<compile_context>
chip_gen: v7x
topology: tpu7x:2x2x1
jax: 0.10.0
libtpu: 0.0.40
codegen_flags: <defaults>
</compile_context>

<pallas_src>
import numpy as np
import jax
import jax.numpy as jnp
from jax.experimental import pallas as pl
from jax.experimental.pallas import tpu as pltpu

# ----------------------- small, deterministic hyper-params -------------------
B = 2
IMG_C, IMG_H, IMG_W = 3, 16, 16          # original: 3 x 224 x 224
T_QST = 8                                # question length
QST_VOCAB = 50
WORD_EMBED = 16
NUM_LAYERS = 2
HIDDEN = 16
EMBED = 32                               # embed_size      (original 1024)
IN_FEATURES = 32                         # ImgEncoder.in_features (original 512)
IMG_SEQ = 16                             # img_seq_size    (original 196)
ATT = 32                                 # att_size        (original 512)
ANS_VOCAB = 10

# conv backbone geometry (stand-in for VGG19 features)
C1, C2, C3 = 8, 16, IN_FEATURES
H2, W2 = IMG_H // 2, IMG_W // 2          # after pool1
H3, W3 = IMG_H // 4, IMG_W // 4          # after pool2

VMEM_SPEC = pl.BlockSpec(memory_space=pltpu.MemorySpace.VMEM)
SMEM_SPEC = pl.BlockSpec(memory_space=pltpu.MemorySpace.SMEM)


# ======================= kernel 1: fused conv backbone =======================
def _conv_taps(x, wbd_ref, nrows):
    """sum_k  x[dy_k : dy_k+nrows, :] @ Wbd[k]   (dx folded into Wbd[k])."""
    acc = jnp.dot(x[0:nrows, :], wbd_ref[0], preferred_element_type=jnp.float32)
    for k in range(1, 9):
        dy = k // 3
        acc = acc + jnp.dot(x[dy:dy + nrows, :], wbd_ref[k],
                            preferred_element_type=jnp.float32)
    return acc


def backbone_kernel(img_ref, wbd1_ref, brow1_ref, sel1_ref,
                    wbd2_ref, brow2_ref, sel2_ref,
                    wbd3_ref, brow3_ref, out_ref, pad_ref):
    s1 = IMG_H + 2
    # ---- place NCHW input planes into a vertically zero-padded VMEM tile ----
    # rows = (image, padded y), lanes = (channel-plane, x)
    pad_ref[...] = jnp.zeros((B * s1, IMG_W * IMG_C), jnp.float32)
    for b in range(B):
        for c in range(IMG_C):
            pad_ref[b * s1 + 1:b * s1 + 1 + IMG_H,
                    c * IMG_W:(c + 1) * IMG_W] = img_ref[b, c]
    x = pad_ref[...]

    # ---- conv1 + ReLU:  (34,48) @ (48,128) x 9 taps -> lanes = (x, c1) ----
    n1 = B * s1 - 2
    v = _conv_taps(x, wbd1_ref, n1)
    v = jnp.maximum(v + brow1_ref[...], 0.0)                       # (34, 128)
    # ---- maxpool 2x2: vertical slice-max, horizontal slice-max, then a 0/1
    #      select-matmul that compacts rows and re-inserts zero pad rows ----
    vm = jnp.maximum(v[0:n1 - 1, :], v[1:n1, :])                   # (33, 128)
    hm = jnp.maximum(vm[:, 0:IMG_W * C1 - C1], vm[:, C1:IMG_W * C1])   # (33,120)
    x2 = jnp.dot(sel1_ref[...], hm, preferred_element_type=jnp.float32)  # (20,120)

    # ---- conv2 + ReLU (horizontal pad / pool compaction folded in Wbd2) ----
    n2 = B * (H2 + 2) - 2
    v = _conv_taps(x2, wbd2_ref, n2)
    v = jnp.maximum(v + brow2_ref[...], 0.0)                       # (18, 128)
    vm = jnp.maximum(v[0:n2 - 1, :], v[1:n2, :])                   # (17, 128)
    hm = jnp.maximum(vm[:, 0:W2 * C2 - C2], vm[:, C2:W2 * C2])     # (17, 112)
    x3 = jnp.dot(sel2_ref[...], hm, preferred_element_type=jnp.float32)  # (12,112)

    # ---- conv3 + ReLU ----
    n3 = B * (H3 + 2) - 2
    v = _conv_taps(x3, wbd3_ref, n3)
    v = jnp.maximum(v + brow3_ref[...], 0.0)                       # (10, 128)

    # valid rows per image: [b*(H3+2), b*(H3+2)+H3)
    for b in range(B):
        out_ref[b * H3:(b + 1) * H3, :] = v[b * (H3 + 2):b * (H3 + 2) + H3, :]


# ================= kernel 2: question/LSTM + img_fc + attention ==============
def head_kernel(qst_ref, dfeat_ref, wv_ref,
                wih1_ref, whh1_ref, bl1_ref, wih2_ref, whh2_ref, bl2_ref,
                wq_ref, bq_ref, wi_ref, bi_ref,
                w11_ref, b11_ref, w12_ref, w22_ref, w13_ref, b13_ref,
                w23_ref, b23_ref, wfc_ref, bfc_ref,
                out_ref, emb_ref, y1_ref, u1_ref, u2_ref):
    f32 = jnp.float32
    Hh = HIDDEN
    S = IMG_SEQ

    # ---------- embedding gather (question indices live in SMEM) ----------
    for t in range(T_QST):
        for b in range(B):
            idx = qst_ref[b, t]
            emb_ref[t * B + b:t * B + b + 1, :] = wv_ref[idx]
    x0 = jnp.tanh(emb_ref[...])                                    # (T*B, WE)

    def _sigmoid(v):                       # tanh form -> EUP, no divide
        return 0.5 * (jnp.tanh(0.5 * v) + 1.0)

    def _lstm(xp, whh, y_ref):
        h = jnp.zeros((B, Hh), f32)
        c = jnp.zeros((B, Hh), f32)
        for t in range(T_QST):
            g = xp[t * B:(t + 1) * B, :] + jnp.dot(
                h, whh, preferred_element_type=f32)
            i_g = _sigmoid(g[:, 0:Hh])
            f_g = _sigmoid(g[:, Hh:2 * Hh])
            g_g = jnp.tanh(g[:, 2 * Hh:3 * Hh])
            o_g = _sigmoid(g[:, 3 * Hh:4 * Hh])
            c = f_g * c + i_g * g_g
            h = o_g * jnp.tanh(c)
            if y_ref is not None:
                y_ref[t * B:(t + 1) * B, :] = h
        return h, c

    # ---------- LSTM layer 1 (input projection hoisted out of the loop) ------
    xp1 = jnp.dot(x0, wih1_ref[...], preferred_element_type=f32) + bl1_ref[...]
    h1, c1 = _lstm(xp1, whh1_ref[...], y1_ref)
    # ---------- LSTM layer 2 (y_seq never materialized, only h/c used) -------
    xp2 = jnp.dot(y1_ref[...], wih2_ref[...],
                  preferred_element_type=f32) + bl2_ref[...]
    h2, c2 = _lstm(xp2, whh2_ref[...], None)

    # ---------- qst_fc: tanh(cat(h1,c1,h2,c2)) @ Wq + bq (concat folded) -----
    wq = wq_ref[...]
    ques = (jnp.dot(jnp.tanh(h1), wq[0 * Hh:1 * Hh, :], preferred_element_type=f32)
            + jnp.dot(jnp.tanh(c1), wq[1 * Hh:2 * Hh, :], preferred_element_type=f32)
            + jnp.dot(jnp.tanh(h2), wq[2 * Hh:3 * Hh, :], preferred_element_type=f32)
            + jnp.dot(jnp.tanh(c2), wq[3 * Hh:4 * Hh, :], preferred_element_type=f32)
            + bq_ref[...])                                         # (B, EMBED)

    # ---------- img_fc + tanh   (TODO(synk): nn.Dropout(0.5) = identity) -----
    img2d = jnp.tanh(jnp.dot(dfeat_ref[...], wi_ref[...],
                             preferred_element_type=f32) + bi_ref[...])  # (B*S, E)

    # ---------- 2-glimpse attention: MXU work batched over B ----------------
    w13 = w13_ref[...]; b13 = b13_ref[...]
    w23 = w23_ref[...]; b23 = b23_ref[...]
    q1_all = jnp.dot(ques, w11_ref[...], preferred_element_type=f32) + b11_ref[...]
    i1_all = jnp.dot(img2d, w12_ref[...], preferred_element_type=f32)   # (B*S, A)
    i2_all = jnp.dot(img2d, w22_ref[...], preferred_element_type=f32)   # (B*S, A)

    def _glimpse(q_row, img_b, i_b, w_s, b_s):
        hmat = jnp.tanh(q_row + i_b)                               # (S, A)
        e = jnp.sum(hmat * w_s, axis=1, keepdims=True) + b_s       # (S, 1)
        e = e - jnp.max(e, axis=0, keepdims=True)
        pmat = jnp.exp(e)
        pmat = pmat * pl.reciprocal(jnp.sum(pmat, axis=0, keepdims=True),
                                    approx=True)
        return jnp.sum(pmat * img_b, axis=0, keepdims=True)        # (1, E)

    for b in range(B):
        img_b = img2d[b * S:(b + 1) * S, :]
        att1 = _glimpse(q1_all[b:b + 1, :], img_b,
                        i1_all[b * S:(b + 1) * S, :], w13, b13)
        u1_ref[b:b + 1, :] = ques[b:b + 1, :] + att1
    u1 = u1_ref[...]
    q2_all = jnp.dot(u1, w12_ref[...], preferred_element_type=f32)  # fc1_2a reuse
    for b in range(B):
        img_b = img2d[b * S:(b + 1) * S, :]
        att2 = _glimpse(q2_all[b:b + 1, :], img_b,
                        i2_all[b * S:(b + 1) * S, :], w23, b23)
        u2_ref[b:b + 1, :] = u1[b:b + 1, :] + att2

    out_ref[...] = (jnp.dot(u2_ref[...], wfc_ref[...],
                            preferred_element_type=f32) + bfc_ref[...])


# ----------------------------- parameter setup --------------------------------
class KeyGen:
    def __init__(self, key):
        self.key = key

    def __call__(self):
        self.key, sub = jax.random.split(self.key)
        return sub


def _uniform(kg, shape, fan_in):
    k = 1.0 / (fan_in ** 0.5)
    return jax.random.uniform(kg(), shape, jnp.float32, -k, k)


def _expand_conv_first(w):
    """w:(3,3,Cin,Cout) -> 9 block-diag taps (Cin*W, W*Cout).
    Input lanes = (plane c, x); output lanes = (x, cout); horizontal pad folded."""
    w = np.asarray(w, np.float32)
    cin, cout = w.shape[2], w.shape[3]
    out = np.zeros((9, cin * IMG_W, IMG_W * cout), np.float32)
    for dy in range(3):
        for dx in range(3):
            k = dy * 3 + dx
            for xo in range(IMG_W):
                xi = xo + dx - 1
                if 0 <= xi < IMG_W:
                    for ci in range(cin):
                        out[k, ci * IMG_W + xi, xo * cout:(xo + 1) * cout] = w[dy, dx, ci]
    return jnp.asarray(out)


def _expand_conv_pooled(w, w_out, groups_in):
    """Conv after an (uncompacted) 2x2 pool: valid input groups sit at even x.
    Pool compaction + horizontal padding are folded into the weight."""
    w = np.asarray(w, np.float32)
    cin, cout = w.shape[2], w.shape[3]
    out = np.zeros((9, groups_in * cin, w_out * cout), np.float32)
    for dy in range(3):
        for dx in range(3):
            k = dy * 3 + dx
            for xo in range(w_out):
                xi = xo + dx - 1
                if 0 <= xi < w_out:
                    g = 2 * xi
                    out[k, g * cin:(g + 1) * cin, xo * cout:(xo + 1) * cout] = w[dy, dx]
    return jnp.asarray(out)


def _pool_select(h_out, src_img_stride, n_src_rows):
    """0/1 matrix: pooled row (b,y) <- source row b*stride + 2y, written into
    the vertically padded frame row b*(h_out+2)+1+y (pad rows stay zero)."""
    sel = np.zeros((B * (h_out + 2), n_src_rows), np.float32)
    for b in range(B):
        for y in range(h_out):
            sel[b * (h_out + 2) + 1 + y, b * src_img_stride + 2 * y] = 1.0
    return jnp.asarray(sel)


def init_params(seed=0):
    kg = KeyGen(jax.random.PRNGKey(seed))
    p = {}
    # ImgEncoder backbone.
    # TODO(synk): pretrained VGG19 features cannot be loaded; a small
    # deterministic VGG-style conv3x3+ReLU(+maxpool) stack stands in for it.
    raw = []
    for cin, cout in [(IMG_C, C1), (C1, C2), (C2, C3)]:
        raw.append((_uniform(kg, (3, 3, cin, cout), 9 * cin),       # HWIO
                    _uniform(kg, (cout,), 9 * cin)))
    (w1, b1), (w2, b2), (w3, b3) = raw
    p["wbd1"] = _expand_conv_first(w1)                               # (9, 48, 128)
    p["brow1"] = jnp.asarray(np.tile(np.asarray(b1), IMG_W)[None, :])
    p["wbd2"] = _expand_conv_pooled(w2, W2, 2 * W2 - 1)              # (9, 120, 128)
    p["brow2"] = jnp.asarray(np.tile(np.asarray(b2), W2)[None, :])
    p["wbd3"] = _expand_conv_pooled(w3, W3, 2 * W3 - 1)              # (9, 112, 128)
    p["brow3"] = jnp.asarray(np.tile(np.asarray(b3), W3)[None, :])
    p["sel1"] = _pool_select(H2, IMG_H + 2, B * (IMG_H + 2) - 3)     # (20, 33)
    p["sel2"] = _pool_select(H3, H2 + 2, B * (H2 + 2) - 3)           # (12, 17)

    p["img_fc_wT"] = _uniform(kg, (IN_FEATURES, EMBED), IN_FEATURES)
    p["img_fc_b"] = _uniform(kg, (1, EMBED), IN_FEATURES)

    # QstEncoder (word2vec stored with a leading gather dim for in-kernel lookup)
    p["word2vec"] = jax.random.normal(kg(), (QST_VOCAB, 1, WORD_EMBED), jnp.float32)
    p["lstm"] = []
    for layer in range(NUM_LAYERS):
        in_sz = WORD_EMBED if layer == 0 else HIDDEN
        w_ih = _uniform(kg, (4 * HIDDEN, in_sz), HIDDEN)
        w_hh = _uniform(kg, (4 * HIDDEN, HIDDEN), HIDDEN)
        b_ih = _uniform(kg, (4 * HIDDEN,), HIDDEN)
        b_hh = _uniform(kg, (4 * HIDDEN,), HIDDEN)
        p["lstm"].append({"w_ih_T": w_ih.T, "w_hh_T": w_hh.T,
                          "bias": (b_ih + b_hh).reshape(1, 4 * HIDDEN)})
    p["qst_fc_wT"] = _uniform(kg, (2 * NUM_LAYERS * HIDDEN, EMBED),
                              2 * NUM_LAYERS * HIDDEN)
    p["qst_fc_b"] = _uniform(kg, (1, EMBED), 2 * NUM_LAYERS * HIDDEN)

    # Attention (weights stored pre-transposed: (in, out))
    p["att"] = {
        "w11T": _uniform(kg, (EMBED, ATT), EMBED), "b11": _uniform(kg, (1, ATT), EMBED),
        "w12T": _uniform(kg, (EMBED, ATT), EMBED),                 # fc1_2a, no bias
        "w13": _uniform(kg, (1, ATT), ATT), "b13": _uniform(kg, (1, 1), ATT),
        # fc2_1a exists in the reference module but is never used in forward()
        # (kept here as dead params; NOT passed into any kernel):
        "w21T": _uniform(kg, (EMBED, ATT), EMBED), "b21": _uniform(kg, (1, ATT), EMBED),
        "w22T": _uniform(kg, (EMBED, ATT), EMBED),                 # fc2_2a, no bias
        "w23": _uniform(kg, (1, ATT), ATT), "b23": _uniform(kg, (1, 1), ATT),
        "wfcT": _uniform(kg, (EMBED, ANS_VOCAB), EMBED),
        "bfc": _uniform(kg, (1, ANS_VOCAB), EMBED),
    }
    return p


# ------------------------------- forward pass ---------------------------------
def vqa_forward(img, qst, p):
    # ---- kernel 1: fused conv backbone (all intermediates in VMEM) ----
    feat = pl.pallas_call(
        backbone_kernel,
        out_shape=jax.ShapeDtypeStruct((B * H3, W3 * C3), jnp.float32),
        in_specs=[VMEM_SPEC] * 9,
        out_specs=VMEM_SPEC,
        scratch_shapes=[pltpu.VMEM((B * (IMG_H + 2), IMG_W * IMG_C), jnp.float32)],
    )(img, p["wbd1"], p["brow1"], p["sel1"],
      p["wbd2"], p["brow2"], p["sel2"], p["wbd3"], p["brow3"])

    # PyTorch: .view(-1, in_features) on the NCHW tensor (channel/spatial-mixing
    # reshape) -- tiny layout glue between the two fused kernels.
    f = feat.reshape(B, H3, W3, C3)                       # rows (b,h), lanes (w,c)
    dfeat = jnp.transpose(f, (0, 3, 1, 2)).reshape(B * IMG_SEQ, IN_FEATURES)

    # ---- kernel 2: embedding + LSTM + qst_fc + img_fc + attention ----
    out = pl.pallas_call(
        head_kernel,
        out_shape=jax.ShapeDtypeStruct((B, ANS_VOCAB), jnp.float32),
        in_specs=[SMEM_SPEC] + [VMEM_SPEC] * 22,
        out_specs=VMEM_SPEC,
        scratch_shapes=[
            pltpu.VMEM((T_QST * B, WORD_EMBED), jnp.float32),   # tanh(embeddings)
            pltpu.VMEM((T_QST * B, HIDDEN), jnp.float32),       # layer-1 h sequence
            pltpu.VMEM((B, EMBED), jnp.float32),                # u1
            pltpu.VMEM((B, EMBED), jnp.float32),                # u2
        ],
    )(qst, dfeat, p["word2vec"],
      p["lstm"][0]["w_ih_T"], p["lstm"][0]["w_hh_T"], p["lstm"][0]["bias"],
      p["lstm"][1]["w_ih_T"], p["lstm"][1]["w_hh_T"], p["lstm"][1]["bias"],
      p["qst_fc_wT"], p["qst_fc_b"], p["img_fc_wT"], p["img_fc_b"],
      p["att"]["w11T"], p["att"]["b11"], p["att"]["w12T"], p["att"]["w22T"],
      p["att"]["w13"], p["att"]["b13"], p["att"]["w23"], p["att"]["b23"],
      p["att"]["wfcT"], p["att"]["bfc"])
    return out


# ----------------------------------- main --------------------------------------
if __name__ == "__main__":
    params = init_params(0)
    key = jax.random.PRNGKey(0)
    k_img, k_qst = jax.random.split(key)
    img = jax.random.normal(k_img, (B, IMG_C, IMG_H, IMG_W), jnp.float32)
    qst = jax.random.randint(k_qst, (B, T_QST), 0, QST_VOCAB, jnp.int32)

    out = jax.jit(vqa_forward)(img, qst, params)
    out = jax.block_until_ready(out)
    assert out.shape == (B, ANS_VOCAB) and out.dtype == jnp.float32
    assert bool(jnp.all(jnp.isfinite(out)))
    print("KERNEL_OK")
</pallas_src>

<mosaic_0001>
module attributes {stable_mosaic.version = 11 : i64} {
  func.func @backbone_kernel(%arg0: memref<2x3x16x16xf32, #tpu.memory_space<vmem>>, %arg1: memref<9x48x128xf32, #tpu.memory_space<vmem>>, %arg2: memref<1x128xf32, #tpu.memory_space<vmem>>, %arg3: memref<20x33xf32, #tpu.memory_space<vmem>>, %arg4: memref<9x120x128xf32, #tpu.memory_space<vmem>>, %arg5: memref<1x128xf32, #tpu.memory_space<vmem>>, %arg6: memref<12x17xf32, #tpu.memory_space<vmem>>, %arg7: memref<9x112x128xf32, #tpu.memory_space<vmem>>, %arg8: memref<1x128xf32, #tpu.memory_space<vmem>>, %arg9: memref<8x128xf32, #tpu.memory_space<vmem>>, %arg10: memref<36x48xf32, #tpu.memory_space<vmem>>) attributes {dimension_semantics = [], scalar_prefetch = 0 : i64, scratch_operands = 1 : i64, tpu.core_type = #tpu.core_type<tc>} {
    %cst = arith.constant 0.000000e+00 : f32
    %0 = vector.broadcast %cst : f32 to vector<36x48xf32>
    %c0 = arith.constant 0 : index
    %c0_0 = arith.constant 0 : index
    %1 = vector.load %arg10[%c0, %c0_0] : memref<36x48xf32, #tpu.memory_space<vmem>>, vector<36x48xf32>
    tpu.vector_store %arg10[%c0, %c0_0], %0 {strides = array<i32>} : memref<36x48xf32, #tpu.memory_space<vmem>>, vector<36x48xf32>,
    %c0_1 = arith.constant 0 : index
    %c0_2 = arith.constant 0 : index
    %c0_3 = arith.constant 0 : index
    %c0_4 = arith.constant 0 : index
    %2 = vector.load %arg0[%c0_1, %c0_2, %c0_3, %c0_4] : memref<2x3x16x16xf32, #tpu.memory_space<vmem>>, vector<1x1x16x16xf32>
    %3 = vector.shape_cast %2 : vector<1x1x16x16xf32> to vector<16x16xf32>
    %c1 = arith.constant 1 : index
    %c0_5 = arith.constant 0 : index
    %4 = vector.load %arg10[%c1, %c0_5] : memref<36x48xf32, #tpu.memory_space<vmem>>, vector<16x16xf32>
    tpu.vector_store %arg10[%c1, %c0_5], %3 {strides = array<i32>} : memref<36x48xf32, #tpu.memory_space<vmem>>, vector<16x16xf32>,
    %c0_6 = arith.constant 0 : index
    %c1_7 = arith.constant 1 : index
    %c0_8 = arith.constant 0 : index
    %c0_9 = arith.constant 0 : index
    %5 = vector.load %arg0[%c0_6, %c1_7, %c0_8, %c0_9] : memref<2x3x16x16xf32, #tpu.memory_space<vmem>>, vector<1x1x16x16xf32>
    %6 = vector.shape_cast %5 : vector<1x1x16x16xf32> to vector<16x16xf32>
    %c1_10 = arith.constant 1 : index
    %c16 = arith.constant 16 : index
    %7 = vector.load %arg10[%c1_10, %c16] : memref<36x48xf32, #tpu.memory_space<vmem>>, vector<16x16xf32>
    tpu.vector_store %arg10[%c1_10, %c16], %6 {strides = array<i32>} : memref<36x48xf32, #tpu.memory_space<vmem>>, vector<16x16xf32>,
    %c0_11 = arith.constant 0 : index
    %c2 = arith.constant 2 : index
    %c0_12 = arith.constant 0 : index
    %c0_13 = arith.constant 0 : index
    %8 = vector.load %arg0[%c0_11, %c2, %c0_12, %c0_13] : memref<2x3x16x16xf32, #tpu.memory_space<vmem>>, vector<1x1x16x16xf32>
    %9 = vector.shape_cast %8 : vector<1x1x16x16xf32> to vector<16x16xf32>
    %c1_14 = arith.constant 1 : index
    %c32 = arith.constant 32 : index
    %10 = vector.load %arg10[%c1_14, %c32] : memref<36x48xf32, #tpu.memory_space<vmem>>, vector<16x16xf32>
    tpu.vector_store %arg10[%c1_14, %c32], %9 {strides = array<i32>} : memref<36x48xf32, #tpu.memory_space<vmem>>, vector<16x16xf32>,
    %c1_15 = arith.constant 1 : index
    %c0_16 = arith.constant 0 : index
    %c0_17 = arith.constant 0 : index
    %c0_18 = arith.constant 0 : index
    %11 = vector.load %arg0[%c1_15, %c0_16, %c0_17, %c0_18] : memref<2x3x16x16xf32, #tpu.memory_space<vmem>>, vector<1x1x16x16xf32>
    %12 = vector.shape_cast %11 : vector<1x1x16x16xf32> to vector<16x16xf32>
    %c19 = arith.constant 19 : index
    %c0_19 = arith.constant 0 : index
    %13 = vector.load %arg10[%c19, %c0_19] : memref<36x48xf32, #tpu.memory_space<vmem>>, vector<16x16xf32>
    tpu.vector_store %arg10[%c19, %c0_19], %12 {strides = array<i32>} : memref<36x48xf32, #tpu.memory_space<vmem>>, vector<16x16xf32>,
    %c1_20 = arith.constant 1 : index
    %c1_21 = arith.constant 1 : index
    %c0_22 = arith.constant 0 : index
    %c0_23 = arith.constant 0 : index
    %14 = vector.load %arg0[%c1_20, %c1_21, %c0_22, %c0_23] : memref<2x3x16x16xf32, #tpu.memory_space<vmem>>, vector<1x1x16x16xf32>
    %15 = vector.shape_cast %14 : vector<1x1x16x16xf32> to vector<16x16xf32>
    %c19_24 = arith.constant 19 : index
    %c16_25 = arith.constant 16 : index
    %16 = vector.load %arg10[%c19_24, %c16_25] : memref<36x48xf32, #tpu.memory_space<vmem>>, vector<16x16xf32>
    tpu.vector_store %arg10[%c19_24, %c16_25], %15 {strides = array<i32>} : memref<36x48xf32, #tpu.memory_space<vmem>>, vector<16x16xf32>,
    %c1_26 = arith.constant 1 : index
    %c2_27 = arith.constant 2 : index
    %c0_28 = arith.constant 0 : index
    %c0_29 = arith.constant 0 : index
    %17 = vector.load %arg0[%c1_26, %c2_27, %c0_28, %c0_29] : memref<2x3x16x16xf32, #tpu.memory_space<vmem>>, vector<1x1x16x16xf32>
    %18 = vector.shape_cast %17 : vector<1x1x16x16xf32> to vector<16x16xf32>
    %c19_30 = arith.constant 19 : index
    %c32_31 = arith.constant 32 : index
    %19 = vector.load %arg10[%c19_30, %c32_31] : memref<36x48xf32, #tpu.memory_space<vmem>>, vector<16x16xf32>
    tpu.vector_store %arg10[%c19_30, %c32_31], %18 {strides = array<i32>} : memref<36x48xf32, #tpu.memory_space<vmem>>, vector<16x16xf32>,
    %c0_32 = arith.constant 0 : index
    %c0_33 = arith.constant 0 : index
    %20 = vector.load %arg10[%c0_32, %c0_33] : memref<36x48xf32, #tpu.memory_space<vmem>>, vector<36x48xf32>
    %21 = vector.extract_strided_slice %20 {offsets = [0, 0], sizes = [34, 48], strides = [1, 1]} : vector<36x48xf32> to vector<34x48xf32>
    %c0_34 = arith.constant 0 : index
    %c0_35 = arith.constant 0 : index
    %c0_36 = arith.constant 0 : index
    %22 = vector.load %arg1[%c0_34, %c0_35, %c0_36] : memref<9x48x128xf32, #tpu.memory_space<vmem>>, vector<1x48x128xf32>
    %23 = vector.shape_cast %22 : vector<1x48x128xf32> to vector<48x128xf32>
    %cst_37 = arith.constant dense<0.000000e+00> : vector<34x128xf32>
    %24 = tpu.matmul %21, %23, %cst_37 {dimension_numbers = #tpu.dot_dimension_numbers<[1], [0], [0], [1], [0, 0, 1, 1], [], []>} : vector<34x48xf32>, vector<48x128xf32>, vector<34x128xf32> -> vector<34x128xf32>
    %25 = vector.extract_strided_slice %20 {offsets = [0, 0], sizes = [34, 48], strides = [1, 1]} : vector<36x48xf32> to vector<34x48xf32>
    %c1_38 = arith.constant 1 : index
    %c0_39 = arith.constant 0 : index
    %c0_40 = arith.constant 0 : index
    %26 = vector.load %arg1[%c1_38, %c0_39, %c0_40] : memref<9x48x128xf32, #tpu.memory_space<vmem>>, vector<1x48x128xf32>
    %27 = vector.shape_cast %26 : vector<1x48x128xf32> to vector<48x128xf32>
    %cst_41 = arith.constant dense<0.000000e+00> : vector<34x128xf32>
    %28 = tpu.matmul %25, %27, %cst_41 {dimension_numbers = #tpu.dot_dimension_numbers<[1], [0], [0], [1], [0, 0, 1, 1], [], []>} : vector<34x48xf32>, vector<48x128xf32>, vector<34x128xf32> -> vector<34x128xf32>
    %29 = arith.addf %24, %28 : vector<34x128xf32>
    %30 = vector.extract_strided_slice %20 {offsets = [0, 0], sizes = [34, 48], strides = [1, 1]} : vector<36x48xf32> to vector<34x48xf32>
    %c2_42 = arith.constant 2 : index
    %c0_43 = arith.constant 0 : index
    %c0_44 = arith.constant 0 : index
    %31 = vector.load %arg1[%c2_42, %c0_43, %c0_44] : memref<9x48x128xf32, #tpu.memory_space<vmem>>, vector<1x48x128xf32>
    %32 = vector.shape_cast %31 : vector<1x48x128xf32> to vector<48x128xf32>
    %cst_45 = arith.constant dense<0.000000e+00> : vector<34x128xf32>
    %33 = tpu.matmul %30, %32, %cst_45 {dimension_numbers = #tpu.dot_dimension_numbers<[1], [0], [0], [1], [0, 0, 1, 1], [], []>} : vector<34x48xf32>, vector<48x128xf32>, vector<34x128xf32> -> vector<34x128xf32>
    %34 = arith.addf %29, %33 : vector<34x128xf32>
    %35 = vector.extract_strided_slice %20 {offsets = [1, 0], sizes = [34, 48], strides = [1, 1]} : vector<36x48xf32> to vector<34x48xf32>
    %c3 = arith.constant 3 : index
    %c0_46 = arith.constant 0 : index
    %c0_47 = arith.constant 0 : index
    %36 = vector.load %arg1[%c3, %c0_46, %c0_47] : memref<9x48x128xf32, #tpu.memory_space<vmem>>, vector<1x48x128xf32>
    %37 = vector.shape_cast %36 : vector<1x48x128xf32> to vector<48x128xf32>
    %cst_48 = arith.constant dense<0.000000e+00> : vector<34x128xf32>
    %38 = tpu.matmul %35, %37, %cst_48 {dimension_numbers = #tpu.dot_dimension_numbers<[1], [0], [0], [1], [0, 0, 1, 1], [], []>} : vector<34x48xf32>, vector<48x128xf32>, vector<34x128xf32> -> vector<34x128xf32>
    %39 = arith.addf %34, %38 : vector<34x128xf32>
    %40 = vector.extract_strided_slice %20 {offsets = [1, 0], sizes = [34, 48], strides = [1, 1]} : vector<36x48xf32> to vector<34x48xf32>
    %c4 = arith.constant 4 : index
    %c0_49 = arith.constant 0 : index
    %c0_50 = arith.constant 0 : index
    %41 = vector.load %arg1[%c4, %c0_49, %c0_50] : memref<9x48x128xf32, #tpu.memory_space<vmem>>, vector<1x48x128xf32>
    %42 = vector.shape_cast %41 : vector<1x48x128xf32> to vector<48x128xf32>
    %cst_51 = arith.constant dense<0.000000e+00> : vector<34x128xf32>
    %43 = tpu.matmul %40, %42, %cst_51 {dimension_numbers = #tpu.dot_dimension_numbers<[1], [0], [0], [1], [0, 0, 1, 1], [], []>} : vector<34x48xf32>, vector<48x128xf32>, vector<34x128xf32> -> vector<34x128xf32>
    %44 = arith.addf %39, %43 : vector<34x128xf32>
    %45 = vector.extract_strided_slice %20 {offsets = [1, 0], sizes = [34, 48], strides = [1, 1]} : vector<36x48xf32> to vector<34x48xf32>
    %c5 = arith.constant 5 : index
    %c0_52 = arith.constant 0 : index
    %c0_53 = arith.constant 0 : index
    %46 = vector.load %arg1[%c5, %c0_52, %c0_53] : memref<9x48x128xf32, #tpu.memory_space<vmem>>, vector<1x48x128xf32>
    %47 = vector.shape_cast %46 : vector<1x48x128xf32> to vector<48x128xf32>
    %cst_54 = arith.constant dense<0.000000e+00> : vector<34x128xf32>
    %48 = tpu.matmul %45, %47, %cst_54 {dimension_numbers = #tpu.dot_dimension_numbers<[1], [0], [0], [1], [0, 0, 1, 1], [], []>} : vector<34x48xf32>, vector<48x128xf32>, vector<34x128xf32> -> vector<34x128xf32>
    %49 = arith.addf %44, %48 : vector<34x128xf32>
    %50 = vector.extract_strided_slice %20 {offsets = [2, 0], sizes = [34, 48], strides = [1, 1]} : vector<36x48xf32> to vector<34x48xf32>
    %c6 = arith.constant 6 : index
    %c0_55 = arith.constant 0 : index
    %c0_56 = arith.constant 0 : index
    %51 = vector.load %arg1[%c6, %c0_55, %c0_56] : memref<9x48x128xf32, #tpu.memory_space<vmem>>, vector<1x48x128xf32>
    %52 = vector.shape_cast %51 : vector<1x48x128xf32> to vector<48x128xf32>
    %cst_57 = arith.constant dense<0.000000e+00> : vector<34x128xf32>
    %53 = tpu.matmul %50, %52, %cst_57 {dimension_numbers = #tpu.dot_dimension_numbers<[1], [0], [0], [1], [0, 0, 1, 1], [], []>} : vector<34x48xf32>, vector<48x128xf32>, vector<34x128xf32> -> vector<34x128xf32>
    %54 = arith.addf %49, %53 : vector<34x128xf32>
    %55 = vector.extract_strided_slice %20 {offsets = [2, 0], sizes = [34, 48], strides = [1, 1]} : vector<36x48xf32> to vector<34x48xf32>
    %c7 = arith.constant 7 : index
    %c0_58 = arith.constant 0 : index
    %c0_59 = arith.constant 0 : index
    %56 = vector.load %arg1[%c7, %c0_58, %c0_59] : memref<9x48x128xf32, #tpu.memory_space<vmem>>, vector<1x48x128xf32>
    %57 = vector.shape_cast %56 : vector<1x48x128xf32> to vector<48x128xf32>
    %cst_60 = arith.constant dense<0.000000e+00> : vector<34x128xf32>
    %58 = tpu.matmul %55, %57, %cst_60 {dimension_numbers = #tpu.dot_dimension_numbers<[1], [0], [0], [1], [0, 0, 1, 1], [], []>} : vector<34x48xf32>, vector<48x128xf32>, vector<34x128xf32> -> vector<34x128xf32>
    %59 = arith.addf %54, %58 : vector<34x128xf32>
    %60 = vector.extract_strided_slice %20 {offsets = [2, 0], sizes = [34, 48], strides = [1, 1]} : vector<36x48xf32> to vector<34x48xf32>
    %c8 = arith.constant 8 : index
    %c0_61 = arith.constant 0 : index
    %c0_62 = arith.constant 0 : index
    %61 = vector.load %arg1[%c8, %c0_61, %c0_62] : memref<9x48x128xf32, #tpu.memory_space<vmem>>, vector<1x48x128xf32>
    %62 = vector.shape_cast %61 : vector<1x48x128xf32> to vector<48x128xf32>
    %cst_63 = arith.constant dense<0.000000e+00> : vector<34x128xf32>
    %63 = tpu.matmul %60, %62, %cst_63 {dimension_numbers = #tpu.dot_dimension_numbers<[1], [0], [0], [1], [0, 0, 1, 1], [], []>} : vector<34x48xf32>, vector<48x128xf32>, vector<34x128xf32> -> vector<34x128xf32>
    %64 = arith.addf %59, %63 : vector<34x128xf32>
    %c0_64 = arith.constant 0 : index
    %c0_65 = arith.constant 0 : index
    %65 = vector.load %arg2[%c0_64, %c0_65] : memref<1x128xf32, #tpu.memory_space<vmem>>, vector<1x128xf32>
    %66 = vector.broadcast %65 : vector<1x128xf32> to vector<34x128xf32>
    %67 = arith.addf %64, %66 : vector<34x128xf32>
    %cst_66 = arith.constant 0.000000e+00 : f32
    %68 = vector.broadcast %cst_66 : f32 to vector<34x128xf32>
    %69 = arith.maximumf %67, %68 : vector<34x128xf32>
    %70 = vector.extract_strided_slice %69 {offsets = [0, 0], sizes = [33, 128], strides = [1, 1]} : vector<34x128xf32> to vector<33x128xf32>
    %71 = vector.extract_strided_slice %69 {offsets = [1, 0], sizes = [33, 128], strides = [1, 1]} : vector<34x128xf32> to vector<33x128xf32>
    %72 = arith.maximumf %70, %71 : vector<33x128xf32>
    %73 = vector.extract_strided_slice %72 {offsets = [0, 0], sizes = [33, 120], strides = [1, 1]} : vector<33x128xf32> to vector<33x120xf32>
    %74 = vector.extract_strided_slice %72 {offsets = [0, 8], sizes = [33, 120], strides = [1, 1]} : vector<33x128xf32> to vector<33x120xf32>
    %75 = arith.maximumf %73, %74 : vector<33x120xf32>
    %c0_67 = arith.constant 0 : index
    %c0_68 = arith.constant 0 : index
    %76 = vector.load %arg3[%c0_67, %c0_68] : memref<20x33xf32, #tpu.memory_space<vmem>>, vector<20x33xf32>
    %cst_69 = arith.constant dense<0.000000e+00> : vector<20x120xf32>
    %77 = tpu.matmul %76, %75, %cst_69 {dimension_numbers = #tpu.dot_dimension_numbers<[1], [0], [0], [1], [0, 0, 1, 1], [], []>} : vector<20x33xf32>, vector<33x120xf32>, vector<20x120xf32> -> vector<20x120xf32>
    %78 = vector.extract_strided_slice %77 {offsets = [0, 0], sizes = [18, 120], strides = [1, 1]} : vector<20x120xf32> to vector<18x120xf32>
    %c0_70 = arith.constant 0 : index
    %c0_71 = arith.constant 0 : index
    %c0_72 = arith.constant 0 : index
    %79 = vector.load %arg4[%c0_70, %c0_71, %c0_72] : memref<9x120x128xf32, #tpu.memory_space<vmem>>, vector<1x120x128xf32>
    %80 = vector.shape_cast %79 : vector<1x120x128xf32> to vector<120x128xf32>
    %cst_73 = arith.constant dense<0.000000e+00> : vector<18x128xf32>
    %81 = tpu.matmul %78, %80, %cst_73 {dimension_numbers = #tpu.dot_dimension_numbers<[1], [0], [0], [1], [0, 0, 1, 1], [], []>} : vector<18x120xf32>, vector<120x128xf32>, vector<18x128xf32> -> vector<18x128xf32>
    %82 = vector.extract_strided_slice %77 {offsets = [0, 0], sizes = [18, 120], strides = [1, 1]} : vector<20x120xf32> to vector<18x120xf32>
    %c1_74 = arith.constant 1 : index
    %c0_75 = arith.constant 0 : index
    %c0_76 = arith.constant 0 : index
    %83 = vector.load %arg4[%c1_74, %c0_75, %c0_76] : memref<9x120x128xf32, #tpu.memory_space<vmem>>, vector<1x120x128xf32>
    %84 = vector.shape_cast %83 : vector<1x120x128xf32> to vector<120x128xf32>
    %cst_77 = arith.constant dense<0.000000e+00> : vector<18x128xf32>
    %85 = tpu.matmul %82, %84, %cst_77 {dimension_numbers = #tpu.dot_dimension_numbers<[1], [0], [0], [1], [0, 0, 1, 1], [], []>} : vector<18x120xf32>, vector<120x128xf32>, vector<18x128xf32> -> vector<18x128xf32>
    %86 = arith.addf %81, %85 : vector<18x128xf32>
    %87 = vector.extract_strided_slice %77 {offsets = [0, 0], sizes = [18, 120], strides = [1, 1]} : vector<20x120xf32> to vector<18x120xf32>
    %c2_78 = arith.constant 2 : index
    %c0_79 = arith.constant 0 : index
    %c0_80 = arith.constant 0 : index
    %88 = vector.load %arg4[%c2_78, %c0_79, %c0_80] : memref<9x120x128xf32, #tpu.memory_space<vmem>>, vector<1x120x128xf32>
    %89 = vector.shape_cast %88 : vector<1x120x128xf32> to vector<120x128xf32>
    %cst_81 = arith.constant dense<0.000000e+00> : vector<18x128xf32>
    %90 = tpu.matmul %87, %89, %cst_81 {dimension_numbers = #tpu.dot_dimension_numbers<[1], [0], [0], [1], [0, 0, 1, 1], [], []>} : vector<18x120xf32>, vector<120x128xf32>, vector<18x128xf32> -> vector<18x128xf32>
    %91 = arith.addf %86, %90 : vector<18x128xf32>
    %92 = vector.extract_strided_slice %77 {offsets = [1, 0], sizes = [18, 120], strides = [1, 1]} : vector<20x120xf32> to vector<18x120xf32>
    %c3_82 = arith.constant 3 : index
    %c0_83 = arith.constant 0 : index
    %c0_84 = arith.constant 0 : index
    %93 = vector.load %arg4[%c3_82, %c0_83, %c0_84] : memref<9x120x128xf32, #tpu.memory_space<vmem>>, vector<1x120x128xf32>
    %94 = vector.shape_cast %93 : vector<1x120x128xf32> to vector<120x128xf32>
    %cst_85 = arith.constant dense<0.000000e+00> : vector<18x128xf32>
    %95 = tpu.matmul %92, %94, %cst_85 {dimension_numbers = #tpu.dot_dimension_numbers<[1], [0], [0], [1], [0, 0, 1, 1], [], []>} : vector<18x120xf32>, vector<120x128xf32>, vector<18x128xf32> -> vector<18x128xf32>
    %96 = arith.addf %91, %95 : vector<18x128xf32>
    %97 = vector.extract_strided_slice %77 {offsets = [1, 0], sizes = [18, 120], strides = [1, 1]} : vector<20x120xf32> to vector<18x120xf32>
    %c4_86 = arith.constant 4 : index
    %c0_87 = arith.constant 0 : index
    %c0_88 = arith.constant 0 : index
    %98 = vector.load %arg4[%c4_86, %c0_87, %c0_88] : memref<9x120x128xf32, #tpu.memory_space<vmem>>, vector<1x120x128xf32>
    %99 = vector.shape_cast %98 : vector<1x120x128xf32> to vector<120x128xf32>
    %cst_89 = arith.constant dense<0.000000e+00> : vector<18x128xf32>
    %100 = tpu.matmul %97, %99, %cst_89 {dimension_numbers = #tpu.dot_dimension_numbers<[1], [0], [0], [1], [0, 0, 1, 1], [], []>} : vector<18x120xf32>, vector<120x128xf32>, vector<18x128xf32> -> vector<18x128xf32>
    %101 = arith.addf %96, %100 : vector<18x128xf32>
    %102 = vector.extract_strided_slice %77 {offsets = [1, 0], sizes = [18, 120], strides = [1, 1]} : vector<20x120xf32> to vector<18x120xf32>
    %c5_90 = arith.constant 5 : index
    %c0_91 = arith.constant 0 : index
    %c0_92 = arith.constant 0 : index
    %103 = vector.load %arg4[%c5_90, %c0_91, %c0_92] : memref<9x120x128xf32, #tpu.memory_space<vmem>>, vector<1x120x128xf32>
    %104 = vector.shape_cast %103 : vector<1x120x128xf32> to vector<120x128xf32>
    %cst_93 = arith.constant dense<0.000000e+00> : vector<18x128xf32>
    %105 = tpu.matmul %102, %104, %cst_93 {dimension_numbers = #tpu.dot_dimension_numbers<[1], [0], [0], [1], [0, 0, 1, 1], [], []>} : vector<18x120xf32>, vector<120x128xf32>, vector<18x128xf32> -> vector<18x128xf32>
    %106 = arith.addf %101, %105 : vector<18x128xf32>
    %107 = vector.extract_strided_slice %77 {offsets = [2, 0], sizes = [18, 120], strides = [1, 1]} : vector<20x120xf32> to vector<18x120xf32>
    %c6_94 = arith.constant 6 : index
    %c0_95 = arith.constant 0 : index
    %c0_96 = arith.constant 0 : index
    %108 = vector.load %arg4[%c6_94, %c0_95, %c0_96] : memref<9x120x128xf32, #tpu.memory_space<vmem>>, vector<1x120x128xf32>
    %109 = vector.shape_cast %108 : vector<1x120x128xf32> to vector<120x128xf32>
    %cst_97 = arith.constant dense<0.000000e+00> : vector<18x128xf32>
    %110 = tpu.matmul %107, %109, %cst_97 {dimension_numbers = #tpu.dot_dimension_numbers<[1], [0], [0], [1], [0, 0, 1, 1], [], []>} : vector<18x120xf32>, vector<120x128xf32>, vector<18x128xf32> -> vector<18x128xf32>
    %111 = arith.addf %106, %110 : vector<18x128xf32>
    %112 = vector.extract_strided_slice %77 {offsets = [2, 0], sizes = [18, 120], strides = [1, 1]} : vector<20x120xf32> to vector<18x120xf32>
    %c7_98 = arith.constant 7 : index
    %c0_99 = arith.constant 0 : index
    %c0_100 = arith.constant 0 : index
    %113 = vector.load %arg4[%c7_98, %c0_99, %c0_100] : memref<9x120x128xf32, #tpu.memory_space<vmem>>, vector<1x120x128xf32>
    %114 = vector.shape_cast %113 : vector<1x120x128xf32> to vector<120x128xf32>
    %cst_101 = arith.constant dense<0.000000e+00> : vector<18x128xf32>
    %115 = tpu.matmul %112, %114, %cst_101 {dimension_numbers = #tpu.dot_dimension_numbers<[1], [0], [0], [1], [0, 0, 1, 1], [], []>} : vector<18x120xf32>, vector<120x128xf32>, vector<18x128xf32> -> vector<18x128xf32>
    %116 = arith.addf %111, %115 : vector<18x128xf32>
    %117 = vector.extract_strided_slice %77 {offsets = [2, 0], sizes = [18, 120], strides = [1, 1]} : vector<20x120xf32> to vector<18x120xf32>
    %c8_102 = arith.constant 8 : index
    %c0_103 = arith.constant 0 : index
    %c0_104 = arith.constant 0 : index
    %118 = vector.load %arg4[%c8_102, %c0_103, %c0_104] : memref<9x120x128xf32, #tpu.memory_space<vmem>>, vector<1x120x128xf32>
    %119 = vector.shape_cast %118 : vector<1x120x128xf32> to vector<120x128xf32>
    %cst_105 = arith.constant dense<0.000000e+00> : vector<18x128xf32>
    %120 = tpu.matmul %117, %119, %cst_105 {dimension_numbers = #tpu.dot_dimension_numbers<[1], [0], [0], [1], [0, 0, 1, 1], [], []>} : vector<18x120xf32>, vector<120x128xf32>, vector<18x128xf32> -> vector<18x128xf32>
    %121 = arith.addf %116, %120 : vector<18x128xf32>
    %c0_106 = arith.constant 0 : index
    %c0_107 = arith.constant 0 : index
    %122 = vector.load %arg5[%c0_106, %c0_107] : memref<1x128xf32, #tpu.memory_space<vmem>>, vector<1x128xf32>
    %123 = vector.broadcast %122 : vector<1x128xf32> to vector<18x128xf32>
    %124 = arith.addf %121, %123 : vector<18x128xf32>
    %cst_108 = arith.constant 0.000000e+00 : f32
    %125 = vector.broadcast %cst_108 : f32 to vector<18x128xf32>
    %126 = arith.maximumf %124, %125 : vector<18x128xf32>
    %127 = vector.extract_strided_slice %126 {offsets = [0, 0], sizes = [17, 128], strides = [1, 1]} : vector<18x128xf32> to vector<17x128xf32>
    %128 = vector.extract_strided_slice %126 {offsets = [1, 0], sizes = [17, 128], strides = [1, 1]} : vector<18x128xf32> to vector<17x128xf32>
    %129 = arith.maximumf %127, %128 : vector<17x128xf32>
    %130 = vector.extract_strided_slice %129 {offsets = [0, 0], sizes = [17, 112], strides = [1, 1]} : vector<17x128xf32> to vector<17x112xf32>
    %131 = vector.extract_strided_slice %129 {offsets = [0, 16], sizes = [17, 112], strides = [1, 1]} : vector<17x128xf32> to vector<17x112xf32>
    %132 = arith.maximumf %130, %131 : vector<17x112xf32>
    %c0_109 = arith.constant 0 : index
    %c0_110 = arith.constant 0 : index
    %133 = vector.load %arg6[%c0_109, %c0_110] : memref<12x17xf32, #tpu.memory_space<vmem>>, vector<12x17xf32>
    %cst_111 = arith.constant dense<0.000000e+00> : vector<12x112xf32>
    %134 = tpu.matmul %133, %132, %cst_111 {dimension_numbers = #tpu.dot_dimension_numbers<[1], [0], [0], [1], [0, 0, 1, 1], [], []>} : vector<12x17xf32>, vector<17x112xf32>, vector<12x112xf32> -> vector<12x112xf32>
    %135 = vector.extract_strided_slice %134 {offsets = [0, 0], sizes = [10, 112], strides = [1, 1]} : vector<12x112xf32> to vector<10x112xf32>
    %c0_112 = arith.constant 0 : index
    %c0_113 = arith.constant 0 : index
    %c0_114 = arith.constant 0 : index
    %136 = vector.load %arg7[%c0_112, %c0_113, %c0_114] : memref<9x112x128xf32, #tpu.memory_space<vmem>>, vector<1x112x128xf32>
    %137 = vector.shape_cast %136 : vector<1x112x128xf32> to vector<112x128xf32>
    %cst_115 = arith.constant dense<0.000000e+00> : vector<10x128xf32>
    %138 = tpu.matmul %135, %137, %cst_115 {dimension_numbers = #tpu.dot_dimension_numbers<[1], [0], [0], [1], [0, 0, 1, 1], [], []>} : vector<10x112xf32>, vector<112x128xf32>, vector<10x128xf32> -> vector<10x128xf32>
    %139 = vector.extract_strided_slice %134 {offsets = [0, 0], sizes = [10, 112], strides = [1, 1]} : vector<12x112xf32> to vector<10x112xf32>
    %c1_116 = arith.constant 1 : index
    %c0_117 = arith.constant 0 : index
    %c0_118 = arith.constant 0 : index
    %140 = vector.load %arg7[%c1_116, %c0_117, %c0_118] : memref<9x112x128xf32, #tpu.memory_space<vmem>>, vector<1x112x128xf32>
    %141 = vector.shape_cast %140 : vector<1x112x128xf32> to vector<112x128xf32>
    %cst_119 = arith.constant dense<0.000000e+00> : vector<10x128xf32>
    %142 = tpu.matmul %139, %141, %cst_119 {dimension_numbers = #tpu.dot_dimension_numbers<[1], [0], [0], [1], [0, 0, 1, 1], [], []>} : vector<10x112xf32>, vector<112x128xf32>, vector<10x128xf32> -> vector<10x128xf32>
    %143 = arith.addf %138, %142 : vector<10x128xf32>
    %144 = vector.extract_strided_slice %134 {offsets = [0, 0], sizes = [10, 112], strides = [1, 1]} : vector<12x112xf32> to vector<10x112xf32>
    %c2_120 = arith.constant 2 : index
    %c0_121 = arith.constant 0 : index
    %c0_122 = arith.constant 0 : index
    %145 = vector.load %arg7[%c2_120, %c0_121, %c0_122] : memref<9x112x128xf32, #tpu.memory_space<vmem>>, vector<1x112x128xf32>
    %146 = vector.shape_cast %145 : vector<1x112x128xf32> to vector<112x128xf32>
    %cst_123 = arith.constant dense<0.000000e+00> : vector<10x128xf32>
    %147 = tpu.matmul %144, %146, %cst_123 {dimension_numbers = #tpu.dot_dimension_numbers<[1], [0], [0], [1], [0, 0, 1, 1], [], []>} : vector<10x112xf32>, vector<112x128xf32>, vector<10x128xf32> -> vector<10x128xf32>
    %148 = arith.addf %143, %147 : vector<10x128xf32>
    %149 = vector.extract_strided_slice %134 {offsets = [1, 0], sizes = [10, 112], strides = [1, 1]} : vector<12x112xf32> to vector<10x112xf32>
    %c3_124 = arith.constant 3 : index
    %c0_125 = arith.constant 0 : index
    %c0_126 = arith.constant 0 : index
    %150 = vector.load %arg7[%c3_124, %c0_125, %c0_126] : memref<9x112x128xf32, #tpu.memory_space<vmem>>, vector<1x112x128xf32>
    %151 = vector.shape_cast %150 : vector<1x112x128xf32> to vector<112x128xf32>
    %cst_127 = arith.constant dense<0.000000e+00> : vector<10x128xf32>
    %152 = tpu.matmul %149, %151, %cst_127 {dimension_numbers = #tpu.dot_dimension_numbers<[1], [0], [0], [1], [0, 0, 1, 1], [], []>} : vector<10x112xf32>, vector<112x128xf32>, vector<10x128xf32> -> vector<10x128xf32>
    %153 = arith.addf %148, %152 : vector<10x128xf32>
    %154 = vector.extract_strided_slice %134 {offsets = [1, 0], sizes = [10, 112], strides = [1, 1]} : vector<12x112xf32> to vector<10x112xf32>
    %c4_128 = arith.constant 4 : index
    %c0_129 = arith.constant 0 : index
    %c0_130 = arith.constant 0 : index
    %155 = vector.load %arg7[%c4_128, %c0_129, %c0_130] : memref<9x112x128xf32, #tpu.memory_space<vmem>>, vector<1x112x128xf32>
    %156 = vector.shape_cast %155 : vector<1x112x128xf32> to vector<112x128xf32>
    %cst_131 = arith.constant dense<0.000000e+00> : vector<10x128xf32>
    %157 = tpu.matmul %154, %156, %cst_131 {dimension_numbers = #tpu.dot_dimension_numbers<[1], [0], [0], [1], [0, 0, 1, 1], [], []>} : vector<10x112xf32>, vector<112x128xf32>, vector<10x128xf32> -> vector<10x128xf32>
    %158 = arith.addf %153, %157 : vector<10x128xf32>
    %159 = vector.extract_strided_slice %134 {offsets = [1, 0], sizes = [10, 112], strides = [1, 1]} : vector<12x112xf32> to vector<10x112xf32>
    %c5_132 = arith.constant 5 : index
    %c0_133 = arith.constant 0 : index
    %c0_134 = arith.constant 0 : index
    %160 = vector.load %arg7[%c5_132, %c0_133, %c0_134] : memref<9x112x128xf32, #tpu.memory_space<vmem>>, vector<1x112x128xf32>
    %161 = vector.shape_cast %160 : vector<1x112x128xf32> to vector<112x128xf32>
    %cst_135 = arith.constant dense<0.000000e+00> : vector<10x128xf32>
    %162 = tpu.matmul %159, %161, %cst_135 {dimension_numbers = #tpu.dot_dimension_numbers<[1], [0], [0], [1], [0, 0, 1, 1], [], []>} : vector<10x112xf32>, vector<112x128xf32>, vector<10x128xf32> -> vector<10x128xf32>
    %163 = arith.addf %158, %162 : vector<10x128xf32>
    %164 = vector.extract_strided_slice %134 {offsets = [2, 0], sizes = [10, 112], strides = [1, 1]} : vector<12x112xf32> to vector<10x112xf32>
    %c6_136 = arith.constant 6 : index
    %c0_137 = arith.constant 0 : index
    %c0_138 = arith.constant 0 : index
    %165 = vector.load %arg7[%c6_136, %c0_137, %c0_138] : memref<9x112x128xf32, #tpu.memory_space<vmem>>, vector<1x112x128xf32>
    %166 = vector.shape_cast %165 : vector<1x112x128xf32> to vector<112x128xf32>
    %cst_139 = arith.constant dense<0.000000e+00> : vector<10x128xf32>
    %167 = tpu.matmul %164, %166, %cst_139 {dimension_numbers = #tpu.dot_dimension_numbers<[1], [0], [0], [1], [0, 0, 1, 1], [], []>} : vector<10x112xf32>, vector<112x128xf32>, vector<10x128xf32> -> vector<10x128xf32>
    %168 = arith.addf %163, %167 : vector<10x128xf32>
    %169 = vector.extract_strided_slice %134 {offsets = [2, 0], sizes = [10, 112], strides = [1, 1]} : vector<12x112xf32> to vector<10x112xf32>
    %c7_140 = arith.constant 7 : index
    %c0_141 = arith.constant 0 : index
    %c0_142 = arith.constant 0 : index
    %170 = vector.load %arg7[%c7_140, %c0_141, %c0_142] : memref<9x112x128xf32, #tpu.memory_space<vmem>>, vector<1x112x128xf32>
    %171 = vector.shape_cast %170 : vector<1x112x128xf32> to vector<112x128xf32>
    %cst_143 = arith.constant dense<0.000000e+00> : vector<10x128xf32>
    %172 = tpu.matmul %169, %171, %cst_143 {dimension_numbers = #tpu.dot_dimension_numbers<[1], [0], [0], [1], [0, 0, 1, 1], [], []>} : vector<10x112xf32>, vector<112x128xf32>, vector<10x128xf32> -> vector<10x128xf32>
    %173 = arith.addf %168, %172 : vector<10x128xf32>
    %174 = vector.extract_strided_slice %134 {offsets = [2, 0], sizes = [10, 112], strides = [1, 1]} : vector<12x112xf32> to vector<10x112xf32>
    %c8_144 = arith.constant 8 : index
    %c0_145 = arith.constant 0 : index
    %c0_146 = arith.constant 0 : index
    %175 = vector.load %arg7[%c8_144, %c0_145, %c0_146] : memref<9x112x128xf32, #tpu.memory_space<vmem>>, vector<1x112x128xf32>
    %176 = vector.shape_cast %175 : vector<1x112x128xf32> to vector<112x128xf32>
    %cst_147 = arith.constant dense<0.000000e+00> : vector<10x128xf32>
    %177 = tpu.matmul %174, %176, %cst_147 {dimension_numbers = #tpu.dot_dimension_numbers<[1], [0], [0], [1], [0, 0, 1, 1], [], []>} : vector<10x112xf32>, vector<112x128xf32>, vector<10x128xf32> -> vector<10x128xf32>
    %178 = arith.addf %173, %177 : vector<10x128xf32>
    %c0_148 = arith.constant 0 : index
    %c0_149 = arith.constant 0 : index
    %179 = vector.load %arg8[%c0_148, %c0_149] : memref<1x128xf32, #tpu.memory_space<vmem>>, vector<1x128xf32>
    %180 = vector.broadcast %179 : vector<1x128xf32> to vector<10x128xf32>
    %181 = arith.addf %178, %180 : vector<10x128xf32>
    %cst_150 = arith.constant 0.000000e+00 : f32
    %182 = vector.broadcast %cst_150 : f32 to vector<10x128xf32>
    %183 = arith.maximumf %181, %182 : vector<10x128xf32>
    %184 = vector.extract_strided_slice %183 {offsets = [0, 0], sizes = [4, 128], strides = [1, 1]} : vector<10x128xf32> to vector<4x128xf32>
    %c0_151 = arith.constant 0 : index
    %c0_152 = arith.constant 0 : index
    %185 = vector.load %arg9[%c0_151, %c0_152] : memref<8x128xf32, #tpu.memory_space<vmem>>, vector<4x128xf32>
    tpu.vector_store %arg9[%c0_151, %c0_152], %184 {strides = array<i32>} : memref<8x128xf32, #tpu.memory_space<vmem>>, vector<4x128xf32>,
    %186 = vector.extract_strided_slice %183 {offsets = [6, 0], sizes = [4, 128], strides = [1, 1]} : vector<10x128xf32> to vector<4x128xf32>
    %c4_153 = arith.constant 4 : index
    %c0_154 = arith.constant 0 : index
    %187 = vector.load %arg9[%c4_153, %c0_154] : memref<8x128xf32, #tpu.memory_space<vmem>>, vector<4x128xf32>
    tpu.vector_store %arg9[%c4_153, %c0_154], %186 {strides = array<i32>} : memref<8x128xf32, #tpu.memory_space<vmem>>, vector<4x128xf32>,
    return
  }
}

module attributes {stable_mosaic.version = 11 : i64} {
  func.func @head_kernel(%arg0: memref<2x8xi32, #tpu.memory_space<smem>>, %arg1: memref<32x32xf32, #tpu.memory_space<vmem>>, %arg2: memref<50x1x16xf32, #tpu.memory_space<vmem>>, %arg3: memref<16x64xf32, #tpu.memory_space<vmem>>, %arg4: memref<16x64xf32, #tpu.memory_space<vmem>>, %arg5: memref<1x64xf32, #tpu.memory_space<vmem>>, %arg6: memref<16x64xf32, #tpu.memory_space<vmem>>, %arg7: memref<16x64xf32, #tpu.memory_space<vmem>>, %arg8: memref<1x64xf32, #tpu.memory_space<vmem>>, %arg9: memref<64x32xf32, #tpu.memory_space<vmem>>, %arg10: memref<1x32xf32, #tpu.memory_space<vmem>>, %arg11: memref<32x32xf32, #tpu.memory_space<vmem>>, %arg12: memref<1x32xf32, #tpu.memory_space<vmem>>, %arg13: memref<32x32xf32, #tpu.memory_space<vmem>>, %arg14: memref<1x32xf32, #tpu.memory_space<vmem>>, %arg15: memref<32x32xf32, #tpu.memory_space<vmem>>, %arg16: memref<32x32xf32, #tpu.memory_space<vmem>>, %arg17: memref<1x32xf32, #tpu.memory_space<vmem>>, %arg18: memref<1x1xf32, #tpu.memory_space<vmem>>, %arg19: memref<1x32xf32, #tpu.memory_space<vmem>>, %arg20: memref<1x1xf32, #tpu.memory_space<vmem>>, %arg21: memref<32x10xf32, #tpu.memory_space<vmem>>, %arg22: memref<1x10xf32, #tpu.memory_space<vmem>>, %arg23: memref<2x10xf32, #tpu.memory_space<vmem>>, %arg24: memref<16x16xf32, #tpu.memory_space<vmem>>, %arg25: memref<16x16xf32, #tpu.memory_space<vmem>>, %arg26: memref<2x32xf32, #tpu.memory_space<vmem>>, %arg27: memref<2x32xf32, #tpu.memory_space<vmem>>) attributes {dimension_semantics = [], scalar_prefetch = 0 : i64, scratch_operands = 4 : i64, tpu.core_type = #tpu.core_type<tc>} {
    %c0 = arith.constant 0 : index
    %c0_0 = arith.constant 0 : index
    %0 = memref.load %arg0[%c0, %c0_0] : memref<2x8xi32, #tpu.memory_space<smem>>
    %1 = arith.index_cast %0 : i32 to index
    %c0_1 = arith.constant 0 : index
    %c0_2 = arith.constant 0 : index
    %2 = vector.load %arg2[%1, %c0_1, %c0_2] : memref<50x1x16xf32, #tpu.memory_space<vmem>>, vector<1x1x16xf32>
    %3 = vector.shape_cast %2 : vector<1x1x16xf32> to vector<1x16xf32>
    %c0_3 = arith.constant 0 : index
    %c0_4 = arith.constant 0 : index
    %4 = vector.load %arg24[%c0_3, %c0_4] : memref<16x16xf32, #tpu.memory_space<vmem>>, vector<1x16xf32>
    tpu.vector_store %arg24[%c0_3, %c0_4], %3 {strides = array<i32>} : memref<16x16xf32, #tpu.memory_space<vmem>>, vector<1x16xf32>,
    %c1 = arith.constant 1 : index
    %c0_5 = arith.constant 0 : index
    %5 = memref.load %arg0[%c1, %c0_5] : memref<2x8xi32, #tpu.memory_space<smem>>
    %6 = arith.index_cast %5 : i32 to index
    %c0_6 = arith.constant 0 : index
    %c0_7 = arith.constant 0 : index
    %7 = vector.load %arg2[%6, %c0_6, %c0_7] : memref<50x1x16xf32, #tpu.memory_space<vmem>>, vector<1x1x16xf32>
    %8 = vector.shape_cast %7 : vector<1x1x16xf32> to vector<1x16xf32>
    %c1_8 = arith.constant 1 : index
    %c0_9 = arith.constant 0 : index
    %9 = vector.load %arg24[%c1_8, %c0_9] : memref<16x16xf32, #tpu.memory_space<vmem>>, vector<1x16xf32>
    tpu.vector_store %arg24[%c1_8, %c0_9], %8 {strides = array<i32>} : memref<16x16xf32, #tpu.memory_space<vmem>>, vector<1x16xf32>,
    %c0_10 = arith.constant 0 : index
    %c1_11 = arith.constant 1 : index
    %10 = memref.load %arg0[%c0_10, %c1_11] : memref<2x8xi32, #tpu.memory_space<smem>>
    %11 = arith.index_cast %10 : i32 to index
    %c0_12 = arith.constant 0 : index
    %c0_13 = arith.constant 0 : index
    %12 = vector.load %arg2[%11, %c0_12, %c0_13] : memref<50x1x16xf32, #tpu.memory_space<vmem>>, vector<1x1x16xf32>
    %13 = vector.shape_cast %12 : vector<1x1x16xf32> to vector<1x16xf32>
    %c2 = arith.constant 2 : index
    %c0_14 = arith.constant 0 : index
    %14 = vector.load %arg24[%c2, %c0_14] : memref<16x16xf32, #tpu.memory_space<vmem>>, vector<1x16xf32>
    tpu.vector_store %arg24[%c2, %c0_14], %13 {strides = array<i32>} : memref<16x16xf32, #tpu.memory_space<vmem>>, vector<1x16xf32>,
    %c1_15 = arith.constant 1 : index
    %c1_16 = arith.constant 1 : index
    %15 = memref.load %arg0[%c1_15, %c1_16] : memref<2x8xi32, #tpu.memory_space<smem>>
    %16 = arith.index_cast %15 : i32 to index
    %c0_17 = arith.constant 0 : index
    %c0_18 = arith.constant 0 : index
    %17 = vector.load %arg2[%16, %c0_17, %c0_18] : memref<50x1x16xf32, #tpu.memory_space<vmem>>, vector<1x1x16xf32>
    %18 = vector.shape_cast %17 : vector<1x1x16xf32> to vector<1x16xf32>
    %c3 = arith.constant 3 : index
    %c0_19 = arith.constant 0 : index
    %19 = vector.load %arg24[%c3, %c0_19] : memref<16x16xf32, #tpu.memory_space<vmem>>, vector<1x16xf32>
    tpu.vector_store %arg24[%c3, %c0_19], %18 {strides = array<i32>} : memref<16x16xf32, #tpu.memory_space<vmem>>, vector<1x16xf32>,
    %c0_20 = arith.constant 0 : index
    %c2_21 = arith.constant 2 : index
    %20 = memref.load %arg0[%c0_20, %c2_21] : memref<2x8xi32, #tpu.memory_space<smem>>
    %21 = arith.index_cast %20 : i32 to index
    %c0_22 = arith.constant 0 : index
    %c0_23 = arith.constant 0 : index
    %22 = vector.load %arg2[%21, %c0_22, %c0_23] : memref<50x1x16xf32, #tpu.memory_space<vmem>>, vector<1x1x16xf32>
    %23 = vector.shape_cast %22 : vector<1x1x16xf32> to vector<1x16xf32>
    %c4 = arith.constant 4 : index
    %c0_24 = arith.constant 0 : index
    %24 = vector.load %arg24[%c4, %c0_24] : memref<16x16xf32, #tpu.memory_space<vmem>>, vector<1x16xf32>
    tpu.vector_store %arg24[%c4, %c0_24], %23 {strides = array<i32>} : memref<16x16xf32, #tpu.memory_space<vmem>>, vector<1x16xf32>,
    %c1_25 = arith.constant 1 : index
    %c2_26 = arith.constant 2 : index
    %25 = memref.load %arg0[%c1_25, %c2_26] : memref<2x8xi32, #tpu.memory_space<smem>>
    %26 = arith.index_cast %25 : i32 to index
    %c0_27 = arith.constant 0 : index
    %c0_28 = arith.constant 0 : index
    %27 = vector.load %arg2[%26, %c0_27, %c0_28] : memref<50x1x16xf32, #tpu.memory_space<vmem>>, vector<1x1x16xf32>
    %28 = vector.shape_cast %27 : vector<1x1x16xf32> to vector<1x16xf32>
    %c5 = arith.constant 5 : index
    %c0_29 = arith.constant 0 : index
    %29 = vector.load %arg24[%c5, %c0_29] : memref<16x16xf32, #tpu.memory_space<vmem>>, vector<1x16xf32>
    tpu.vector_store %arg24[%c5, %c0_29], %28 {strides = array<i32>} : memref<16x16xf32, #tpu.memory_space<vmem>>, vector<1x16xf32>,
    %c0_30 = arith.constant 0 : index
    %c3_31 = arith.constant 3 : index
    %30 = memref.load %arg0[%c0_30, %c3_31] : memref<2x8xi32, #tpu.memory_space<smem>>
    %31 = arith.index_cast %30 : i32 to index
    %c0_32 = arith.constant 0 : index
    %c0_33 = arith.constant 0 : index
    %32 = vector.load %arg2[%31, %c0_32, %c0_33] : memref<50x1x16xf32, #tpu.memory_space<vmem>>, vector<1x1x16xf32>
    %33 = vector.shape_cast %32 : vector<1x1x16xf32> to vector<1x16xf32>
    %c6 = arith.constant 6 : index
    %c0_34 = arith.constant 0 : index
    %34 = vector.load %arg24[%c6, %c0_34] : memref<16x16xf32, #tpu.memory_space<vmem>>, vector<1x16xf32>
    tpu.vector_store %arg24[%c6, %c0_34], %33 {strides = array<i32>} : memref<16x16xf32, #tpu.memory_space<vmem>>, vector<1x16xf32>,
    %c1_35 = arith.constant 1 : index
    %c3_36 = arith.constant 3 : index
    %35 = memref.load %arg0[%c1_35, %c3_36] : memref<2x8xi32, #tpu.memory_space<smem>>
    %36 = arith.index_cast %35 : i32 to index
    %c0_37 = arith.constant 0 : index
    %c0_38 = arith.constant 0 : index
    %37 = vector.load %arg2[%36, %c0_37, %c0_38] : memref<50x1x16xf32, #tpu.memory_space<vmem>>, vector<1x1x16xf32>
    %38 = vector.shape_cast %37 : vector<1x1x16xf32> to vector<1x16xf32>
    %c7 = arith.constant 7 : index
    %c0_39 = arith.constant 0 : index
    %39 = vector.load %arg24[%c7, %c0_39] : memref<16x16xf32, #tpu.memory_space<vmem>>, vector<1x16xf32>
    tpu.vector_store %arg24[%c7, %c0_39], %38 {strides = array<i32>} : memref<16x16xf32, #tpu.memory_space<vmem>>, vector<1x16xf32>,
    %c0_40 = arith.constant 0 : index
    %c4_41 = arith.constant 4 : index
    %40 = memref.load %arg0[%c0_40, %c4_41] : memref<2x8xi32, #tpu.memory_space<smem>>
    %41 = arith.index_cast %40 : i32 to index
    %c0_42 = arith.constant 0 : index
    %c0_43 = arith.constant 0 : index
    %42 = vector.load %arg2[%41, %c0_42, %c0_43] : memref<50x1x16xf32, #tpu.memory_space<vmem>>, vector<1x1x16xf32>
    %43 = vector.shape_cast %42 : vector<1x1x16xf32> to vector<1x16xf32>
    %c8 = arith.constant 8 : index
    %c0_44 = arith.constant 0 : index
    %44 = vector.load %arg24[%c8, %c0_44] : memref<16x16xf32, #tpu.memory_space<vmem>>, vector<1x16xf32>
    tpu.vector_store %arg24[%c8, %c0_44], %43 {strides = array<i32>} : memref<16x16xf32, #tpu.memory_space<vmem>>, vector<1x16xf32>,
    %c1_45 = arith.constant 1 : index
    %c4_46 = arith.constant 4 : index
    %45 = memref.load %arg0[%c1_45, %c4_46] : memref<2x8xi32, #tpu.memory_space<smem>>
    %46 = arith.index_cast %45 : i32 to index
    %c0_47 = arith.constant 0 : index
    %c0_48 = arith.constant 0 : index
    %47 = vector.load %arg2[%46, %c0_47, %c0_48] : memref<50x1x16xf32, #tpu.memory_space<vmem>>, vector<1x1x16xf32>
    %48 = vector.shape_cast %47 : vector<1x1x16xf32> to vector<1x16xf32>
    %c9 = arith.constant 9 : index
    %c0_49 = arith.constant 0 : index
    %49 = vector.load %arg24[%c9, %c0_49] : memref<16x16xf32, #tpu.memory_space<vmem>>, vector<1x16xf32>
    tpu.vector_store %arg24[%c9, %c0_49], %48 {strides = array<i32>} : memref<16x16xf32, #tpu.memory_space<vmem>>, vector<1x16xf32>,
    %c0_50 = arith.constant 0 : index
    %c5_51 = arith.constant 5 : index
    %50 = memref.load %arg0[%c0_50, %c5_51] : memref<2x8xi32, #tpu.memory_space<smem>>
    %51 = arith.index_cast %50 : i32 to index
    %c0_52 = arith.constant 0 : index
    %c0_53 = arith.constant 0 : index
    %52 = vector.load %arg2[%51, %c0_52, %c0_53] : memref<50x1x16xf32, #tpu.memory_space<vmem>>, vector<1x1x16xf32>
    %53 = vector.shape_cast %52 : vector<1x1x16xf32> to vector<1x16xf32>
    %c10 = arith.constant 10 : index
    %c0_54 = arith.constant 0 : index
    %54 = vector.load %arg24[%c10, %c0_54] : memref<16x16xf32, #tpu.memory_space<vmem>>, vector<1x16xf32>
    tpu.vector_store %arg24[%c10, %c0_54], %53 {strides = array<i32>} : memref<16x16xf32, #tpu.memory_space<vmem>>, vector<1x16xf32>,
    %c1_55 = arith.constant 1 : index
    %c5_56 = arith.constant 5 : index
    %55 = memref.load %arg0[%c1_55, %c5_56] : memref<2x8xi32, #tpu.memory_space<smem>>
    %56 = arith.index_cast %55 : i32 to index
    %c0_57 = arith.constant 0 : index
    %c0_58 = arith.constant 0 : index
    %57 = vector.load %arg2[%56, %c0_57, %c0_58] : memref<50x1x16xf32, #tpu.memory_space<vmem>>, vector<1x1x16xf32>
    %58 = vector.shape_cast %57 : vector<1x1x16xf32> to vector<1x16xf32>
    %c11 = arith.constant 11 : index
    %c0_59 = arith.constant 0 : index
    %59 = vector.load %arg24[%c11, %c0_59] : memref<16x16xf32, #tpu.memory_space<vmem>>, vector<1x16xf32>
    tpu.vector_store %arg24[%c11, %c0_59], %58 {strides = array<i32>} : memref<16x16xf32, #tpu.memory_space<vmem>>, vector<1x16xf32>,
    %c0_60 = arith.constant 0 : index
    %c6_61 = arith.constant 6 : index
    %60 = memref.load %arg0[%c0_60, %c6_61] : memref<2x8xi32, #tpu.memory_space<smem>>
    %61 = arith.index_cast %60 : i32 to index
    %c0_62 = arith.constant 0 : index
    %c0_63 = arith.constant 0 : index
    %62 = vector.load %arg2[%61, %c0_62, %c0_63] : memref<50x1x16xf32, #tpu.memory_space<vmem>>, vector<1x1x16xf32>
    %63 = vector.shape_cast %62 : vector<1x1x16xf32> to vector<1x16xf32>
    %c12 = arith.constant 12 : index
    %c0_64 = arith.constant 0 : index
    %64 = vector.load %arg24[%c12, %c0_64] : memref<16x16xf32, #tpu.memory_space<vmem>>, vector<1x16xf32>
    tpu.vector_store %arg24[%c12, %c0_64], %63 {strides = array<i32>} : memref<16x16xf32, #tpu.memory_space<vmem>>, vector<1x16xf32>,
    %c1_65 = arith.constant 1 : index
    %c6_66 = arith.constant 6 : index
    %65 = memref.load %arg0[%c1_65, %c6_66] : memref<2x8xi32, #tpu.memory_space<smem>>
    %66 = arith.index_cast %65 : i32 to index
    %c0_67 = arith.constant 0 : index
    %c0_68 = arith.constant 0 : index
    %67 = vector.load %arg2[%66, %c0_67, %c0_68] : memref<50x1x16xf32, #tpu.memory_space<vmem>>, vector<1x1x16xf32>
    %68 = vector.shape_cast %67 : vector<1x1x16xf32> to vector<1x16xf32>
    %c13 = arith.constant 13 : index
    %c0_69 = arith.constant 0 : index
    %69 = vector.load %arg24[%c13, %c0_69] : memref<16x16xf32, #tpu.memory_space<vmem>>, vector<1x16xf32>
    tpu.vector_store %arg24[%c13, %c0_69], %68 {strides = array<i32>} : memref<16x16xf32, #tpu.memory_space<vmem>>, vector<1x16xf32>,
    %c0_70 = arith.constant 0 : index
    %c7_71 = arith.constant 7 : index
    %70 = memref.load %arg0[%c0_70, %c7_71] : memref<2x8xi32, #tpu.memory_space<smem>>
    %71 = arith.index_cast %70 : i32 to index
    %c0_72 = arith.constant 0 : index
    %c0_73 = arith.constant 0 : index
    %72 = vector.load %arg2[%71, %c0_72, %c0_73] : memref<50x1x16xf32, #tpu.memory_space<vmem>>, vector<1x1x16xf32>
    %73 = vector.shape_cast %72 : vector<1x1x16xf32> to vector<1x16xf32>
    %c14 = arith.constant 14 : index
    %c0_74 = arith.constant 0 : index
    %74 = vector.load %arg24[%c14, %c0_74] : memref<16x16xf32, #tpu.memory_space<vmem>>, vector<1x16xf32>
    tpu.vector_store %arg24[%c14, %c0_74], %73 {strides = array<i32>} : memref<16x16xf32, #tpu.memory_space<vmem>>, vector<1x16xf32>,
    %c1_75 = arith.constant 1 : index
    %c7_76 = arith.constant 7 : index
    %75 = memref.load %arg0[%c1_75, %c7_76] : memref<2x8xi32, #tpu.memory_space<smem>>
    %76 = arith.index_cast %75 : i32 to index
    %c0_77 = arith.constant 0 : index
    %c0_78 = arith.constant 0 : index
    %77 = vector.load %arg2[%76, %c0_77, %c0_78] : memref<50x1x16xf32, #tpu.memory_space<vmem>>, vector<1x1x16xf32>
    %78 = vector.shape_cast %77 : vector<1x1x16xf32> to vector<1x16xf32>
    %c15 = arith.constant 15 : index
    %c0_79 = arith.constant 0 : index
    %79 = vector.load %arg24[%c15, %c0_79] : memref<16x16xf32, #tpu.memory_space<vmem>>, vector<1x16xf32>
    tpu.vector_store %arg24[%c15, %c0_79], %78 {strides = array<i32>} : memref<16x16xf32, #tpu.memory_space<vmem>>, vector<1x16xf32>,
    %c0_80 = arith.constant 0 : index
    %c0_81 = arith.constant 0 : index
    %80 = vector.load %arg24[%c0_80, %c0_81] : memref<16x16xf32, #tpu.memory_space<vmem>>, vector<16x16xf32>
    %81 = math.tanh %80 : vector<16x16xf32>
    %c0_82 = arith.constant 0 : index
    %c0_83 = arith.constant 0 : index
    %82 = vector.load %arg3[%c0_82, %c0_83] : memref<16x64xf32, #tpu.memory_space<vmem>>, vector<16x64xf32>
    %cst = arith.constant dense<0.000000e+00> : vector<16x64xf32>
    %83 = tpu.matmul %81, %82, %cst {dimension_numbers = #tpu.dot_dimension_numbers<[1], [0], [0], [1], [0, 0, 1, 1], [], []>} : vector<16x16xf32>, vector<16x64xf32>, vector<16x64xf32> -> vector<16x64xf32>
    %c0_84 = arith.constant 0 : index
    %c0_85 = arith.constant 0 : index
    %84 = vector.load %arg5[%c0_84, %c0_85] : memref<1x64xf32, #tpu.memory_space<vmem>>, vector<1x64xf32>
    %85 = vector.broadcast %84 : vector<1x64xf32> to vector<16x64xf32>
    %86 = arith.addf %83, %85 : vector<16x64xf32>
    %c0_86 = arith.constant 0 : index
    %c0_87 = arith.constant 0 : index
    %87 = vector.load %arg4[%c0_86, %c0_87] : memref<16x64xf32, #tpu.memory_space<vmem>>, vector<16x64xf32>
    %cst_88 = arith.constant 0.000000e+00 : f32
    %88 = vector.broadcast %cst_88 : f32 to vector<2x16xf32>
    %cst_89 = arith.constant 0.000000e+00 : f32
    %89 = vector.broadcast %cst_89 : f32 to vector<2x16xf32>
    %90 = vector.extract_strided_slice %86 {offsets = [0, 0], sizes = [2, 64], strides = [1, 1]} : vector<16x64xf32> to vector<2x64xf32>
    %cst_90 = arith.constant dense<0.000000e+00> : vector<2x64xf32>
    %91 = tpu.matmul %88, %87, %cst_90 {dimension_numbers = #tpu.dot_dimension_numbers<[1], [0], [0], [1], [0, 0, 1, 1], [], []>} : vector<2x16xf32>, vector<16x64xf32>, vector<2x64xf32> -> vector<2x64xf32>
    %92 = arith.addf %90, %91 : vector<2x64xf32>
    %93 = vector.extract_strided_slice %92 {offsets = [0, 0], sizes = [2, 16], strides = [1, 1]} : vector<2x64xf32> to vector<2x16xf32>
    %cst_91 = arith.constant 5.000000e-01 : f32
    %94 = vector.broadcast %cst_91 : f32 to vector<2x16xf32>
    %95 = arith.mulf %94, %93 : vector<2x16xf32>
    %96 = math.tanh %95 : vector<2x16xf32>
    %cst_92 = arith.constant 1.000000e+00 : f32
    %97 = vector.broadcast %cst_92 : f32 to vector<2x16xf32>
    %98 = arith.addf %96, %97 : vector<2x16xf32>
    %cst_93 = arith.constant 5.000000e-01 : f32
    %99 = vector.broadcast %cst_93 : f32 to vector<2x16xf32>
    %100 = arith.mulf %99, %98 : vector<2x16xf32>
    %101 = vector.extract_strided_slice %92 {offsets = [0, 16], sizes = [2, 16], strides = [1, 1]} : vector<2x64xf32> to vector<2x16xf32>
    %cst_94 = arith.constant 5.000000e-01 : f32
    %102 = vector.broadcast %cst_94 : f32 to vector<2x16xf32>
    %103 = arith.mulf %102, %101 : vector<2x16xf32>
    %104 = math.tanh %103 : vector<2x16xf32>
    %cst_95 = arith.constant 1.000000e+00 : f32
    %105 = vector.broadcast %cst_95 : f32 to vector<2x16xf32>
    %106 = arith.addf %104, %105 : vector<2x16xf32>
    %cst_96 = arith.constant 5.000000e-01 : f32
    %107 = vector.broadcast %cst_96 : f32 to vector<2x16xf32>
    %108 = arith.mulf %107, %106 : vector<2x16xf32>
    %109 = vector.extract_strided_slice %92 {offsets = [0, 32], sizes = [2, 16], strides = [1, 1]} : vector<2x64xf32> to vector<2x16xf32>
    %110 = math.tanh %109 : vector<2x16xf32>
    %111 = vector.extract_strided_slice %92 {offsets = [0, 48], sizes = [2, 16], strides = [1, 1]} : vector<2x64xf32> to vector<2x16xf32>
    %cst_97 = arith.constant 5.000000e-01 : f32
    %112 = vector.broadcast %cst_97 : f32 to vector<2x16xf32>
    %113 = arith.mulf %112, %111 : vector<2x16xf32>
    %114 = math.tanh %113 : vector<2x16xf32>
    %cst_98 = arith.constant 1.000000e+00 : f32
    %115 = vector.broadcast %cst_98 : f32 to vector<2x16xf32>
    %116 = arith.addf %114, %115 : vector<2x16xf32>
    %cst_99 = arith.constant 5.000000e-01 : f32
    %117 = vector.broadcast %cst_99 : f32 to vector<2x16xf32>
    %118 = arith.mulf %117, %116 : vector<2x16xf32>
    %119 = arith.mulf %108, %89 : vector<2x16xf32>
    %120 = arith.mulf %100, %110 : vector<2x16xf32>
    %121 = arith.addf %119, %120 : vector<2x16xf32>
    %122 = math.tanh %121 : vector<2x16xf32>
    %123 = arith.mulf %118, %122 : vector<2x16xf32>
    %c0_100 = arith.constant 0 : index
    %c0_101 = arith.constant 0 : index
    %124 = vector.load %arg25[%c0_100, %c0_101] : memref<16x16xf32, #tpu.memory_space<vmem>>, vector<2x16xf32>
    tpu.vector_store %arg25[%c0_100, %c0_101], %123 {strides = array<i32>} : memref<16x16xf32, #tpu.memory_space<vmem>>, vector<2x16xf32>,
    %125 = vector.extract_strided_slice %86 {offsets = [2, 0], sizes = [2, 64], strides = [1, 1]} : vector<16x64xf32> to vector<2x64xf32>
    %cst_102 = arith.constant dense<0.000000e+00> : vector<2x64xf32>
    %126 = tpu.matmul %123, %87, %cst_102 {dimension_numbers = #tpu.dot_dimension_numbers<[1], [0], [0], [1], [0, 0, 1, 1], [], []>} : vector<2x16xf32>, vector<16x64xf32>, vector<2x64xf32> -> vector<2x64xf32>
    %127 = arith.addf %125, %126 : vector<2x64xf32>
    %128 = vector.extract_strided_slice %127 {offsets = [0, 0], sizes = [2, 16], strides = [1, 1]} : vector<2x64xf32> to vector<2x16xf32>
    %cst_103 = arith.constant 5.000000e-01 : f32
    %129 = vector.broadcast %cst_103 : f32 to vector<2x16xf32>
    %130 = arith.mulf %129, %128 : vector<2x16xf32>
    %131 = math.tanh %130 : vector<2x16xf32>
    %cst_104 = arith.constant 1.000000e+00 : f32
    %132 = vector.broadcast %cst_104 : f32 to vector<2x16xf32>
    %133 = arith.addf %131, %132 : vector<2x16xf32>
    %cst_105 = arith.constant 5.000000e-01 : f32
    %134 = vector.broadcast %cst_105 : f32 to vector<2x16xf32>
    %135 = arith.mulf %134, %133 : vector<2x16xf32>
    %136 = vector.extract_strided_slice %127 {offsets = [0, 16], sizes = [2, 16], strides = [1, 1]} : vector<2x64xf32> to vector<2x16xf32>
    %cst_106 = arith.constant 5.000000e-01 : f32
    %137 = vector.broadcast %cst_106 : f32 to vector<2x16xf32>
    %138 = arith.mulf %137, %136 : vector<2x16xf32>
    %139 = math.tanh %138 : vector<2x16xf32>
    %cst_107 = arith.constant 1.000000e+00 : f32
    %140 = vector.broadcast %cst_107 : f32 to vector<2x16xf32>
    %141 = arith.addf %139, %140 : vector<2x16xf32>
    %cst_108 = arith.constant 5.000000e-01 : f32
    %142 = vector.broadcast %cst_108 : f32 to vector<2x16xf32>
    %143 = arith.mulf %142, %141 : vector<2x16xf32>
    %144 = vector.extract_strided_slice %127 {offsets = [0, 32], sizes = [2, 16], strides = [1, 1]} : vector<2x64xf32> to vector<2x16xf32>
    %145 = math.tanh %144 : vector<2x16xf32>
    %146 = vector.extract_strided_slice %127 {offsets = [0, 48], sizes = [2, 16], strides = [1, 1]} : vector<2x64xf32> to vector<2x16xf32>
    %cst_109 = arith.constant 5.000000e-01 : f32
    %147 = vector.broadcast %cst_109 : f32 to vector<2x16xf32>
    %148 = arith.mulf %147, %146 : vector<2x16xf32>
    %149 = math.tanh %148 : vector<2x16xf32>
    %cst_110 = arith.constant 1.000000e+00 : f32
    %150 = vector.broadcast %cst_110 : f32 to vector<2x16xf32>
    %151 = arith.addf %149, %150 : vector<2x16xf32>
    %cst_111 = arith.constant 5.000000e-01 : f32
    %152 = vector.broadcast %cst_111 : f32 to vector<2x16xf32>
    %153 = arith.mulf %152, %151 : vector<2x16xf32>
    %154 = arith.mulf %143, %121 : vector<2x16xf32>
    %155 = arith.mulf %135, %145 : vector<2x16xf32>
    %156 = arith.addf %154, %155 : vector<2x16xf32>
    %157 = math.tanh %156 : vector<2x16xf32>
    %158 = arith.mulf %153, %157 : vector<2x16xf32>
    %c2_112 = arith.constant 2 : index
    %c0_113 = arith.constant 0 : index
    %159 = vector.load %arg25[%c2_112, %c0_113] : memref<16x16xf32, #tpu.memory_space<vmem>>, vector<2x16xf32>
    tpu.vector_store %arg25[%c2_112, %c0_113], %158 {strides = array<i32>} : memref<16x16xf32, #tpu.memory_space<vmem>>, vector<2x16xf32>,
    %160 = vector.extract_strided_slice %86 {offsets = [4, 0], sizes = [2, 64], strides = [1, 1]} : vector<16x64xf32> to vector<2x64xf32>
    %cst_114 = arith.constant dense<0.000000e+00> : vector<2x64xf32>
    %161 = tpu.matmul %158, %87, %cst_114 {dimension_numbers = #tpu.dot_dimension_numbers<[1], [0], [0], [1], [0, 0, 1, 1], [], []>} : vector<2x16xf32>, vector<16x64xf32>, vector<2x64xf32> -> vector<2x64xf32>
    %162 = arith.addf %160, %161 : vector<2x64xf32>
    %163 = vector.extract_strided_slice %162 {offsets = [0, 0], sizes = [2, 16], strides = [1, 1]} : vector<2x64xf32> to vector<2x16xf32>
    %cst_115 = arith.constant 5.000000e-01 : f32
    %164 = vector.broadcast %cst_115 : f32 to vector<2x16xf32>
    %165 = arith.mulf %164, %163 : vector<2x16xf32>
    %166 = math.tanh %165 : vector<2x16xf32>
    %cst_116 = arith.constant 1.000000e+00 : f32
    %167 = vector.broadcast %cst_116 : f32 to vector<2x16xf32>
    %168 = arith.addf %166, %167 : vector<2x16xf32>
    %cst_117 = arith.constant 5.000000e-01 : f32
    %169 = vector.broadcast %cst_117 : f32 to vector<2x16xf32>
    %170 = arith.mulf %169, %168 : vector<2x16xf32>
    %171 = vector.extract_strided_slice %162 {offsets = [0, 16], sizes = [2, 16], strides = [1, 1]} : vector<2x64xf32> to vector<2x16xf32>
    %cst_118 = arith.constant 5.000000e-01 : f32
    %172 = vector.broadcast %cst_118 : f32 to vector<2x16xf32>
    %173 = arith.mulf %172, %171 : vector<2x16xf32>
    %174 = math.tanh %173 : vector<2x16xf32>
    %cst_119 = arith.constant 1.000000e+00 : f32
    %175 = vector.broadcast %cst_119 : f32 to vector<2x16xf32>
    %176 = arith.addf %174, %175 : vector<2x16xf32>
    %cst_120 = arith.constant 5.000000e-01 : f32
    %177 = vector.broadcast %cst_120 : f32 to vector<2x16xf32>
    %178 = arith.mulf %177, %176 : vector<2x16xf32>
    %179 = vector.extract_strided_slice %162 {offsets = [0, 32], sizes = [2, 16], strides = [1, 1]} : vector<2x64xf32> to vector<2x16xf32>
    %180 = math.tanh %179 : vector<2x16xf32>
    %181 = vector.extract_strided_slice %162 {offsets = [0, 48], sizes = [2, 16], strides = [1, 1]} : vector<2x64xf32> to vector<2x16xf32>
    %cst_121 = arith.constant 5.000000e-01 : f32
    %182 = vector.broadcast %cst_121 : f32 to vector<2x16xf32>
    %183 = arith.mulf %182, %181 : vector<2x16xf32>
    %184 = math.tanh %183 : vector<2x16xf32>
    %cst_122 = arith.constant 1.000000e+00 : f32
    %185 = vector.broadcast %cst_122 : f32 to vector<2x16xf32>
    %186 = arith.addf %184, %185 : vector<2x16xf32>
    %cst_123 = arith.constant 5.000000e-01 : f32
    %187 = vector.broadcast %cst_123 : f32 to vector<2x16xf32>
    %188 = arith.mulf %187, %186 : vector<2x16xf32>
    %189 = arith.mulf %178, %156 : vector<2x16xf32>
    %190 = arith.mulf %170, %180 : vector<2x16xf32>
    %191 = arith.addf %189, %190 : vector<2x16xf32>
    %192 = math.tanh %191 : vector<2x16xf32>
    %193 = arith.mulf %188, %192 : vector<2x16xf32>
    %c4_124 = arith.constant 4 : index
    %c0_125 = arith.constant 0 : index
    %194 = vector.load %arg25[%c4_124, %c0_125] : memref<16x16xf32, #tpu.memory_space<vmem>>, vector<2x16xf32>
    tpu.vector_store %arg25[%c4_124, %c0_125], %193 {strides = array<i32>} : memref<16x16xf32, #tpu.memory_space<vmem>>, vector<2x16xf32>,
    %195 = vector.extract_strided_slice %86 {offsets = [6, 0], sizes = [2, 64], strides = [1, 1]} : vector<16x64xf32> to vector<2x64xf32>
    %cst_126 = arith.constant dense<0.000000e+00> : vector<2x64xf32>
    %196 = tpu.matmul %193, %87, %cst_126 {dimension_numbers = #tpu.dot_dimension_numbers<[1], [0], [0], [1], [0, 0, 1, 1], [], []>} : vector<2x16xf32>, vector<16x64xf32>, vector<2x64xf32> -> vector<2x64xf32>
    %197 = arith.addf %195, %196 : vector<2x64xf32>
    %198 = vector.extract_strided_slice %197 {offsets = [0, 0], sizes = [2, 16], strides = [1, 1]} : vector<2x64xf32> to vector<2x16xf32>
    %cst_127 = arith.constant 5.000000e-01 : f32
    %199 = vector.broadcast %cst_127 : f32 to vector<2x16xf32>
    %200 = arith.mulf %199, %198 : vector<2x16xf32>
    %201 = math.tanh %200 : vector<2x16xf32>
    %cst_128 = arith.constant 1.000000e+00 : f32
    %202 = vector.broadcast %cst_128 : f32 to vector<2x16xf32>
    %203 = arith.addf %201, %202 : vector<2x16xf32>
    %cst_129 = arith.constant 5.000000e-01 : f32
    %204 = vector.broadcast %cst_129 : f32 to vector<2x16xf32>
    %205 = arith.mulf %204, %203 : vector<2x16xf32>
    %206 = vector.extract_strided_slice %197 {offsets = [0, 16], sizes = [2, 16], strides = [1, 1]} : vector<2x64xf32> to vector<2x16xf32>
    %cst_130 = arith.constant 5.000000e-01 : f32
    %207 = vector.broadcast %cst_130 : f32 to vector<2x16xf32>
    %208 = arith.mulf %207, %206 : vector<2x16xf32>
    %209 = math.tanh %208 : vector<2x16xf32>
    %cst_131 = arith.constant 1.000000e+00 : f32
    %210 = vector.broadcast %cst_131 : f32 to vector<2x16xf32>
    %211 = arith.addf %209, %210 : vector<2x16xf32>
    %cst_132 = arith.constant 5.000000e-01 : f32
    %212 = vector.broadcast %cst_132 : f32 to vector<2x16xf32>
    %213 = arith.mulf %212, %211 : vector<2x16xf32>
    %214 = vector.extract_strided_slice %197 {offsets = [0, 32], sizes = [2, 16], strides = [1, 1]} : vector<2x64xf32> to vector<2x16xf32>
    %215 = math.tanh %214 : vector<2x16xf32>
    %216 = vector.extract_strided_slice %197 {offsets = [0, 48], sizes = [2, 16], strides = [1, 1]} : vector<2x64xf32> to vector<2x16xf32>
    %cst_133 = arith.constant 5.000000e-01 : f32
    %217 = vector.broadcast %cst_133 : f32 to vector<2x16xf32>
    %218 = arith.mulf %217, %216 : vector<2x16xf32>
    %219 = math.tanh %218 : vector<2x16xf32>
    %cst_134 = arith.constant 1.000000e+00 : f32
    %220 = vector.broadcast %cst_134 : f32 to vector<2x16xf32>
    %221 = arith.addf %219, %220 : vector<2x16xf32>
    %cst_135 = arith.constant 5.000000e-01 : f32
    %222 = vector.broadcast %cst_135 : f32 to vector<2x16xf32>
    %223 = arith.mulf %222, %221 : vector<2x16xf32>
    %224 = arith.mulf %213, %191 : vector<2x16xf32>
    %225 = arith.mulf %205, %215 : vector<2x16xf32>
    %226 = arith.addf %224, %225 : vector<2x16xf32>
    %227 = math.tanh %226 : vector<2x16xf32>
    %228 = arith.mulf %223, %227 : vector<2x16xf32>
    %c6_136 = arith.constant 6 : index
    %c0_137 = arith.constant 0 : index
    %229 = vector.load %arg25[%c6_136, %c0_137] : memref<16x16xf32, #tpu.memory_space<vmem>>, vector<2x16xf32>
    tpu.vector_store %arg25[%c6_136, %c0_137], %228 {strides = array<i32>} : memref<16x16xf32, #tpu.memory_space<vmem>>, vector<2x16xf32>,
    %230 = vector.extract_strided_slice %86 {offsets = [8, 0], sizes = [2, 64], strides = [1, 1]} : vector<16x64xf32> to vector<2x64xf32>
    %cst_138 = arith.constant dense<0.000000e+00> : vector<2x64xf32>
    %231 = tpu.matmul %228, %87, %cst_138 {dimension_numbers = #tpu.dot_dimension_numbers<[1], [0], [0], [1], [0, 0, 1, 1], [], []>} : vector<2x16xf32>, vector<16x64xf32>, vector<2x64xf32> -> vector<2x64xf32>
    %232 = arith.addf %230, %231 : vector<2x64xf32>
    %233 = vector.extract_strided_slice %232 {offsets = [0, 0], sizes = [2, 16], strides = [1, 1]} : vector<2x64xf32> to vector<2x16xf32>
    %cst_139 = arith.constant 5.000000e-01 : f32
    %234 = vector.broadcast %cst_139 : f32 to vector<2x16xf32>
    %235 = arith.mulf %234, %233 : vector<2x16xf32>
    %236 = math.tanh %235 : vector<2x16xf32>
    %cst_140 = arith.constant 1.000000e+00 : f32
    %237 = vector.broadcast %cst_140 : f32 to vector<2x16xf32>
    %238 = arith.addf %236, %237 : vector<2x16xf32>
    %cst_141 = arith.constant 5.000000e-01 : f32
    %239 = vector.broadcast %cst_141 : f32 to vector<2x16xf32>
    %240 = arith.mulf %239, %238 : vector<2x16xf32>
    %241 = vector.extract_strided_slice %232 {offsets = [0, 16], sizes = [2, 16], strides = [1, 1]} : vector<2x64xf32> to vector<2x16xf32>
    %cst_142 = arith.constant 5.000000e-01 : f32
    %242 = vector.broadcast %cst_142 : f32 to vector<2x16xf32>
    %243 = arith.mulf %242, %241 : vector<2x16xf32>
    %244 = math.tanh %243 : vector<2x16xf32>
    %cst_143 = arith.constant 1.000000e+00 : f32
    %245 = vector.broadcast %cst_143 : f32 to vector<2x16xf32>
    %246 = arith.addf %244, %245 : vector<2x16xf32>
    %cst_144 = arith.constant 5.000000e-01 : f32
    %247 = vector.broadcast %cst_144 : f32 to vector<2x16xf32>
    %248 = arith.mulf %247, %246 : vector<2x16xf32>
    %249 = vector.extract_strided_slice %232 {offsets = [0, 32], sizes = [2, 16], strides = [1, 1]} : vector<2x64xf32> to vector<2x16xf32>
    %250 = math.tanh %249 : vector<2x16xf32>
    %251 = vector.extract_strided_slice %232 {offsets = [0, 48], sizes = [2, 16], strides = [1, 1]} : vector<2x64xf32> to vector<2x16xf32>
    %cst_145 = arith.constant 5.000000e-01 : f32
    %252 = vector.broadcast %cst_145 : f32 to vector<2x16xf32>
    %253 = arith.mulf %252, %251 : vector<2x16xf32>
    %254 = math.tanh %253 : vector<2x16xf32>
    %cst_146 = arith.constant 1.000000e+00 : f32
    %255 = vector.broadcast %cst_146 : f32 to vector<2x16xf32>
    %256 = arith.addf %254, %255 : vector<2x16xf32>
    %cst_147 = arith.constant 5.000000e-01 : f32
    %257 = vector.broadcast %cst_147 : f32 to vector<2x16xf32>
    %258 = arith.mulf %257, %256 : vector<2x16xf32>
    %259 = arith.mulf %248, %226 : vector<2x16xf32>
    %260 = arith.mulf %240, %250 : vector<2x16xf32>
    %261 = arith.addf %259, %260 : vector<2x16xf32>
    %262 = math.tanh %261 : vector<2x16xf32>
    %263 = arith.mulf %258, %262 : vector<2x16xf32>
    %c8_148 = arith.constant 8 : index
    %c0_149 = arith.constant 0 : index
    %264 = vector.load %arg25[%c8_148, %c0_149] : memref<16x16xf32, #tpu.memory_space<vmem>>, vector<2x16xf32>
    tpu.vector_store %arg25[%c8_148, %c0_149], %263 {strides = array<i32>} : memref<16x16xf32, #tpu.memory_space<vmem>>, vector<2x16xf32>,
    %265 = vector.extract_strided_slice %86 {offsets = [10, 0], sizes = [2, 64], strides = [1, 1]} : vector<16x64xf32> to vector<2x64xf32>
    %cst_150 = arith.constant dense<0.000000e+00> : vector<2x64xf32>
    %266 = tpu.matmul %263, %87, %cst_150 {dimension_numbers = #tpu.dot_dimension_numbers<[1], [0], [0], [1], [0, 0, 1, 1], [], []>} : vector<2x16xf32>, vector<16x64xf32>, vector<2x64xf32> -> vector<2x64xf32>
    %267 = arith.addf %265, %266 : vector<2x64xf32>
    %268 = vector.extract_strided_slice %267 {offsets = [0, 0], sizes = [2, 16], strides = [1, 1]} : vector<2x64xf32> to vector<2x16xf32>
    %cst_151 = arith.constant 5.000000e-01 : f32
    %269 = vector.broadcast %cst_151 : f32 to vector<2x16xf32>
    %270 = arith.mulf %269, %268 : vector<2x16xf32>
    %271 = math.tanh %270 : vector<2x16xf32>
    %cst_152 = arith.constant 1.000000e+00 : f32
    %272 = vector.broadcast %cst_152 : f32 to vector<2x16xf32>
    %273 = arith.addf %271, %272 : vector<2x16xf32>
    %cst_153 = arith.constant 5.000000e-01 : f32
    %274 = vector.broadcast %cst_153 : f32 to vector<2x16xf32>
    %275 = arith.mulf %274, %273 : vector<2x16xf32>
    %276 = vector.extract_strided_slice %267 {offsets = [0, 16], sizes = [2, 16], strides = [1, 1]} : vector<2x64xf32> to vector<2x16xf32>
    %cst_154 = arith.constant 5.000000e-01 : f32
    %277 = vector.broadcast %cst_154 : f32 to vector<2x16xf32>
    %278 = arith.mulf %277, %276 : vector<2x16xf32>
    %279 = math.tanh %278 : vector<2x16xf32>
    %cst_155 = arith.constant 1.000000e+00 : f32
    %280 = vector.broadcast %cst_155 : f32 to vector<2x16xf32>
    %281 = arith.addf %279, %280 : vector<2x16xf32>
    %cst_156 = arith.constant 5.000000e-01 : f32
    %282 = vector.broadcast %cst_156 : f32 to vector<2x16xf32>
    %283 = arith.mulf %282, %281 : vector<2x16xf32>
    %284 = vector.extract_strided_slice %267 {offsets = [0, 32], sizes = [2, 16], strides = [1, 1]} : vector<2x64xf32> to vector<2x16xf32>
    %285 = math.tanh %284 : vector<2x16xf32>
    %286 = vector.extract_strided_slice %267 {offsets = [0, 48], sizes = [2, 16], strides = [1, 1]} : vector<2x64xf32> to vector<2x16xf32>
    %cst_157 = arith.constant 5.000000e-01 : f32
    %287 = vector.broadcast %cst_157 : f32 to vector<2x16xf32>
    %288 = arith.mulf %287, %286 : vector<2x16xf32>
    %289 = math.tanh %288 : vector<2x16xf32>
    %cst_158 = arith.constant 1.000000e+00 : f32
    %290 = vector.broadcast %cst_158 : f32 to vector<2x16xf32>
    %291 = arith.addf %289, %290 : vector<2x16xf32>
    %cst_159 = arith.constant 5.000000e-01 : f32
    %292 = vector.broadcast %cst_159 : f32 to vector<2x16xf32>
    %293 = arith.mulf %292, %291 : vector<2x16xf32>
    %294 = arith.mulf %283, %261 : vector<2x16xf32>
    %295 = arith.mulf %275, %285 : vector<2x16xf32>
    %296 = arith.addf %294, %295 : vector<2x16xf32>
    %297 = math.tanh %296 : vector<2x16xf32>
    %298 = arith.mulf %293, %297 : vector<2x16xf32>
    %c10_160 = arith.constant 10 : index
    %c0_161 = arith.constant 0 : index
    %299 = vector.load %arg25[%c10_160, %c0_161] : memref<16x16xf32, #tpu.memory_space<vmem>>, vector<2x16xf32>
    tpu.vector_store %arg25[%c10_160, %c0_161], %298 {strides = array<i32>} : memref<16x16xf32, #tpu.memory_space<vmem>>, vector<2x16xf32>,
    %300 = vector.extract_strided_slice %86 {offsets = [12, 0], sizes = [2, 64], strides = [1, 1]} : vector<16x64xf32> to vector<2x64xf32>
    %cst_162 = arith.constant dense<0.000000e+00> : vector<2x64xf32>
    %301 = tpu.matmul %298, %87, %cst_162 {dimension_numbers = #tpu.dot_dimension_numbers<[1], [0], [0], [1], [0, 0, 1, 1], [], []>} : vector<2x16xf32>, vector<16x64xf32>, vector<2x64xf32> -> vector<2x64xf32>
    %302 = arith.addf %300, %301 : vector<2x64xf32>
    %303 = vector.extract_strided_slice %302 {offsets = [0, 0], sizes = [2, 16], strides = [1, 1]} : vector<2x64xf32> to vector<2x16xf32>
    %cst_163 = arith.constant 5.000000e-01 : f32
    %304 = vector.broadcast %cst_163 : f32 to vector<2x16xf32>
    %305 = arith.mulf %304, %303 : vector<2x16xf32>
    %306 = math.tanh %305 : vector<2x16xf32>
    %cst_164 = arith.constant 1.000000e+00 : f32
    %307 = vector.broadcast %cst_164 : f32 to vector<2x16xf32>
    %308 = arith.addf %306, %307 : vector<2x16xf32>
    %cst_165 = arith.constant 5.000000e-01 : f32
    %309 = vector.broadcast %cst_165 : f32 to vector<2x16xf32>
    %310 = arith.mulf %309, %308 : vector<2x16xf32>
    %311 = vector.extract_strided_slice %302 {offsets = [0, 16], sizes = [2, 16], strides = [1, 1]} : vector<2x64xf32> to vector<2x16xf32>
    %cst_166 = arith.constant 5.000000e-01 : f32
    %312 = vector.broadcast %cst_166 : f32 to vector<2x16xf32>
    %313 = arith.mulf %312, %311 : vector<2x16xf32>
    %314 = math.tanh %313 : vector<2x16xf32>
    %cst_167 = arith.constant 1.000000e+00 : f32
    %315 = vector.broadcast %cst_167 : f32 to vector<2x16xf32>
    %316 = arith.addf %314, %315 : vector<2x16xf32>
    %cst_168 = arith.constant 5.000000e-01 : f32
    %317 = vector.broadcast %cst_168 : f32 to vector<2x16xf32>
    %318 = arith.mulf %317, %316 : vector<2x16xf32>
    %319 = vector.extract_strided_slice %302 {offsets = [0, 32], sizes = [2, 16], strides = [1, 1]} : vector<2x64xf32> to vector<2x16xf32>
    %320 = math.tanh %319 : vector<2x16xf32>
    %321 = vector.extract_strided_slice %302 {offsets = [0, 48], sizes = [2, 16], strides = [1, 1]} : vector<2x64xf32> to vector<2x16xf32>
    %cst_169 = arith.constant 5.000000e-01 : f32
    %322 = vector.broadcast %cst_169 : f32 to vector<2x16xf32>
    %323 = arith.mulf %322, %321 : vector<2x16xf32>
    %324 = math.tanh %323 : vector<2x16xf32>
    %cst_170 = arith.constant 1.000000e+00 : f32
    %325 = vector.broadcast %cst_170 : f32 to vector<2x16xf32>
    %326 = arith.addf %324, %325 : vector<2x16xf32>
    %cst_171 = arith.constant 5.000000e-01 : f32
    %327 = vector.broadcast %cst_171 : f32 to vector<2x16xf32>
    %328 = arith.mulf %327, %326 : vector<2x16xf32>
    %329 = arith.mulf %318, %296 : vector<2x16xf32>
    %330 = arith.mulf %310, %320 : vector<2x16xf32>
    %331 = arith.addf %329, %330 : vector<2x16xf32>
    %332 = math.tanh %331 : vector<2x16xf32>
    %333 = arith.mulf %328, %332 : vector<2x16xf32>
    %c12_172 = arith.constant 12 : index
    %c0_173 = arith.constant 0 : index
    %334 = vector.load %arg25[%c12_172, %c0_173] : memref<16x16xf32, #tpu.memory_space<vmem>>, vector<2x16xf32>
    tpu.vector_store %arg25[%c12_172, %c0_173], %333 {strides = array<i32>} : memref<16x16xf32, #tpu.memory_space<vmem>>, vector<2x16xf32>,
    %335 = vector.extract_strided_slice %86 {offsets = [14, 0], sizes = [2, 64], strides = [1, 1]} : vector<16x64xf32> to vector<2x64xf32>
    %cst_174 = arith.constant dense<0.000000e+00> : vector<2x64xf32>
    %336 = tpu.matmul %333, %87, %cst_174 {dimension_numbers = #tpu.dot_dimension_numbers<[1], [0], [0], [1], [0, 0, 1, 1], [], []>} : vector<2x16xf32>, vector<16x64xf32>, vector<2x64xf32> -> vector<2x64xf32>
    %337 = arith.addf %335, %336 : vector<2x64xf32>
    %338 = vector.extract_strided_slice %337 {offsets = [0, 0], sizes = [2, 16], strides = [1, 1]} : vector<2x64xf32> to vector<2x16xf32>
    %cst_175 = arith.constant 5.000000e-01 : f32
    %339 = vector.broadcast %cst_175 : f32 to vector<2x16xf32>
    %340 = arith.mulf %339, %338 : vector<2x16xf32>
    %341 = math.tanh %340 : vector<2x16xf32>
    %cst_176 = arith.constant 1.000000e+00 : f32
    %342 = vector.broadcast %cst_176 : f32 to vector<2x16xf32>
    %343 = arith.addf %341, %342 : vector<2x16xf32>
    %cst_177 = arith.constant 5.000000e-01 : f32
    %344 = vector.broadcast %cst_177 : f32 to vector<2x16xf32>
    %345 = arith.mulf %344, %343 : vector<2x16xf32>
    %346 = vector.extract_strided_slice %337 {offsets = [0, 16], sizes = [2, 16], strides = [1, 1]} : vector<2x64xf32> to vector<2x16xf32>
    %cst_178 = arith.constant 5.000000e-01 : f32
    %347 = vector.broadcast %cst_178 : f32 to vector<2x16xf32>
    %348 = arith.mulf %347, %346 : vector<2x16xf32>
    %349 = math.tanh %348 : vector<2x16xf32>
    %cst_179 = arith.constant 1.000000e+00 : f32
    %350 = vector.broadcast %cst_179 : f32 to vector<2x16xf32>
    %351 = arith.addf %349, %350 : vector<2x16xf32>
    %cst_180 = arith.constant 5.000000e-01 : f32
    %352 = vector.broadcast %cst_180 : f32 to vector<2x16xf32>
    %353 = arith.mulf %352, %351 : vector<2x16xf32>
    %354 = vector.extract_strided_slice %337 {offsets = [0, 32], sizes = [2, 16], strides = [1, 1]} : vector<2x64xf32> to vector<2x16xf32>
    %355 = math.tanh %354 : vector<2x16xf32>
    %356 = vector.extract_strided_slice %337 {offsets = [0, 48], sizes = [2, 16], strides = [1, 1]} : vector<2x64xf32> to vector<2x16xf32>
    %cst_181 = arith.constant 5.000000e-01 : f32
    %357 = vector.broadcast %cst_181 : f32 to vector<2x16xf32>
    %358 = arith.mulf %357, %356 : vector<2x16xf32>
    %359 = math.tanh %358 : vector<2x16xf32>
    %cst_182 = arith.constant 1.000000e+00 : f32
    %360 = vector.broadcast %cst_182 : f32 to vector<2x16xf32>
    %361 = arith.addf %359, %360 : vector<2x16xf32>
    %cst_183 = arith.constant 5.000000e-01 : f32
    %362 = vector.broadcast %cst_183 : f32 to vector<2x16xf32>
    %363 = arith.mulf %362, %361 : vector<2x16xf32>
    %364 = arith.mulf %353, %331 : vector<2x16xf32>
    %365 = arith.mulf %345, %355 : vector<2x16xf32>
    %366 = arith.addf %364, %365 : vector<2x16xf32>
    %367 = math.tanh %366 : vector<2x16xf32>
    %368 = arith.mulf %363, %367 : vector<2x16xf32>
    %c14_184 = arith.constant 14 : index
    %c0_185 = arith.constant 0 : index
    %369 = vector.load %arg25[%c14_184, %c0_185] : memref<16x16xf32, #tpu.memory_space<vmem>>, vector<2x16xf32>
    tpu.vector_store %arg25[%c14_184, %c0_185], %368 {strides = array<i32>} : memref<16x16xf32, #tpu.memory_space<vmem>>, vector<2x16xf32>,
    %c0_186 = arith.constant 0 : index
    %c0_187 = arith.constant 0 : index
    %370 = vector.load %arg25[%c0_186, %c0_187] : memref<16x16xf32, #tpu.memory_space<vmem>>, vector<16x16xf32>
    %c0_188 = arith.constant 0 : index
    %c0_189 = arith.constant 0 : index
    %371 = vector.load %arg6[%c0_188, %c0_189] : memref<16x64xf32, #tpu.memory_space<vmem>>, vector<16x64xf32>
    %cst_190 = arith.constant dense<0.000000e+00> : vector<16x64xf32>
    %372 = tpu.matmul %370, %371, %cst_190 {dimension_numbers = #tpu.dot_dimension_numbers<[1], [0], [0], [1], [0, 0, 1, 1], [], []>} : vector<16x16xf32>, vector<16x64xf32>, vector<16x64xf32> -> vector<16x64xf32>
    %c0_191 = arith.constant 0 : index
    %c0_192 = arith.constant 0 : index
    %373 = vector.load %arg8[%c0_191, %c0_192] : memref<1x64xf32, #tpu.memory_space<vmem>>, vector<1x64xf32>
    %374 = vector.broadcast %373 : vector<1x64xf32> to vector<16x64xf32>
    %375 = arith.addf %372, %374 : vector<16x64xf32>
    %c0_193 = arith.constant 0 : index
    %c0_194 = arith.constant 0 : index
    %376 = vector.load %arg7[%c0_193, %c0_194] : memref<16x64xf32, #tpu.memory_space<vmem>>, vector<16x64xf32>
    %cst_195 = arith.constant 0.000000e+00 : f32
    %377 = vector.broadcast %cst_195 : f32 to vector<2x16xf32>
    %cst_196 = arith.constant 0.000000e+00 : f32
    %378 = vector.broadcast %cst_196 : f32 to vector<2x16xf32>
    %379 = vector.extract_strided_slice %375 {offsets = [0, 0], sizes = [2, 64], strides = [1, 1]} : vector<16x64xf32> to vector<2x64xf32>
    %cst_197 = arith.constant dense<0.000000e+00> : vector<2x64xf32>
    %380 = tpu.matmul %377, %376, %cst_197 {dimension_numbers = #tpu.dot_dimension_numbers<[1], [0], [0], [1], [0, 0, 1, 1], [], []>} : vector<2x16xf32>, vector<16x64xf32>, vector<2x64xf32> -> vector<2x64xf32>
    %381 = arith.addf %379, %380 : vector<2x64xf32>
    %382 = vector.extract_strided_slice %381 {offsets = [0, 0], sizes = [2, 16], strides = [1, 1]} : vector<2x64xf32> to vector<2x16xf32>
    %cst_198 = arith.constant 5.000000e-01 : f32
    %383 = vector.broadcast %cst_198 : f32 to vector<2x16xf32>
    %384 = arith.mulf %383, %382 : vector<2x16xf32>
    %385 = math.tanh %384 : vector<2x16xf32>
    %cst_199 = arith.constant 1.000000e+00 : f32
    %386 = vector.broadcast %cst_199 : f32 to vector<2x16xf32>
    %387 = arith.addf %385, %386 : vector<2x16xf32>
    %cst_200 = arith.constant 5.000000e-01 : f32
    %388 = vector.broadcast %cst_200 : f32 to vector<2x16xf32>
    %389 = arith.mulf %388, %387 : vector<2x16xf32>
    %390 = vector.extract_strided_slice %381 {offsets = [0, 16], sizes = [2, 16], strides = [1, 1]} : vector<2x64xf32> to vector<2x16xf32>
    %cst_201 = arith.constant 5.000000e-01 : f32
    %391 = vector.broadcast %cst_201 : f32 to vector<2x16xf32>
    %392 = arith.mulf %391, %390 : vector<2x16xf32>
    %393 = math.tanh %392 : vector<2x16xf32>
    %cst_202 = arith.constant 1.000000e+00 : f32
    %394 = vector.broadcast %cst_202 : f32 to vector<2x16xf32>
    %395 = arith.addf %393, %394 : vector<2x16xf32>
    %cst_203 = arith.constant 5.000000e-01 : f32
    %396 = vector.broadcast %cst_203 : f32 to vector<2x16xf32>
    %397 = arith.mulf %396, %395 : vector<2x16xf32>
    %398 = vector.extract_strided_slice %381 {offsets = [0, 32], sizes = [2, 16], strides = [1, 1]} : vector<2x64xf32> to vector<2x16xf32>
    %399 = math.tanh %398 : vector<2x16xf32>
    %400 = vector.extract_strided_slice %381 {offsets = [0, 48], sizes = [2, 16], strides = [1, 1]} : vector<2x64xf32> to vector<2x16xf32>
    %cst_204 = arith.constant 5.000000e-01 : f32
    %401 = vector.broadcast %cst_204 : f32 to vector<2x16xf32>
    %402 = arith.mulf %401, %400 : vector<2x16xf32>
    %403 = math.tanh %402 : vector<2x16xf32>
    %cst_205 = arith.constant 1.000000e+00 : f32
    %404 = vector.broadcast %cst_205 : f32 to vector<2x16xf32>
    %405 = arith.addf %403, %404 : vector<2x16xf32>
    %cst_206 = arith.constant 5.000000e-01 : f32
    %406 = vector.broadcast %cst_206 : f32 to vector<2x16xf32>
    %407 = arith.mulf %406, %405 : vector<2x16xf32>
    %408 = arith.mulf %397, %378 : vector<2x16xf32>
    %409 = arith.mulf %389, %399 : vector<2x16xf32>
    %410 = arith.addf %408, %409 : vector<2x16xf32>
    %411 = math.tanh %410 : vector<2x16xf32>
    %412 = arith.mulf %407, %411 : vector<2x16xf32>
    %413 = vector.extract_strided_slice %375 {offsets = [2, 0], sizes = [2, 64], strides = [1, 1]} : vector<16x64xf32> to vector<2x64xf32>
    %cst_207 = arith.constant dense<0.000000e+00> : vector<2x64xf32>
    %414 = tpu.matmul %412, %376, %cst_207 {dimension_numbers = #tpu.dot_dimension_numbers<[1], [0], [0], [1], [0, 0, 1, 1], [], []>} : vector<2x16xf32>, vector<16x64xf32>, vector<2x64xf32> -> vector<2x64xf32>
    %415 = arith.addf %413, %414 : vector<2x64xf32>
    %416 = vector.extract_strided_slice %415 {offsets = [0, 0], sizes = [2, 16], strides = [1, 1]} : vector<2x64xf32> to vector<2x16xf32>
    %cst_208 = arith.constant 5.000000e-01 : f32
    %417 = vector.broadcast %cst_208 : f32 to vector<2x16xf32>
    %418 = arith.mulf %417, %416 : vector<2x16xf32>
    %419 = math.tanh %418 : vector<2x16xf32>
    %cst_209 = arith.constant 1.000000e+00 : f32
    %420 = vector.broadcast %cst_209 : f32 to vector<2x16xf32>
    %421 = arith.addf %419, %420 : vector<2x16xf32>
    %cst_210 = arith.constant 5.000000e-01 : f32
    %422 = vector.broadcast %cst_210 : f32 to vector<2x16xf32>
    %423 = arith.mulf %422, %421 : vector<2x16xf32>
    %424 = vector.extract_strided_slice %415 {offsets = [0, 16], sizes = [2, 16], strides = [1, 1]} : vector<2x64xf32> to vector<2x16xf32>
    %cst_211 = arith.constant 5.000000e-01 : f32
    %425 = vector.broadcast %cst_211 : f32 to vector<2x16xf32>
    %426 = arith.mulf %425, %424 : vector<2x16xf32>
    %427 = math.tanh %426 : vector<2x16xf32>
    %cst_212 = arith.constant 1.000000e+00 : f32
    %428 = vector.broadcast %cst_212 : f32 to vector<2x16xf32>
    %429 = arith.addf %427, %428 : vector<2x16xf32>
    %cst_213 = arith.constant 5.000000e-01 : f32
    %430 = vector.broadcast %cst_213 : f32 to vector<2x16xf32>
    %431 = arith.mulf %430, %429 : vector<2x16xf32>
    %432 = vector.extract_strided_slice %415 {offsets = [0, 32], sizes = [2, 16], strides = [1, 1]} : vector<2x64xf32> to vector<2x16xf32>
    %433 = math.tanh %432 : vector<2x16xf32>
    %434 = vector.extract_strided_slice %415 {offsets = [0, 48], sizes = [2, 16], strides = [1, 1]} : vector<2x64xf32> to vector<2x16xf32>
    %cst_214 = arith.constant 5.000000e-01 : f32
    %435 = vector.broadcast %cst_214 : f32 to vector<2x16xf32>
    %436 = arith.mulf %435, %434 : vector<2x16xf32>
    %437 = math.tanh %436 : vector<2x16xf32>
    %cst_215 = arith.constant 1.000000e+00 : f32
    %438 = vector.broadcast %cst_215 : f32 to vector<2x16xf32>
    %439 = arith.addf %437, %438 : vector<2x16xf32>
    %cst_216 = arith.constant 5.000000e-01 : f32
    %440 = vector.broadcast %cst_216 : f32 to vector<2x16xf32>
    %441 = arith.mulf %440, %439 : vector<2x16xf32>
    %442 = arith.mulf %431, %410 : vector<2x16xf32>
    %443 = arith.mulf %423, %433 : vector<2x16xf32>
    %444 = arith.addf %442, %443 : vector<2x16xf32>
    %445 = math.tanh %444 : vector<2x16xf32>
    %446 = arith.mulf %441, %445 : vector<2x16xf32>
    %447 = vector.extract_strided_slice %375 {offsets = [4, 0], sizes = [2, 64], strides = [1, 1]} : vector<16x64xf32> to vector<2x64xf32>
    %cst_217 = arith.constant dense<0.000000e+00> : vector<2x64xf32>
    %448 = tpu.matmul %446, %376, %cst_217 {dimension_numbers = #tpu.dot_dimension_numbers<[1], [0], [0], [1], [0, 0, 1, 1], [], []>} : vector<2x16xf32>, vector<16x64xf32>, vector<2x64xf32> -> vector<2x64xf32>
    %449 = arith.addf %447, %448 : vector<2x64xf32>
    %450 = vector.extract_strided_slice %449 {offsets = [0, 0], sizes = [2, 16], strides = [1, 1]} : vector<2x64xf32> to vector<2x16xf32>
    %cst_218 = arith.constant 5.000000e-01 : f32
    %451 = vector.broadcast %cst_218 : f32 to vector<2x16xf32>
    %452 = arith.mulf %451, %450 : vector<2x16xf32>
    %453 = math.tanh %452 : vector<2x16xf32>
    %cst_219 = arith.constant 1.000000e+00 : f32
    %454 = vector.broadcast %cst_219 : f32 to vector<2x16xf32>
    %455 = arith.addf %453, %454 : vector<2x16xf32>
    %cst_220 = arith.constant 5.000000e-01 : f32
    %456 = vector.broadcast %cst_220 : f32 to vector<2x16xf32>
    %457 = arith.mulf %456, %455 : vector<2x16xf32>
    %458 = vector.extract_strided_slice %449 {offsets = [0, 16], sizes = [2, 16], strides = [1, 1]} : vector<2x64xf32> to vector<2x16xf32>
    %cst_221 = arith.constant 5.000000e-01 : f32
    %459 = vector.broadcast %cst_221 : f32 to vector<2x16xf32>
    %460 = arith.mulf %459, %458 : vector<2x16xf32>
    %461 = math.tanh %460 : vector<2x16xf32>
    %cst_222 = arith.constant 1.000000e+00 : f32
    %462 = vector.broadcast %cst_222 : f32 to vector<2x16xf32>
    %463 = arith.addf %461, %462 : vector<2x16xf32>
    %cst_223 = arith.constant 5.000000e-01 : f32
    %464 = vector.broadcast %cst_223 : f32 to vector<2x16xf32>
    %465 = arith.mulf %464, %463 : vector<2x16xf32>
    %466 = vector.extract_strided_slice %449 {offsets = [0, 32], sizes = [2, 16], strides = [1, 1]} : vector<2x64xf32> to vector<2x16xf32>
    %467 = math.tanh %466 : vector<2x16xf32>
    %468 = vector.extract_strided_slice %449 {offsets = [0, 48], sizes = [2, 16], strides = [1, 1]} : vector<2x64xf32> to vector<2x16xf32>
    %cst_224 = arith.constant 5.000000e-01 : f32
    %469 = vector.broadcast %cst_224 : f32 to vector<2x16xf32>
    %470 = arith.mulf %469, %468 : vector<2x16xf32>
    %471 = math.tanh %470 : vector<2x16xf32>
    %cst_225 = arith.constant 1.000000e+00 : f32
    %472 = vector.broadcast %cst_225 : f32 to vector<2x16xf32>
    %473 = arith.addf %471, %472 : vector<2x16xf32>
    %cst_226 = arith.constant 5.000000e-01 : f32
    %474 = vector.broadcast %cst_226 : f32 to vector<2x16xf32>
    %475 = arith.mulf %474, %473 : vector<2x16xf32>
    %476 = arith.mulf %465, %444 : vector<2x16xf32>
    %477 = arith.mulf %457, %467 : vector<2x16xf32>
    %478 = arith.addf %476, %477 : vector<2x16xf32>
    %479 = math.tanh %478 : vector<2x16xf32>
    %480 = arith.mulf %475, %479 : vector<2x16xf32>
    %481 = vector.extract_strided_slice %375 {offsets = [6, 0], sizes = [2, 64], strides = [1, 1]} : vector<16x64xf32> to vector<2x64xf32>
    %cst_227 = arith.constant dense<0.000000e+00> : vector<2x64xf32>
    %482 = tpu.matmul %480, %376, %cst_227 {dimension_numbers = #tpu.dot_dimension_numbers<[1], [0], [0], [1], [0, 0, 1, 1], [], []>} : vector<2x16xf32>, vector<16x64xf32>, vector<2x64xf32> -> vector<2x64xf32>
    %483 = arith.addf %481, %482 : vector<2x64xf32>
    %484 = vector.extract_strided_slice %483 {offsets = [0, 0], sizes = [2, 16], strides = [1, 1]} : vector<2x64xf32> to vector<2x16xf32>
    %cst_228 = arith.constant 5.000000e-01 : f32
    %485 = vector.broadcast %cst_228 : f32 to vector<2x16xf32>
    %486 = arith.mulf %485, %484 : vector<2x16xf32>
    %487 = math.tanh %486 : vector<2x16xf32>
    %cst_229 = arith.constant 1.000000e+00 : f32
    %488 = vector.broadcast %cst_229 : f32 to vector<2x16xf32>
    %489 = arith.addf %487, %488 : vector<2x16xf32>
    %cst_230 = arith.constant 5.000000e-01 : f32
    %490 = vector.broadcast %cst_230 : f32 to vector<2x16xf32>
    %491 = arith.mulf %490, %489 : vector<2x16xf32>
    %492 = vector.extract_strided_slice %483 {offsets = [0, 16], sizes = [2, 16], strides = [1, 1]} : vector<2x64xf32> to vector<2x16xf32>
    %cst_231 = arith.constant 5.000000e-01 : f32
    %493 = vector.broadcast %cst_231 : f32 to vector<2x16xf32>
    %494 = arith.mulf %493, %492 : vector<2x16xf32>
    %495 = math.tanh %494 : vector<2x16xf32>
    %cst_232 = arith.constant 1.000000e+00 : f32
    %496 = vector.broadcast %cst_232 : f32 to vector<2x16xf32>
    %497 = arith.addf %495, %496 : vector<2x16xf32>
    %cst_233 = arith.constant 5.000000e-01 : f32
    %498 = vector.broadcast %cst_233 : f32 to vector<2x16xf32>
    %499 = arith.mulf %498, %497 : vector<2x16xf32>
    %500 = vector.extract_strided_slice %483 {offsets = [0, 32], sizes = [2, 16], strides = [1, 1]} : vector<2x64xf32> to vector<2x16xf32>
    %501 = math.tanh %500 : vector<2x16xf32>
    %502 = vector.extract_strided_slice %483 {offsets = [0, 48], sizes = [2, 16], strides = [1, 1]} : vector<2x64xf32> to vector<2x16xf32>
    %cst_234 = arith.constant 5.000000e-01 : f32
    %503 = vector.broadcast %cst_234 : f32 to vector<2x16xf32>
    %504 = arith.mulf %503, %502 : vector<2x16xf32>
    %505 = math.tanh %504 : vector<2x16xf32>
    %cst_235 = arith.constant 1.000000e+00 : f32
    %506 = vector.broadcast %cst_235 : f32 to vector<2x16xf32>
    %507 = arith.addf %505, %506 : vector<2x16xf32>
    %cst_236 = arith.constant 5.000000e-01 : f32
    %508 = vector.broadcast %cst_236 : f32 to vector<2x16xf32>
    %509 = arith.mulf %508, %507 : vector<2x16xf32>
    %510 = arith.mulf %499, %478 : vector<2x16xf32>
    %511 = arith.mulf %491, %501 : vector<2x16xf32>
    %512 = arith.addf %510, %511 : vector<2x16xf32>
    %513 = math.tanh %512 : vector<2x16xf32>
    %514 = arith.mulf %509, %513 : vector<2x16xf32>
    %515 = vector.extract_strided_slice %375 {offsets = [8, 0], sizes = [2, 64], strides = [1, 1]} : vector<16x64xf32> to vector<2x64xf32>
    %cst_237 = arith.constant dense<0.000000e+00> : vector<2x64xf32>
    %516 = tpu.matmul %514, %376, %cst_237 {dimension_numbers = #tpu.dot_dimension_numbers<[1], [0], [0], [1], [0, 0, 1, 1], [], []>} : vector<2x16xf32>, vector<16x64xf32>, vector<2x64xf32> -> vector<2x64xf32>
    %517 = arith.addf %515, %516 : vector<2x64xf32>
    %518 = vector.extract_strided_slice %517 {offsets = [0, 0], sizes = [2, 16], strides = [1, 1]} : vector<2x64xf32> to vector<2x16xf32>
    %cst_238 = arith.constant 5.000000e-01 : f32
    %519 = vector.broadcast %cst_238 : f32 to vector<2x16xf32>
    %520 = arith.mulf %519, %518 : vector<2x16xf32>
    %521 = math.tanh %520 : vector<2x16xf32>
    %cst_239 = arith.constant 1.000000e+00 : f32
    %522 = vector.broadcast %cst_239 : f32 to vector<2x16xf32>
    %523 = arith.addf %521, %522 : vector<2x16xf32>
    %cst_240 = arith.constant 5.000000e-01 : f32
    %524 = vector.broadcast %cst_240 : f32 to vector<2x16xf32>
    %525 = arith.mulf %524, %523 : vector<2x16xf32>
    %526 = vector.extract_strided_slice %517 {offsets = [0, 16], sizes = [2, 16], strides = [1, 1]} : vector<2x64xf32> to vector<2x16xf32>
    %cst_241 = arith.constant 5.000000e-01 : f32
    %527 = vector.broadcast %cst_241 : f32 to vector<2x16xf32>
    %528 = arith.mulf %527, %526 : vector<2x16xf32>
    %529 = math.tanh %528 : vector<2x16xf32>
    %cst_242 = arith.constant 1.000000e+00 : f32
    %530 = vector.broadcast %cst_242 : f32 to vector<2x16xf32>
    %531 = arith.addf %529, %530 : vector<2x16xf32>
    %cst_243 = arith.constant 5.000000e-01 : f32
    %532 = vector.broadcast %cst_243 : f32 to vector<2x16xf32>
    %533 = arith.mulf %532, %531 : vector<2x16xf32>
    %534 = vector.extract_strided_slice %517 {offsets = [0, 32], sizes = [2, 16], strides = [1, 1]} : vector<2x64xf32> to vector<2x16xf32>
    %535 = math.tanh %534 : vector<2x16xf32>
    %536 = vector.extract_strided_slice %517 {offsets = [0, 48], sizes = [2, 16], strides = [1, 1]} : vector<2x64xf32> to vector<2x16xf32>
    %cst_244 = arith.constant 5.000000e-01 : f32
    %537 = vector.broadcast %cst_244 : f32 to vector<2x16xf32>
    %538 = arith.mulf %537, %536 : vector<2x16xf32>
    %539 = math.tanh %538 : vector<2x16xf32>
    %cst_245 = arith.constant 1.000000e+00 : f32
    %540 = vector.broadcast %cst_245 : f32 to vector<2x16xf32>
    %541 = arith.addf %539, %540 : vector<2x16xf32>
    %cst_246 = arith.constant 5.000000e-01 : f32
    %542 = vector.broadcast %cst_246 : f32 to vector<2x16xf32>
    %543 = arith.mulf %542, %541 : vector<2x16xf32>
    %544 = arith.mulf %533, %512 : vector<2x16xf32>
    %545 = arith.mulf %525, %535 : vector<2x16xf32>
    %546 = arith.addf %544, %545 : vector<2x16xf32>
    %547 = math.tanh %546 : vector<2x16xf32>
    %548 = arith.mulf %543, %547 : vector<2x16xf32>
    %549 = vector.extract_strided_slice %375 {offsets = [10, 0], sizes = [2, 64], strides = [1, 1]} : vector<16x64xf32> to vector<2x64xf32>
    %cst_247 = arith.constant dense<0.000000e+00> : vector<2x64xf32>
    %550 = tpu.matmul %548, %376, %cst_247 {dimension_numbers = #tpu.dot_dimension_numbers<[1], [0], [0], [1], [0, 0, 1, 1], [], []>} : vector<2x16xf32>, vector<16x64xf32>, vector<2x64xf32> -> vector<2x64xf32>
    %551 = arith.addf %549, %550 : vector<2x64xf32>
    %552 = vector.extract_strided_slice %551 {offsets = [0, 0], sizes = [2, 16], strides = [1, 1]} : vector<2x64xf32> to vector<2x16xf32>
    %cst_248 = arith.constant 5.000000e-01 : f32
    %553 = vector.broadcast %cst_248 : f32 to vector<2x16xf32>
    %554 = arith.mulf %553, %552 : vector<2x16xf32>
    %555 = math.tanh %554 : vector<2x16xf32>
    %cst_249 = arith.constant 1.000000e+00 : f32
    %556 = vector.broadcast %cst_249 : f32 to vector<2x16xf32>
    %557 = arith.addf %555, %556 : vector<2x16xf32>
    %cst_250 = arith.constant 5.000000e-01 : f32
    %558 = vector.broadcast %cst_250 : f32 to vector<2x16xf32>
    %559 = arith.mulf %558, %557 : vector<2x16xf32>
    %560 = vector.extract_strided_slice %551 {offsets = [0, 16], sizes = [2, 16], strides = [1, 1]} : vector<2x64xf32> to vector<2x16xf32>
    %cst_251 = arith.constant 5.000000e-01 : f32
    %561 = vector.broadcast %cst_251 : f32 to vector<2x16xf32>
    %562 = arith.mulf %561, %560 : vector<2x16xf32>
    %563 = math.tanh %562 : vector<2x16xf32>
    %cst_252 = arith.constant 1.000000e+00 : f32
    %564 = vector.broadcast %cst_252 : f32 to vector<2x16xf32>
    %565 = arith.addf %563, %564 : vector<2x16xf32>
    %cst_253 = arith.constant 5.000000e-01 : f32
    %566 = vector.broadcast %cst_253 : f32 to vector<2x16xf32>
    %567 = arith.mulf %566, %565 : vector<2x16xf32>
    %568 = vector.extract_strided_slice %551 {offsets = [0, 32], sizes = [2, 16], strides = [1, 1]} : vector<2x64xf32> to vector<2x16xf32>
    %569 = math.tanh %568 : vector<2x16xf32>
    %570 = vector.extract_strided_slice %551 {offsets = [0, 48], sizes = [2, 16], strides = [1, 1]} : vector<2x64xf32> to vector<2x16xf32>
    %cst_254 = arith.constant 5.000000e-01 : f32
    %571 = vector.broadcast %cst_254 : f32 to vector<2x16xf32>
    %572 = arith.mulf %571, %570 : vector<2x16xf32>
    %573 = math.tanh %572 : vector<2x16xf32>
    %cst_255 = arith.constant 1.000000e+00 : f32
    %574 = vector.broadcast %cst_255 : f32 to vector<2x16xf32>
    %575 = arith.addf %573, %574 : vector<2x16xf32>
    %cst_256 = arith.constant 5.000000e-01 : f32
    %576 = vector.broadcast %cst_256 : f32 to vector<2x16xf32>
    %577 = arith.mulf %576, %575 : vector<2x16xf32>
    %578 = arith.mulf %567, %546 : vector<2x16xf32>
    %579 = arith.mulf %559, %569 : vector<2x16xf32>
    %580 = arith.addf %578, %579 : vector<2x16xf32>
    %581 = math.tanh %580 : vector<2x16xf32>
    %582 = arith.mulf %577, %581 : vector<2x16xf32>
    %583 = vector.extract_strided_slice %375 {offsets = [12, 0], sizes = [2, 64], strides = [1, 1]} : vector<16x64xf32> to vector<2x64xf32>
    %cst_257 = arith.constant dense<0.000000e+00> : vector<2x64xf32>
    %584 = tpu.matmul %582, %376, %cst_257 {dimension_numbers = #tpu.dot_dimension_numbers<[1], [0], [0], [1], [0, 0, 1, 1], [], []>} : vector<2x16xf32>, vector<16x64xf32>, vector<2x64xf32> -> vector<2x64xf32>
    %585 = arith.addf %583, %584 : vector<2x64xf32>
    %586 = vector.extract_strided_slice %585 {offsets = [0, 0], sizes = [2, 16], strides = [1, 1]} : vector<2x64xf32> to vector<2x16xf32>
    %cst_258 = arith.constant 5.000000e-01 : f32
    %587 = vector.broadcast %cst_258 : f32 to vector<2x16xf32>
    %588 = arith.mulf %587, %586 : vector<2x16xf32>
    %589 = math.tanh %588 : vector<2x16xf32>
    %cst_259 = arith.constant 1.000000e+00 : f32
    %590 = vector.broadcast %cst_259 : f32 to vector<2x16xf32>
    %591 = arith.addf %589, %590 : vector<2x16xf32>
    %cst_260 = arith.constant 5.000000e-01 : f32
    %592 = vector.broadcast %cst_260 : f32 to vector<2x16xf32>
    %593 = arith.mulf %592, %591 : vector<2x16xf32>
    %594 = vector.extract_strided_slice %585 {offsets = [0, 16], sizes = [2, 16], strides = [1, 1]} : vector<2x64xf32> to vector<2x16xf32>
    %cst_261 = arith.constant 5.000000e-01 : f32
    %595 = vector.broadcast %cst_261 : f32 to vector<2x16xf32>
    %596 = arith.mulf %595, %594 : vector<2x16xf32>
    %597 = math.tanh %596 : vector<2x16xf32>
    %cst_262 = arith.constant 1.000000e+00 : f32
    %598 = vector.broadcast %cst_262 : f32 to vector<2x16xf32>
    %599 = arith.addf %597, %598 : vector<2x16xf32>
    %cst_263 = arith.constant 5.000000e-01 : f32
    %600 = vector.broadcast %cst_263 : f32 to vector<2x16xf32>
    %601 = arith.mulf %600, %599 : vector<2x16xf32>
    %602 = vector.extract_strided_slice %585 {offsets = [0, 32], sizes = [2, 16], strides = [1, 1]} : vector<2x64xf32> to vector<2x16xf32>
    %603 = math.tanh %602 : vector<2x16xf32>
    %604 = vector.extract_strided_slice %585 {offsets = [0, 48], sizes = [2, 16], strides = [1, 1]} : vector<2x64xf32> to vector<2x16xf32>
    %cst_264 = arith.constant 5.000000e-01 : f32
    %605 = vector.broadcast %cst_264 : f32 to vector<2x16xf32>
    %606 = arith.mulf %605, %604 : vector<2x16xf32>
    %607 = math.tanh %606 : vector<2x16xf32>
    %cst_265 = arith.constant 1.000000e+00 : f32
    %608 = vector.broadcast %cst_265 : f32 to vector<2x16xf32>
    %609 = arith.addf %607, %608 : vector<2x16xf32>
    %cst_266 = arith.constant 5.000000e-01 : f32
    %610 = vector.broadcast %cst_266 : f32 to vector<2x16xf32>
    %611 = arith.mulf %610, %609 : vector<2x16xf32>
    %612 = arith.mulf %601, %580 : vector<2x16xf32>
    %613 = arith.mulf %593, %603 : vector<2x16xf32>
    %614 = arith.addf %612, %613 : vector<2x16xf32>
    %615 = math.tanh %614 : vector<2x16xf32>
    %616 = arith.mulf %611, %615 : vector<2x16xf32>
    %617 = vector.extract_strided_slice %375 {offsets = [14, 0], sizes = [2, 64], strides = [1, 1]} : vector<16x64xf32> to vector<2x64xf32>
    %cst_267 = arith.constant dense<0.000000e+00> : vector<2x64xf32>
    %618 = tpu.matmul %616, %376, %cst_267 {dimension_numbers = #tpu.dot_dimension_numbers<[1], [0], [0], [1], [0, 0, 1, 1], [], []>} : vector<2x16xf32>, vector<16x64xf32>, vector<2x64xf32> -> vector<2x64xf32>
    %619 = arith.addf %617, %618 : vector<2x64xf32>
    %620 = vector.extract_strided_slice %619 {offsets = [0, 0], sizes = [2, 16], strides = [1, 1]} : vector<2x64xf32> to vector<2x16xf32>
    %cst_268 = arith.constant 5.000000e-01 : f32
    %621 = vector.broadcast %cst_268 : f32 to vector<2x16xf32>
    %622 = arith.mulf %621, %620 : vector<2x16xf32>
    %623 = math.tanh %622 : vector<2x16xf32>
    %cst_269 = arith.constant 1.000000e+00 : f32
    %624 = vector.broadcast %cst_269 : f32 to vector<2x16xf32>
    %625 = arith.addf %623, %624 : vector<2x16xf32>
    %cst_270 = arith.constant 5.000000e-01 : f32
    %626 = vector.broadcast %cst_270 : f32 to vector<2x16xf32>
    %627 = arith.mulf %626, %625 : vector<2x16xf32>
    %628 = vector.extract_strided_slice %619 {offsets = [0, 16], sizes = [2, 16], strides = [1, 1]} : vector<2x64xf32> to vector<2x16xf32>
    %cst_271 = arith.constant 5.000000e-01 : f32
    %629 = vector.broadcast %cst_271 : f32 to vector<2x16xf32>
    %630 = arith.mulf %629, %628 : vector<2x16xf32>
    %631 = math.tanh %630 : vector<2x16xf32>
    %cst_272 = arith.constant 1.000000e+00 : f32
    %632 = vector.broadcast %cst_272 : f32 to vector<2x16xf32>
    %633 = arith.addf %631, %632 : vector<2x16xf32>
    %cst_273 = arith.constant 5.000000e-01 : f32
    %634 = vector.broadcast %cst_273 : f32 to vector<2x16xf32>
    %635 = arith.mulf %634, %633 : vector<2x16xf32>
    %636 = vector.extract_strided_slice %619 {offsets = [0, 32], sizes = [2, 16], strides = [1, 1]} : vector<2x64xf32> to vector<2x16xf32>
    %637 = math.tanh %636 : vector<2x16xf32>
    %638 = vector.extract_strided_slice %619 {offsets = [0, 48], sizes = [2, 16], strides = [1, 1]} : vector<2x64xf32> to vector<2x16xf32>
    %cst_274 = arith.constant 5.000000e-01 : f32
    %639 = vector.broadcast %cst_274 : f32 to vector<2x16xf32>
    %640 = arith.mulf %639, %638 : vector<2x16xf32>
    %641 = math.tanh %640 : vector<2x16xf32>
    %cst_275 = arith.constant 1.000000e+00 : f32
    %642 = vector.broadcast %cst_275 : f32 to vector<2x16xf32>
    %643 = arith.addf %641, %642 : vector<2x16xf32>
    %cst_276 = arith.constant 5.000000e-01 : f32
    %644 = vector.broadcast %cst_276 : f32 to vector<2x16xf32>
    %645 = arith.mulf %644, %643 : vector<2x16xf32>
    %646 = arith.mulf %635, %614 : vector<2x16xf32>
    %647 = arith.mulf %627, %637 : vector<2x16xf32>
    %648 = arith.addf %646, %647 : vector<2x16xf32>
    %649 = math.tanh %648 : vector<2x16xf32>
    %650 = arith.mulf %645, %649 : vector<2x16xf32>
    %c0_277 = arith.constant 0 : index
    %c0_278 = arith.constant 0 : index
    %651 = vector.load %arg9[%c0_277, %c0_278] : memref<64x32xf32, #tpu.memory_space<vmem>>, vector<64x32xf32>
    %652 = math.tanh %368 : vector<2x16xf32>
    %653 = vector.extract_strided_slice %651 {offsets = [0, 0], sizes = [16, 32], strides = [1, 1]} : vector<64x32xf32> to vector<16x32xf32>
    %cst_279 = arith.constant dense<0.000000e+00> : vector<2x32xf32>
    %654 = tpu.matmul %652, %653, %cst_279 {dimension_numbers = #tpu.dot_dimension_numbers<[1], [0], [0], [1], [0, 0, 1, 1], [], []>} : vector<2x16xf32>, vector<16x32xf32>, vector<2x32xf32> -> vector<2x32xf32>
    %655 = math.tanh %366 : vector<2x16xf32>
    %656 = vector.extract_strided_slice %651 {offsets = [16, 0], sizes = [16, 32], strides = [1, 1]} : vector<64x32xf32> to vector<16x32xf32>
    %cst_280 = arith.constant dense<0.000000e+00> : vector<2x32xf32>
    %657 = tpu.matmul %655, %656, %cst_280 {dimension_numbers = #tpu.dot_dimension_numbers<[1], [0], [0], [1], [0, 0, 1, 1], [], []>} : vector<2x16xf32>, vector<16x32xf32>, vector<2x32xf32> -> vector<2x32xf32>
    %658 = arith.addf %654, %657 : vector<2x32xf32>
    %659 = math.tanh %650 : vector<2x16xf32>
    %660 = vector.extract_strided_slice %651 {offsets = [32, 0], sizes = [16, 32], strides = [1, 1]} : vector<64x32xf32> to vector<16x32xf32>
    %cst_281 = arith.constant dense<0.000000e+00> : vector<2x32xf32>
    %661 = tpu.matmul %659, %660, %cst_281 {dimension_numbers = #tpu.dot_dimension_numbers<[1], [0], [0], [1], [0, 0, 1, 1], [], []>} : vector<2x16xf32>, vector<16x32xf32>, vector<2x32xf32> -> vector<2x32xf32>
    %662 = arith.addf %658, %661 : vector<2x32xf32>
    %663 = math.tanh %648 : vector<2x16xf32>
    %664 = vector.extract_strided_slice %651 {offsets = [48, 0], sizes = [16, 32], strides = [1, 1]} : vector<64x32xf32> to vector<16x32xf32>
    %cst_282 = arith.constant dense<0.000000e+00> : vector<2x32xf32>
    %665 = tpu.matmul %663, %664, %cst_282 {dimension_numbers = #tpu.dot_dimension_numbers<[1], [0], [0], [1], [0, 0, 1, 1], [], []>} : vector<2x16xf32>, vector<16x32xf32>, vector<2x32xf32> -> vector<2x32xf32>
    %666 = arith.addf %662, %665 : vector<2x32xf32>
    %c0_283 = arith.constant 0 : index
    %c0_284 = arith.constant 0 : index
    %667 = vector.load %arg10[%c0_283, %c0_284] : memref<1x32xf32, #tpu.memory_space<vmem>>, vector<1x32xf32>
    %668 = vector.broadcast %667 : vector<1x32xf32> to vector<2x32xf32>
    %669 = arith.addf %666, %668 : vector<2x32xf32>
    %c0_285 = arith.constant 0 : index
    %c0_286 = arith.constant 0 : index
    %670 = vector.load %arg1[%c0_285, %c0_286] : memref<32x32xf32, #tpu.memory_space<vmem>>, vector<32x32xf32>
    %c0_287 = arith.constant 0 : index
    %c0_288 = arith.constant 0 : index
    %671 = vector.load %arg11[%c0_287, %c0_288] : memref<32x32xf32, #tpu.memory_space<vmem>>, vector<32x32xf32>
    %cst_289 = arith.constant dense<0.000000e+00> : vector<32x32xf32>
    %672 = tpu.matmul %670, %671, %cst_289 {dimension_numbers = #tpu.dot_dimension_numbers<[1], [0], [0], [1], [0, 0, 1, 1], [], []>} : vector<32x32xf32>, vector<32x32xf32>, vector<32x32xf32> -> vector<32x32xf32>
    %c0_290 = arith.constant 0 : index
    %c0_291 = arith.constant 0 : index
    %673 = vector.load %arg12[%c0_290, %c0_291] : memref<1x32xf32, #tpu.memory_space<vmem>>, vector<1x32xf32>
    %674 = vector.broadcast %673 : vector<1x32xf32> to vector<32x32xf32>
    %675 = arith.addf %672, %674 : vector<32x32xf32>
    %676 = math.tanh %675 : vector<32x32xf32>
    %c0_292 = arith.constant 0 : index
    %c0_293 = arith.constant 0 : index
    %677 = vector.load %arg17[%c0_292, %c0_293] : memref<1x32xf32, #tpu.memory_space<vmem>>, vector<1x32xf32>
    %c0_294 = arith.constant 0 : index
    %c0_295 = arith.constant 0 : index
    %678 = vector.load %arg18[%c0_294, %c0_295] : memref<1x1xf32, #tpu.memory_space<vmem>>, vector<1x1xf32>
    %c0_296 = arith.constant 0 : index
    %c0_297 = arith.constant 0 : index
    %679 = vector.load %arg19[%c0_296, %c0_297] : memref<1x32xf32, #tpu.memory_space<vmem>>, vector<1x32xf32>
    %c0_298 = arith.constant 0 : index
    %c0_299 = arith.constant 0 : index
    %680 = vector.load %arg20[%c0_298, %c0_299] : memref<1x1xf32, #tpu.memory_space<vmem>>, vector<1x1xf32>
    %c0_300 = arith.constant 0 : index
    %c0_301 = arith.constant 0 : index
    %681 = vector.load %arg13[%c0_300, %c0_301] : memref<32x32xf32, #tpu.memory_space<vmem>>, vector<32x32xf32>
    %cst_302 = arith.constant dense<0.000000e+00> : vector<2x32xf32>
    %682 = tpu.matmul %669, %681, %cst_302 {dimension_numbers = #tpu.dot_dimension_numbers<[1], [0], [0], [1], [0, 0, 1, 1], [], []>} : vector<2x32xf32>, vector<32x32xf32>, vector<2x32xf32> -> vector<2x32xf32>
    %c0_303 = arith.constant 0 : index
    %c0_304 = arith.constant 0 : index
    %683 = vector.load %arg14[%c0_303, %c0_304] : memref<1x32xf32, #tpu.memory_space<vmem>>, vector<1x32xf32>
    %684 = vector.broadcast %683 : vector<1x32xf32> to vector<2x32xf32>
    %685 = arith.addf %682, %684 : vector<2x32xf32>
    %c0_305 = arith.constant 0 : index
    %c0_306 = arith.constant 0 : index
    %686 = vector.load %arg15[%c0_305, %c0_306] : memref<32x32xf32, #tpu.memory_space<vmem>>, vector<32x32xf32>
    %cst_307 = arith.constant dense<0.000000e+00> : vector<32x32xf32>
    %687 = tpu.matmul %676, %686, %cst_307 {dimension_numbers = #tpu.dot_dimension_numbers<[1], [0], [0], [1], [0, 0, 1, 1], [], []>} : vector<32x32xf32>, vector<32x32xf32>, vector<32x32xf32> -> vector<32x32xf32>
    %c0_308 = arith.constant 0 : index
    %c0_309 = arith.constant 0 : index
    %688 = vector.load %arg16[%c0_308, %c0_309] : memref<32x32xf32, #tpu.memory_space<vmem>>, vector<32x32xf32>
    %cst_310 = arith.constant dense<0.000000e+00> : vector<32x32xf32>
    %689 = tpu.matmul %676, %688, %cst_310 {dimension_numbers = #tpu.dot_dimension_numbers<[1], [0], [0], [1], [0, 0, 1, 1], [], []>} : vector<32x32xf32>, vector<32x32xf32>, vector<32x32xf32> -> vector<32x32xf32>
    %690 = vector.extract_strided_slice %676 {offsets = [0, 0], sizes = [16, 32], strides = [1, 1]} : vector<32x32xf32> to vector<16x32xf32>
    %691 = vector.extract_strided_slice %685 {offsets = [0, 0], sizes = [1, 32], strides = [1, 1]} : vector<2x32xf32> to vector<1x32xf32>
    %692 = vector.extract_strided_slice %687 {offsets = [0, 0], sizes = [16, 32], strides = [1, 1]} : vector<32x32xf32> to vector<16x32xf32>
    %693 = vector.broadcast %691 : vector<1x32xf32> to vector<16x32xf32>
    %694 = arith.addf %693, %692 : vector<16x32xf32>
    %695 = math.tanh %694 : vector<16x32xf32>
    %696 = vector.broadcast %677 : vector<1x32xf32> to vector<16x32xf32>
    %697 = arith.mulf %695, %696 : vector<16x32xf32>
    %cst_311 = arith.constant dense<0.000000e+00> : vector<16xf32>
    %698 = vector.multi_reduction <add>, %697, %cst_311 [1] : vector<16x32xf32> to vector<16xf32>
    %699 = vector.shape_cast %698 : vector<16xf32> to vector<16x1xf32>
    %700 = vector.broadcast %678 : vector<1x1xf32> to vector<16x1xf32>
    %701 = arith.addf %699, %700 : vector<16x1xf32>
    %cst_312 = arith.constant dense<0xFF800000> : vector<1xf32>
    %702 = vector.multi_reduction <maximumf>, %701, %cst_312 [0] : vector<16x1xf32> to vector<1xf32>
    %703 = vector.shape_cast %702 : vector<1xf32> to vector<1x1xf32>
    %704 = vector.broadcast %703 : vector<1x1xf32> to vector<16x1xf32>
    %705 = arith.subf %701, %704 : vector<16x1xf32>
    %706 = math.exp %705 : vector<16x1xf32>
    %cst_313 = arith.constant dense<0.000000e+00> : vector<1xf32>
    %707 = vector.multi_reduction <add>, %706, %cst_313 [0] : vector<16x1xf32> to vector<1xf32>
    %708 = vector.shape_cast %707 : vector<1xf32> to vector<1x1xf32>
    %709 = tpu.reciprocal %708 {approx = true} : vector<1x1xf32> -> vector<1x1xf32>
    %710 = vector.broadcast %709 : vector<1x1xf32> to vector<16x1xf32>
    %711 = arith.mulf %706, %710 : vector<16x1xf32>
    %712 = vector.broadcast %711 : vector<16x1xf32> to vector<16x32xf32>
    %713 = arith.mulf %712, %690 : vector<16x32xf32>
    %cst_314 = arith.constant dense<0.000000e+00> : vector<32xf32>
    %714 = vector.multi_reduction <add>, %713, %cst_314 [0] : vector<16x32xf32> to vector<32xf32>
    %715 = vector.shape_cast %714 : vector<32xf32> to vector<1x32xf32>
    %716 = vector.extract_strided_slice %669 {offsets = [0, 0], sizes = [1, 32], strides = [1, 1]} : vector<2x32xf32> to vector<1x32xf32>
    %717 = arith.addf %716, %715 : vector<1x32xf32>
    %c0_315 = arith.constant 0 : index
    %c0_316 = arith.constant 0 : index
    %718 = vector.load %arg26[%c0_315, %c0_316] : memref<2x32xf32, #tpu.memory_space<vmem>>, vector<1x32xf32>
    tpu.vector_store %arg26[%c0_315, %c0_316], %717 {strides = array<i32>} : memref<2x32xf32, #tpu.memory_space<vmem>>, vector<1x32xf32>,
    %719 = vector.extract_strided_slice %676 {offsets = [16, 0], sizes = [16, 32], strides = [1, 1]} : vector<32x32xf32> to vector<16x32xf32>
    %720 = vector.extract_strided_slice %685 {offsets = [1, 0], sizes = [1, 32], strides = [1, 1]} : vector<2x32xf32> to vector<1x32xf32>
    %721 = vector.extract_strided_slice %687 {offsets = [16, 0], sizes = [16, 32], strides = [1, 1]} : vector<32x32xf32> to vector<16x32xf32>
    %722 = vector.broadcast %720 : vector<1x32xf32> to vector<16x32xf32>
    %723 = arith.addf %722, %721 : vector<16x32xf32>
    %724 = math.tanh %723 : vector<16x32xf32>
    %725 = vector.broadcast %677 : vector<1x32xf32> to vector<16x32xf32>
    %726 = arith.mulf %724, %725 : vector<16x32xf32>
    %cst_317 = arith.constant dense<0.000000e+00> : vector<16xf32>
    %727 = vector.multi_reduction <add>, %726, %cst_317 [1] : vector<16x32xf32> to vector<16xf32>
    %728 = vector.shape_cast %727 : vector<16xf32> to vector<16x1xf32>
    %729 = vector.broadcast %678 : vector<1x1xf32> to vector<16x1xf32>
    %730 = arith.addf %728, %729 : vector<16x1xf32>
    %cst_318 = arith.constant dense<0xFF800000> : vector<1xf32>
    %731 = vector.multi_reduction <maximumf>, %730, %cst_318 [0] : vector<16x1xf32> to vector<1xf32>
    %732 = vector.shape_cast %731 : vector<1xf32> to vector<1x1xf32>
    %733 = vector.broadcast %732 : vector<1x1xf32> to vector<16x1xf32>
    %734 = arith.subf %730, %733 : vector<16x1xf32>
    %735 = math.exp %734 : vector<16x1xf32>
    %cst_319 = arith.constant dense<0.000000e+00> : vector<1xf32>
    %736 = vector.multi_reduction <add>, %735, %cst_319 [0] : vector<16x1xf32> to vector<1xf32>
    %737 = vector.shape_cast %736 : vector<1xf32> to vector<1x1xf32>
    %738 = tpu.reciprocal %737 {approx = true} : vector<1x1xf32> -> vector<1x1xf32>
    %739 = vector.broadcast %738 : vector<1x1xf32> to vector<16x1xf32>
    %740 = arith.mulf %735, %739 : vector<16x1xf32>
    %741 = vector.broadcast %740 : vector<16x1xf32> to vector<16x32xf32>
    %742 = arith.mulf %741, %719 : vector<16x32xf32>
    %cst_320 = arith.constant dense<0.000000e+00> : vector<32xf32>
    %743 = vector.multi_reduction <add>, %742, %cst_320 [0] : vector<16x32xf32> to vector<32xf32>
    %744 = vector.shape_cast %743 : vector<32xf32> to vector<1x32xf32>
    %745 = vector.extract_strided_slice %669 {offsets = [1, 0], sizes = [1, 32], strides = [1, 1]} : vector<2x32xf32> to vector<1x32xf32>
    %746 = arith.addf %745, %744 : vector<1x32xf32>
    %c1_321 = arith.constant 1 : index
    %c0_322 = arith.constant 0 : index
    %747 = vector.load %arg26[%c1_321, %c0_322] : memref<2x32xf32, #tpu.memory_space<vmem>>, vector<1x32xf32>
    tpu.vector_store %arg26[%c1_321, %c0_322], %746 {strides = array<i32>} : memref<2x32xf32, #tpu.memory_space<vmem>>, vector<1x32xf32>,
    %c0_323 = arith.constant 0 : index
    %c0_324 = arith.constant 0 : index
    %748 = vector.load %arg26[%c0_323, %c0_324] : memref<2x32xf32, #tpu.memory_space<vmem>>, vector<2x32xf32>
    %c0_325 = arith.constant 0 : index
    %c0_326 = arith.constant 0 : index
    %749 = vector.load %arg15[%c0_325, %c0_326] : memref<32x32xf32, #tpu.memory_space<vmem>>, vector<32x32xf32>
    %cst_327 = arith.constant dense<0.000000e+00> : vector<2x32xf32>
    %750 = tpu.matmul %748, %749, %cst_327 {dimension_numbers = #tpu.dot_dimension_numbers<[1], [0], [0], [1], [0, 0, 1, 1], [], []>} : vector<2x32xf32>, vector<32x32xf32>, vector<2x32xf32> -> vector<2x32xf32>
    %751 = vector.extract_strided_slice %676 {offsets = [0, 0], sizes = [16, 32], strides = [1, 1]} : vector<32x32xf32> to vector<16x32xf32>
    %752 = vector.extract_strided_slice %750 {offsets = [0, 0], sizes = [1, 32], strides = [1, 1]} : vector<2x32xf32> to vector<1x32xf32>
    %753 = vector.extract_strided_slice %689 {offsets = [0, 0], sizes = [16, 32], strides = [1, 1]} : vector<32x32xf32> to vector<16x32xf32>
    %754 = vector.broadcast %752 : vector<1x32xf32> to vector<16x32xf32>
    %755 = arith.addf %754, %753 : vector<16x32xf32>
    %756 = math.tanh %755 : vector<16x32xf32>
    %757 = vector.broadcast %679 : vector<1x32xf32> to vector<16x32xf32>
    %758 = arith.mulf %756, %757 : vector<16x32xf32>
    %cst_328 = arith.constant dense<0.000000e+00> : vector<16xf32>
    %759 = vector.multi_reduction <add>, %758, %cst_328 [1] : vector<16x32xf32> to vector<16xf32>
    %760 = vector.shape_cast %759 : vector<16xf32> to vector<16x1xf32>
    %761 = vector.broadcast %680 : vector<1x1xf32> to vector<16x1xf32>
    %762 = arith.addf %760, %761 : vector<16x1xf32>
    %cst_329 = arith.constant dense<0xFF800000> : vector<1xf32>
    %763 = vector.multi_reduction <maximumf>, %762, %cst_329 [0] : vector<16x1xf32> to vector<1xf32>
    %764 = vector.shape_cast %763 : vector<1xf32> to vector<1x1xf32>
    %765 = vector.broadcast %764 : vector<1x1xf32> to vector<16x1xf32>
    %766 = arith.subf %762, %765 : vector<16x1xf32>
    %767 = math.exp %766 : vector<16x1xf32>
    %cst_330 = arith.constant dense<0.000000e+00> : vector<1xf32>
    %768 = vector.multi_reduction <add>, %767, %cst_330 [0] : vector<16x1xf32> to vector<1xf32>
    %769 = vector.shape_cast %768 : vector<1xf32> to vector<1x1xf32>
    %770 = tpu.reciprocal %769 {approx = true} : vector<1x1xf32> -> vector<1x1xf32>
    %771 = vector.broadcast %770 : vector<1x1xf32> to vector<16x1xf32>
    %772 = arith.mulf %767, %771 : vector<16x1xf32>
    %773 = vector.broadcast %772 : vector<16x1xf32> to vector<16x32xf32>
    %774 = arith.mulf %773, %751 : vector<16x32xf32>
    %cst_331 = arith.constant dense<0.000000e+00> : vector<32xf32>
    %775 = vector.multi_reduction <add>, %774, %cst_331 [0] : vector<16x32xf32> to vector<32xf32>
    %776 = vector.shape_cast %775 : vector<32xf32> to vector<1x32xf32>
    %777 = vector.extract_strided_slice %748 {offsets = [0, 0], sizes = [1, 32], strides = [1, 1]} : vector<2x32xf32> to vector<1x32xf32>
    %778 = arith.addf %777, %776 : vector<1x32xf32>
    %c0_332 = arith.constant 0 : index
    %c0_333 = arith.constant 0 : index
    %779 = vector.load %arg27[%c0_332, %c0_333] : memref<2x32xf32, #tpu.memory_space<vmem>>, vector<1x32xf32>
    tpu.vector_store %arg27[%c0_332, %c0_333], %778 {strides = array<i32>} : memref<2x32xf32, #tpu.memory_space<vmem>>, vector<1x32xf32>,
    %780 = vector.extract_strided_slice %676 {offsets = [16, 0], sizes = [16, 32], strides = [1, 1]} : vector<32x32xf32> to vector<16x32xf32>
    %781 = vector.extract_strided_slice %750 {offsets = [1, 0], sizes = [1, 32], strides = [1, 1]} : vector<2x32xf32> to vector<1x32xf32>
    %782 = vector.extract_strided_slice %689 {offsets = [16, 0], sizes = [16, 32], strides = [1, 1]} : vector<32x32xf32> to vector<16x32xf32>
    %783 = vector.broadcast %781 : vector<1x32xf32> to vector<16x32xf32>
    %784 = arith.addf %783, %782 : vector<16x32xf32>
    %785 = math.tanh %784 : vector<16x32xf32>
    %786 = vector.broadcast %679 : vector<1x32xf32> to vector<16x32xf32>
    %787 = arith.mulf %785, %786 : vector<16x32xf32>
    %cst_334 = arith.constant dense<0.000000e+00> : vector<16xf32>
    %788 = vector.multi_reduction <add>, %787, %cst_334 [1] : vector<16x32xf32> to vector<16xf32>
    %789 = vector.shape_cast %788 : vector<16xf32> to vector<16x1xf32>
    %790 = vector.broadcast %680 : vector<1x1xf32> to vector<16x1xf32>
    %791 = arith.addf %789, %790 : vector<16x1xf32>
    %cst_335 = arith.constant dense<0xFF800000> : vector<1xf32>
    %792 = vector.multi_reduction <maximumf>, %791, %cst_335 [0] : vector<16x1xf32> to vector<1xf32>
    %793 = vector.shape_cast %792 : vector<1xf32> to vector<1x1xf32>
    %794 = vector.broadcast %793 : vector<1x1xf32> to vector<16x1xf32>
    %795 = arith.subf %791, %794 : vector<16x1xf32>
    %796 = math.exp %795 : vector<16x1xf32>
    %cst_336 = arith.constant dense<0.000000e+00> : vector<1xf32>
    %797 = vector.multi_reduction <add>, %796, %cst_336 [0] : vector<16x1xf32> to vector<1xf32>
    %798 = vector.shape_cast %797 : vector<1xf32> to vector<1x1xf32>
    %799 = tpu.reciprocal %798 {approx = true} : vector<1x1xf32> -> vector<1x1xf32>
    %800 = vector.broadcast %799 : vector<1x1xf32> to vector<16x1xf32>
    %801 = arith.mulf %796, %800 : vector<16x1xf32>
    %802 = vector.broadcast %801 : vector<16x1xf32> to vector<16x32xf32>
    %803 = arith.mulf %802, %780 : vector<16x32xf32>
    %cst_337 = arith.constant dense<0.000000e+00> : vector<32xf32>
    %804 = vector.multi_reduction <add>, %803, %cst_337 [0] : vector<16x32xf32> to vector<32xf32>
    %805 = vector.shape_cast %804 : vector<32xf32> to vector<1x32xf32>
    %806 = vector.extract_strided_slice %748 {offsets = [1, 0], sizes = [1, 32], strides = [1, 1]} : vector<2x32xf32> to vector<1x32xf32>
    %807 = arith.addf %806, %805 : vector<1x32xf32>
    %c1_338 = arith.constant 1 : index
    %c0_339 = arith.constant 0 : index
    %808 = vector.load %arg27[%c1_338, %c0_339] : memref<2x32xf32, #tpu.memory_space<vmem>>, vector<1x32xf32>
    tpu.vector_store %arg27[%c1_338, %c0_339], %807 {strides = array<i32>} : memref<2x32xf32, #tpu.memory_space<vmem>>, vector<1x32xf32>,
    %c0_340 = arith.constant 0 : index
    %c0_341 = arith.constant 0 : index
    %809 = vector.load %arg27[%c0_340, %c0_341] : memref<2x32xf32, #tpu.memory_space<vmem>>, vector<2x32xf32>
    %c0_342 = arith.constant 0 : index
    %c0_343 = arith.constant 0 : index
    %810 = vector.load %arg21[%c0_342, %c0_343] : memref<32x10xf32, #tpu.memory_space<vmem>>, vector<32x10xf32>
    %cst_344 = arith.constant dense<0.000000e+00> : vector<2x10xf32>
    %811 = tpu.matmul %809, %810, %cst_344 {dimension_numbers = #tpu.dot_dimension_numbers<[1], [0], [0], [1], [0, 0, 1, 1], [], []>} : vector<2x32xf32>, vector<32x10xf32>, vector<2x10xf32> -> vector<2x10xf32>
    %c0_345 = arith.constant 0 : index
    %c0_346 = arith.constant 0 : index
    %812 = vector.load %arg22[%c0_345, %c0_346] : memref<1x10xf32, #tpu.memory_space<vmem>>, vector<1x10xf32>
    %813 = vector.broadcast %812 : vector<1x10xf32> to vector<2x10xf32>
    %814 = arith.addf %811, %813 : vector<2x10xf32>
    %c0_347 = arith.constant 0 : index
    %c0_348 = arith.constant 0 : index
    %815 = vector.load %arg23[%c0_347, %c0_348] : memref<2x10xf32, #tpu.memory_space<vmem>>, vector<2x10xf32>
    tpu.vector_store %arg23[%c0_347, %c0_348], %814 {strides = array<i32>} : memref<2x10xf32, #tpu.memory_space<vmem>>, vector<2x10xf32>,
    return
  }
}

</mosaic_0001>

<llo_original>
// kernel: vqa_forward.2
$region0: #{vqa_forward.2}
  #allocation0 [shape = 'u32[]', space=smem, size = 0x4, offset = 0x4, fixed_abs, tag = 'smem constant byte address 0x4 - core index']
  #allocation1 [shape = 'u32[144,128]{1,0:T(1,128)}', space=vmem, size = 0x12000, scoped, tag = 'internal scratch']
  #allocation2 [shape = 'f32[36,48]{1,0:T(8,128)}', space=vmem, size = 0x5000, scoped, tag = 'scratch operand']
  %s0 = inlined_call_operand.vmem [shape: f32[2,3,16,16], index: 0, kind: input, shape index: {}]
  %s1 = inlined_call_operand.hbm [shape: f32[9,48,128], index: 1, kind: input, shape index: {}]
  %s2 = inlined_call_operand.vmem [shape: f32[1,128], index: 2, kind: input, shape index: {}]
  %s3 = inlined_call_operand.hbm [shape: f32[20,33], index: 3, kind: input, shape index: {}]
  %s4 = inlined_call_operand.hbm [shape: f32[9,120,128], index: 4, kind: input, shape index: {}]
  %s5 = inlined_call_operand.hbm [shape: f32[1,128], index: 5, kind: input, shape index: {}]
  %s6 = inlined_call_operand.vmem [shape: f32[12,17], index: 6, kind: input, shape index: {}]
  %s7 = inlined_call_operand.hbm [shape: f32[9,112,128], index: 7, kind: input, shape index: {}]
  %s8 = inlined_call_operand.hbm [shape: f32[1,128], index: 8, kind: input, shape index: {}]
  %s9 = inlined_call_operand.vmem [shape: f32[8,128], index: 9, kind: output, shape index: {}]
  %s10 = sld [smem:[#allocation0]]
  $region70: #{vqa_forward.2} parent=0
    _
  %s12 = ssub.s32 1, %s10
  %s13 = scalar_select 0, %s12, %s10
  $region1: #{vqa_forward.2} parent=0
    #allocation3 [shape = 'u8[221184]{0}', space=vmem, size = 0x36000, scoped, tag = 'input window, operand 1, single buffered']
    #allocation4 [shape = 's32[1]{0}', space=sflag, size = 0x4, scoped, tag = 'scoped memory for vqa_forward.2']
    #allocation5 [shape = 'u8[12288]{0}', space=vmem, size = 0x3000, scoped, tag = 'input window, operand 3, single buffered']
    #allocation6 [shape = 's32[1]{0}', space=sflag, size = 0x4, scoped, tag = 'scoped memory for vqa_forward.2']
    #allocation7 [shape = 'u8[552960]{0}', space=vmem, size = 0x87000, scoped, tag = 'input window, operand 4, single buffered']
    #allocation8 [shape = 'u8[512]{0}', space=vmem, size = 0x400, scoped, tag = 'input window, operand 5, single buffered']
    #allocation9 [shape = 's32[1]{0}', space=sflag, size = 0x4, scoped, tag = 'scoped memory for vqa_forward.2']
    #allocation10 [shape = 'u8[516096]{0}', space=vmem, size = 0x7e000, scoped, tag = 'input window, operand 7, single buffered']
    #allocation11 [shape = 'u8[512]{0}', space=vmem, size = 0x400, scoped, tag = 'input window, operand 8, single buffered']
    #allocation12 [shape = 's32[1]{0}', space=sflag, size = 0x4, scoped, tag = 'scoped memory for vqa_forward.2']
    %14 = vsyncpa [#allocation4], 0
    %15 = vsyncpa [#allocation6], 0
    %16 = vsyncpa [#allocation9], 0
    %17 = vsyncpa [#allocation12], 0
    // Predicated region
    $region2: #{vqa_forward.2} parent=1 // pred_check
      _
    $region3: #{vqa_forward.2} parent=1 // pred_check_branch
      %19 = sbr.rel (0) target = $region5
    $region4: #{vqa_forward.2} parent=1 // pred_region
      _
    $region5: #{vqa_forward.2} parent=1 // pred_fallthru
      _
    // Predicated region
    $region6: #{vqa_forward.2} parent=1 // pred_check
      _
    $region7: #{vqa_forward.2} parent=1 // pred_check_branch
      %21 = sbr.rel (0) target = $region9
    $region8: #{vqa_forward.2} parent=1 // pred_region
      %s23 = ssub.s32 6912, 6912
      %24 = vsyncadd [#allocation4], %s23
      %s25 = sshll.u32 [#allocation3], 4
      %s26 = int_to_ptr.vmem [resolvable:$true] %s25
      %31 = dma.hbm_to_vmem [thread:$0]  %s1, 6912, %s26, [#allocation4], 128, 128, 8
    $region9: #{vqa_forward.2} parent=1 // pred_fallthru
      _
    // Predicated region
    $region10: #{vqa_forward.2} parent=1 // pred_check
      _
    $region11: #{vqa_forward.2} parent=1 // pred_check_branch
      %33 = sbr.rel (0) target = $region13
    $region12: #{vqa_forward.2} parent=1 // pred_region
      _
    $region13: #{vqa_forward.2} parent=1 // pred_fallthru
      _
    // Predicated region
    $region14: #{vqa_forward.2} parent=1 // pred_check
      _
    $region15: #{vqa_forward.2} parent=1 // pred_check_branch
      %35 = sbr.rel (0) target = $region17
    $region16: #{vqa_forward.2} parent=1 // pred_region
      %s37 = ssub.s32 384, 384
      %38 = vsyncadd [#allocation6], %s37
      %s39 = sshll.u32 [#allocation5], 4
      %s40 = int_to_ptr.vmem [resolvable:$true] %s39
      %45 = dma.hbm_to_vmem [thread:$0]  %s3, 384, %s40, [#allocation6], 128, 128, 8
    $region17: #{vqa_forward.2} parent=1 // pred_fallthru
      _
    // Predicated region
    $region18: #{vqa_forward.2} parent=1 // pred_check
      _
    $region19: #{vqa_forward.2} parent=1 // pred_check_branch
      %47 = sbr.rel (0) target = $region21
    $region20: #{vqa_forward.2} parent=1 // pred_region
      %s49 = ssub.s32 17280, 17280
      %50 = vsyncadd [#allocation6], %s49
      %s51 = sshll.u32 [#allocation7], 4
      %s52 = int_to_ptr.vmem [resolvable:$true] %s51
      %57 = dma.hbm_to_vmem [thread:$0]  %s4, 17280, %s52, [#allocation6], 128, 128, 8
    $region21: #{vqa_forward.2} parent=1 // pred_fallthru
      _
    // Predicated region
    $region22: #{vqa_forward.2} parent=1 // pred_check
      _
    $region23: #{vqa_forward.2} parent=1 // pred_check_branch
      %59 = sbr.rel (0) target = $region25
    $region24: #{vqa_forward.2} parent=1 // pred_region
      %s61 = ssub.s32 16, 16
      %62 = vsyncadd [#allocation9], %s61
      %s64 = sshll.u32 [#allocation8], 4
      %s65 = int_to_ptr.vmem [resolvable:$true] %s64
      %67 = dma.hbm_to_vmem [thread:$0]  %s5, 16, %s65, [#allocation9]
    $region25: #{vqa_forward.2} parent=1 // pred_fallthru
      _
    // Predicated region
    $region26: #{vqa_forward.2} parent=1 // pred_check
      _
    $region27: #{vqa_forward.2} parent=1 // pred_check_branch
      %69 = sbr.rel (0) target = $region29
    $region28: #{vqa_forward.2} parent=1 // pred_region
      _
    $region29: #{vqa_forward.2} parent=1 // pred_fallthru
      _
    // Predicated region
    $region30: #{vqa_forward.2} parent=1 // pred_check
      _
    $region31: #{vqa_forward.2} parent=1 // pred_check_branch
      %71 = sbr.rel (0) target = $region33
    $region32: #{vqa_forward.2} parent=1 // pred_region
      %s73 = ssub.s32 16128, 16128
      %74 = vsyncadd [#allocation9], %s73
      %s75 = sshll.u32 [#allocation10], 4
      %s76 = int_to_ptr.vmem [resolvable:$true] %s75
      %81 = dma.hbm_to_vmem [thread:$0]  %s7, 16128, %s76, [#allocation9], 128, 128, 8
    $region33: #{vqa_forward.2} parent=1 // pred_fallthru
      _
    // Predicated region
    $region34: #{vqa_forward.2} parent=1 // pred_check
      _
    $region35: #{vqa_forward.2} parent=1 // pred_check_branch
      %83 = sbr.rel (0) target = $region37
    $region36: #{vqa_forward.2} parent=1 // pred_region
      %s85 = ssub.s32 16, 16
      %86 = vsyncadd [#allocation12], %s85
      %s88 = sshll.u32 [#allocation11], 4
      %s89 = int_to_ptr.vmem [resolvable:$true] %s88
      %91 = dma.hbm_to_vmem [thread:$0]  %s8, 16, %s89, [#allocation12]
    $region37: #{vqa_forward.2} parent=1 // pred_fallthru
      _
    // Predicated region
    $region38: #{vqa_forward.2} parent=1 // pred_check
      _
    $region39: #{vqa_forward.2} parent=1 // pred_check_branch
      %93 = sbr.rel (0) target = $region41
    $region40: #{vqa_forward.2} parent=1 // pred_region
      %94 = dma.done [#allocation4], 6912
    $region41: #{vqa_forward.2} parent=1 // pred_fallthru
      _
    // Predicated region
    $region42: #{vqa_forward.2} parent=1 // pred_check
      _
    $region43: #{vqa_forward.2} parent=1 // pred_check_branch
      %96 = sbr.rel (0) target = $region45
    $region44: #{vqa_forward.2} parent=1 // pred_region
      %97 = dma.done [#allocation6], 384
    $region45: #{vqa_forward.2} parent=1 // pred_fallthru
      _
    // Predicated region
    $region46: #{vqa_forward.2} parent=1 // pred_check
      _
    $region47: #{vqa_forward.2} parent=1 // pred_check_branch
      %99 = sbr.rel (0) target = $region49
    $region48: #{vqa_forward.2} parent=1 // pred_region
      %100 = dma.done [#allocation6], 17280
    $region49: #{vqa_forward.2} parent=1 // pred_fallthru
      _
    // Predicated region
    $region50: #{vqa_forward.2} parent=1 // pred_check
      _
    $region51: #{vqa_forward.2} parent=1 // pred_check_branch
      %102 = sbr.rel (0) target = $region53
    $region52: #{vqa_forward.2} parent=1 // pred_region
      %103 = dma.done [#allocation9], 16
    $region53: #{vqa_forward.2} parent=1 // pred_fallthru
      _
    // Predicated region
    $region54: #{vqa_forward.2} parent=1 // pred_check
      _
    $region55: #{vqa_forward.2} parent=1 // pred_check_branch
      %105 = sbr.rel (0) target = $region57
    $region56: #{vqa_forward.2} parent=1 // pred_region
      %106 = dma.done [#allocation9], 16128
    $region57: #{vqa_forward.2} parent=1 // pred_fallthru
      _
    // Predicated region
    $region58: #{vqa_forward.2} parent=1 // pred_check
      _
    $region59: #{vqa_forward.2} parent=1 // pred_check_branch
      %108 = sbr.rel (0) target = $region61
    $region60: #{vqa_forward.2} parent=1 // pred_region
      %109 = dma.done [#allocation12], 16
    $region61: #{vqa_forward.2} parent=1 // pred_fallthru
      _
    %vm110 = vcmask 392192
    %111 = vst.msk [vmem:[#allocation2] sm:$0xff] %vm110, 0.0
    %112 = vst.msk [vmem:[#allocation2 + $0x8] sm:$0xff] %vm110, 0.0
    %113 = vst.msk [vmem:[#allocation2 + $0x10] sm:$0xff] %vm110, 0.0
    %114 = vst.msk [vmem:[#allocation2 + $0x18] sm:$0xff] %vm110, 0.0
    %vm115 = vcmask 388096
    %116 = vst.msk [vmem:[#allocation2 + $0x20] sm:$0xf] %vm115, 0.0
    %v117 = vld [vmem:[%s0] sm:$0xff]
    %v118 = vld [vmem:[%s0 + $0x8] sm:$0xff]
    %vm119 = vcmask 130048
    %120 = vst.msk [vmem:[#allocation2 + $0x1] sm:$0xff] %vm119, %v117
    %121 = vst.msk [vmem:[#allocation2 + $0x9] sm:$0xff] %vm119, %v118
    %s122 = scalar_lea.vmem %s0, 16
    %v123 = vld [vmem:[%s122] sm:$0xff]
    %v124 = vld [vmem:[%s122 + $0x8] sm:$0xff]
    %127 = vrot.lane.b32.xlu0 %v123, 16
    %v128 = vpop.permute.xlu0 %127
    %129 = vrot.lane.b32.xlu0 %v124, 16
    %v130 = vpop.permute.xlu0 %129
    %vm133 = vcmask 261248
    %134 = vst.msk [vmem:[#allocation2 + $0x1] sm:$0xff] %vm133, %v128
    %135 = vst.msk [vmem:[#allocation2 + $0x9] sm:$0xff] %vm133, %v130
    %s136 = scalar_lea.vmem %s0, 32
    %v137 = vld [vmem:[%s136] sm:$0xff]
    %v138 = vld [vmem:[%s136 + $0x8] sm:$0xff]
    %141 = vrot.lane.b32.xlu0 %v137, 32
    %v142 = vpop.permute.xlu0 %141
    %143 = vrot.lane.b32.xlu0 %v138, 32
    %v144 = vpop.permute.xlu0 %143
    %vm147 = vcmask 392448
    %148 = vst.msk [vmem:[#allocation2 + $0x1] sm:$0xff] %vm147, %v142
    %149 = vst.msk [vmem:[#allocation2 + $0x9] sm:$0xff] %vm147, %v144
    %s150 = scalar_lea.vmem %s0, 48
    %v151 = vld [vmem:[%s150] sm:$0xff]
    %v152 = vld [vmem:[%s150 + $0x8] sm:$0xff]
    %153 = vst.msk [vmem:[#allocation2 + $0x13] sm:$0xff] %vm119, %v151
    %154 = vst.msk [vmem:[#allocation2 + $0x1b] sm:$0xff] %vm119, %v152
    %s155 = scalar_lea.vmem %s0, 64
    %v156 = vld [vmem:[%s155] sm:$0xff]
    %v157 = vld [vmem:[%s155 + $0x8] sm:$0xff]
    %160 = vrot.lane.b32.xlu0 %v156, 16
    %v161 = vpop.permute.xlu0 %160
    %162 = vrot.lane.b32.xlu0 %v157, 16
    %v163 = vpop.permute.xlu0 %162
    %166 = vst.msk [vmem:[#allocation2 + $0x13] sm:$0xff] %vm133, %v161
    %167 = vst.msk [vmem:[#allocation2 + $0x1b] sm:$0xff] %vm133, %v163
    %s168 = scalar_lea.vmem %s0, 80
    %v169 = vld [vmem:[%s168] sm:$0xff]
    %v170 = vld [vmem:[%s168 + $0x8] sm:$0xff]
    %173 = vrot.lane.b32.xlu0 %v169, 32
    %v174 = vpop.permute.xlu0 %173
    %175 = vrot.lane.b32.xlu0 %v170, 32
    %v176 = vpop.permute.xlu0 %175
    %179 = vst.msk [vmem:[#allocation2 + $0x13] sm:$0xff] %vm147, %v174
    %180 = vst.msk [vmem:[#allocation2 + $0x1b] sm:$0xff] %vm147, %v176
    %v181 = vld [vmem:[#allocation2] sm:$0xff]
    %v182 = vld [vmem:[#allocation2 + $0x8] sm:$0xff]
    %v183 = vld [vmem:[#allocation2 + $0x10] sm:$0xff]
    %v184 = vld [vmem:[#allocation2 + $0x18] sm:$0xff]
    %v185 = vld [vmem:[#allocation2 + $0x20] sm:$0xf]
    %v186 = vld [vmem:[#allocation3] sm:$0xff]
    %v187 = vld [vmem:[#allocation3 + $0x8] sm:$0xff]
    %v188 = vld [vmem:[#allocation3 + $0x10] sm:$0xff]
    %v189 = vld [vmem:[#allocation3 + $0x18] sm:$0xff]
    %v190 = vld [vmem:[#allocation3 + $0x20] sm:$0xff]
    %v191 = vld [vmem:[#allocation3 + $0x28] sm:$0xff]
    %s192 = scalar_lea.vmem [#allocation3], 48
    %v193 = vld [vmem:[%s192] sm:$0xff]
    %v194 = vld [vmem:[%s192 + $0x8] sm:$0xff]
    %v195 = vld [vmem:[%s192 + $0x10] sm:$0xff]
    %v196 = vld [vmem:[%s192 + $0x18] sm:$0xff]
    %v197 = vld [vmem:[%s192 + $0x20] sm:$0xff]
    %v198 = vld [vmem:[%s192 + $0x28] sm:$0xff]
    %v200 = vsel %vm110, %v181, 0
    %v203 = vsel %vm110, %v182, 0
    %v206 = vsel %vm110, %v183, 0
    %v209 = vsel %vm110, %v184, 0
    %v212 = vsel %vm110, %v185, 0
    %214 = vmatprep.subr.mxu0 0.0
    %215 = vmatpush1.msra.mxu0 %v193
    %216 = vmatprep.subr.mxu0 0.0
    %217 = vmatpush1.msra.mxu0 %v194
    %218 = vmatprep.subr.mxu0 0.0
    %219 = vmatpush1.msra.mxu0 %v195
    %220 = vmatprep.subr.mxu0 0.0
    %221 = vmatpush1.msra.mxu0 %v196
    %222 = vmatprep.subr.mxu0 0.0
    %223 = vmatpush1.msra.mxu0 %v197
    %224 = vmatprep.subr.mxu0 0.0
    %225 = vmatpush1.msra.mxu0 %v198
    %226 = vmatprep.subr.mxu0 0.0
    %227 = vmatpush1.msra.mxu0 0.0
    %228 = vmatprep.subr.mxu0 0.0
    %229 = vmatpush1.msra.mxu0 0.0
    %230 = vmatprep.subr.mxu0 0.0
    %231 = vmatpush1.msra.mxu0 0.0
    %232 = vmatprep.subr.mxu0 0.0
    %233 = vmatpush1.msra.mxu0 0.0
    %234 = vmatprep.subr.mxu0 0.0
    %235 = vmatpush1.msra.mxu0 0.0
    %236 = vmatprep.subr.mxu0 0.0
    %237 = vmatpush1.msra.mxu0 0.0
    %238 = vmatprep.subr.mxu0 0.0
    %239 = vmatpush1.msra.mxu0 0.0
    %240 = vmatprep.subr.mxu0 0.0
    %241 = vmatpush1.msra.mxu0 0.0
    %242 = vmatprep.subr.mxu0 0.0
    %243 = vmatpush1.msra.mxu0 0.0
    %244 = vmatprep.subr.mxu0 0.0
    %245 = vmatpush1.msra.mxu0 0.0
    %246 = vmatprep.subr.mxu0 0.0
    %247 = vmatpush1.msra.mxu0 0.0
    %248 = vmatprep.subr.mxu0 0.0
    %249 = vmatpush1.msra.mxu0 0.0
    %250 = vmatprep.subr.mxu0 0.0
    %251 = vmatpush1.msra.mxu0 0.0
    %252 = vmatprep.subr.mxu0 0.0
    %253 = vmatpush1.msra.mxu0 0.0
    %254 = vmatprep.subr.mxu0 0.0
    %255 = vmatpush1.msra.mxu0 0.0
    %256 = vmatprep.subr.mxu0 0.0
    %257 = vmatpush1.msra.mxu0 0.0
    %258 = vmatprep.subr.mxu0 0.0
    %259 = vmatpush1.msra.mxu0 0.0
    %260 = vmatprep.subr.mxu0 0.0
    %261 = vmatpush1.msra.mxu0 0.0
    %262 = vmatprep.subr.mxu0 0.0
    %263 = vmatpush1.msra.mxu0 0.0
    %264 = vmatprep.subr.mxu0 0.0
    %265 = vmatpush1.msra.mxu0 0.0
    %266 = vmatprep.subr.mxu0 0.0
    %267 = vmatpush1.msra.mxu0 0.0
    %268 = vmatprep.subr.mxu0 0.0
    %269 = vmatpush1.msra.mxu0 0.0
    %270 = vmatprep.subr.mxu0 0.0
    %271 = vmatpush1.msra.mxu0 0.0
    %272 = vmatprep.subr.mxu0 0.0
    %273 = vmatpush1.msra.mxu0 0.0
    %274 = vmatprep.subr.mxu0 0.0
    %275 = vmatpush1.msra.mxu0 0.0
    %276 = vmatprep.subr.mxu0 0.0
    %277 = vmatpush1.msra.mxu0 0.0
    %278 = vmatprep.mubr.f32.mxu0 0.0
    %279 = vmatmul.mubr.f32.gmra.mrb[0].mxu0 %v200
    %v280 = vpop.f32.mrb[0].mxu0
    %v281 = vadd.f32 0.0, %v280
    %v282 = vpop.f32.mrb[0].mxu0
    %283 = vmatprep.mubr.f32.mxu0 0.0
    %284 = vmatmul.mubr.f32.gmra.mrb[0].mxu0 %v203
    %v285 = vpop.f32.mrb[0].mxu0
    %v286 = vadd.f32 0.0, %v285
    %v287 = vpop.f32.mrb[0].mxu0
    %288 = vmatprep.mubr.f32.mxu0 0.0
    %289 = vmatmul.mubr.f32.gmra.mrb[0].mxu0 %v206
    %v290 = vpop.f32.mrb[0].mxu0
    %v291 = vadd.f32 0.0, %v290
    %v292 = vpop.f32.mrb[0].mxu0
    %293 = vmatprep.mubr.f32.mxu0 0.0
    %294 = vmatmul.mubr.f32.gmra.mrb[0].mxu0 %v209
    %v295 = vpop.f32.mrb[0].mxu0
    %v296 = vadd.f32 0.0, %v295
    %v297 = vpop.f32.mrb[0].mxu0
    %298 = vmatprep.mubr.f32.mxu0 0.0
    %299 = vmatmul.mubr.f32.gmra.mrb[0].mxu0 %v212
    %v300 = vpop.f32.mrb[0].mxu0
    %v301 = vadd.f32 0.0, %v300
    %v302 = vpop.f32.mrb[0].mxu0
    %303 = vdwg.mxu0
    %304 = vmatprep.subr.mxu0 0.0
    %305 = vmatpush1.msra.mxu0 %v186
    %306 = vmatprep.subr.mxu0 0.0
    %307 = vmatpush1.msra.mxu0 %v187
    %308 = vmatprep.subr.mxu0 0.0
    %309 = vmatpush1.msra.mxu0 %v188
    %310 = vmatprep.subr.mxu0 0.0
    %311 = vmatpush1.msra.mxu0 %v189
    %312 = vmatprep.subr.mxu0 0.0
    %313 = vmatpush1.msra.mxu0 %v190
    %314 = vmatprep.subr.mxu0 0.0
    %315 = vmatpush1.msra.mxu0 %v191
    %316 = vmatprep.subr.mxu0 0.0
    %317 = vmatpush1.msra.mxu0 0.0
    %318 = vmatprep.subr.mxu0 0.0
    %319 = vmatpush1.msra.mxu0 0.0
    %320 = vmatprep.subr.mxu0 0.0
    %321 = vmatpush1.msra.mxu0 0.0
    %322 = vmatprep.subr.mxu0 0.0
    %323 = vmatpush1.msra.mxu0 0.0
    %324 = vmatprep.subr.mxu0 0.0
    %325 = vmatpush1.msra.mxu0 0.0
    %326 = vmatprep.subr.mxu0 0.0
    %327 = vmatpush1.msra.mxu0 0.0
    %328 = vmatprep.subr.mxu0 0.0
    %329 = vmatpush1.msra.mxu0 0.0
    %330 = vmatprep.subr.mxu0 0.0
    %331 = vmatpush1.msra.mxu0 0.0
    %332 = vmatprep.subr.mxu0 0.0
    %333 = vmatpush1.msra.mxu0 0.0
    %334 = vmatprep.subr.mxu0 0.0
    %335 = vmatpush1.msra.mxu0 0.0
    %336 = vmatprep.subr.mxu0 0.0
    %337 = vmatpush1.msra.mxu0 0.0
    %338 = vmatprep.subr.mxu0 0.0
    %339 = vmatpush1.msra.mxu0 0.0
    %340 = vmatprep.subr.mxu0 0.0
    %341 = vmatpush1.msra.mxu0 0.0
    %342 = vmatprep.subr.mxu0 0.0
    %343 = vmatpush1.msra.mxu0 0.0
    %344 = vmatprep.subr.mxu0 0.0
    %345 = vmatpush1.msra.mxu0 0.0
    %346 = vmatprep.subr.mxu0 0.0
    %347 = vmatpush1.msra.mxu0 0.0
    %348 = vmatprep.subr.mxu0 0.0
    %349 = vmatpush1.msra.mxu0 0.0
    %350 = vmatprep.subr.mxu0 0.0
    %351 = vmatpush1.msra.mxu0 0.0
    %352 = vmatprep.subr.mxu0 0.0
    %353 = vmatpush1.msra.mxu0 0.0
    %354 = vmatprep.subr.mxu0 0.0
    %355 = vmatpush1.msra.mxu0 0.0
    %356 = vmatprep.subr.mxu0 0.0
    %357 = vmatpush1.msra.mxu0 0.0
    %358 = vmatprep.subr.mxu0 0.0
    %359 = vmatpush1.msra.mxu0 0.0
    %360 = vmatprep.subr.mxu0 0.0
    %361 = vmatpush1.msra.mxu0 0.0
    %362 = vmatprep.subr.mxu0 0.0
    %363 = vmatpush1.msra.mxu0 0.0
    %364 = vmatprep.subr.mxu0 0.0
    %365 = vmatpush1.msra.mxu0 0.0
    %366 = vmatprep.subr.mxu0 0.0
    %367 = vmatpush1.msra.mxu0 0.0
    %368 = vmatprep.mubr.f32.mxu0 0.0
    %369 = vmatmul.mubr.f32.gmra.mrb[0].mxu0 %v200
    %v370 = vpop.f32.mrb[0].mxu0
    %v371 = vadd.f32 %v281, %v370
    %v372 = vpop.f32.mrb[0].mxu0
    %373 = vmatprep.mubr.f32.mxu0 0.0
    %374 = vmatmul.mubr.f32.gmra.mrb[0].mxu0 %v203
    %v375 = vpop.f32.mrb[0].mxu0
    %v376 = vadd.f32 %v286, %v375
    %v377 = vpop.f32.mrb[0].mxu0
    %378 = vmatprep.mubr.f32.mxu0 0.0
    %379 = vmatmul.mubr.f32.gmra.mrb[0].mxu0 %v206
    %v380 = vpop.f32.mrb[0].mxu0
    %v381 = vadd.f32 %v291, %v380
    %v382 = vpop.f32.mrb[0].mxu0
    %383 = vmatprep.mubr.f32.mxu0 0.0
    %384 = vmatmul.mubr.f32.gmra.mrb[0].mxu0 %v209
    %v385 = vpop.f32.mrb[0].mxu0
    %v386 = vadd.f32 %v296, %v385
    %v387 = vpop.f32.mrb[0].mxu0
    %388 = vmatprep.mubr.f32.mxu0 0.0
    %389 = vmatmul.mubr.f32.gmra.mrb[0].mxu0 %v212
    %v390 = vpop.f32.mrb[0].mxu0
    %v391 = vadd.f32 %v301, %v390
    %v392 = vpop.f32.mrb[0].mxu0
    %393 = vdwg.mxu0
    %s394 = scalar_lea.vmem [#allocation3], 96
    %v395 = vld [vmem:[%s394] sm:$0xff]
    %v396 = vld [vmem:[%s394 + $0x8] sm:$0xff]
    %v397 = vld [vmem:[%s394 + $0x10] sm:$0xff]
    %v398 = vld [vmem:[%s394 + $0x18] sm:$0xff]
    %v399 = vld [vmem:[%s394 + $0x20] sm:$0xff]
    %v400 = vld [vmem:[%s394 + $0x28] sm:$0xff]
    %401 = vmatprep.subr.mxu0 0.0
    %402 = vmatpush1.msra.mxu0 %v395
    %403 = vmatprep.subr.mxu0 0.0
    %404 = vmatpush1.msra.mxu0 %v396
    %405 = vmatprep.subr.mxu0 0.0
    %406 = vmatpush1.msra.mxu0 %v397
    %407 = vmatprep.subr.mxu0 0.0
    %408 = vmatpush1.msra.mxu0 %v398
    %409 = vmatprep.subr.mxu0 0.0
    %410 = vmatpush1.msra.mxu0 %v399
    %411 = vmatprep.subr.mxu0 0.0
    %412 = vmatpush1.msra.mxu0 %v400
    %413 = vmatprep.subr.mxu0 0.0
    %414 = vmatpush1.msra.mxu0 0.0
    %415 = vmatprep.subr.mxu0 0.0
    %416 = vmatpush1.msra.mxu0 0.0
    %417 = vmatprep.subr.mxu0 0.0
    %418 = vmatpush1.msra.mxu0 0.0
    %419 = vmatprep.subr.mxu0 0.0
    %420 = vmatpush1.msra.mxu0 0.0
    %421 = vmatprep.subr.mxu0 0.0
    %422 = vmatpush1.msra.mxu0 0.0
    %423 = vmatprep.subr.mxu0 0.0
    %424 = vmatpush1.msra.mxu0 0.0
    %425 = vmatprep.subr.mxu0 0.0
    %426 = vmatpush1.msra.mxu0 0.0
    %427 = vmatprep.subr.mxu0 0.0
    %428 = vmatpush1.msra.mxu0 0.0
    %429 = vmatprep.subr.mxu0 0.0
    %430 = vmatpush1.msra.mxu0 0.0
    %431 = vmatprep.subr.mxu0 0.0
    %432 = vmatpush1.msra.mxu0 0.0
    %433 = vmatprep.subr.mxu0 0.0
    %434 = vmatpush1.msra.mxu0 0.0
    %435 = vmatprep.subr.mxu0 0.0
    %436 = vmatpush1.msra.mxu0 0.0
    %437 = vmatprep.subr.mxu0 0.0
    %438 = vmatpush1.msra.mxu0 0.0
    %439 = vmatprep.subr.mxu0 0.0
    %440 = vmatpush1.msra.mxu0 0.0
    %441 = vmatprep.subr.mxu0 0.0
    %442 = vmatpush1.msra.mxu0 0.0
    %443 = vmatprep.subr.mxu0 0.0
    %444 = vmatpush1.msra.mxu0 0.0
    %445 = vmatprep.subr.mxu0 0.0
    %446 = vmatpush1.msra.mxu0 0.0
    %447 = vmatprep.subr.mxu0 0.0
    %448 = vmatpush1.msra.mxu0 0.0
    %449 = vmatprep.subr.mxu0 0.0
    %450 = vmatpush1.msra.mxu0 0.0
    %451 = vmatprep.subr.mxu0 0.0
    %452 = vmatpush1.msra.mxu0 0.0
    %453 = vmatprep.subr.mxu0 0.0
    %454 = vmatpush1.msra.mxu0 0.0
    %455 = vmatprep.subr.mxu0 0.0
    %456 = vmatpush1.msra.mxu0 0.0
    %457 = vmatprep.subr.mxu0 0.0
    %458 = vmatpush1.msra.mxu0 0.0
    %459 = vmatprep.subr.mxu0 0.0
    %460 = vmatpush1.msra.mxu0 0.0
    %461 = vmatprep.subr.mxu0 0.0
    %462 = vmatpush1.msra.mxu0 0.0
    %463 = vmatprep.subr.mxu0 0.0
    %464 = vmatpush1.msra.mxu0 0.0
    %465 = vmatprep.mubr.f32.mxu0 0.0
    %466 = vmatmul.mubr.f32.gmra.mrb[0].mxu0 %v200
    %v467 = vpop.f32.mrb[0].mxu0
    %v468 = vadd.f32 0.0, %v467
    %v469 = vpop.f32.mrb[0].mxu0
    %470 = vmatprep.mubr.f32.mxu0 0.0
    %471 = vmatmul.mubr.f32.gmra.mrb[0].mxu0 %v203
    %v472 = vpop.f32.mrb[0].mxu0
    %v473 = vadd.f32 0.0, %v472
    %v474 = vpop.f32.mrb[0].mxu0
    %475 = vmatprep.mubr.f32.mxu0 0.0
    %476 = vmatmul.mubr.f32.gmra.mrb[0].mxu0 %v206
    %v477 = vpop.f32.mrb[0].mxu0
    %v478 = vadd.f32 0.0, %v477
    %v479 = vpop.f32.mrb[0].mxu0
    %480 = vmatprep.mubr.f32.mxu0 0.0
    %481 = vmatmul.mubr.f32.gmra.mrb[0].mxu0 %v209
    %v482 = vpop.f32.mrb[0].mxu0
    %v483 = vadd.f32 0.0, %v482
    %v484 = vpop.f32.mrb[0].mxu0
    %485 = vmatprep.mubr.f32.mxu0 0.0
    %486 = vmatmul.mubr.f32.gmra.mrb[0].mxu0 %v212
    %v487 = vpop.f32.mrb[0].mxu0
    %v488 = vadd.f32 0.0, %v487
    %v489 = vpop.f32.mrb[0].mxu0
    %490 = vdwg.mxu0
    %v491 = vadd.f32 %v371, %v468
    %v492 = vadd.f32 %v376, %v473
    %v493 = vadd.f32 %v381, %v478
    %v494 = vadd.f32 %v386, %v483
    %v495 = vadd.f32 %v391, %v488
    %s496 = scalar_lea.vmem [#allocation3], 144
    %v497 = vld [vmem:[%s496] sm:$0xff]
    %v498 = vld [vmem:[%s496 + $0x8] sm:$0xff]
    %v499 = vld [vmem:[%s496 + $0x10] sm:$0xff]
    %v500 = vld [vmem:[%s496 + $0x18] sm:$0xff]
    %v501 = vld [vmem:[%s496 + $0x20] sm:$0xff]
    %v502 = vld [vmem:[%s496 + $0x28] sm:$0xff]
    %vm503 = vcmask 1046528
    %v504 = vrot.slane %v181, 1
    %v505 = vrot.slane %v182, 1
    %v506 = vsel %vm503, %v504, %v505
    %v507 = vrot.slane %v183, 1
    %v508 = vsel %vm503, %v505, %v507
    %v509 = vrot.slane %v184, 1
    %v510 = vsel %vm503, %v507, %v509
    %v511 = vrot.slane %v185, 1
    %v512 = vsel %vm503, %v509, %v511
    %v513 = vsel %vm110, %v506, 0
    %v515 = vsel %vm110, %v508, 0
    %v517 = vsel %vm110, %v510, 0
    %v519 = vsel %vm110, %v512, 0
    %v521 = vsel %vm110, %v511, 0
    %523 = vmatprep.subr.mxu0 0.0
    %524 = vmatpush1.msra.mxu0 %v497
    %525 = vmatprep.subr.mxu0 0.0
    %526 = vmatpush1.msra.mxu0 %v498
    %527 = vmatprep.subr.mxu0 0.0
    %528 = vmatpush1.msra.mxu0 %v499
    %529 = vmatprep.subr.mxu0 0.0
    %530 = vmatpush1.msra.mxu0 %v500
    %531 = vmatprep.subr.mxu0 0.0
    %532 = vmatpush1.msra.mxu0 %v501
    %533 = vmatprep.subr.mxu0 0.0
    %534 = vmatpush1.msra.mxu0 %v502
    %535 = vmatprep.subr.mxu0 0.0
    %536 = vmatpush1.msra.mxu0 0.0
    %537 = vmatprep.subr.mxu0 0.0
    %538 = vmatpush1.msra.mxu0 0.0
    %539 = vmatprep.subr.mxu0 0.0
    %540 = vmatpush1.msra.mxu0 0.0
    %541 = vmatprep.subr.mxu0 0.0
    %542 = vmatpush1.msra.mxu0 0.0
    %543 = vmatprep.subr.mxu0 0.0
    %544 = vmatpush1.msra.mxu0 0.0
    %545 = vmatprep.subr.mxu0 0.0
    %546 = vmatpush1.msra.mxu0 0.0
    %547 = vmatprep.subr.mxu0 0.0
    %548 = vmatpush1.msra.mxu0 0.0
    %549 = vmatprep.subr.mxu0 0.0
    %550 = vmatpush1.msra.mxu0 0.0
    %551 = vmatprep.subr.mxu0 0.0
    %552 = vmatpush1.msra.mxu0 0.0
    %553 = vmatprep.subr.mxu0 0.0
    %554 = vmatpush1.msra.mxu0 0.0
    %555 = vmatprep.subr.mxu0 0.0
    %556 = vmatpush1.msra.mxu0 0.0
    %557 = vmatprep.subr.mxu0 0.0
    %558 = vmatpush1.msra.mxu0 0.0
    %559 = vmatprep.subr.mxu0 0.0
    %560 = vmatpush1.msra.mxu0 0.0
    %561 = vmatprep.subr.mxu0 0.0
    %562 = vmatpush1.msra.mxu0 0.0
    %563 = vmatprep.subr.mxu0 0.0
    %564 = vmatpush1.msra.mxu0 0.0
    %565 = vmatprep.subr.mxu0 0.0
    %566 = vmatpush1.msra.mxu0 0.0
    %567 = vmatprep.subr.mxu0 0.0
    %568 = vmatpush1.msra.mxu0 0.0
    %569 = vmatprep.subr.mxu0 0.0
    %570 = vmatpush1.msra.mxu0 0.0
    %571 = vmatprep.subr.mxu0 0.0
    %572 = vmatpush1.msra.mxu0 0.0
    %573 = vmatprep.subr.mxu0 0.0
    %574 = vmatpush1.msra.mxu0 0.0
    %575 = vmatprep.subr.mxu0 0.0
    %576 = vmatpush1.msra.mxu0 0.0
    %577 = vmatprep.subr.mxu0 0.0
    %578 = vmatpush1.msra.mxu0 0.0
    %579 = vmatprep.subr.mxu0 0.0
    %580 = vmatpush1.msra.mxu0 0.0
    %581 = vmatprep.subr.mxu0 0.0
    %582 = vmatpush1.msra.mxu0 0.0
    %583 = vmatprep.subr.mxu0 0.0
    %584 = vmatpush1.msra.mxu0 0.0
    %585 = vmatprep.subr.mxu0 0.0
    %586 = vmatpush1.msra.mxu0 0.0
    %587 = vmatprep.mubr.f32.mxu0 0.0
    %588 = vmatmul.mubr.f32.gmra.mrb[0].mxu0 %v513
    %v589 = vpop.f32.mrb[0].mxu0
    %v590 = vadd.f32 0.0, %v589
    %v591 = vpop.f32.mrb[0].mxu0
    %592 = vmatprep.mubr.f32.mxu0 0.0
    %593 = vmatmul.mubr.f32.gmra.mrb[0].mxu0 %v515
    %v594 = vpop.f32.mrb[0].mxu0
    %v595 = vadd.f32 0.0, %v594
    %v596 = vpop.f32.mrb[0].mxu0
    %597 = vmatprep.mubr.f32.mxu0 0.0
    %598 = vmatmul.mubr.f32.gmra.mrb[0].mxu0 %v517
    %v599 = vpop.f32.mrb[0].mxu0
    %v600 = vadd.f32 0.0, %v599
    %v601 = vpop.f32.mrb[0].mxu0
    %602 = vmatprep.mubr.f32.mxu0 0.0
    %603 = vmatmul.mubr.f32.gmra.mrb[0].mxu0 %v519
    %v604 = vpop.f32.mrb[0].mxu0
    %v605 = vadd.f32 0.0, %v604
    %v606 = vpop.f32.mrb[0].mxu0
    %607 = vmatprep.mubr.f32.mxu0 0.0
    %608 = vmatmul.mubr.f32.gmra.mrb[0].mxu0 %v521
    %v609 = vpop.f32.mrb[0].mxu0
    %v610 = vadd.f32 0.0, %v609
    %v611 = vpop.f32.mrb[0].mxu0
    %612 = vdwg.mxu0
    %v613 = vadd.f32 %v491, %v590
    %v614 = vadd.f32 %v492, %v595
    %v615 = vadd.f32 %v493, %v600
    %v616 = vadd.f32 %v494, %v605
    %v617 = vadd.f32 %v495, %v610
    %s618 = scalar_lea.vmem [#allocation3], 192
    %v619 = vld [vmem:[%s618] sm:$0xff]
    %v620 = vld [vmem:[%s618 + $0x8] sm:$0xff]
    %v621 = vld [vmem:[%s618 + $0x10] sm:$0xff]
    %v622 = vld [vmem:[%s618 + $0x18] sm:$0xff]
    %v623 = vld [vmem:[%s618 + $0x20] sm:$0xff]
    %v624 = vld [vmem:[%s618 + $0x28] sm:$0xff]
    %625 = vmatprep.subr.mxu0 0.0
    %626 = vmatpush1.msra.mxu0 %v619
    %627 = vmatprep.subr.mxu0 0.0
    %628 = vmatpush1.msra.mxu0 %v620
    %629 = vmatprep.subr.mxu0 0.0
    %630 = vmatpush1.msra.mxu0 %v621
    %631 = vmatprep.subr.mxu0 0.0
    %632 = vmatpush1.msra.mxu0 %v622
    %633 = vmatprep.subr.mxu0 0.0
    %634 = vmatpush1.msra.mxu0 %v623
    %635 = vmatprep.subr.mxu0 0.0
    %636 = vmatpush1.msra.mxu0 %v624
    %637 = vmatprep.subr.mxu0 0.0
    %638 = vmatpush1.msra.mxu0 0.0
    %639 = vmatprep.subr.mxu0 0.0
    %640 = vmatpush1.msra.mxu0 0.0
    %641 = vmatprep.subr.mxu0 0.0
    %642 = vmatpush1.msra.mxu0 0.0
    %643 = vmatprep.subr.mxu0 0.0
    %644 = vmatpush1.msra.mxu0 0.0
    %645 = vmatprep.subr.mxu0 0.0
    %646 = vmatpush1.msra.mxu0 0.0
    %647 = vmatprep.subr.mxu0 0.0
    %648 = vmatpush1.msra.mxu0 0.0
    %649 = vmatprep.subr.mxu0 0.0
    %650 = vmatpush1.msra.mxu0 0.0
    %651 = vmatprep.subr.mxu0 0.0
    %652 = vmatpush1.msra.mxu0 0.0
    %653 = vmatprep.subr.mxu0 0.0
    %654 = vmatpush1.msra.mxu0 0.0
    %655 = vmatprep.subr.mxu0 0.0
    %656 = vmatpush1.msra.mxu0 0.0
    %657 = vmatprep.subr.mxu0 0.0
    %658 = vmatpush1.msra.mxu0 0.0
    %659 = vmatprep.subr.mxu0 0.0
    %660 = vmatpush1.msra.mxu0 0.0
    %661 = vmatprep.subr.mxu0 0.0
    %662 = vmatpush1.msra.mxu0 0.0
    %663 = vmatprep.subr.mxu0 0.0
    %664 = vmatpush1.msra.mxu0 0.0
    %665 = vmatprep.subr.mxu0 0.0
    %666 = vmatpush1.msra.mxu0 0.0
    %667 = vmatprep.subr.mxu0 0.0
    %668 = vmatpush1.msra.mxu0 0.0
    %669 = vmatprep.subr.mxu0 0.0
    %670 = vmatpush1.msra.mxu0 0.0
    %671 = vmatprep.subr.mxu0 0.0
    %672 = vmatpush1.msra.mxu0 0.0
    %673 = vmatprep.subr.mxu0 0.0
    %674 = vmatpush1.msra.mxu0 0.0
    %675 = vmatprep.subr.mxu0 0.0
    %676 = vmatpush1.msra.mxu0 0.0
    %677 = vmatprep.subr.mxu0 0.0
    %678 = vmatpush1.msra.mxu0 0.0
    %679 = vmatprep.subr.mxu0 0.0
    %680 = vmatpush1.msra.mxu0 0.0
    %681 = vmatprep.subr.mxu0 0.0
    %682 = vmatpush1.msra.mxu0 0.0
    %683 = vmatprep.subr.mxu0 0.0
    %684 = vmatpush1.msra.mxu0 0.0
    %685 = vmatprep.subr.mxu0 0.0
    %686 = vmatpush1.msra.mxu0 0.0
    %687 = vmatprep.subr.mxu0 0.0
    %688 = vmatpush1.msra.mxu0 0.0
    %689 = vmatprep.mubr.f32.mxu0 0.0
    %690 = vmatmul.mubr.f32.gmra.mrb[0].mxu0 %v513
    %v691 = vpop.f32.mrb[0].mxu0
    %v692 = vadd.f32 0.0, %v691
    %v693 = vpop.f32.mrb[0].mxu0
    %694 = vmatprep.mubr.f32.mxu0 0.0
    %695 = vmatmul.mubr.f32.gmra.mrb[0].mxu0 %v515
    %v696 = vpop.f32.mrb[0].mxu0
    %v697 = vadd.f32 0.0, %v696
    %v698 = vpop.f32.mrb[0].mxu0
    %699 = vmatprep.mubr.f32.mxu0 0.0
    %700 = vmatmul.mubr.f32.gmra.mrb[0].mxu0 %v517
    %v701 = vpop.f32.mrb[0].mxu0
    %v702 = vadd.f32 0.0, %v701
    %v703 = vpop.f32.mrb[0].mxu0
    %704 = vmatprep.mubr.f32.mxu0 0.0
    %705 = vmatmul.mubr.f32.gmra.mrb[0].mxu0 %v519
    %v706 = vpop.f32.mrb[0].mxu0
    %v707 = vadd.f32 0.0, %v706
    %v708 = vpop.f32.mrb[0].mxu0
    %709 = vmatprep.mubr.f32.mxu0 0.0
    %710 = vmatmul.mubr.f32.gmra.mrb[0].mxu0 %v521
    %v711 = vpop.f32.mrb[0].mxu0
    %v712 = vadd.f32 0.0, %v711
    %v713 = vpop.f32.mrb[0].mxu0
    %714 = vdwg.mxu0
    %v715 = vadd.f32 %v613, %v692
    %v716 = vadd.f32 %v614, %v697
    %v717 = vadd.f32 %v615, %v702
    %v718 = vadd.f32 %v616, %v707
    %v719 = vadd.f32 %v617, %v712
    %s720 = scalar_lea.vmem [#allocation3], 240
    %v721 = vld [vmem:[%s720] sm:$0xff]
    %v722 = vld [vmem:[%s720 + $0x8] sm:$0xff]
    %v723 = vld [vmem:[%s720 + $0x10] sm:$0xff]
    %v724 = vld [vmem:[%s720 + $0x18] sm:$0xff]
    %v725 = vld [vmem:[%s720 + $0x20] sm:$0xff]
    %v726 = vld [vmem:[%s720 + $0x28] sm:$0xff]
    %727 = vmatprep.subr.mxu0 0.0
    %728 = vmatpush1.msra.mxu0 %v721
    %729 = vmatprep.subr.mxu0 0.0
    %730 = vmatpush1.msra.mxu0 %v722
    %731 = vmatprep.subr.mxu0 0.0
    %732 = vmatpush1.msra.mxu0 %v723
    %733 = vmatprep.subr.mxu0 0.0
    %734 = vmatpush1.msra.mxu0 %v724
    %735 = vmatprep.subr.mxu0 0.0
    %736 = vmatpush1.msra.mxu0 %v725
    %737 = vmatprep.subr.mxu0 0.0
    %738 = vmatpush1.msra.mxu0 %v726
    %739 = vmatprep.subr.mxu0 0.0
    %740 = vmatpush1.msra.mxu0 0.0
    %741 = vmatprep.subr.mxu0 0.0
    %742 = vmatpush1.msra.mxu0 0.0
    %743 = vmatprep.subr.mxu0 0.0
    %744 = vmatpush1.msra.mxu0 0.0
    %745 = vmatprep.subr.mxu0 0.0
    %746 = vmatpush1.msra.mxu0 0.0
    %747 = vmatprep.subr.mxu0 0.0
    %748 = vmatpush1.msra.mxu0 0.0
    %749 = vmatprep.subr.mxu0 0.0
    %750 = vmatpush1.msra.mxu0 0.0
    %751 = vmatprep.subr.mxu0 0.0
    %752 = vmatpush1.msra.mxu0 0.0
    %753 = vmatprep.subr.mxu0 0.0
    %754 = vmatpush1.msra.mxu0 0.0
    %755 = vmatprep.subr.mxu0 0.0
    %756 = vmatpush1.msra.mxu0 0.0
    %757 = vmatprep.subr.mxu0 0.0
    %758 = vmatpush1.msra.mxu0 0.0
    %759 = vmatprep.subr.mxu0 0.0
    %760 = vmatpush1.msra.mxu0 0.0
    %761 = vmatprep.subr.mxu0 0.0
    %762 = vmatpush1.msra.mxu0 0.0
    %763 = vmatprep.subr.mxu0 0.0
    %764 = vmatpush1.msra.mxu0 0.0
    %765 = vmatprep.subr.mxu0 0.0
    %766 = vmatpush1.msra.mxu0 0.0
    %767 = vmatprep.subr.mxu0 0.0
    %768 = vmatpush1.msra.mxu0 0.0
    %769 = vmatprep.subr.mxu0 0.0
    %770 = vmatpush1.msra.mxu0 0.0
    %771 = vmatprep.subr.mxu0 0.0
    %772 = vmatpush1.msra.mxu0 0.0
    %773 = vmatprep.subr.mxu0 0.0
    %774 = vmatpush1.msra.mxu0 0.0
    %775 = vmatprep.subr.mxu0 0.0
    %776 = vmatpush1.msra.mxu0 0.0
    %777 = vmatprep.subr.mxu0 0.0
    %778 = vmatpush1.msra.mxu0 0.0
    %779 = vmatprep.subr.mxu0 0.0
    %780 = vmatpush1.msra.mxu0 0.0
    %781 = vmatprep.subr.mxu0 0.0
    %782 = vmatpush1.msra.mxu0 0.0
    %783 = vmatprep.subr.mxu0 0.0
    %784 = vmatpush1.msra.mxu0 0.0
    %785 = vmatprep.subr.mxu0 0.0
    %786 = vmatpush1.msra.mxu0 0.0
    %787 = vmatprep.subr.mxu0 0.0
    %788 = vmatpush1.msra.mxu0 0.0
    %789 = vmatprep.subr.mxu0 0.0
    %790 = vmatpush1.msra.mxu0 0.0
    %791 = vmatprep.mubr.f32.mxu0 0.0
    %792 = vmatmul.mubr.f32.gmra.mrb[0].mxu0 %v513
    %v793 = vpop.f32.mrb[0].mxu0
    %v794 = vadd.f32 0.0, %v793
    %v795 = vpop.f32.mrb[0].mxu0
    %796 = vmatprep.mubr.f32.mxu0 0.0
    %797 = vmatmul.mubr.f32.gmra.mrb[0].mxu0 %v515
    %v798 = vpop.f32.mrb[0].mxu0
    %v799 = vadd.f32 0.0, %v798
    %v800 = vpop.f32.mrb[0].mxu0
    %801 = vmatprep.mubr.f32.mxu0 0.0
    %802 = vmatmul.mubr.f32.gmra.mrb[0].mxu0 %v517
    %v803 = vpop.f32.mrb[0].mxu0
    %v804 = vadd.f32 0.0, %v803
    %v805 = vpop.f32.mrb[0].mxu0
    %806 = vmatprep.mubr.f32.mxu0 0.0
    %807 = vmatmul.mubr.f32.gmra.mrb[0].mxu0 %v519
    %v808 = vpop.f32.mrb[0].mxu0
    %v809 = vadd.f32 0.0, %v808
    %v810 = vpop.f32.mrb[0].mxu0
    %811 = vmatprep.mubr.f32.mxu0 0.0
    %812 = vmatmul.mubr.f32.gmra.mrb[0].mxu0 %v521
    %v813 = vpop.f32.mrb[0].mxu0
    %v814 = vadd.f32 0.0, %v813
    %v815 = vpop.f32.mrb[0].mxu0
    %816 = vdwg.mxu0
    %v817 = vadd.f32 %v715, %v794
    %v818 = vadd.f32 %v716, %v799
    %v819 = vadd.f32 %v717, %v804
    %v820 = vadd.f32 %v718, %v809
    %v821 = vadd.f32 %v719, %v814
    %s822 = scalar_lea.vmem [#allocation3], 288
    %v823 = vld [vmem:[%s822] sm:$0xff]
    %v824 = vld [vmem:[%s822 + $0x8] sm:$0xff]
    %v825 = vld [vmem:[%s822 + $0x10] sm:$0xff]
    %v826 = vld [vmem:[%s822 + $0x18] sm:$0xff]
    %v827 = vld [vmem:[%s822 + $0x20] sm:$0xff]
    %v828 = vld [vmem:[%s822 + $0x28] sm:$0xff]
    %vm829 = vcmask 1045504
    %v830 = vrot.slane %v181, 2
    %v831 = vrot.slane %v182, 2
    %v832 = vsel %vm829, %v830, %v831
    %v833 = vrot.slane %v183, 2
    %v834 = vsel %vm829, %v831, %v833
    %v835 = vrot.slane %v184, 2
    %v836 = vsel %vm829, %v833, %v835
    %v837 = vrot.slane %v185, 2
    %v838 = vsel %vm829, %v835, %v837
    %v839 = vsel %vm110, %v832, 0
    %v841 = vsel %vm110, %v834, 0
    %v843 = vsel %vm110, %v836, 0
    %v845 = vsel %vm110, %v838, 0
    %v847 = vsel %vm110, %v837, 0
    %849 = vmatprep.subr.mxu0 0.0
    %850 = vmatpush1.msra.mxu0 %v823
    %851 = vmatprep.subr.mxu0 0.0
    %852 = vmatpush1.msra.mxu0 %v824
    %853 = vmatprep.subr.mxu0 0.0
    %854 = vmatpush1.msra.mxu0 %v825
    %855 = vmatprep.subr.mxu0 0.0
    %856 = vmatpush1.msra.mxu0 %v826
    %857 = vmatprep.subr.mxu0 0.0
    %858 = vmatpush1.msra.mxu0 %v827
    %859 = vmatprep.subr.mxu0 0.0
    %860 = vmatpush1.msra.mxu0 %v828
    %861 = vmatprep.subr.mxu0 0.0
    %862 = vmatpush1.msra.mxu0 0.0
    %863 = vmatprep.subr.mxu0 0.0
    %864 = vmatpush1.msra.mxu0 0.0
    %865 = vmatprep.subr.mxu0 0.0
    %866 = vmatpush1.msra.mxu0 0.0
    %867 = vmatprep.subr.mxu0 0.0
    %868 = vmatpush1.msra.mxu0 0.0
    %869 = vmatprep.subr.mxu0 0.0
    %870 = vmatpush1.msra.mxu0 0.0
    %871 = vmatprep.subr.mxu0 0.0
    %872 = vmatpush1.msra.mxu0 0.0
    %873 = vmatprep.subr.mxu0 0.0
    %874 = vmatpush1.msra.mxu0 0.0
    %875 = vmatprep.subr.mxu0 0.0
    %876 = vmatpush1.msra.mxu0 0.0
    %877 = vmatprep.subr.mxu0 0.0
    %878 = vmatpush1.msra.mxu0 0.0
    %879 = vmatprep.subr.mxu0 0.0
    %880 = vmatpush1.msra.mxu0 0.0
    %881 = vmatprep.subr.mxu0 0.0
    %882 = vmatpush1.msra.mxu0 0.0
    %883 = vmatprep.subr.mxu0 0.0
    %884 = vmatpush1.msra.mxu0 0.0
    %885 = vmatprep.subr.mxu0 0.0
    %886 = vmatpush1.msra.mxu0 0.0
    %887 = vmatprep.subr.mxu0 0.0
    %888 = vmatpush1.msra.mxu0 0.0
    %889 = vmatprep.subr.mxu0 0.0
    %890 = vmatpush1.msra.mxu0 0.0
    %891 = vmatprep.subr.mxu0 0.0
    %892 = vmatpush1.msra.mxu0 0.0
    %893 = vmatprep.subr.mxu0 0.0
    %894 = vmatpush1.msra.mxu0 0.0
    %895 = vmatprep.subr.mxu0 0.0
    %896 = vmatpush1.msra.mxu0 0.0
    %897 = vmatprep.subr.mxu0 0.0
    %898 = vmatpush1.msra.mxu0 0.0
    %899 = vmatprep.subr.mxu0 0.0
    %900 = vmatpush1.msra.mxu0 0.0
    %901 = vmatprep.subr.mxu0 0.0
    %902 = vmatpush1.msra.mxu0 0.0
    %903 = vmatprep.subr.mxu0 0.0
    %904 = vmatpush1.msra.mxu0 0.0
    %905 = vmatprep.subr.mxu0 0.0
    %906 = vmatpush1.msra.mxu0 0.0
    %907 = vmatprep.subr.mxu0 0.0
    %908 = vmatpush1.msra.mxu0 0.0
    %909 = vmatprep.subr.mxu0 0.0
    %910 = vmatpush1.msra.mxu0 0.0
    %911 = vmatprep.subr.mxu0 0.0
    %912 = vmatpush1.msra.mxu0 0.0
    %913 = vmatprep.mubr.f32.mxu0 0.0
    %914 = vmatmul.mubr.f32.gmra.mrb[0].mxu0 %v839
    %v915 = vpop.f32.mrb[0].mxu0
    %v916 = vadd.f32 0.0, %v915
    %v917 = vpop.f32.mrb[0].mxu0
    %918 = vmatprep.mubr.f32.mxu0 0.0
    %919 = vmatmul.mubr.f32.gmra.mrb[0].mxu0 %v841
    %v920 = vpop.f32.mrb[0].mxu0
    %v921 = vadd.f32 0.0, %v920
    %v922 = vpop.f32.mrb[0].mxu0
    %923 = vmatprep.mubr.f32.mxu0 0.0
    %924 = vmatmul.mubr.f32.gmra.mrb[0].mxu0 %v843
    %v925 = vpop.f32.mrb[0].mxu0
    %v926 = vadd.f32 0.0, %v925
    %v927 = vpop.f32.mrb[0].mxu0
    %928 = vmatprep.mubr.f32.mxu0 0.0
    %929 = vmatmul.mubr.f32.gmra.mrb[0].mxu0 %v845
    %v930 = vpop.f32.mrb[0].mxu0
    %v931 = vadd.f32 0.0, %v930
    %v932 = vpop.f32.mrb[0].mxu0
    %933 = vmatprep.mubr.f32.mxu0 0.0
    %934 = vmatmul.mubr.f32.gmra.mrb[0].mxu0 %v847
    %v935 = vpop.f32.mrb[0].mxu0
    %v936 = vadd.f32 0.0, %v935
    %v937 = vpop.f32.mrb[0].mxu0
    %938 = vdwg.mxu0
    %v939 = vadd.f32 %v817, %v916
    %v940 = vadd.f32 %v818, %v921
    %v941 = vadd.f32 %v819, %v926
    %v942 = vadd.f32 %v820, %v931
    %v943 = vadd.f32 %v821, %v936
    %s944 = scalar_lea.vmem [#allocation3], 336
    %v945 = vld [vmem:[%s944] sm:$0xff]
    %v946 = vld [vmem:[%s944 + $0x8] sm:$0xff]
    %v947 = vld [vmem:[%s944 + $0x10] sm:$0xff]
    %v948 = vld [vmem:[%s944 + $0x18] sm:$0xff]
    %v949 = vld [vmem:[%s944 + $0x20] sm:$0xff]
    %v950 = vld [vmem:[%s944 + $0x28] sm:$0xff]
    %951 = vmatprep.subr.mxu0 0.0
    %952 = vmatpush1.msra.mxu0 %v945
    %953 = vmatprep.subr.mxu0 0.0
    %954 = vmatpush1.msra.mxu0 %v946
    %955 = vmatprep.subr.mxu0 0.0
    %956 = vmatpush1.msra.mxu0 %v947
    %957 = vmatprep.subr.mxu0 0.0
    %958 = vmatpush1.msra.mxu0 %v948
    %959 = vmatprep.subr.mxu0 0.0
    %960 = vmatpush1.msra.mxu0 %v949
    %961 = vmatprep.subr.mxu0 0.0
    %962 = vmatpush1.msra.mxu0 %v950
    %963 = vmatprep.subr.mxu0 0.0
    %964 = vmatpush1.msra.mxu0 0.0
    %965 = vmatprep.subr.mxu0 0.0
    %966 = vmatpush1.msra.mxu0 0.0
    %967 = vmatprep.subr.mxu0 0.0
    %968 = vmatpush1.msra.mxu0 0.0
    %969 = vmatprep.subr.mxu0 0.0
    %970 = vmatpush1.msra.mxu0 0.0
    %971 = vmatprep.subr.mxu0 0.0
    %972 = vmatpush1.msra.mxu0 0.0
    %973 = vmatprep.subr.mxu0 0.0
    %974 = vmatpush1.msra.mxu0 0.0
    %975 = vmatprep.subr.mxu0 0.0
    %976 = vmatpush1.msra.mxu0 0.0
    %977 = vmatprep.subr.mxu0 0.0
    %978 = vmatpush1.msra.mxu0 0.0
    %979 = vmatprep.subr.mxu0 0.0
    %980 = vmatpush1.msra.mxu0 0.0
    %981 = vmatprep.subr.mxu0 0.0
    %982 = vmatpush1.msra.mxu0 0.0
    %983 = vmatprep.subr.mxu0 0.0
    %984 = vmatpush1.msra.mxu0 0.0
    %985 = vmatprep.subr.mxu0 0.0
    %986 = vmatpush1.msra.mxu0 0.0
    %987 = vmatprep.subr.mxu0 0.0
    %988 = vmatpush1.msra.mxu0 0.0
    %989 = vmatprep.subr.mxu0 0.0
    %990 = vmatpush1.msra.mxu0 0.0
    %991 = vmatprep.subr.mxu0 0.0
    %992 = vmatpush1.msra.mxu0 0.0
    %993 = vmatprep.subr.mxu0 0.0
    %994 = vmatpush1.msra.mxu0 0.0
    %995 = vmatprep.subr.mxu0 0.0
    %996 = vmatpush1.msra.mxu0 0.0
    %997 = vmatprep.subr.mxu0 0.0
    %998 = vmatpush1.msra.mxu0 0.0
    %999 = vmatprep.subr.mxu0 0.0
    %1000 = vmatpush1.msra.mxu0 0.0
    %1001 = vmatprep.subr.mxu0 0.0
    %1002 = vmatpush1.msra.mxu0 0.0
    %1003 = vmatprep.subr.mxu0 0.0
    %1004 = vmatpush1.msra.mxu0 0.0
    %1005 = vmatprep.subr.mxu0 0.0
    %1006 = vmatpush1.msra.mxu0 0.0
    %1007 = vmatprep.subr.mxu0 0.0
    %1008 = vmatpush1.msra.mxu0 0.0
    %1009 = vmatprep.subr.mxu0 0.0
    %1010 = vmatpush1.msra.mxu0 0.0
    %1011 = vmatprep.subr.mxu0 0.0
    %1012 = vmatpush1.msra.mxu0 0.0
    %1013 = vmatprep.subr.mxu0 0.0
    %1014 = vmatpush1.msra.mxu0 0.0
    %1015 = vmatprep.mubr.f32.mxu0 0.0
    %1016 = vmatmul.mubr.f32.gmra.mrb[0].mxu0 %v839
    %v1017 = vpop.f32.mrb[0].mxu0
    %v1018 = vadd.f32 0.0, %v1017
    %v1019 = vpop.f32.mrb[0].mxu0
    %1020 = vmatprep.mubr.f32.mxu0 0.0
    %1021 = vmatmul.mubr.f32.gmra.mrb[0].mxu0 %v841
    %v1022 = vpop.f32.mrb[0].mxu0
    %v1023 = vadd.f32 0.0, %v1022
    %v1024 = vpop.f32.mrb[0].mxu0
    %1025 = vmatprep.mubr.f32.mxu0 0.0
    %1026 = vmatmul.mubr.f32.gmra.mrb[0].mxu0 %v843
    %v1027 = vpop.f32.mrb[0].mxu0
    %v1028 = vadd.f32 0.0, %v1027
    %v1029 = vpop.f32.mrb[0].mxu0
    %1030 = vmatprep.mubr.f32.mxu0 0.0
    %1031 = vmatmul.mubr.f32.gmra.mrb[0].mxu0 %v845
    %v1032 = vpop.f32.mrb[0].mxu0
    %v1033 = vadd.f32 0.0, %v1032
    %v1034 = vpop.f32.mrb[0].mxu0
    %1035 = vmatprep.mubr.f32.mxu0 0.0
    %1036 = vmatmul.mubr.f32.gmra.mrb[0].mxu0 %v847
    %v1037 = vpop.f32.mrb[0].mxu0
    %v1038 = vadd.f32 0.0, %v1037
    %v1039 = vpop.f32.mrb[0].mxu0
    %1040 = vdwg.mxu0
    %v1041 = vadd.f32 %v939, %v1018
    %v1042 = vadd.f32 %v940, %v1023
    %v1043 = vadd.f32 %v941, %v1028
    %v1044 = vadd.f32 %v942, %v1033
    %v1045 = vadd.f32 %v943, %v1038
    %s1046 = scalar_lea.vmem [#allocation3], 384
    %v1047 = vld [vmem:[%s1046] sm:$0xff]
    %v1048 = vld [vmem:[%s1046 + $0x8] sm:$0xff]
    %v1049 = vld [vmem:[%s1046 + $0x10] sm:$0xff]
    %v1050 = vld [vmem:[%s1046 + $0x18] sm:$0xff]
    %v1051 = vld [vmem:[%s1046 + $0x20] sm:$0xff]
    %v1052 = vld [vmem:[%s1046 + $0x28] sm:$0xff]
    %1053 = vmatprep.subr.mxu0 0.0
    %1054 = vmatpush1.msra.mxu0 %v1047
    %1055 = vmatprep.subr.mxu0 0.0
    %1056 = vmatpush1.msra.mxu0 %v1048
    %1057 = vmatprep.subr.mxu0 0.0
    %1058 = vmatpush1.msra.mxu0 %v1049
    %1059 = vmatprep.subr.mxu0 0.0
    %1060 = vmatpush1.msra.mxu0 %v1050
    %1061 = vmatprep.subr.mxu0 0.0
    %1062 = vmatpush1.msra.mxu0 %v1051
    %1063 = vmatprep.subr.mxu0 0.0
    %1064 = vmatpush1.msra.mxu0 %v1052
    %1065 = vmatprep.subr.mxu0 0.0
    %1066 = vmatpush1.msra.mxu0 0.0
    %1067 = vmatprep.subr.mxu0 0.0
    %1068 = vmatpush1.msra.mxu0 0.0
    %1069 = vmatprep.subr.mxu0 0.0
    %1070 = vmatpush1.msra.mxu0 0.0
    %1071 = vmatprep.subr.mxu0 0.0
    %1072 = vmatpush1.msra.mxu0 0.0
    %1073 = vmatprep.subr.mxu0 0.0
    %1074 = vmatpush1.msra.mxu0 0.0
    %1075 = vmatprep.subr.mxu0 0.0
    %1076 = vmatpush1.msra.mxu0 0.0
    %1077 = vmatprep.subr.mxu0 0.0
    %1078 = vmatpush1.msra.mxu0 0.0
    %1079 = vmatprep.subr.mxu0 0.0
    %1080 = vmatpush1.msra.mxu0 0.0
    %1081 = vmatprep.subr.mxu0 0.0
    %1082 = vmatpush1.msra.mxu0 0.0
    %1083 = vmatprep.subr.mxu0 0.0
    %1084 = vmatpush1.msra.mxu0 0.0
    %1085 = vmatprep.subr.mxu0 0.0
    %1086 = vmatpush1.msra.mxu0 0.0
    %1087 = vmatprep.subr.mxu0 0.0
    %1088 = vmatpush1.msra.mxu0 0.0
    %1089 = vmatprep.subr.mxu0 0.0
    %1090 = vmatpush1.msra.mxu0 0.0
    %1091 = vmatprep.subr.mxu0 0.0
    %1092 = vmatpush1.msra.mxu0 0.0
    %1093 = vmatprep.subr.mxu0 0.0
    %1094 = vmatpush1.msra.mxu0 0.0
    %1095 = vmatprep.subr.mxu0 0.0
    %1096 = vmatpush1.msra.mxu0 0.0
    %1097 = vmatprep.subr.mxu0 0.0
    %1098 = vmatpush1.msra.mxu0 0.0
    %1099 = vmatprep.subr.mxu0 0.0
    %1100 = vmatpush1.msra.mxu0 0.0
    %1101 = vmatprep.subr.mxu0 0.0
    %1102 = vmatpush1.msra.mxu0 0.0
    %1103 = vmatprep.subr.mxu0 0.0
    %1104 = vmatpush1.msra.mxu0 0.0
    %1105 = vmatprep.subr.mxu0 0.0
    %1106 = vmatpush1.msra.mxu0 0.0
    %1107 = vmatprep.subr.mxu0 0.0
    %1108 = vmatpush1.msra.mxu0 0.0
    %1109 = vmatprep.subr.mxu0 0.0
    %1110 = vmatpush1.msra.mxu0 0.0
    %1111 = vmatprep.subr.mxu0 0.0
    %1112 = vmatpush1.msra.mxu0 0.0
    %1113 = vmatprep.subr.mxu0 0.0
    %1114 = vmatpush1.msra.mxu0 0.0
    %1115 = vmatprep.subr.mxu0 0.0
    %1116 = vmatpush1.msra.mxu0 0.0
    %1117 = vmatprep.mubr.f32.mxu0 0.0
    %1118 = vmatmul.mubr.f32.gmra.mrb[0].mxu0 %v839
    %v1119 = vpop.f32.mrb[0].mxu0
    %v1120 = vadd.f32 0.0, %v1119
    %v1121 = vpop.f32.mrb[0].mxu0
    %1122 = vmatprep.mubr.f32.mxu0 0.0
    %1123 = vmatmul.mubr.f32.gmra.mrb[0].mxu0 %v841
    %v1124 = vpop.f32.mrb[0].mxu0
    %v1125 = vadd.f32 0.0, %v1124
    %v1126 = vpop.f32.mrb[0].mxu0
    %1127 = vmatprep.mubr.f32.mxu0 0.0
    %1128 = vmatmul.mubr.f32.gmra.mrb[0].mxu0 %v843
    %v1129 = vpop.f32.mrb[0].mxu0
    %v1130 = vadd.f32 0.0, %v1129
    %v1131 = vpop.f32.mrb[0].mxu0
    %1132 = vmatprep.mubr.f32.mxu0 0.0
    %1133 = vmatmul.mubr.f32.gmra.mrb[0].mxu0 %v845
    %v1134 = vpop.f32.mrb[0].mxu0
    %v1135 = vadd.f32 0.0, %v1134
    %v1136 = vpop.f32.mrb[0].mxu0
    %1137 = vmatprep.mubr.f32.mxu0 0.0
    %1138 = vmatmul.mubr.f32.gmra.mrb[0].mxu0 %v847
    %v1139 = vpop.f32.mrb[0].mxu0
    %v1140 = vadd.f32 0.0, %v1139
    %v1141 = vpop.f32.mrb[0].mxu0
    %1142 = vdwg.mxu0
    %v1143 = vadd.f32 %v1041, %v1120
    %v1144 = vadd.f32 %v1042, %v1125
    %v1145 = vadd.f32 %v1043, %v1130
    %v1146 = vadd.f32 %v1044, %v1135
    %v1147 = vadd.f32 %v1045, %v1140
    %v1148 = vld [vmem:[%s2] sm:$0x1]
    %v1150 = vlaneseq
    %v1151 = vshrl.u32 %v1150, 7
    %v1152 = vsub.s32 0, %v1151
    %v1153 = vrot.slane %v1148, %v1152
    %v1155 = vadd.f32 %v1143, %v1153
    %v1156 = vadd.f32 %v1144, %v1153
    %v1157 = vadd.f32 %v1145, %v1153
    %v1158 = vadd.f32 %v1146, %v1153
    %v1159 = vadd.f32 %v1147, %v1153
    %v1160 = vmax.f32 %v1155, 0.0
    %v1161 = vmax.f32 %v1156, 0.0
    %v1162 = vmax.f32 %v1157, 0.0
    %v1163 = vmax.f32 %v1158, 0.0
    %v1164 = vmax.f32 %v1159, 0.0
    %v1170 = vrot.slane %v1160, 1
    %v1171 = vrot.slane %v1161, 1
    %v1172 = vsel %vm503, %v1170, %v1171
    %v1173 = vrot.slane %v1162, 1
    %v1174 = vsel %vm503, %v1171, %v1173
    %v1175 = vrot.slane %v1163, 1
    %v1176 = vsel %vm503, %v1173, %v1175
    %v1177 = vrot.slane %v1164, 1
    %v1178 = vsel %vm503, %v1175, %v1177
    %v1184 = vmax.f32 %v1160, %v1172
    %v1185 = vmax.f32 %v1161, %v1174
    %v1186 = vmax.f32 %v1162, %v1176
    %v1187 = vmax.f32 %v1163, %v1178
    %v1188 = vmax.f32 %v1164, %v1177
    %1194 = vrot.lane.b32.xlu0 %v1184, 120
    %v1195 = vpop.permute.xlu0 %1194
    %1196 = vrot.lane.b32.xlu0 %v1185, 120
    %v1197 = vpop.permute.xlu0 %1196
    %1198 = vrot.lane.b32.xlu0 %v1186, 120
    %v1199 = vpop.permute.xlu0 %1198
    %1200 = vrot.lane.b32.xlu0 %v1187, 120
    %v1201 = vpop.permute.xlu0 %1200
    %1202 = vrot.lane.b32.xlu0 %v1188, 120
    %v1203 = vpop.permute.xlu0 %1202
    %v1209 = vmax.f32 %v1184, %v1195
    %v1210 = vmax.f32 %v1185, %v1197
    %v1211 = vmax.f32 %v1186, %v1199
    %v1212 = vmax.f32 %v1187, %v1201
    %v1213 = vmax.f32 %v1188, %v1203
    %v1214 = vld [vmem:[#allocation5] sm:$0xff]
    %v1215 = vld [vmem:[#allocation5 + $0x8] sm:$0xff]
    %v1216 = vld [vmem:[#allocation5 + $0x10] sm:$0xf]
    %vm1217 = vcmask 269312
    %v1219 = vsel %vm1217, %v1214, 0
    %v1222 = vsel %vm1217, %v1215, 0
    %v1225 = vsel %vm1217, %v1216, 0
    %vm1227 = vcmask 1040384
    %v1229 = vsel %vm1227, %v1213, 0
    %1231 = vmatprep.subr.mxu0 0.0
    %1232 = vmatpush1.msra.mxu0 %v1209
    %1233 = vmatprep.subr.mxu0 0.0
    %1234 = vmatpush1.msra.mxu0 %v1210
    %1235 = vmatprep.subr.mxu0 0.0
    %1236 = vmatpush1.msra.mxu0 %v1211
    %1237 = vmatprep.subr.mxu0 0.0
    %1238 = vmatpush1.msra.mxu0 %v1212
    %1239 = vmatprep.subr.mxu0 0.0
    %1240 = vmatpush1.msra.mxu0 %v1229
    %1241 = vmatprep.subr.mxu0 0.0
    %1242 = vmatpush1.msra.mxu0 0.0
    %1243 = vmatprep.subr.mxu0 0.0
    %1244 = vmatpush1.msra.mxu0 0.0
    %1245 = vmatprep.subr.mxu0 0.0
    %1246 = vmatpush1.msra.mxu0 0.0
    %1247 = vmatprep.subr.mxu0 0.0
    %1248 = vmatpush1.msra.mxu0 0.0
    %1249 = vmatprep.subr.mxu0 0.0
    %1250 = vmatpush1.msra.mxu0 0.0
    %1251 = vmatprep.subr.mxu0 0.0
    %1252 = vmatpush1.msra.mxu0 0.0
    %1253 = vmatprep.subr.mxu0 0.0
    %1254 = vmatpush1.msra.mxu0 0.0
    %1255 = vmatprep.subr.mxu0 0.0
    %1256 = vmatpush1.msra.mxu0 0.0
    %1257 = vmatprep.subr.mxu0 0.0
    %1258 = vmatpush1.msra.mxu0 0.0
    %1259 = vmatprep.subr.mxu0 0.0
    %1260 = vmatpush1.msra.mxu0 0.0
    %1261 = vmatprep.subr.mxu0 0.0
    %1262 = vmatpush1.msra.mxu0 0.0
    %1263 = vmatprep.subr.mxu0 0.0
    %1264 = vmatpush1.msra.mxu0 0.0
    %1265 = vmatprep.subr.mxu0 0.0
    %1266 = vmatpush1.msra.mxu0 0.0
    %1267 = vmatprep.subr.mxu0 0.0
    %1268 = vmatpush1.msra.mxu0 0.0
    %1269 = vmatprep.subr.mxu0 0.0
    %1270 = vmatpush1.msra.mxu0 0.0
    %1271 = vmatprep.subr.mxu0 0.0
    %1272 = vmatpush1.msra.mxu0 0.0
    %1273 = vmatprep.subr.mxu0 0.0
    %1274 = vmatpush1.msra.mxu0 0.0
    %1275 = vmatprep.subr.mxu0 0.0
    %1276 = vmatpush1.msra.mxu0 0.0
    %1277 = vmatprep.subr.mxu0 0.0
    %1278 = vmatpush1.msra.mxu0 0.0
    %1279 = vmatprep.subr.mxu0 0.0
    %1280 = vmatpush1.msra.mxu0 0.0
    %1281 = vmatprep.subr.mxu0 0.0
    %1282 = vmatpush1.msra.mxu0 0.0
    %1283 = vmatprep.subr.mxu0 0.0
    %1284 = vmatpush1.msra.mxu0 0.0
    %1285 = vmatprep.subr.mxu0 0.0
    %1286 = vmatpush1.msra.mxu0 0.0
    %1287 = vmatprep.subr.mxu0 0.0
    %1288 = vmatpush1.msra.mxu0 0.0
    %1289 = vmatprep.subr.mxu0 0.0
    %1290 = vmatpush1.msra.mxu0 0.0
    %1291 = vmatprep.subr.mxu0 0.0
    %1292 = vmatpush1.msra.mxu0 0.0
    %1293 = vmatprep.subr.mxu0 0.0
    %1294 = vmatpush1.msra.mxu0 0.0
    %1295 = vmatprep.mubr.f32.mxu0 0.0
    %1296 = vmatmul.mubr.f32.gmra.mrb[0].mxu0 %v1219
    %v1297 = vpop.f32.mrb[0].mxu0
    %v1298 = vadd.f32 0.0, %v1297
    %v1299 = vpop.f32.mrb[0].mxu0
    %1300 = vmatprep.mubr.f32.mxu0 0.0
    %1301 = vmatmul.mubr.f32.gmra.mrb[0].mxu0 %v1222
    %v1302 = vpop.f32.mrb[0].mxu0
    %v1303 = vadd.f32 0.0, %v1302
    %v1304 = vpop.f32.mrb[0].mxu0
    %1305 = vmatprep.mubr.f32.mxu0 0.0
    %1306 = vmatmul.mubr.f32.gmra.mrb[0].mxu0 %v1225
    %v1307 = vpop.f32.mrb[0].mxu0
    %v1308 = vadd.f32 0.0, %v1307
    %v1309 = vpop.f32.mrb[0].mxu0
    %1310 = vdwg.mxu0
    %v1311 = vld [vmem:[#allocation7] sm:$0xff]
    %v1312 = vld [vmem:[#allocation7 + $0x8] sm:$0xff]
    %v1313 = vld [vmem:[#allocation7 + $0x10] sm:$0xff]
    %v1314 = vld [vmem:[#allocation7 + $0x18] sm:$0xff]
    %v1315 = vld [vmem:[#allocation7 + $0x20] sm:$0xff]
    %v1316 = vld [vmem:[#allocation7 + $0x28] sm:$0xff]
    %v1317 = vld [vmem:[#allocation7 + $0x30] sm:$0xff]
    %v1318 = vld [vmem:[#allocation7 + $0x38] sm:$0xff]
    %v1319 = vld [vmem:[#allocation7 + $0x40] sm:$0xff]
    %v1320 = vld [vmem:[#allocation7 + $0x48] sm:$0xff]
    %v1321 = vld [vmem:[#allocation7 + $0x50] sm:$0xff]
    %v1322 = vld [vmem:[#allocation7 + $0x58] sm:$0xff]
    %v1323 = vld [vmem:[#allocation7 + $0x60] sm:$0xff]
    %v1324 = vld [vmem:[#allocation7 + $0x68] sm:$0xff]
    %v1325 = vld [vmem:[#allocation7 + $0x70] sm:$0xff]
    %s1326 = scalar_lea.vmem [#allocation7], 120
    %v1327 = vld [vmem:[%s1326] sm:$0xff]
    %v1328 = vld [vmem:[%s1326 + $0x8] sm:$0xff]
    %v1329 = vld [vmem:[%s1326 + $0x10] sm:$0xff]
    %v1330 = vld [vmem:[%s1326 + $0x18] sm:$0xff]
    %v1331 = vld [vmem:[%s1326 + $0x20] sm:$0xff]
    %v1332 = vld [vmem:[%s1326 + $0x28] sm:$0xff]
    %v1333 = vld [vmem:[%s1326 + $0x30] sm:$0xff]
    %v1334 = vld [vmem:[%s1326 + $0x38] sm:$0xff]
    %v1335 = vld [vmem:[%s1326 + $0x40] sm:$0xff]
    %v1336 = vld [vmem:[%s1326 + $0x48] sm:$0xff]
    %v1337 = vld [vmem:[%s1326 + $0x50] sm:$0xff]
    %v1338 = vld [vmem:[%s1326 + $0x58] sm:$0xff]
    %v1339 = vld [vmem:[%s1326 + $0x60] sm:$0xff]
    %v1340 = vld [vmem:[%s1326 + $0x68] sm:$0xff]
    %v1341 = vld [vmem:[%s1326 + $0x70] sm:$0xff]
    %vm1342 = vcmask 982016
    %v1344 = vsel %vm1342, %v1298, 0
    %v1347 = vsel %vm1342, %v1303, 0
    %v1350 = vsel %vm1342, %v1308, 0
    %1352 = vmatprep.subr.mxu0 0.0
    %1353 = vmatpush1.msra.mxu0 %v1327
    %1354 = vmatprep.subr.mxu0 0.0
    %1355 = vmatpush1.msra.mxu0 %v1328
    %1356 = vmatprep.subr.mxu0 0.0
    %1357 = vmatpush1.msra.mxu0 %v1329
    %1358 = vmatprep.subr.mxu0 0.0
    %1359 = vmatpush1.msra.mxu0 %v1330
    %1360 = vmatprep.subr.mxu0 0.0
    %1361 = vmatpush1.msra.mxu0 %v1331
    %1362 = vmatprep.subr.mxu0 0.0
    %1363 = vmatpush1.msra.mxu0 %v1332
    %1364 = vmatprep.subr.mxu0 0.0
    %1365 = vmatpush1.msra.mxu0 %v1333
    %1366 = vmatprep.subr.mxu0 0.0
    %1367 = vmatpush1.msra.mxu0 %v1334
    %1368 = vmatprep.subr.mxu0 0.0
    %1369 = vmatpush1.msra.mxu0 %v1335
    %1370 = vmatprep.subr.mxu0 0.0
    %1371 = vmatpush1.msra.mxu0 %v1336
    %1372 = vmatprep.subr.mxu0 0.0
    %1373 = vmatpush1.msra.mxu0 %v1337
    %1374 = vmatprep.subr.mxu0 0.0
    %1375 = vmatpush1.msra.mxu0 %v1338
    %1376 = vmatprep.subr.mxu0 0.0
    %1377 = vmatpush1.msra.mxu0 %v1339
    %1378 = vmatprep.subr.mxu0 0.0
    %1379 = vmatpush1.msra.mxu0 %v1340
    %1380 = vmatprep.subr.mxu0 0.0
    %1381 = vmatpush1.msra.mxu0 %v1341
    %1382 = vmatprep.subr.mxu0 0.0
    %1383 = vmatpush1.msra.mxu0 0.0
    %1384 = vmatprep.subr.mxu0 0.0
    %1385 = vmatpush1.msra.mxu0 0.0
    %1386 = vmatprep.subr.mxu0 0.0
    %1387 = vmatpush1.msra.mxu0 0.0
    %1388 = vmatprep.subr.mxu0 0.0
    %1389 = vmatpush1.msra.mxu0 0.0
    %1390 = vmatprep.subr.mxu0 0.0
    %1391 = vmatpush1.msra.mxu0 0.0
    %1392 = vmatprep.subr.mxu0 0.0
    %1393 = vmatpush1.msra.mxu0 0.0
    %1394 = vmatprep.subr.mxu0 0.0
    %1395 = vmatpush1.msra.mxu0 0.0
    %1396 = vmatprep.subr.mxu0 0.0
    %1397 = vmatpush1.msra.mxu0 0.0
    %1398 = vmatprep.subr.mxu0 0.0
    %1399 = vmatpush1.msra.mxu0 0.0
    %1400 = vmatprep.subr.mxu0 0.0
    %1401 = vmatpush1.msra.mxu0 0.0
    %1402 = vmatprep.subr.mxu0 0.0
    %1403 = vmatpush1.msra.mxu0 0.0
    %1404 = vmatprep.subr.mxu0 0.0
    %1405 = vmatpush1.msra.mxu0 0.0
    %1406 = vmatprep.subr.mxu0 0.0
    %1407 = vmatpush1.msra.mxu0 0.0
    %1408 = vmatprep.subr.mxu0 0.0
    %1409 = vmatpush1.msra.mxu0 0.0
    %1410 = vmatprep.subr.mxu0 0.0
    %1411 = vmatpush1.msra.mxu0 0.0
    %1412 = vmatprep.subr.mxu0 0.0
    %1413 = vmatpush1.msra.mxu0 0.0
    %1414 = vmatprep.subr.mxu0 0.0
    %1415 = vmatpush1.msra.mxu0 0.0
    %1416 = vmatprep.mubr.f32.mxu0 0.0
    %1417 = vmatmul.mubr.f32.gmra.mrb[0].mxu0 %v1344
    %v1418 = vpop.f32.mrb[0].mxu0
    %v1419 = vadd.f32 0.0, %v1418
    %v1420 = vpop.f32.mrb[0].mxu0
    %1421 = vmatprep.mubr.f32.mxu0 0.0
    %1422 = vmatmul.mubr.f32.gmra.mrb[0].mxu0 %v1347
    %v1423 = vpop.f32.mrb[0].mxu0
    %v1424 = vadd.f32 0.0, %v1423
    %v1425 = vpop.f32.mrb[0].mxu0
    %1426 = vmatprep.mubr.f32.mxu0 0.0
    %1427 = vmatmul.mubr.f32.gmra.mrb[0].mxu0 %v1350
    %v1428 = vpop.f32.mrb[0].mxu0
    %v1429 = vadd.f32 0.0, %v1428
    %v1430 = vpop.f32.mrb[0].mxu0
    %1431 = vdwg.mxu0
    %1432 = vmatprep.subr.mxu0 0.0
    %1433 = vmatpush1.msra.mxu0 %v1311
    %1434 = vmatprep.subr.mxu0 0.0
    %1435 = vmatpush1.msra.mxu0 %v1312
    %1436 = vmatprep.subr.mxu0 0.0
    %1437 = vmatpush1.msra.mxu0 %v1313
    %1438 = vmatprep.subr.mxu0 0.0
    %1439 = vmatpush1.msra.mxu0 %v1314
    %1440 = vmatprep.subr.mxu0 0.0
    %1441 = vmatpush1.msra.mxu0 %v1315
    %1442 = vmatprep.subr.mxu0 0.0
    %1443 = vmatpush1.msra.mxu0 %v1316
    %1444 = vmatprep.subr.mxu0 0.0
    %1445 = vmatpush1.msra.mxu0 %v1317
    %1446 = vmatprep.subr.mxu0 0.0
    %1447 = vmatpush1.msra.mxu0 %v1318
    %1448 = vmatprep.subr.mxu0 0.0
    %1449 = vmatpush1.msra.mxu0 %v1319
    %1450 = vmatprep.subr.mxu0 0.0
    %1451 = vmatpush1.msra.mxu0 %v1320
    %1452 = vmatprep.subr.mxu0 0.0
    %1453 = vmatpush1.msra.mxu0 %v1321
    %1454 = vmatprep.subr.mxu0 0.0
    %1455 = vmatpush1.msra.mxu0 %v1322
    %1456 = vmatprep.subr.mxu0 0.0
    %1457 = vmatpush1.msra.mxu0 %v1323
    %1458 = vmatprep.subr.mxu0 0.0
    %1459 = vmatpush1.msra.mxu0 %v1324
    %1460 = vmatprep.subr.mxu0 0.0
    %1461 = vmatpush1.msra.mxu0 %v1325
    %1462 = vmatprep.subr.mxu0 0.0
    %1463 = vmatpush1.msra.mxu0 0.0
    %1464 = vmatprep.subr.mxu0 0.0
    %1465 = vmatpush1.msra.mxu0 0.0
    %1466 = vmatprep.subr.mxu0 0.0
    %1467 = vmatpush1.msra.mxu0 0.0
    %1468 = vmatprep.subr.mxu0 0.0
    %1469 = vmatpush1.msra.mxu0 0.0
    %1470 = vmatprep.subr.mxu0 0.0
    %1471 = vmatpush1.msra.mxu0 0.0
    %1472 = vmatprep.subr.mxu0 0.0
    %1473 = vmatpush1.msra.mxu0 0.0
    %1474 = vmatprep.subr.mxu0 0.0
    %1475 = vmatpush1.msra.mxu0 0.0
    %1476 = vmatprep.subr.mxu0 0.0
    %1477 = vmatpush1.msra.mxu0 0.0
    %1478 = vmatprep.subr.mxu0 0.0
    %1479 = vmatpush1.msra.mxu0 0.0
    %1480 = vmatprep.subr.mxu0 0.0
    %1481 = vmatpush1.msra.mxu0 0.0
    %1482 = vmatprep.subr.mxu0 0.0
    %1483 = vmatpush1.msra.mxu0 0.0
    %1484 = vmatprep.subr.mxu0 0.0
    %1485 = vmatpush1.msra.mxu0 0.0
    %1486 = vmatprep.subr.mxu0 0.0
    %1487 = vmatpush1.msra.mxu0 0.0
    %1488 = vmatprep.subr.mxu0 0.0
    %1489 = vmatpush1.msra.mxu0 0.0
    %1490 = vmatprep.subr.mxu0 0.0
    %1491 = vmatpush1.msra.mxu0 0.0
    %1492 = vmatprep.subr.mxu0 0.0
    %1493 = vmatpush1.msra.mxu0 0.0
    %1494 = vmatprep.subr.mxu0 0.0
    %1495 = vmatpush1.msra.mxu0 0.0
    %1496 = vmatprep.mubr.f32.mxu0 0.0
    %1497 = vmatmul.mubr.f32.gmra.mrb[0].mxu0 %v1344
    %v1498 = vpop.f32.mrb[0].mxu0
    %v1499 = vadd.f32 %v1419, %v1498
    %v1500 = vpop.f32.mrb[0].mxu0
    %1501 = vmatprep.mubr.f32.mxu0 0.0
    %1502 = vmatmul.mubr.f32.gmra.mrb[0].mxu0 %v1347
    %v1503 = vpop.f32.mrb[0].mxu0
    %v1504 = vadd.f32 %v1424, %v1503
    %v1505 = vpop.f32.mrb[0].mxu0
    %1506 = vmatprep.mubr.f32.mxu0 0.0
    %1507 = vmatmul.mubr.f32.gmra.mrb[0].mxu0 %v1350
    %v1508 = vpop.f32.mrb[0].mxu0
    %v1509 = vadd.f32 %v1429, %v1508
    %v1510 = vpop.f32.mrb[0].mxu0
    %1511 = vdwg.mxu0
    %s1512 = scalar_lea.vmem [#allocation7], 240
    %v1513 = vld [vmem:[%s1512] sm:$0xff]
    %v1514 = vld [vmem:[%s1512 + $0x8] sm:$0xff]
    %v1515 = vld [vmem:[%s1512 + $0x10] sm:$0xff]
    %v1516 = vld [vmem:[%s1512 + $0x18] sm:$0xff]
    %v1517 = vld [vmem:[%s1512 + $0x20] sm:$0xff]
    %v1518 = vld [vmem:[%s1512 + $0x28] sm:$0xff]
    %v1519 = vld [vmem:[%s1512 + $0x30] sm:$0xff]
    %v1520 = vld [vmem:[%s1512 + $0x38] sm:$0xff]
    %v1521 = vld [vmem:[%s1512 + $0x40] sm:$0xff]
    %v1522 = vld [vmem:[%s1512 + $0x48] sm:$0xff]
    %v1523 = vld [vmem:[%s1512 + $0x50] sm:$0xff]
    %v1524 = vld [vmem:[%s1512 + $0x58] sm:$0xff]
    %v1525 = vld [vmem:[%s1512 + $0x60] sm:$0xff]
    %v1526 = vld [vmem:[%s1512 + $0x68] sm:$0xff]
    %v1527 = vld [vmem:[%s1512 + $0x70] sm:$0xff]
    %1528 = vmatprep.subr.mxu0 0.0
    %1529 = vmatpush1.msra.mxu0 %v1513
    %1530 = vmatprep.subr.mxu0 0.0
    %1531 = vmatpush1.msra.mxu0 %v1514
    %1532 = vmatprep.subr.mxu0 0.0
    %1533 = vmatpush1.msra.mxu0 %v1515
    %1534 = vmatprep.subr.mxu0 0.0
    %1535 = vmatpush1.msra.mxu0 %v1516
    %1536 = vmatprep.subr.mxu0 0.0
    %1537 = vmatpush1.msra.mxu0 %v1517
    %1538 = vmatprep.subr.mxu0 0.0
    %1539 = vmatpush1.msra.mxu0 %v1518
    %1540 = vmatprep.subr.mxu0 0.0
    %1541 = vmatpush1.msra.mxu0 %v1519
    %1542 = vmatprep.subr.mxu0 0.0
    %1543 = vmatpush1.msra.mxu0 %v1520
    %1544 = vmatprep.subr.mxu0 0.0
    %1545 = vmatpush1.msra.mxu0 %v1521
    %1546 = vmatprep.subr.mxu0 0.0
    %1547 = vmatpush1.msra.mxu0 %v1522
    %1548 = vmatprep.subr.mxu0 0.0
    %1549 = vmatpush1.msra.mxu0 %v1523
    %1550 = vmatprep.subr.mxu0 0.0
    %1551 = vmatpush1.msra.mxu0 %v1524
    %1552 = vmatprep.subr.mxu0 0.0
    %1553 = vmatpush1.msra.mxu0 %v1525
    %1554 = vmatprep.subr.mxu0 0.0
    %1555 = vmatpush1.msra.mxu0 %v1526
    %1556 = vmatprep.subr.mxu0 0.0
    %1557 = vmatpush1.msra.mxu0 %v1527
    %1558 = vmatprep.subr.mxu0 0.0
    %1559 = vmatpush1.msra.mxu0 0.0
    %1560 = vmatprep.subr.mxu0 0.0
    %1561 = vmatpush1.msra.mxu0 0.0
    %1562 = vmatprep.subr.mxu0 0.0
    %1563 = vmatpush1.msra.mxu0 0.0
    %1564 = vmatprep.subr.mxu0 0.0
    %1565 = vmatpush1.msra.mxu0 0.0
    %1566 = vmatprep.subr.mxu0 0.0
    %1567 = vmatpush1.msra.mxu0 0.0
    %1568 = vmatprep.subr.mxu0 0.0
    %1569 = vmatpush1.msra.mxu0 0.0
    %1570 = vmatprep.subr.mxu0 0.0
    %1571 = vmatpush1.msra.mxu0 0.0
    %1572 = vmatprep.subr.mxu0 0.0
    %1573 = vmatpush1.msra.mxu0 0.0
    %1574 = vmatprep.subr.mxu0 0.0
    %1575 = vmatpush1.msra.mxu0 0.0
    %1576 = vmatprep.subr.mxu0 0.0
    %1577 = vmatpush1.msra.mxu0 0.0
    %1578 = vmatprep.subr.mxu0 0.0
    %1579 = vmatpush1.msra.mxu0 0.0
    %1580 = vmatprep.subr.mxu0 0.0
    %1581 = vmatpush1.msra.mxu0 0.0
    %1582 = vmatprep.subr.mxu0 0.0
    %1583 = vmatpush1.msra.mxu0 0.0
    %1584 = vmatprep.subr.mxu0 0.0
    %1585 = vmatpush1.msra.mxu0 0.0
    %1586 = vmatprep.subr.mxu0 0.0
    %1587 = vmatpush1.msra.mxu0 0.0
    %1588 = vmatprep.subr.mxu0 0.0
    %1589 = vmatpush1.msra.mxu0 0.0
    %1590 = vmatprep.subr.mxu0 0.0
    %1591 = vmatpush1.msra.mxu0 0.0
    %1592 = vmatprep.mubr.f32.mxu0 0.0
    %1593 = vmatmul.mubr.f32.gmra.mrb[0].mxu0 %v1344
    %v1594 = vpop.f32.mrb[0].mxu0
    %v1595 = vadd.f32 0.0, %v1594
    %v1596 = vpop.f32.mrb[0].mxu0
    %1597 = vmatprep.mubr.f32.mxu0 0.0
    %1598 = vmatmul.mubr.f32.gmra.mrb[0].mxu0 %v1347
    %v1599 = vpop.f32.mrb[0].mxu0
    %v1600 = vadd.f32 0.0, %v1599
    %v1601 = vpop.f32.mrb[0].mxu0
    %1602 = vmatprep.mubr.f32.mxu0 0.0
    %1603 = vmatmul.mubr.f32.gmra.mrb[0].mxu0 %v1350
    %v1604 = vpop.f32.mrb[0].mxu0
    %v1605 = vadd.f32 0.0, %v1604
    %v1606 = vpop.f32.mrb[0].mxu0
    %1607 = vdwg.mxu0
    %v1608 = vadd.f32 %v1499, %v1595
    %v1609 = vadd.f32 %v1504, %v1600
    %v1610 = vadd.f32 %v1509, %v1605
    %s1611 = scalar_lea.vmem [#allocation7], 360
    %v1612 = vld [vmem:[%s1611] sm:$0xff]
    %v1613 = vld [vmem:[%s1611 + $0x8] sm:$0xff]
    %v1614 = vld [vmem:[%s1611 + $0x10] sm:$0xff]
    %v1615 = vld [vmem:[%s1611 + $0x18] sm:$0xff]
    %v1616 = vld [vmem:[%s1611 + $0x20] sm:$0xff]
    %v1617 = vld [vmem:[%s1611 + $0x28] sm:$0xff]
    %v1618 = vld [vmem:[%s1611 + $0x30] sm:$0xff]
    %v1619 = vld [vmem:[%s1611 + $0x38] sm:$0xff]
    %v1620 = vld [vmem:[%s1611 + $0x40] sm:$0xff]
    %v1621 = vld [vmem:[%s1611 + $0x48] sm:$0xff]
    %v1622 = vld [vmem:[%s1611 + $0x50] sm:$0xff]
    %v1623 = vld [vmem:[%s1611 + $0x58] sm:$0xff]
    %v1624 = vld [vmem:[%s1611 + $0x60] sm:$0xff]
    %v1625 = vld [vmem:[%s1611 + $0x68] sm:$0xff]
    %v1626 = vld [vmem:[%s1611 + $0x70] sm:$0xff]
    %v1627 = vrot.slane %v1298, 1
    %v1628 = vrot.slane %v1303, 1
    %v1629 = vsel %vm503, %v1627, %v1628
    %v1630 = vrot.slane %v1308, 1
    %v1631 = vsel %vm503, %v1628, %v1630
    %v1632 = vsel %vm1342, %v1629, 0
    %v1634 = vsel %vm1342, %v1631, 0
    %v1636 = vsel %vm1342, %v1630, 0
    %1638 = vmatprep.subr.mxu0 0.0
    %1639 = vmatpush1.msra.mxu0 %v1612
    %1640 = vmatprep.subr.mxu0 0.0
    %1641 = vmatpush1.msra.mxu0 %v1613
    %1642 = vmatprep.subr.mxu0 0.0
    %1643 = vmatpush1.msra.mxu0 %v1614
    %1644 = vmatprep.subr.mxu0 0.0
    %1645 = vmatpush1.msra.mxu0 %v1615
    %1646 = vmatprep.subr.mxu0 0.0
    %1647 = vmatpush1.msra.mxu0 %v1616
    %1648 = vmatprep.subr.mxu0 0.0
    %1649 = vmatpush1.msra.mxu0 %v1617
    %1650 = vmatprep.subr.mxu0 0.0
    %1651 = vmatpush1.msra.mxu0 %v1618
    %1652 = vmatprep.subr.mxu0 0.0
    %1653 = vmatpush1.msra.mxu0 %v1619
    %1654 = vmatprep.subr.mxu0 0.0
    %1655 = vmatpush1.msra.mxu0 %v1620
    %1656 = vmatprep.subr.mxu0 0.0
    %1657 = vmatpush1.msra.mxu0 %v1621
    %1658 = vmatprep.subr.mxu0 0.0
    %1659 = vmatpush1.msra.mxu0 %v1622
    %1660 = vmatprep.subr.mxu0 0.0
    %1661 = vmatpush1.msra.mxu0 %v1623
    %1662 = vmatprep.subr.mxu0 0.0
    %1663 = vmatpush1.msra.mxu0 %v1624
    %1664 = vmatprep.subr.mxu0 0.0
    %1665 = vmatpush1.msra.mxu0 %v1625
    %1666 = vmatprep.subr.mxu0 0.0
    %1667 = vmatpush1.msra.mxu0 %v1626
    %1668 = vmatprep.subr.mxu0 0.0
    %1669 = vmatpush1.msra.mxu0 0.0
    %1670 = vmatprep.subr.mxu0 0.0
    %1671 = vmatpush1.msra.mxu0 0.0
    %1672 = vmatprep.subr.mxu0 0.0
    %1673 = vmatpush1.msra.mxu0 0.0
    %1674 = vmatprep.subr.mxu0 0.0
    %1675 = vmatpush1.msra.mxu0 0.0
    %1676 = vmatprep.subr.mxu0 0.0
    %1677 = vmatpush1.msra.mxu0 0.0
    %1678 = vmatprep.subr.mxu0 0.0
    %1679 = vmatpush1.msra.mxu0 0.0
    %1680 = vmatprep.subr.mxu0 0.0
    %1681 = vmatpush1.msra.mxu0 0.0
    %1682 = vmatprep.subr.mxu0 0.0
    %1683 = vmatpush1.msra.mxu0 0.0
    %1684 = vmatprep.subr.mxu0 0.0
    %1685 = vmatpush1.msra.mxu0 0.0
    %1686 = vmatprep.subr.mxu0 0.0
    %1687 = vmatpush1.msra.mxu0 0.0
    %1688 = vmatprep.subr.mxu0 0.0
    %1689 = vmatpush1.msra.mxu0 0.0
    %1690 = vmatprep.subr.mxu0 0.0
    %1691 = vmatpush1.msra.mxu0 0.0
    %1692 = vmatprep.subr.mxu0 0.0
    %1693 = vmatpush1.msra.mxu0 0.0
    %1694 = vmatprep.subr.mxu0 0.0
    %1695 = vmatpush1.msra.mxu0 0.0
    %1696 = vmatprep.subr.mxu0 0.0
    %1697 = vmatpush1.msra.mxu0 0.0
    %1698 = vmatprep.subr.mxu0 0.0
    %1699 = vmatpush1.msra.mxu0 0.0
    %1700 = vmatprep.subr.mxu0 0.0
    %1701 = vmatpush1.msra.mxu0 0.0
    %1702 = vmatprep.mubr.f32.mxu0 0.0
    %1703 = vmatmul.mubr.f32.gmra.mrb[0].mxu0 %v1632
    %v1704 = vpop.f32.mrb[0].mxu0
    %v1705 = vadd.f32 0.0, %v1704
    %v1706 = vpop.f32.mrb[0].mxu0
    %1707 = vmatprep.mubr.f32.mxu0 0.0
    %1708 = vmatmul.mubr.f32.gmra.mrb[0].mxu0 %v1634
    %v1709 = vpop.f32.mrb[0].mxu0
    %v1710 = vadd.f32 0.0, %v1709
    %v1711 = vpop.f32.mrb[0].mxu0
    %1712 = vmatprep.mubr.f32.mxu0 0.0
    %1713 = vmatmul.mubr.f32.gmra.mrb[0].mxu0 %v1636
    %v1714 = vpop.f32.mrb[0].mxu0
    %v1715 = vadd.f32 0.0, %v1714
    %v1716 = vpop.f32.mrb[0].mxu0
    %1717 = vdwg.mxu0
    %v1718 = vadd.f32 %v1608, %v1705
    %v1719 = vadd.f32 %v1609, %v1710
    %v1720 = vadd.f32 %v1610, %v1715
    %s1721 = scalar_lea.vmem [#allocation7], 480
    %v1722 = vld [vmem:[%s1721] sm:$0xff]
    %v1723 = vld [vmem:[%s1721 + $0x8] sm:$0xff]
    %v1724 = vld [vmem:[%s1721 + $0x10] sm:$0xff]
    %v1725 = vld [vmem:[%s1721 + $0x18] sm:$0xff]
    %v1726 = vld [vmem:[%s1721 + $0x20] sm:$0xff]
    %v1727 = vld [vmem:[%s1721 + $0x28] sm:$0xff]
    %v1728 = vld [vmem:[%s1721 + $0x30] sm:$0xff]
    %v1729 = vld [vmem:[%s1721 + $0x38] sm:$0xff]
    %v1730 = vld [vmem:[%s1721 + $0x40] sm:$0xff]
    %v1731 = vld [vmem:[%s1721 + $0x48] sm:$0xff]
    %v1732 = vld [vmem:[%s1721 + $0x50] sm:$0xff]
    %v1733 = vld [vmem:[%s1721 + $0x58] sm:$0xff]
    %v1734 = vld [vmem:[%s1721 + $0x60] sm:$0xff]
    %v1735 = vld [vmem:[%s1721 + $0x68] sm:$0xff]
    %v1736 = vld [vmem:[%s1721 + $0x70] sm:$0xff]
    %1737 = vmatprep.subr.mxu0 0.0
    %1738 = vmatpush1.msra.mxu0 %v1722
    %1739 = vmatprep.subr.mxu0 0.0
    %1740 = vmatpush1.msra.mxu0 %v1723
    %1741 = vmatprep.subr.mxu0 0.0
    %1742 = vmatpush1.msra.mxu0 %v1724
    %1743 = vmatprep.subr.mxu0 0.0
    %1744 = vmatpush1.msra.mxu0 %v1725
    %1745 = vmatprep.subr.mxu0 0.0
    %1746 = vmatpush1.msra.mxu0 %v1726
    %1747 = vmatprep.subr.mxu0 0.0
    %1748 = vmatpush1.msra.mxu0 %v1727
    %1749 = vmatprep.subr.mxu0 0.0
    %1750 = vmatpush1.msra.mxu0 %v1728
    %1751 = vmatprep.subr.mxu0 0.0
    %1752 = vmatpush1.msra.mxu0 %v1729
    %1753 = vmatprep.subr.mxu0 0.0
    %1754 = vmatpush1.msra.mxu0 %v1730
    %1755 = vmatprep.subr.mxu0 0.0
    %1756 = vmatpush1.msra.mxu0 %v1731
    %1757 = vmatprep.subr.mxu0 0.0
    %1758 = vmatpush1.msra.mxu0 %v1732
    %1759 = vmatprep.subr.mxu0 0.0
    %1760 = vmatpush1.msra.mxu0 %v1733
    %1761 = vmatprep.subr.mxu0 0.0
    %1762 = vmatpush1.msra.mxu0 %v1734
    %1763 = vmatprep.subr.mxu0 0.0
    %1764 = vmatpush1.msra.mxu0 %v1735
    %1765 = vmatprep.subr.mxu0 0.0
    %1766 = vmatpush1.msra.mxu0 %v1736
    %1767 = vmatprep.subr.mxu0 0.0
    %1768 = vmatpush1.msra.mxu0 0.0
    %1769 = vmatprep.subr.mxu0 0.0
    %1770 = vmatpush1.msra.mxu0 0.0
    %1771 = vmatprep.subr.mxu0 0.0
    %1772 = vmatpush1.msra.mxu0 0.0
    %1773 = vmatprep.subr.mxu0 0.0
    %1774 = vmatpush1.msra.mxu0 0.0
    %1775 = vmatprep.subr.mxu0 0.0
    %1776 = vmatpush1.msra.mxu0 0.0
    %1777 = vmatprep.subr.mxu0 0.0
    %1778 = vmatpush1.msra.mxu0 0.0
    %1779 = vmatprep.subr.mxu0 0.0
    %1780 = vmatpush1.msra.mxu0 0.0
    %1781 = vmatprep.subr.mxu0 0.0
    %1782 = vmatpush1.msra.mxu0 0.0
    %1783 = vmatprep.subr.mxu0 0.0
    %1784 = vmatpush1.msra.mxu0 0.0
    %1785 = vmatprep.subr.mxu0 0.0
    %1786 = vmatpush1.msra.mxu0 0.0
    %1787 = vmatprep.subr.mxu0 0.0
    %1788 = vmatpush1.msra.mxu0 0.0
    %1789 = vmatprep.subr.mxu0 0.0
    %1790 = vmatpush1.msra.mxu0 0.0
    %1791 = vmatprep.subr.mxu0 0.0
    %1792 = vmatpush1.msra.mxu0 0.0
    %1793 = vmatprep.subr.mxu0 0.0
    %1794 = vmatpush1.msra.mxu0 0.0
    %1795 = vmatprep.subr.mxu0 0.0
    %1796 = vmatpush1.msra.mxu0 0.0
    %1797 = vmatprep.subr.mxu0 0.0
    %1798 = vmatpush1.msra.mxu0 0.0
    %1799 = vmatprep.subr.mxu0 0.0
    %1800 = vmatpush1.msra.mxu0 0.0
    %1801 = vmatprep.mubr.f32.mxu0 0.0
    %1802 = vmatmul.mubr.f32.gmra.mrb[0].mxu0 %v1632
    %v1803 = vpop.f32.mrb[0].mxu0
    %v1804 = vadd.f32 0.0, %v1803
    %v1805 = vpop.f32.mrb[0].mxu0
    %1806 = vmatprep.mubr.f32.mxu0 0.0
    %1807 = vmatmul.mubr.f32.gmra.mrb[0].mxu0 %v1634
    %v1808 = vpop.f32.mrb[0].mxu0
    %v1809 = vadd.f32 0.0, %v1808
    %v1810 = vpop.f32.mrb[0].mxu0
    %1811 = vmatprep.mubr.f32.mxu0 0.0
    %1812 = vmatmul.mubr.f32.gmra.mrb[0].mxu0 %v1636
    %v1813 = vpop.f32.mrb[0].mxu0
    %v1814 = vadd.f32 0.0, %v1813
    %v1815 = vpop.f32.mrb[0].mxu0
    %1816 = vdwg.mxu0
    %v1817 = vadd.f32 %v1718, %v1804
    %v1818 = vadd.f32 %v1719, %v1809
    %v1819 = vadd.f32 %v1720, %v1814
    %s1820 = scalar_lea.vmem [#allocation7], 600
    %v1821 = vld [vmem:[%s1820] sm:$0xff]
    %v1822 = vld [vmem:[%s1820 + $0x8] sm:$0xff]
    %v1823 = vld [vmem:[%s1820 + $0x10] sm:$0xff]
    %v1824 = vld [vmem:[%s1820 + $0x18] sm:$0xff]
    %v1825 = vld [vmem:[%s1820 + $0x20] sm:$0xff]
    %v1826 = vld [vmem:[%s1820 + $0x28] sm:$0xff]
    %v1827 = vld [vmem:[%s1820 + $0x30] sm:$0xff]
    %v1828 = vld [vmem:[%s1820 + $0x38] sm:$0xff]
    %v1829 = vld [vmem:[%s1820 + $0x40] sm:$0xff]
    %v1830 = vld [vmem:[%s1820 + $0x48] sm:$0xff]
    %v1831 = vld [vmem:[%s1820 + $0x50] sm:$0xff]
    %v1832 = vld [vmem:[%s1820 + $0x58] sm:$0xff]
    %v1833 = vld [vmem:[%s1820 + $0x60] sm:$0xff]
    %v1834 = vld [vmem:[%s1820 + $0x68] sm:$0xff]
    %v1835 = vld [vmem:[%s1820 + $0x70] sm:$0xff]
    %1836 = vmatprep.subr.mxu0 0.0
    %1837 = vmatpush1.msra.mxu0 %v1821
    %1838 = vmatprep.subr.mxu0 0.0
    %1839 = vmatpush1.msra.mxu0 %v1822
    %1840 = vmatprep.subr.mxu0 0.0
    %1841 = vmatpush1.msra.mxu0 %v1823
    %1842 = vmatprep.subr.mxu0 0.0
    %1843 = vmatpush1.msra.mxu0 %v1824
    %1844 = vmatprep.subr.mxu0 0.0
    %1845 = vmatpush1.msra.mxu0 %v1825
    %1846 = vmatprep.subr.mxu0 0.0
    %1847 = vmatpush1.msra.mxu0 %v1826
    %1848 = vmatprep.subr.mxu0 0.0
    %1849 = vmatpush1.msra.mxu0 %v1827
    %1850 = vmatprep.subr.mxu0 0.0
    %1851 = vmatpush1.msra.mxu0 %v1828
    %1852 = vmatprep.subr.mxu0 0.0
    %1853 = vmatpush1.msra.mxu0 %v1829
    %1854 = vmatprep.subr.mxu0 0.0
    %1855 = vmatpush1.msra.mxu0 %v1830
    %1856 = vmatprep.subr.mxu0 0.0
    %1857 = vmatpush1.msra.mxu0 %v1831
    %1858 = vmatprep.subr.mxu0 0.0
    %1859 = vmatpush1.msra.mxu0 %v1832
    %1860 = vmatprep.subr.mxu0 0.0
    %1861 = vmatpush1.msra.mxu0 %v1833
    %1862 = vmatprep.subr.mxu0 0.0
    %1863 = vmatpush1.msra.mxu0 %v1834
    %1864 = vmatprep.subr.mxu0 0.0
    %1865 = vmatpush1.msra.mxu0 %v1835
    %1866 = vmatprep.subr.mxu0 0.0
    %1867 = vmatpush1.msra.mxu0 0.0
    %1868 = vmatprep.subr.mxu0 0.0
    %1869 = vmatpush1.msra.mxu0 0.0
    %1870 = vmatprep.subr.mxu0 0.0
    %1871 = vmatpush1.msra.mxu0 0.0
    %1872 = vmatprep.subr.mxu0 0.0
    %1873 = vmatpush1.msra.mxu0 0.0
    %1874 = vmatprep.subr.mxu0 0.0
    %1875 = vmatpush1.msra.mxu0 0.0
    %1876 = vmatprep.subr.mxu0 0.0
    %1877 = vmatpush1.msra.mxu0 0.0
    %1878 = vmatprep.subr.mxu0 0.0
    %1879 = vmatpush1.msra.mxu0 0.0
    %1880 = vmatprep.subr.mxu0 0.0
    %1881 = vmatpush1.msra.mxu0 0.0
    %1882 = vmatprep.subr.mxu0 0.0
    %1883 = vmatpush1.msra.mxu0 0.0
    %1884 = vmatprep.subr.mxu0 0.0
    %1885 = vmatpush1.msra.mxu0 0.0
    %1886 = vmatprep.subr.mxu0 0.0
    %1887 = vmatpush1.msra.mxu0 0.0
    %1888 = vmatprep.subr.mxu0 0.0
    %1889 = vmatpush1.msra.mxu0 0.0
    %1890 = vmatprep.subr.mxu0 0.0
    %1891 = vmatpush1.msra.mxu0 0.0
    %1892 = vmatprep.subr.mxu0 0.0
    %1893 = vmatpush1.msra.mxu0 0.0
    %1894 = vmatprep.subr.mxu0 0.0
    %1895 = vmatpush1.msra.mxu0 0.0
    %1896 = vmatprep.subr.mxu0 0.0
    %1897 = vmatpush1.msra.mxu0 0.0
    %1898 = vmatprep.subr.mxu0 0.0
    %1899 = vmatpush1.msra.mxu0 0.0
    %1900 = vmatprep.mubr.f32.mxu0 0.0
    %1901 = vmatmul.mubr.f32.gmra.mrb[0].mxu0 %v1632
    %v1902 = vpop.f32.mrb[0].mxu0
    %v1903 = vadd.f32 0.0, %v1902
    %v1904 = vpop.f32.mrb[0].mxu0
    %1905 = vmatprep.mubr.f32.mxu0 0.0
    %1906 = vmatmul.mubr.f32.gmra.mrb[0].mxu0 %v1634
    %v1907 = vpop.f32.mrb[0].mxu0
    %v1908 = vadd.f32 0.0, %v1907
    %v1909 = vpop.f32.mrb[0].mxu0
    %1910 = vmatprep.mubr.f32.mxu0 0.0
    %1911 = vmatmul.mubr.f32.gmra.mrb[0].mxu0 %v1636
    %v1912 = vpop.f32.mrb[0].mxu0
    %v1913 = vadd.f32 0.0, %v1912
    %v1914 = vpop.f32.mrb[0].mxu0
    %1915 = vdwg.mxu0
    %v1916 = vadd.f32 %v1817, %v1903
    %v1917 = vadd.f32 %v1818, %v1908
    %v1918 = vadd.f32 %v1819, %v1913
    %s1919 = scalar_lea.vmem [#allocation7], 720
    %v1920 = vld [vmem:[%s1919] sm:$0xff]
    %v1921 = vld [vmem:[%s1919 + $0x8] sm:$0xff]
    %v1922 = vld [vmem:[%s1919 + $0x10] sm:$0xff]
    %v1923 = vld [vmem:[%s1919 + $0x18] sm:$0xff]
    %v1924 = vld [vmem:[%s1919 + $0x20] sm:$0xff]
    %v1925 = vld [vmem:[%s1919 + $0x28] sm:$0xff]
    %v1926 = vld [vmem:[%s1919 + $0x30] sm:$0xff]
    %v1927 = vld [vmem:[%s1919 + $0x38] sm:$0xff]
    %v1928 = vld [vmem:[%s1919 + $0x40] sm:$0xff]
    %v1929 = vld [vmem:[%s1919 + $0x48] sm:$0xff]
    %v1930 = vld [vmem:[%s1919 + $0x50] sm:$0xff]
    %v1931 = vld [vmem:[%s1919 + $0x58] sm:$0xff]
    %v1932 = vld [vmem:[%s1919 + $0x60] sm:$0xff]
    %v1933 = vld [vmem:[%s1919 + $0x68] sm:$0xff]
    %v1934 = vld [vmem:[%s1919 + $0x70] sm:$0xff]
    %v1935 = vrot.slane %v1298, 2
    %v1936 = vrot.slane %v1303, 2
    %v1937 = vsel %vm829, %v1935, %v1936
    %v1938 = vrot.slane %v1308, 2
    %v1939 = vsel %vm829, %v1936, %v1938
    %v1940 = vsel %vm1342, %v1937, 0
    %v1942 = vsel %vm1342, %v1939, 0
    %v1944 = vsel %vm1342, %v1938, 0
    %1946 = vmatprep.subr.mxu0 0.0
    %1947 = vmatpush1.msra.mxu0 %v1920
    %1948 = vmatprep.subr.mxu0 0.0
    %1949 = vmatpush1.msra.mxu0 %v1921
    %1950 = vmatprep.subr.mxu0 0.0
    %1951 = vmatpush1.msra.mxu0 %v1922
    %1952 = vmatprep.subr.mxu0 0.0
    %1953 = vmatpush1.msra.mxu0 %v1923
    %1954 = vmatprep.subr.mxu0 0.0
    %1955 = vmatpush1.msra.mxu0 %v1924
    %1956 = vmatprep.subr.mxu0 0.0
    %1957 = vmatpush1.msra.mxu0 %v1925
    %1958 = vmatprep.subr.mxu0 0.0
    %1959 = vmatpush1.msra.mxu0 %v1926
    %1960 = vmatprep.subr.mxu0 0.0
    %1961 = vmatpush1.msra.mxu0 %v1927
    %1962 = vmatprep.subr.mxu0 0.0
    %1963 = vmatpush1.msra.mxu0 %v1928
    %1964 = vmatprep.subr.mxu0 0.0
    %1965 = vmatpush1.msra.mxu0 %v1929
    %1966 = vmatprep.subr.mxu0 0.0
    %1967 = vmatpush1.msra.mxu0 %v1930
    %1968 = vmatprep.subr.mxu0 0.0
    %1969 = vmatpush1.msra.mxu0 %v1931
    %1970 = vmatprep.subr.mxu0 0.0
    %1971 = vmatpush1.msra.mxu0 %v1932
    %1972 = vmatprep.subr.mxu0 0.0
    %1973 = vmatpush1.msra.mxu0 %v1933
    %1974 = vmatprep.subr.mxu0 0.0
    %1975 = vmatpush1.msra.mxu0 %v1934
    %1976 = vmatprep.subr.mxu0 0.0
    %1977 = vmatpush1.msra.mxu0 0.0
    %1978 = vmatprep.subr.mxu0 0.0
    %1979 = vmatpush1.msra.mxu0 0.0
    %1980 = vmatprep.subr.mxu0 0.0
    %1981 = vmatpush1.msra.mxu0 0.0
    %1982 = vmatprep.subr.mxu0 0.0
    %1983 = vmatpush1.msra.mxu0 0.0
    %1984 = vmatprep.subr.mxu0 0.0
    %1985 = vmatpush1.msra.mxu0 0.0
    %1986 = vmatprep.subr.mxu0 0.0
    %1987 = vmatpush1.msra.mxu0 0.0
    %1988 = vmatprep.subr.mxu0 0.0
    %1989 = vmatpush1.msra.mxu0 0.0
    %1990 = vmatprep.subr.mxu0 0.0
    %1991 = vmatpush1.msra.mxu0 0.0
    %1992 = vmatprep.subr.mxu0 0.0
    %1993 = vmatpush1.msra.mxu0 0.0
    %1994 = vmatprep.subr.mxu0 0.0
    %1995 = vmatpush1.msra.mxu0 0.0
    %1996 = vmatprep.subr.mxu0 0.0
    %1997 = vmatpush1.msra.mxu0 0.0
    %1998 = vmatprep.subr.mxu0 0.0
    %1999 = vmatpush1.msra.mxu0 0.0
    %2000 = vmatprep.subr.mxu0 0.0
    %2001 = vmatpush1.msra.mxu0 0.0
    %2002 = vmatprep.subr.mxu0 0.0
    %2003 = vmatpush1.msra.mxu0 0.0
    %2004 = vmatprep.subr.mxu0 0.0
    %2005 = vmatpush1.msra.mxu0 0.0
    %2006 = vmatprep.subr.mxu0 0.0
    %2007 = vmatpush1.msra.mxu0 0.0
    %2008 = vmatprep.subr.mxu0 0.0
    %2009 = vmatpush1.msra.mxu0 0.0
    %2010 = vmatprep.mubr.f32.mxu0 0.0
    %2011 = vmatmul.mubr.f32.gmra.mrb[0].mxu0 %v1940
    %v2012 = vpop.f32.mrb[0].mxu0
    %v2013 = vadd.f32 0.0, %v2012
    %v2014 = vpop.f32.mrb[0].mxu0
    %2015 = vmatprep.mubr.f32.mxu0 0.0
    %2016 = vmatmul.mubr.f32.gmra.mrb[0].mxu0 %v1942
    %v2017 = vpop.f32.mrb[0].mxu0
    %v2018 = vadd.f32 0.0, %v2017
    %v2019 = vpop.f32.mrb[0].mxu0
    %2020 = vmatprep.mubr.f32.mxu0 0.0
    %2021 = vmatmul.mubr.f32.gmra.mrb[0].mxu0 %v1944
    %v2022 = vpop.f32.mrb[0].mxu0
    %v2023 = vadd.f32 0.0, %v2022
    %v2024 = vpop.f32.mrb[0].mxu0
    %2025 = vdwg.mxu0
    %v2026 = vadd.f32 %v1916, %v2013
    %v2027 = vadd.f32 %v1917, %v2018
    %v2028 = vadd.f32 %v1918, %v2023
    %s2029 = scalar_lea.vmem [#allocation7], 840
    %v2030 = vld [vmem:[%s2029] sm:$0xff]
    %v2031 = vld [vmem:[%s2029 + $0x8] sm:$0xff]
    %v2032 = vld [vmem:[%s2029 + $0x10] sm:$0xff]
    %v2033 = vld [vmem:[%s2029 + $0x18] sm:$0xff]
    %v2034 = vld [vmem:[%s2029 + $0x20] sm:$0xff]
    %v2035 = vld [vmem:[%s2029 + $0x28] sm:$0xff]
    %v2036 = vld [vmem:[%s2029 + $0x30] sm:$0xff]
    %v2037 = vld [vmem:[%s2029 + $0x38] sm:$0xff]
    %v2038 = vld [vmem:[%s2029 + $0x40] sm:$0xff]
    %v2039 = vld [vmem:[%s2029 + $0x48] sm:$0xff]
    %v2040 = vld [vmem:[%s2029 + $0x50] sm:$0xff]
    %v2041 = vld [vmem:[%s2029 + $0x58] sm:$0xff]
    %v2042 = vld [vmem:[%s2029 + $0x60] sm:$0xff]
    %v2043 = vld [vmem:[%s2029 + $0x68] sm:$0xff]
    %v2044 = vld [vmem:[%s2029 + $0x70] sm:$0xff]
    %2045 = vmatprep.subr.mxu0 0.0
    %2046 = vmatpush1.msra.mxu0 %v2030
    %2047 = vmatprep.subr.mxu0 0.0
    %2048 = vmatpush1.msra.mxu0 %v2031
    %2049 = vmatprep.subr.mxu0 0.0
    %2050 = vmatpush1.msra.mxu0 %v2032
    %2051 = vmatprep.subr.mxu0 0.0
    %2052 = vmatpush1.msra.mxu0 %v2033
    %2053 = vmatprep.subr.mxu0 0.0
    %2054 = vmatpush1.msra.mxu0 %v2034
    %2055 = vmatprep.subr.mxu0 0.0
    %2056 = vmatpush1.msra.mxu0 %v2035
    %2057 = vmatprep.subr.mxu0 0.0
    %2058 = vmatpush1.msra.mxu0 %v2036
    %2059 = vmatprep.subr.mxu0 0.0
    %2060 = vmatpush1.msra.mxu0 %v2037
    %2061 = vmatprep.subr.mxu0 0.0
    %2062 = vmatpush1.msra.mxu0 %v2038
    %2063 = vmatprep.subr.mxu0 0.0
    %2064 = vmatpush1.msra.mxu0 %v2039
    %2065 = vmatprep.subr.mxu0 0.0
    %2066 = vmatpush1.msra.mxu0 %v2040
    %2067 = vmatprep.subr.mxu0 0.0
    %2068 = vmatpush1.msra.mxu0 %v2041
    %2069 = vmatprep.subr.mxu0 0.0
    %2070 = vmatpush1.msra.mxu0 %v2042
    %2071 = vmatprep.subr.mxu0 0.0
    %2072 = vmatpush1.msra.mxu0 %v2043
    %2073 = vmatprep.subr.mxu0 0.0
    %2074 = vmatpush1.msra.mxu0 %v2044
    %2075 = vmatprep.subr.mxu0 0.0
    %2076 = vmatpush1.msra.mxu0 0.0
    %2077 = vmatprep.subr.mxu0 0.0
    %2078 = vmatpush1.msra.mxu0 0.0
    %2079 = vmatprep.subr.mxu0 0.0
    %2080 = vmatpush1.msra.mxu0 0.0
    %2081 = vmatprep.subr.mxu0 0.0
    %2082 = vmatpush1.msra.mxu0 0.0
    %2083 = vmatprep.subr.mxu0 0.0
    %2084 = vmatpush1.msra.mxu0 0.0
    %2085 = vmatprep.subr.mxu0 0.0
    %2086 = vmatpush1.msra.mxu0 0.0
    %2087 = vmatprep.subr.mxu0 0.0
    %2088 = vmatpush1.msra.mxu0 0.0
    %2089 = vmatprep.subr.mxu0 0.0
    %2090 = vmatpush1.msra.mxu0 0.0
    %2091 = vmatprep.subr.mxu0 0.0
    %2092 = vmatpush1.msra.mxu0 0.0
    %2093 = vmatprep.subr.mxu0 0.0
    %2094 = vmatpush1.msra.mxu0 0.0
    %2095 = vmatprep.subr.mxu0 0.0
    %2096 = vmatpush1.msra.mxu0 0.0
    %2097 = vmatprep.subr.mxu0 0.0
    %2098 = vmatpush1.msra.mxu0 0.0
    %2099 = vmatprep.subr.mxu0 0.0
    %2100 = vmatpush1.msra.mxu0 0.0
    %2101 = vmatprep.subr.mxu0 0.0
    %2102 = vmatpush1.msra.mxu0 0.0
    %2103 = vmatprep.subr.mxu0 0.0
    %2104 = vmatpush1.msra.mxu0 0.0
    %2105 = vmatprep.subr.mxu0 0.0
    %2106 = vmatpush1.msra.mxu0 0.0
    %2107 = vmatprep.subr.mxu0 0.0
    %2108 = vmatpush1.msra.mxu0 0.0
    %2109 = vmatprep.mubr.f32.mxu0 0.0
    %2110 = vmatmul.mubr.f32.gmra.mrb[0].mxu0 %v1940
    %v2111 = vpop.f32.mrb[0].mxu0
    %v2112 = vadd.f32 0.0, %v2111
    %v2113 = vpop.f32.mrb[0].mxu0
    %2114 = vmatprep.mubr.f32.mxu0 0.0
    %2115 = vmatmul.mubr.f32.gmra.mrb[0].mxu0 %v1942
    %v2116 = vpop.f32.mrb[0].mxu0
    %v2117 = vadd.f32 0.0, %v2116
    %v2118 = vpop.f32.mrb[0].mxu0
    %2119 = vmatprep.mubr.f32.mxu0 0.0
    %2120 = vmatmul.mubr.f32.gmra.mrb[0].mxu0 %v1944
    %v2121 = vpop.f32.mrb[0].mxu0
    %v2122 = vadd.f32 0.0, %v2121
    %v2123 = vpop.f32.mrb[0].mxu0
    %2124 = vdwg.mxu0
    %v2125 = vadd.f32 %v2026, %v2112
    %v2126 = vadd.f32 %v2027, %v2117
    %v2127 = vadd.f32 %v2028, %v2122
    %s2128 = scalar_lea.vmem [#allocation7], 960
    %v2129 = vld [vmem:[%s2128] sm:$0xff]
    %v2130 = vld [vmem:[%s2128 + $0x8] sm:$0xff]
    %v2131 = vld [vmem:[%s2128 + $0x10] sm:$0xff]
    %v2132 = vld [vmem:[%s2128 + $0x18] sm:$0xff]
    %v2133 = vld [vmem:[%s2128 + $0x20] sm:$0xff]
    %v2134 = vld [vmem:[%s2128 + $0x28] sm:$0xff]
    %v2135 = vld [vmem:[%s2128 + $0x30] sm:$0xff]
    %v2136 = vld [vmem:[%s2128 + $0x38] sm:$0xff]
    %v2137 = vld [vmem:[%s2128 + $0x40] sm:$0xff]
    %v2138 = vld [vmem:[%s2128 + $0x48] sm:$0xff]
    %v2139 = vld [vmem:[%s2128 + $0x50] sm:$0xff]
    %v2140 = vld [vmem:[%s2128 + $0x58] sm:$0xff]
    %v2141 = vld [vmem:[%s2128 + $0x60] sm:$0xff]
    %v2142 = vld [vmem:[%s2128 + $0x68] sm:$0xff]
    %v2143 = vld [vmem:[%s2128 + $0x70] sm:$0xff]
    %2144 = vmatprep.subr.mxu0 0.0
    %2145 = vmatpush1.msra.mxu0 %v2129
    %2146 = vmatprep.subr.mxu0 0.0
    %2147 = vmatpush1.msra.mxu0 %v2130
    %2148 = vmatprep.subr.mxu0 0.0
    %2149 = vmatpush1.msra.mxu0 %v2131
    %2150 = vmatprep.subr.mxu0 0.0
    %2151 = vmatpush1.msra.mxu0 %v2132
    %2152 = vmatprep.subr.mxu0 0.0
    %2153 = vmatpush1.msra.mxu0 %v2133
    %2154 = vmatprep.subr.mxu0 0.0
    %2155 = vmatpush1.msra.mxu0 %v2134
    %2156 = vmatprep.subr.mxu0 0.0
    %2157 = vmatpush1.msra.mxu0 %v2135
    %2158 = vmatprep.subr.mxu0 0.0
    %2159 = vmatpush1.msra.mxu0 %v2136
    %2160 = vmatprep.subr.mxu0 0.0
    %2161 = vmatpush1.msra.mxu0 %v2137
    %2162 = vmatprep.subr.mxu0 0.0
    %2163 = vmatpush1.msra.mxu0 %v2138
    %2164 = vmatprep.subr.mxu0 0.0
    %2165 = vmatpush1.msra.mxu0 %v2139
    %2166 = vmatprep.subr.mxu0 0.0
    %2167 = vmatpush1.msra.mxu0 %v2140
    %2168 = vmatprep.subr.mxu0 0.0
    %2169 = vmatpush1.msra.mxu0 %v2141
    %2170 = vmatprep.subr.mxu0 0.0
    %2171 = vmatpush1.msra.mxu0 %v2142
    %2172 = vmatprep.subr.mxu0 0.0
    %2173 = vmatpush1.msra.mxu0 %v2143
    %2174 = vmatprep.subr.mxu0 0.0
    %2175 = vmatpush1.msra.mxu0 0.0
    %2176 = vmatprep.subr.mxu0 0.0
    %2177 = vmatpush1.msra.mxu0 0.0
    %2178 = vmatprep.subr.mxu0 0.0
    %2179 = vmatpush1.msra.mxu0 0.0
    %2180 = vmatprep.subr.mxu0 0.0
    %2181 = vmatpush1.msra.mxu0 0.0
    %2182 = vmatprep.subr.mxu0 0.0
    %2183 = vmatpush1.msra.mxu0 0.0
    %2184 = vmatprep.subr.mxu0 0.0
    %2185 = vmatpush1.msra.mxu0 0.0
    %2186 = vmatprep.subr.mxu0 0.0
    %2187 = vmatpush1.msra.mxu0 0.0
    %2188 = vmatprep.subr.mxu0 0.0
    %2189 = vmatpush1.msra.mxu0 0.0
    %2190 = vmatprep.subr.mxu0 0.0
    %2191 = vmatpush1.msra.mxu0 0.0
    %2192 = vmatprep.subr.mxu0 0.0
    %2193 = vmatpush1.msra.mxu0 0.0
    %2194 = vmatprep.subr.mxu0 0.0
    %2195 = vmatpush1.msra.mxu0 0.0
    %2196 = vmatprep.subr.mxu0 0.0
    %2197 = vmatpush1.msra.mxu0 0.0
    %2198 = vmatprep.subr.mxu0 0.0
    %2199 = vmatpush1.msra.mxu0 0.0
    %2200 = vmatprep.subr.mxu0 0.0
    %2201 = vmatpush1.msra.mxu0 0.0
    %2202 = vmatprep.subr.mxu0 0.0
    %2203 = vmatpush1.msra.mxu0 0.0
    %2204 = vmatprep.subr.mxu0 0.0
    %2205 = vmatpush1.msra.mxu0 0.0
    %2206 = vmatprep.subr.mxu0 0.0
    %2207 = vmatpush1.msra.mxu0 0.0
    %2208 = vmatprep.mubr.f32.mxu0 0.0
    %2209 = vmatmul.mubr.f32.gmra.mrb[0].mxu0 %v1940
    %v2210 = vpop.f32.mrb[0].mxu0
    %v2211 = vadd.f32 0.0, %v2210
    %v2212 = vpop.f32.mrb[0].mxu0
    %2213 = vmatprep.mubr.f32.mxu0 0.0
    %2214 = vmatmul.mubr.f32.gmra.mrb[0].mxu0 %v1942
    %v2215 = vpop.f32.mrb[0].mxu0
    %v2216 = vadd.f32 0.0, %v2215
    %v2217 = vpop.f32.mrb[0].mxu0
    %2218 = vmatprep.mubr.f32.mxu0 0.0
    %2219 = vmatmul.mubr.f32.gmra.mrb[0].mxu0 %v1944
    %v2220 = vpop.f32.mrb[0].mxu0
    %v2221 = vadd.f32 0.0, %v2220
    %v2222 = vpop.f32.mrb[0].mxu0
    %2223 = vdwg.mxu0
    %v2224 = vadd.f32 %v2125, %v2211
    %v2225 = vadd.f32 %v2126, %v2216
    %v2226 = vadd.f32 %v2127, %v2221
    %v2227 = vld [vmem:[#allocation8] sm:$0x1]
    %v2229 = vlaneseq
    %v2230 = vshrl.u32 %v2229, 7
    %v2231 = vsub.s32 0, %v2230
    %v2232 = vrot.slane %v2227, %v2231
    %v2234 = vadd.f32 %v2224, %v2232
    %v2235 = vadd.f32 %v2225, %v2232
    %v2236 = vadd.f32 %v2226, %v2232
    %v2237 = vmax.f32 %v2234, 0.0
    %v2238 = vmax.f32 %v2235, 0.0
    %v2239 = vmax.f32 %v2236, 0.0
    %v2243 = vrot.slane %v2237, 1
    %v2244 = vrot.slane %v2238, 1
    %v2245 = vsel %vm503, %v2243, %v2244
    %v2246 = vrot.slane %v2239, 1
    %v2247 = vsel %vm503, %v2244, %v2246
    %v2251 = vmax.f32 %v2237, %v2245
    %v2252 = vmax.f32 %v2238, %v2247
    %v2253 = vmax.f32 %v2239, %v2246
    %2257 = vrot.lane.b32.xlu0 %v2251, 112
    %v2258 = vpop.permute.xlu0 %2257
    %2259 = vrot.lane.b32.xlu0 %v2252, 112
    %v2260 = vpop.permute.xlu0 %2259
    %2261 = vrot.lane.b32.xlu0 %v2253, 112
    %v2262 = vpop.permute.xlu0 %2261
    %v2266 = vmax.f32 %v2251, %v2258
    %v2267 = vmax.f32 %v2252, %v2260
    %v2268 = vmax.f32 %v2253, %v2262
    %v2269 = vld [vmem:[%s6] sm:$0xff]
    %v2270 = vld [vmem:[%s6 + $0x8] sm:$0xf]
    %vm2271 = vcmask 138240
    %v2273 = vsel %vm2271, %v2269, 0
    %v2276 = vsel %vm2271, %v2270, 0
    %v2279 = vsel %vm1227, %v2268, 0
    %2281 = vmatprep.subr.mxu0 0.0
    %2282 = vmatpush1.msra.mxu0 %v2266
    %2283 = vmatprep.subr.mxu0 0.0
    %2284 = vmatpush1.msra.mxu0 %v2267
    %2285 = vmatprep.subr.mxu0 0.0
    %2286 = vmatpush1.msra.mxu0 %v2279
    %2287 = vmatprep.subr.mxu0 0.0
    %2288 = vmatpush1.msra.mxu0 0.0
    %2289 = vmatprep.subr.mxu0 0.0
    %2290 = vmatpush1.msra.mxu0 0.0
    %2291 = vmatprep.subr.mxu0 0.0
    %2292 = vmatpush1.msra.mxu0 0.0
    %2293 = vmatprep.subr.mxu0 0.0
    %2294 = vmatpush1.msra.mxu0 0.0
    %2295 = vmatprep.subr.mxu0 0.0
    %2296 = vmatpush1.msra.mxu0 0.0
    %2297 = vmatprep.subr.mxu0 0.0
    %2298 = vmatpush1.msra.mxu0 0.0
    %2299 = vmatprep.subr.mxu0 0.0
    %2300 = vmatpush1.msra.mxu0 0.0
    %2301 = vmatprep.subr.mxu0 0.0
    %2302 = vmatpush1.msra.mxu0 0.0
    %2303 = vmatprep.subr.mxu0 0.0
    %2304 = vmatpush1.msra.mxu0 0.0
    %2305 = vmatprep.subr.mxu0 0.0
    %2306 = vmatpush1.msra.mxu0 0.0
    %2307 = vmatprep.subr.mxu0 0.0
    %2308 = vmatpush1.msra.mxu0 0.0
    %2309 = vmatprep.subr.mxu0 0.0
    %2310 = vmatpush1.msra.mxu0 0.0
    %2311 = vmatprep.subr.mxu0 0.0
    %2312 = vmatpush1.msra.mxu0 0.0
    %2313 = vmatprep.subr.mxu0 0.0
    %2314 = vmatpush1.msra.mxu0 0.0
    %2315 = vmatprep.subr.mxu0 0.0
    %2316 = vmatpush1.msra.mxu0 0.0
    %2317 = vmatprep.subr.mxu0 0.0
    %2318 = vmatpush1.msra.mxu0 0.0
    %2319 = vmatprep.subr.mxu0 0.0
    %2320 = vmatpush1.msra.mxu0 0.0
    %2321 = vmatprep.subr.mxu0 0.0
    %2322 = vmatpush1.msra.mxu0 0.0
    %2323 = vmatprep.subr.mxu0 0.0
    %2324 = vmatpush1.msra.mxu0 0.0
    %2325 = vmatprep.subr.mxu0 0.0
    %2326 = vmatpush1.msra.mxu0 0.0
    %2327 = vmatprep.subr.mxu0 0.0
    %2328 = vmatpush1.msra.mxu0 0.0
    %2329 = vmatprep.subr.mxu0 0.0
    %2330 = vmatpush1.msra.mxu0 0.0
    %2331 = vmatprep.subr.mxu0 0.0
    %2332 = vmatpush1.msra.mxu0 0.0
    %2333 = vmatprep.subr.mxu0 0.0
    %2334 = vmatpush1.msra.mxu0 0.0
    %2335 = vmatprep.subr.mxu0 0.0
    %2336 = vmatpush1.msra.mxu0 0.0
    %2337 = vmatprep.subr.mxu0 0.0
    %2338 = vmatpush1.msra.mxu0 0.0
    %2339 = vmatprep.subr.mxu0 0.0
    %2340 = vmatpush1.msra.mxu0 0.0
    %2341 = vmatprep.subr.mxu0 0.0
    %2342 = vmatpush1.msra.mxu0 0.0
    %2343 = vmatprep.subr.mxu0 0.0
    %2344 = vmatpush1.msra.mxu0 0.0
    %2345 = vmatprep.mubr.f32.mxu0 0.0
    %2346 = vmatmul.mubr.f32.gmra.mrb[0].mxu0 %v2273
    %v2347 = vpop.f32.mrb[0].mxu0
    %v2348 = vadd.f32 0.0, %v2347
    %v2349 = vpop.f32.mrb[0].mxu0
    %2350 = vmatprep.mubr.f32.mxu0 0.0
    %2351 = vmatmul.mubr.f32.gmra.mrb[0].mxu0 %v2276
    %v2352 = vpop.f32.mrb[0].mxu0
    %v2353 = vadd.f32 0.0, %v2352
    %v2354 = vpop.f32.mrb[0].mxu0
    %2355 = vdwg.mxu0
    %v2356 = vld [vmem:[#allocation10] sm:$0xff]
    %v2357 = vld [vmem:[#allocation10 + $0x8] sm:$0xff]
    %v2358 = vld [vmem:[#allocation10 + $0x10] sm:$0xff]
    %v2359 = vld [vmem:[#allocation10 + $0x18] sm:$0xff]
    %v2360 = vld [vmem:[#allocation10 + $0x20] sm:$0xff]
    %v2361 = vld [vmem:[#allocation10 + $0x28] sm:$0xff]
    %v2362 = vld [vmem:[#allocation10 + $0x30] sm:$0xff]
    %v2363 = vld [vmem:[#allocation10 + $0x38] sm:$0xff]
    %v2364 = vld [vmem:[#allocation10 + $0x40] sm:$0xff]
    %v2365 = vld [vmem:[#allocation10 + $0x48] sm:$0xff]
    %v2366 = vld [vmem:[#allocation10 + $0x50] sm:$0xff]
    %v2367 = vld [vmem:[#allocation10 + $0x58] sm:$0xff]
    %v2368 = vld [vmem:[#allocation10 + $0x60] sm:$0xff]
    %v2369 = vld [vmem:[#allocation10 + $0x68] sm:$0xff]
    %s2370 = scalar_lea.vmem [#allocation10], 112
    %v2371 = vld [vmem:[%s2370] sm:$0xff]
    %v2372 = vld [vmem:[%s2370 + $0x8] sm:$0xff]
    %v2373 = vld [vmem:[%s2370 + $0x10] sm:$0xff]
    %v2374 = vld [vmem:[%s2370 + $0x18] sm:$0xff]
    %v2375 = vld [vmem:[%s2370 + $0x20] sm:$0xff]
    %v2376 = vld [vmem:[%s2370 + $0x28] sm:$0xff]
    %v2377 = vld [vmem:[%s2370 + $0x30] sm:$0xff]
    %v2378 = vld [vmem:[%s2370 + $0x38] sm:$0xff]
    %v2379 = vld [vmem:[%s2370 + $0x40] sm:$0xff]
    %v2380 = vld [vmem:[%s2370 + $0x48] sm:$0xff]
    %v2381 = vld [vmem:[%s2370 + $0x50] sm:$0xff]
    %v2382 = vld [vmem:[%s2370 + $0x58] sm:$0xff]
    %v2383 = vld [vmem:[%s2370 + $0x60] sm:$0xff]
    %v2384 = vld [vmem:[%s2370 + $0x68] sm:$0xff]
    %vm2385 = vcmask 916480
    %v2387 = vsel %vm2385, %v2348, 0
    %v2390 = vsel %vm2385, %v2353, 0
    %2392 = vmatprep.subr.mxu0 0.0
    %2393 = vmatpush1.msra.mxu0 %v2371
    %2394 = vmatprep.subr.mxu0 0.0
    %2395 = vmatpush1.msra.mxu0 %v2372
    %2396 = vmatprep.subr.mxu0 0.0
    %2397 = vmatpush1.msra.mxu0 %v2373
    %2398 = vmatprep.subr.mxu0 0.0
    %2399 = vmatpush1.msra.mxu0 %v2374
    %2400 = vmatprep.subr.mxu0 0.0
    %2401 = vmatpush1.msra.mxu0 %v2375
    %2402 = vmatprep.subr.mxu0 0.0
    %2403 = vmatpush1.msra.mxu0 %v2376
    %2404 = vmatprep.subr.mxu0 0.0
    %2405 = vmatpush1.msra.mxu0 %v2377
    %2406 = vmatprep.subr.mxu0 0.0
    %2407 = vmatpush1.msra.mxu0 %v2378
    %2408 = vmatprep.subr.mxu0 0.0
    %2409 = vmatpush1.msra.mxu0 %v2379
    %2410 = vmatprep.subr.mxu0 0.0
    %2411 = vmatpush1.msra.mxu0 %v2380
    %2412 = vmatprep.subr.mxu0 0.0
    %2413 = vmatpush1.msra.mxu0 %v2381
    %2414 = vmatprep.subr.mxu0 0.0
    %2415 = vmatpush1.msra.mxu0 %v2382
    %2416 = vmatprep.subr.mxu0 0.0
    %2417 = vmatpush1.msra.mxu0 %v2383
    %2418 = vmatprep.subr.mxu0 0.0
    %2419 = vmatpush1.msra.mxu0 %v2384
    %2420 = vmatprep.subr.mxu0 0.0
    %2421 = vmatpush1.msra.mxu0 0.0
    %2422 = vmatprep.subr.mxu0 0.0
    %2423 = vmatpush1.msra.mxu0 0.0
    %2424 = vmatprep.subr.mxu0 0.0
    %2425 = vmatpush1.msra.mxu0 0.0
    %2426 = vmatprep.subr.mxu0 0.0
    %2427 = vmatpush1.msra.mxu0 0.0
    %2428 = vmatprep.subr.mxu0 0.0
    %2429 = vmatpush1.msra.mxu0 0.0
    %2430 = vmatprep.subr.mxu0 0.0
    %2431 = vmatpush1.msra.mxu0 0.0
    %2432 = vmatprep.subr.mxu0 0.0
    %2433 = vmatpush1.msra.mxu0 0.0
    %2434 = vmatprep.subr.mxu0 0.0
    %2435 = vmatpush1.msra.mxu0 0.0
    %2436 = vmatprep.subr.mxu0 0.0
    %2437 = vmatpush1.msra.mxu0 0.0
    %2438 = vmatprep.subr.mxu0 0.0
    %2439 = vmatpush1.msra.mxu0 0.0
    %2440 = vmatprep.subr.mxu0 0.0
    %2441 = vmatpush1.msra.mxu0 0.0
    %2442 = vmatprep.subr.mxu0 0.0
    %2443 = vmatpush1.msra.mxu0 0.0
    %2444 = vmatprep.subr.mxu0 0.0
    %2445 = vmatpush1.msra.mxu0 0.0
    %2446 = vmatprep.subr.mxu0 0.0
    %2447 = vmatpush1.msra.mxu0 0.0
    %2448 = vmatprep.subr.mxu0 0.0
    %2449 = vmatpush1.msra.mxu0 0.0
    %2450 = vmatprep.subr.mxu0 0.0
    %2451 = vmatpush1.msra.mxu0 0.0
    %2452 = vmatprep.subr.mxu0 0.0
    %2453 = vmatpush1.msra.mxu0 0.0
    %2454 = vmatprep.subr.mxu0 0.0
    %2455 = vmatpush1.msra.mxu0 0.0
    %2456 = vmatprep.mubr.f32.mxu0 0.0
    %2457 = vmatmul.mubr.f32.gmra.mrb[0].mxu0 %v2387
    %v2458 = vpop.f32.mrb[0].mxu0
    %v2459 = vadd.f32 0.0, %v2458
    %v2460 = vpop.f32.mrb[0].mxu0
    %2461 = vmatprep.mubr.f32.mxu0 0.0
    %2462 = vmatmul.mubr.f32.gmra.mrb[0].mxu0 %v2390
    %v2463 = vpop.f32.mrb[0].mxu0
    %v2464 = vadd.f32 0.0, %v2463
    %v2465 = vpop.f32.mrb[0].mxu0
    %2466 = vdwg.mxu0
    %2467 = vmatprep.subr.mxu0 0.0
    %2468 = vmatpush1.msra.mxu0 %v2356
    %2469 = vmatprep.subr.mxu0 0.0
    %2470 = vmatpush1.msra.mxu0 %v2357
    %2471 = vmatprep.subr.mxu0 0.0
    %2472 = vmatpush1.msra.mxu0 %v2358
    %2473 = vmatprep.subr.mxu0 0.0
    %2474 = vmatpush1.msra.mxu0 %v2359
    %2475 = vmatprep.subr.mxu0 0.0
    %2476 = vmatpush1.msra.mxu0 %v2360
    %2477 = vmatprep.subr.mxu0 0.0
    %2478 = vmatpush1.msra.mxu0 %v2361
    %2479 = vmatprep.subr.mxu0 0.0
    %2480 = vmatpush1.msra.mxu0 %v2362
    %2481 = vmatprep.subr.mxu0 0.0
    %2482 = vmatpush1.msra.mxu0 %v2363
    %2483 = vmatprep.subr.mxu0 0.0
    %2484 = vmatpush1.msra.mxu0 %v2364
    %2485 = vmatprep.subr.mxu0 0.0
    %2486 = vmatpush1.msra.mxu0 %v2365
    %2487 = vmatprep.subr.mxu0 0.0
    %2488 = vmatpush1.msra.mxu0 %v2366
    %2489 = vmatprep.subr.mxu0 0.0
    %2490 = vmatpush1.msra.mxu0 %v2367
    %2491 = vmatprep.subr.mxu0 0.0
    %2492 = vmatpush1.msra.mxu0 %v2368
    %2493 = vmatprep.subr.mxu0 0.0
    %2494 = vmatpush1.msra.mxu0 %v2369
    %2495 = vmatprep.subr.mxu0 0.0
    %2496 = vmatpush1.msra.mxu0 0.0
    %2497 = vmatprep.subr.mxu0 0.0
    %2498 = vmatpush1.msra.mxu0 0.0
    %2499 = vmatprep.subr.mxu0 0.0
    %2500 = vmatpush1.msra.mxu0 0.0
    %2501 = vmatprep.subr.mxu0 0.0
    %2502 = vmatpush1.msra.mxu0 0.0
    %2503 = vmatprep.subr.mxu0 0.0
    %2504 = vmatpush1.msra.mxu0 0.0
    %2505 = vmatprep.subr.mxu0 0.0
    %2506 = vmatpush1.msra.mxu0 0.0
    %2507 = vmatprep.subr.mxu0 0.0
    %2508 = vmatpush1.msra.mxu0 0.0
    %2509 = vmatprep.subr.mxu0 0.0
    %2510 = vmatpush1.msra.mxu0 0.0
    %2511 = vmatprep.subr.mxu0 0.0
    %2512 = vmatpush1.msra.mxu0 0.0
    %2513 = vmatprep.subr.mxu0 0.0
    %2514 = vmatpush1.msra.mxu0 0.0
    %2515 = vmatprep.subr.mxu0 0.0
    %2516 = vmatpush1.msra.mxu0 0.0
    %2517 = vmatprep.subr.mxu0 0.0
    %2518 = vmatpush1.msra.mxu0 0.0
    %2519 = vmatprep.subr.mxu0 0.0
    %2520 = vmatpush1.msra.mxu0 0.0
    %2521 = vmatprep.subr.mxu0 0.0
    %2522 = vmatpush1.msra.mxu0 0.0
    %2523 = vmatprep.subr.mxu0 0.0
    %2524 = vmatpush1.msra.mxu0 0.0
    %2525 = vmatprep.subr.mxu0 0.0
    %2526 = vmatpush1.msra.mxu0 0.0
    %2527 = vmatprep.subr.mxu0 0.0
    %2528 = vmatpush1.msra.mxu0 0.0
    %2529 = vmatprep.subr.mxu0 0.0
    %2530 = vmatpush1.msra.mxu0 0.0
    %2531 = vmatprep.mubr.f32.mxu0 0.0
    %2532 = vmatmul.mubr.f32.gmra.mrb[0].mxu0 %v2387
    %v2533 = vpop.f32.mrb[0].mxu0
    %v2534 = vadd.f32 %v2459, %v2533
    %v2535 = vpop.f32.mrb[0].mxu0
    %2536 = vmatprep.mubr.f32.mxu0 0.0
    %2537 = vmatmul.mubr.f32.gmra.mrb[0].mxu0 %v2390
    %v2538 = vpop.f32.mrb[0].mxu0
    %v2539 = vadd.f32 %v2464, %v2538
    %v2540 = vpop.f32.mrb[0].mxu0
    %2541 = vdwg.mxu0
    %s2542 = scalar_lea.vmem [#allocation10], 224
    %v2543 = vld [vmem:[%s2542] sm:$0xff]
    %v2544 = vld [vmem:[%s2542 + $0x8] sm:$0xff]
    %v2545 = vld [vmem:[%s2542 + $0x10] sm:$0xff]
    %v2546 = vld [vmem:[%s2542 + $0x18] sm:$0xff]
    %v2547 = vld [vmem:[%s2542 + $0x20] sm:$0xff]
    %v2548 = vld [vmem:[%s2542 + $0x28] sm:$0xff]
    %v2549 = vld [vmem:[%s2542 + $0x30] sm:$0xff]
    %v2550 = vld [vmem:[%s2542 + $0x38] sm:$0xff]
    %v2551 = vld [vmem:[%s2542 + $0x40] sm:$0xff]
    %v2552 = vld [vmem:[%s2542 + $0x48] sm:$0xff]
    %v2553 = vld [vmem:[%s2542 + $0x50] sm:$0xff]
    %v2554 = vld [vmem:[%s2542 + $0x58] sm:$0xff]
    %v2555 = vld [vmem:[%s2542 + $0x60] sm:$0xff]
    %v2556 = vld [vmem:[%s2542 + $0x68] sm:$0xff]
    %2557 = vmatprep.subr.mxu0 0.0
    %2558 = vmatpush1.msra.mxu0 %v2543
    %2559 = vmatprep.subr.mxu0 0.0
    %2560 = vmatpush1.msra.mxu0 %v2544
    %2561 = vmatprep.subr.mxu0 0.0
    %2562 = vmatpush1.msra.mxu0 %v2545
    %2563 = vmatprep.subr.mxu0 0.0
    %2564 = vmatpush1.msra.mxu0 %v2546
    %2565 = vmatprep.subr.mxu0 0.0
    %2566 = vmatpush1.msra.mxu0 %v2547
    %2567 = vmatprep.subr.mxu0 0.0
    %2568 = vmatpush1.msra.mxu0 %v2548
    %2569 = vmatprep.subr.mxu0 0.0
    %2570 = vmatpush1.msra.mxu0 %v2549
    %2571 = vmatprep.subr.mxu0 0.0
    %2572 = vmatpush1.msra.mxu0 %v2550
    %2573 = vmatprep.subr.mxu0 0.0
    %2574 = vmatpush1.msra.mxu0 %v2551
    %2575 = vmatprep.subr.mxu0 0.0
    %2576 = vmatpush1.msra.mxu0 %v2552
    %2577 = vmatprep.subr.mxu0 0.0
    %2578 = vmatpush1.msra.mxu0 %v2553
    %2579 = vmatprep.subr.mxu0 0.0
    %2580 = vmatpush1.msra.mxu0 %v2554
    %2581 = vmatprep.subr.mxu0 0.0
    %2582 = vmatpush1.msra.mxu0 %v2555
    %2583 = vmatprep.subr.mxu0 0.0
    %2584 = vmatpush1.msra.mxu0 %v2556
    %2585 = vmatprep.subr.mxu0 0.0
    %2586 = vmatpush1.msra.mxu0 0.0
    %2587 = vmatprep.subr.mxu0 0.0
    %2588 = vmatpush1.msra.mxu0 0.0
    %2589 = vmatprep.subr.mxu0 0.0
    %2590 = vmatpush1.msra.mxu0 0.0
    %2591 = vmatprep.subr.mxu0 0.0
    %2592 = vmatpush1.msra.mxu0 0.0
    %2593 = vmatprep.subr.mxu0 0.0
    %2594 = vmatpush1.msra.mxu0 0.0
    %2595 = vmatprep.subr.mxu0 0.0
    %2596 = vmatpush1.msra.mxu0 0.0
    %2597 = vmatprep.subr.mxu0 0.0
    %2598 = vmatpush1.msra.mxu0 0.0
    %2599 = vmatprep.subr.mxu0 0.0
    %2600 = vmatpush1.msra.mxu0 0.0
    %2601 = vmatprep.subr.mxu0 0.0
    %2602 = vmatpush1.msra.mxu0 0.0
    %2603 = vmatprep.subr.mxu0 0.0
    %2604 = vmatpush1.msra.mxu0 0.0
    %2605 = vmatprep.subr.mxu0 0.0
    %2606 = vmatpush1.msra.mxu0 0.0
    %2607 = vmatprep.subr.mxu0 0.0
    %2608 = vmatpush1.msra.mxu0 0.0
    %2609 = vmatprep.subr.mxu0 0.0
    %2610 = vmatpush1.msra.mxu0 0.0
    %2611 = vmatprep.subr.mxu0 0.0
    %2612 = vmatpush1.msra.mxu0 0.0
    %2613 = vmatprep.subr.mxu0 0.0
    %2614 = vmatpush1.msra.mxu0 0.0
    %2615 = vmatprep.subr.mxu0 0.0
    %2616 = vmatpush1.msra.mxu0 0.0
    %2617 = vmatprep.subr.mxu0 0.0
    %2618 = vmatpush1.msra.mxu0 0.0
    %2619 = vmatprep.subr.mxu0 0.0
    %2620 = vmatpush1.msra.mxu0 0.0
    %2621 = vmatprep.mubr.f32.mxu0 0.0
    %2622 = vmatmul.mubr.f32.gmra.mrb[0].mxu0 %v2387
    %v2623 = vpop.f32.mrb[0].mxu0
    %v2624 = vadd.f32 0.0, %v2623
    %v2625 = vpop.f32.mrb[0].mxu0
    %2626 = vmatprep.mubr.f32.mxu0 0.0
    %2627 = vmatmul.mubr.f32.gmra.mrb[0].mxu0 %v2390
    %v2628 = vpop.f32.mrb[0].mxu0
    %v2629 = vadd.f32 0.0, %v2628
    %v2630 = vpop.f32.mrb[0].mxu0
    %2631 = vdwg.mxu0
    %v2632 = vadd.f32 %v2534, %v2624
    %v2633 = vadd.f32 %v2539, %v2629
    %s2634 = scalar_lea.vmem [#allocation10], 336
    %v2635 = vld [vmem:[%s2634] sm:$0xff]
    %v2636 = vld [vmem:[%s2634 + $0x8] sm:$0xff]
    %v2637 = vld [vmem:[%s2634 + $0x10] sm:$0xff]
    %v2638 = vld [vmem:[%s2634 + $0x18] sm:$0xff]
    %v2639 = vld [vmem:[%s2634 + $0x20] sm:$0xff]
    %v2640 = vld [vmem:[%s2634 + $0x28] sm:$0xff]
    %v2641 = vld [vmem:[%s2634 + $0x30] sm:$0xff]
    %v2642 = vld [vmem:[%s2634 + $0x38] sm:$0xff]
    %v2643 = vld [vmem:[%s2634 + $0x40] sm:$0xff]
    %v2644 = vld [vmem:[%s2634 + $0x48] sm:$0xff]
    %v2645 = vld [vmem:[%s2634 + $0x50] sm:$0xff]
    %v2646 = vld [vmem:[%s2634 + $0x58] sm:$0xff]
    %v2647 = vld [vmem:[%s2634 + $0x60] sm:$0xff]
    %v2648 = vld [vmem:[%s2634 + $0x68] sm:$0xff]
    %v2649 = vrot.slane %v2348, 1
    %v2650 = vrot.slane %v2353, 1
    %v2651 = vsel %vm503, %v2649, %v2650
    %v2652 = vsel %vm2385, %v2651, 0
    %v2654 = vsel %vm2385, %v2650, 0
    %2656 = vmatprep.subr.mxu0 0.0
    %2657 = vmatpush1.msra.mxu0 %v2635
    %2658 = vmatprep.subr.mxu0 0.0
    %2659 = vmatpush1.msra.mxu0 %v2636
    %2660 = vmatprep.subr.mxu0 0.0
    %2661 = vmatpush1.msra.mxu0 %v2637
    %2662 = vmatprep.subr.mxu0 0.0
    %2663 = vmatpush1.msra.mxu0 %v2638
    %2664 = vmatprep.subr.mxu0 0.0
    %2665 = vmatpush1.msra.mxu0 %v2639
    %2666 = vmatprep.subr.mxu0 0.0
    %2667 = vmatpush1.msra.mxu0 %v2640
    %2668 = vmatprep.subr.mxu0 0.0
    %2669 = vmatpush1.msra.mxu0 %v2641
    %2670 = vmatprep.subr.mxu0 0.0
    %2671 = vmatpush1.msra.mxu0 %v2642
    %2672 = vmatprep.subr.mxu0 0.0
    %2673 = vmatpush1.msra.mxu0 %v2643
    %2674 = vmatprep.subr.mxu0 0.0
    %2675 = vmatpush1.msra.mxu0 %v2644
    %2676 = vmatprep.subr.mxu0 0.0
    %2677 = vmatpush1.msra.mxu0 %v2645
    %2678 = vmatprep.subr.mxu0 0.0
    %2679 = vmatpush1.msra.mxu0 %v2646
    %2680 = vmatprep.subr.mxu0 0.0
    %2681 = vmatpush1.msra.mxu0 %v2647
    %2682 = vmatprep.subr.mxu0 0.0
    %2683 = vmatpush1.msra.mxu0 %v2648
    %2684 = vmatprep.subr.mxu0 0.0
    %2685 = vmatpush1.msra.mxu0 0.0
    %2686 = vmatprep.subr.mxu0 0.0
    %2687 = vmatpush1.msra.mxu0 0.0
    %2688 = vmatprep.subr.mxu0 0.0
    %2689 = vmatpush1.msra.mxu0 0.0
    %2690 = vmatprep.subr.mxu0 0.0
    %2691 = vmatpush1.msra.mxu0 0.0
    %2692 = vmatprep.subr.mxu0 0.0
    %2693 = vmatpush1.msra.mxu0 0.0
    %2694 = vmatprep.subr.mxu0 0.0
    %2695 = vmatpush1.msra.mxu0 0.0
    %2696 = vmatprep.subr.mxu0 0.0
    %2697 = vmatpush1.msra.mxu0 0.0
    %2698 = vmatprep.subr.mxu0 0.0
    %2699 = vmatpush1.msra.mxu0 0.0
    %2700 = vmatprep.subr.mxu0 0.0
    %2701 = vmatpush1.msra.mxu0 0.0
    %2702 = vmatprep.subr.mxu0 0.0
    %2703 = vmatpush1.msra.mxu0 0.0
    %2704 = vmatprep.subr.mxu0 0.0
    %2705 = vmatpush1.msra.mxu0 0.0
    %2706 = vmatprep.subr.mxu0 0.0
    %2707 = vmatpush1.msra.mxu0 0.0
    %2708 = vmatprep.subr.mxu0 0.0
    %2709 = vmatpush1.msra.mxu0 0.0
    %2710 = vmatprep.subr.mxu0 0.0
    %2711 = vmatpush1.msra.mxu0 0.0
    %2712 = vmatprep.subr.mxu0 0.0
    %2713 = vmatpush1.msra.mxu0 0.0
    %2714 = vmatprep.subr.mxu0 0.0
    %2715 = vmatpush1.msra.mxu0 0.0
    %2716 = vmatprep.subr.mxu0 0.0
    %2717 = vmatpush1.msra.mxu0 0.0
    %2718 = vmatprep.subr.mxu0 0.0
    %2719 = vmatpush1.msra.mxu0 0.0
    %2720 = vmatprep.mubr.f32.mxu0 0.0
    %2721 = vmatmul.mubr.f32.gmra.mrb[0].mxu0 %v2652
    %v2722 = vpop.f32.mrb[0].mxu0
    %v2723 = vadd.f32 0.0, %v2722
    %v2724 = vpop.f32.mrb[0].mxu0
    %2725 = vmatprep.mubr.f32.mxu0 0.0
    %2726 = vmatmul.mubr.f32.gmra.mrb[0].mxu0 %v2654
    %v2727 = vpop.f32.mrb[0].mxu0
    %v2728 = vadd.f32 0.0, %v2727
    %v2729 = vpop.f32.mrb[0].mxu0
    %2730 = vdwg.mxu0
    %v2731 = vadd.f32 %v2632, %v2723
    %v2732 = vadd.f32 %v2633, %v2728
    %s2733 = scalar_lea.vmem [#allocation10], 448
    %v2734 = vld [vmem:[%s2733] sm:$0xff]
    %v2735 = vld [vmem:[%s2733 + $0x8] sm:$0xff]
    %v2736 = vld [vmem:[%s2733 + $0x10] sm:$0xff]
    %v2737 = vld [vmem:[%s2733 + $0x18] sm:$0xff]
    %v2738 = vld [vmem:[%s2733 + $0x20] sm:$0xff]
    %v2739 = vld [vmem:[%s2733 + $0x28] sm:$0xff]
    %v2740 = vld [vmem:[%s2733 + $0x30] sm:$0xff]
    %v2741 = vld [vmem:[%s2733 + $0x38] sm:$0xff]
    %v2742 = vld [vmem:[%s2733 + $0x40] sm:$0xff]
    %v2743 = vld [vmem:[%s2733 + $0x48] sm:$0xff]
    %v2744 = vld [vmem:[%s2733 + $0x50] sm:$0xff]
    %v2745 = vld [vmem:[%s2733 + $0x58] sm:$0xff]
    %v2746 = vld [vmem:[%s2733 + $0x60] sm:$0xff]
    %v2747 = vld [vmem:[%s2733 + $0x68] sm:$0xff]
    %2748 = vmatprep.subr.mxu0 0.0
    %2749 = vmatpush1.msra.mxu0 %v2734
    %2750 = vmatprep.subr.mxu0 0.0
    %2751 = vmatpush1.msra.mxu0 %v2735
    %2752 = vmatprep.subr.mxu0 0.0
    %2753 = vmatpush1.msra.mxu0 %v2736
    %2754 = vmatprep.subr.mxu0 0.0
    %2755 = vmatpush1.msra.mxu0 %v2737
    %2756 = vmatprep.subr.mxu0 0.0
    %2757 = vmatpush1.msra.mxu0 %v2738
    %2758 = vmatprep.subr.mxu0 0.0
    %2759 = vmatpush1.msra.mxu0 %v2739
    %2760 = vmatprep.subr.mxu0 0.0
    %2761 = vmatpush1.msra.mxu0 %v2740
    %2762 = vmatprep.subr.mxu0 0.0
    %2763 = vmatpush1.msra.mxu0 %v2741
    %2764 = vmatprep.subr.mxu0 0.0
    %2765 = vmatpush1.msra.mxu0 %v2742
    %2766 = vmatprep.subr.mxu0 0.0
    %2767 = vmatpush1.msra.mxu0 %v2743
    %2768 = vmatprep.subr.mxu0 0.0
    %2769 = vmatpush1.msra.mxu0 %v2744
    %2770 = vmatprep.subr.mxu0 0.0
    %2771 = vmatpush1.msra.mxu0 %v2745
    %2772 = vmatprep.subr.mxu0 0.0
    %2773 = vmatpush1.msra.mxu0 %v2746
    %2774 = vmatprep.subr.mxu0 0.0
    %2775 = vmatpush1.msra.mxu0 %v2747
    %2776 = vmatprep.subr.mxu0 0.0
    %2777 = vmatpush1.msra.mxu0 0.0
    %2778 = vmatprep.subr.mxu0 0.0
    %2779 = vmatpush1.msra.mxu0 0.0
    %2780 = vmatprep.subr.mxu0 0.0
    %2781 = vmatpush1.msra.mxu0 0.0
    %2782 = vmatprep.subr.mxu0 0.0
    %2783 = vmatpush1.msra.mxu0 0.0
    %2784 = vmatprep.subr.mxu0 0.0
    %2785 = vmatpush1.msra.mxu0 0.0
    %2786 = vmatprep.subr.mxu0 0.0
    %2787 = vmatpush1.msra.mxu0 0.0
    %2788 = vmatprep.subr.mxu0 0.0
    %2789 = vmatpush1.msra.mxu0 0.0
    %2790 = vmatprep.subr.mxu0 0.0
    %2791 = vmatpush1.msra.mxu0 0.0
    %2792 = vmatprep.subr.mxu0 0.0
    %2793 = vmatpush1.msra.mxu0 0.0
    %2794 = vmatprep.subr.mxu0 0.0
    %2795 = vmatpush1.msra.mxu0 0.0
    %2796 = vmatprep.subr.mxu0 0.0
    %2797 = vmatpush1.msra.mxu0 0.0
    %2798 = vmatprep.subr.mxu0 0.0
    %2799 = vmatpush1.msra.mxu0 0.0
    %2800 = vmatprep.subr.mxu0 0.0
    %2801 = vmatpush1.msra.mxu0 0.0
    %2802 = vmatprep.subr.mxu0 0.0
    %2803 = vmatpush1.msra.mxu0 0.0
    %2804 = vmatprep.subr.mxu0 0.0
    %2805 = vmatpush1.msra.mxu0 0.0
    %2806 = vmatprep.subr.mxu0 0.0
    %2807 = vmatpush1.msra.mxu0 0.0
    %2808 = vmatprep.subr.mxu0 0.0
    %2809 = vmatpush1.msra.mxu0 0.0
    %2810 = vmatprep.subr.mxu0 0.0
    %2811 = vmatpush1.msra.mxu0 0.0
    %2812 = vmatprep.mubr.f32.mxu0 0.0
    %2813 = vmatmul.mubr.f32.gmra.mrb[0].mxu0 %v2652
    %v2814 = vpop.f32.mrb[0].mxu0
    %v2815 = vadd.f32 0.0, %v2814
    %v2816 = vpop.f32.mrb[0].mxu0
    %2817 = vmatprep.mubr.f32.mxu0 0.0
    %2818 = vmatmul.mubr.f32.gmra.mrb[0].mxu0 %v2654
    %v2819 = vpop.f32.mrb[0].mxu0
    %v2820 = vadd.f32 0.0, %v2819
    %v2821 = vpop.f32.mrb[0].mxu0
    %2822 = vdwg.mxu0
    %v2823 = vadd.f32 %v2731, %v2815
    %v2824 = vadd.f32 %v2732, %v2820
    %s2825 = scalar_lea.vmem [#allocation10], 560
    %v2826 = vld [vmem:[%s2825] sm:$0xff]
    %v2827 = vld [vmem:[%s2825 + $0x8] sm:$0xff]
    %v2828 = vld [vmem:[%s2825 + $0x10] sm:$0xff]
    %v2829 = vld [vmem:[%s2825 + $0x18] sm:$0xff]
    %v2830 = vld [vmem:[%s2825 + $0x20] sm:$0xff]
    %v2831 = vld [vmem:[%s2825 + $0x28] sm:$0xff]
    %v2832 = vld [vmem:[%s2825 + $0x30] sm:$0xff]
    %v2833 = vld [vmem:[%s2825 + $0x38] sm:$0xff]
    %v2834 = vld [vmem:[%s2825 + $0x40] sm:$0xff]
    %v2835 = vld [vmem:[%s2825 + $0x48] sm:$0xff]
    %v2836 = vld [vmem:[%s2825 + $0x50] sm:$0xff]
    %v2837 = vld [vmem:[%s2825 + $0x58] sm:$0xff]
    %v2838 = vld [vmem:[%s2825 + $0x60] sm:$0xff]
    %v2839 = vld [vmem:[%s2825 + $0x68] sm:$0xff]
    %2840 = vmatprep.subr.mxu0 0.0
    %2841 = vmatpush1.msra.mxu0 %v2826
    %2842 = vmatprep.subr.mxu0 0.0
    %2843 = vmatpush1.msra.mxu0 %v2827
    %2844 = vmatprep.subr.mxu0 0.0
    %2845 = vmatpush1.msra.mxu0 %v2828
    %2846 = vmatprep.subr.mxu0 0.0
    %2847 = vmatpush1.msra.mxu0 %v2829
    %2848 = vmatprep.subr.mxu0 0.0
    %2849 = vmatpush1.msra.mxu0 %v2830
    %2850 = vmatprep.subr.mxu0 0.0
    %2851 = vmatpush1.msra.mxu0 %v2831
    %2852 = vmatprep.subr.mxu0 0.0
    %2853 = vmatpush1.msra.mxu0 %v2832
    %2854 = vmatprep.subr.mxu0 0.0
    %2855 = vmatpush1.msra.mxu0 %v2833
    %2856 = vmatprep.subr.mxu0 0.0
    %2857 = vmatpush1.msra.mxu0 %v2834
    %2858 = vmatprep.subr.mxu0 0.0
    %2859 = vmatpush1.msra.mxu0 %v2835
    %2860 = vmatprep.subr.mxu0 0.0
    %2861 = vmatpush1.msra.mxu0 %v2836
    %2862 = vmatprep.subr.mxu0 0.0
    %2863 = vmatpush1.msra.mxu0 %v2837
    %2864 = vmatprep.subr.mxu0 0.0
    %2865 = vmatpush1.msra.mxu0 %v2838
    %2866 = vmatprep.subr.mxu0 0.0
    %2867 = vmatpush1.msra.mxu0 %v2839
    %2868 = vmatprep.subr.mxu0 0.0
    %2869 = vmatpush1.msra.mxu0 0.0
    %2870 = vmatprep.subr.mxu0 0.0
    %2871 = vmatpush1.msra.mxu0 0.0
    %2872 = vmatprep.subr.mxu0 0.0
    %2873 = vmatpush1.msra.mxu0 0.0
    %2874 = vmatprep.subr.mxu0 0.0
    %2875 = vmatpush1.msra.mxu0 0.0
    %2876 = vmatprep.subr.mxu0 0.0
    %2877 = vmatpush1.msra.mxu0 0.0
    %2878 = vmatprep.subr.mxu0 0.0
    %2879 = vmatpush1.msra.mxu0 0.0
    %2880 = vmatprep.subr.mxu0 0.0
    %2881 = vmatpush1.msra.mxu0 0.0
    %2882 = vmatprep.subr.mxu0 0.0
    %2883 = vmatpush1.msra.mxu0 0.0
    %2884 = vmatprep.subr.mxu0 0.0
    %2885 = vmatpush1.msra.mxu0 0.0
    %2886 = vmatprep.subr.mxu0 0.0
    %2887 = vmatpush1.msra.mxu0 0.0
    %2888 = vmatprep.subr.mxu0 0.0
    %2889 = vmatpush1.msra.mxu0 0.0
    %2890 = vmatprep.subr.mxu0 0.0
    %2891 = vmatpush1.msra.mxu0 0.0
    %2892 = vmatprep.subr.mxu0 0.0
    %2893 = vmatpush1.msra.mxu0 0.0
    %2894 = vmatprep.subr.mxu0 0.0
    %2895 = vmatpush1.msra.mxu0 0.0
    %2896 = vmatprep.subr.mxu0 0.0
    %2897 = vmatpush1.msra.mxu0 0.0
    %2898 = vmatprep.subr.mxu0 0.0
    %2899 = vmatpush1.msra.mxu0 0.0
    %2900 = vmatprep.subr.mxu0 0.0
    %2901 = vmatpush1.msra.mxu0 0.0
    %2902 = vmatprep.subr.mxu0 0.0
    %2903 = vmatpush1.msra.mxu0 0.0
    %2904 = vmatprep.mubr.f32.mxu0 0.0
    %2905 = vmatmul.mubr.f32.gmra.mrb[0].mxu0 %v2652
    %v2906 = vpop.f32.mrb[0].mxu0
    %v2907 = vadd.f32 0.0, %v2906
    %v2908 = vpop.f32.mrb[0].mxu0
    %2909 = vmatprep.mubr.f32.mxu0 0.0
    %2910 = vmatmul.mubr.f32.gmra.mrb[0].mxu0 %v2654
    %v2911 = vpop.f32.mrb[0].mxu0
    %v2912 = vadd.f32 0.0, %v2911
    %v2913 = vpop.f32.mrb[0].mxu0
    %2914 = vdwg.mxu0
    %v2915 = vadd.f32 %v2823, %v2907
    %v2916 = vadd.f32 %v2824, %v2912
    %s2917 = scalar_lea.vmem [#allocation10], 672
    %v2918 = vld [vmem:[%s2917] sm:$0xff]
    %v2919 = vld [vmem:[%s2917 + $0x8] sm:$0xff]
    %v2920 = vld [vmem:[%s2917 + $0x10] sm:$0xff]
    %v2921 = vld [vmem:[%s2917 + $0x18] sm:$0xff]
    %v2922 = vld [vmem:[%s2917 + $0x20] sm:$0xff]
    %v2923 = vld [vmem:[%s2917 + $0x28] sm:$0xff]
    %v2924 = vld [vmem:[%s2917 + $0x30] sm:$0xff]
    %v2925 = vld [vmem:[%s2917 + $0x38] sm:$0xff]
    %v2926 = vld [vmem:[%s2917 + $0x40] sm:$0xff]
    %v2927 = vld [vmem:[%s2917 + $0x48] sm:$0xff]
    %v2928 = vld [vmem:[%s2917 + $0x50] sm:$0xff]
    %v2929 = vld [vmem:[%s2917 + $0x58] sm:$0xff]
    %v2930 = vld [vmem:[%s2917 + $0x60] sm:$0xff]
    %v2931 = vld [vmem:[%s2917 + $0x68] sm:$0xff]
    %v2932 = vrot.slane %v2348, 2
    %v2933 = vrot.slane %v2353, 2
    %v2934 = vsel %vm829, %v2932, %v2933
    %v2935 = vsel %vm2385, %v2934, 0
    %v2937 = vsel %vm2385, %v2933, 0
    %2939 = vmatprep.subr.mxu0 0.0
    %2940 = vmatpush1.msra.mxu0 %v2918
    %2941 = vmatprep.subr.mxu0 0.0
    %2942 = vmatpush1.msra.mxu0 %v2919
    %2943 = vmatprep.subr.mxu0 0.0
    %2944 = vmatpush1.msra.mxu0 %v2920
    %2945 = vmatprep.subr.mxu0 0.0
    %2946 = vmatpush1.msra.mxu0 %v2921
    %2947 = vmatprep.subr.mxu0 0.0
    %2948 = vmatpush1.msra.mxu0 %v2922
    %2949 = vmatprep.subr.mxu0 0.0
    %2950 = vmatpush1.msra.mxu0 %v2923
    %2951 = vmatprep.subr.mxu0 0.0
    %2952 = vmatpush1.msra.mxu0 %v2924
    %2953 = vmatprep.subr.mxu0 0.0
    %2954 = vmatpush1.msra.mxu0 %v2925
    %2955 = vmatprep.subr.mxu0 0.0
    %2956 = vmatpush1.msra.mxu0 %v2926
    %2957 = vmatprep.subr.mxu0 0.0
    %2958 = vmatpush1.msra.mxu0 %v2927
    %2959 = vmatprep.subr.mxu0 0.0
    %2960 = vmatpush1.msra.mxu0 %v2928
    %2961 = vmatprep.subr.mxu0 0.0
    %2962 = vmatpush1.msra.mxu0 %v2929
    %2963 = vmatprep.subr.mxu0 0.0
    %2964 = vmatpush1.msra.mxu0 %v2930
    %2965 = vmatprep.subr.mxu0 0.0
    %2966 = vmatpush1.msra.mxu0 %v2931
    %2967 = vmatprep.subr.mxu0 0.0
    %2968 = vmatpush1.msra.mxu0 0.0
    %2969 = vmatprep.subr.mxu0 0.0
    %2970 = vmatpush1.msra.mxu0 0.0
    %2971 = vmatprep.subr.mxu0 0.0
    %2972 = vmatpush1.msra.mxu0 0.0
    %2973 = vmatprep.subr.mxu0 0.0
    %2974 = vmatpush1.msra.mxu0 0.0
    %2975 = vmatprep.subr.mxu0 0.0
    %2976 = vmatpush1.msra.mxu0 0.0
    %2977 = vmatprep.subr.mxu0 0.0
    %2978 = vmatpush1.msra.mxu0 0.0
    %2979 = vmatprep.subr.mxu0 0.0
    %2980 = vmatpush1.msra.mxu0 0.0
    %2981 = vmatprep.subr.mxu0 0.0
    %2982 = vmatpush1.msra.mxu0 0.0
    %2983 = vmatprep.subr.mxu0 0.0
    %2984 = vmatpush1.msra.mxu0 0.0
    %2985 = vmatprep.subr.mxu0 0.0
    %2986 = vmatpush1.msra.mxu0 0.0
    %2987 = vmatprep.subr.mxu0 0.0
    %2988 = vmatpush1.msra.mxu0 0.0
    %2989 = vmatprep.subr.mxu0 0.0
    %2990 = vmatpush1.msra.mxu0 0.0
    %2991 = vmatprep.subr.mxu0 0.0
    %2992 = vmatpush1.msra.mxu0 0.0
    %2993 = vmatprep.subr.mxu0 0.0
    %2994 = vmatpush1.msra.mxu0 0.0
    %2995 = vmatprep.subr.mxu0 0.0
    %2996 = vmatpush1.msra.mxu0 0.0
    %2997 = vmatprep.subr.mxu0 0.0
    %2998 = vmatpush1.msra.mxu0 0.0
    %2999 = vmatprep.subr.mxu0 0.0
    %3000 = vmatpush1.msra.mxu0 0.0
    %3001 = vmatprep.subr.mxu0 0.0
    %3002 = vmatpush1.msra.mxu0 0.0
    %3003 = vmatprep.mubr.f32.mxu0 0.0
    %3004 = vmatmul.mubr.f32.gmra.mrb[0].mxu0 %v2935
    %v3005 = vpop.f32.mrb[0].mxu0
    %v3006 = vadd.f32 0.0, %v3005
    %v3007 = vpop.f32.mrb[0].mxu0
    %3008 = vmatprep.mubr.f32.mxu0 0.0
    %3009 = vmatmul.mubr.f32.gmra.mrb[0].mxu0 %v2937
    %v3010 = vpop.f32.mrb[0].mxu0
    %v3011 = vadd.f32 0.0, %v3010
    %v3012 = vpop.f32.mrb[0].mxu0
    %3013 = vdwg.mxu0
    %v3014 = vadd.f32 %v2915, %v3006
    %v3015 = vadd.f32 %v2916, %v3011
    %s3016 = scalar_lea.vmem [#allocation10], 784
    %v3017 = vld [vmem:[%s3016] sm:$0xff]
    %v3018 = vld [vmem:[%s3016 + $0x8] sm:$0xff]
    %v3019 = vld [vmem:[%s3016 + $0x10] sm:$0xff]
    %v3020 = vld [vmem:[%s3016 + $0x18] sm:$0xff]
    %v3021 = vld [vmem:[%s3016 + $0x20] sm:$0xff]
    %v3022 = vld [vmem:[%s3016 + $0x28] sm:$0xff]
    %v3023 = vld [vmem:[%s3016 + $0x30] sm:$0xff]
    %v3024 = vld [vmem:[%s3016 + $0x38] sm:$0xff]
    %v3025 = vld [vmem:[%s3016 + $0x40] sm:$0xff]
    %v3026 = vld [vmem:[%s3016 + $0x48] sm:$0xff]
    %v3027 = vld [vmem:[%s3016 + $0x50] sm:$0xff]
    %v3028 = vld [vmem:[%s3016 + $0x58] sm:$0xff]
    %v3029 = vld [vmem:[%s3016 + $0x60] sm:$0xff]
    %v3030 = vld [vmem:[%s3016 + $0x68] sm:$0xff]
    %3031 = vmatprep.subr.mxu0 0.0
    %3032 = vmatpush1.msra.mxu0 %v3017
    %3033 = vmatprep.subr.mxu0 0.0
    %3034 = vmatpush1.msra.mxu0 %v3018
    %3035 = vmatprep.subr.mxu0 0.0
    %3036 = vmatpush1.msra.mxu0 %v3019
    %3037 = vmatprep.subr.mxu0 0.0
    %3038 = vmatpush1.msra.mxu0 %v3020
    %3039 = vmatprep.subr.mxu0 0.0
    %3040 = vmatpush1.msra.mxu0 %v3021
    %3041 = vmatprep.subr.mxu0 0.0
    %3042 = vmatpush1.msra.mxu0 %v3022
    %3043 = vmatprep.subr.mxu0 0.0
    %3044 = vmatpush1.msra.mxu0 %v3023
    %3045 = vmatprep.subr.mxu0 0.0
    %3046 = vmatpush1.msra.mxu0 %v3024
    %3047 = vmatprep.subr.mxu0 0.0
    %3048 = vmatpush1.msra.mxu0 %v3025
    %3049 = vmatprep.subr.mxu0 0.0
    %3050 = vmatpush1.msra.mxu0 %v3026
    %3051 = vmatprep.subr.mxu0 0.0
    %3052 = vmatpush1.msra.mxu0 %v3027
    %3053 = vmatprep.subr.mxu0 0.0
    %3054 = vmatpush1.msra.mxu0 %v3028
    %3055 = vmatprep.subr.mxu0 0.0
    %3056 = vmatpush1.msra.mxu0 %v3029
    %3057 = vmatprep.subr.mxu0 0.0
    %3058 = vmatpush1.msra.mxu0 %v3030
    %3059 = vmatprep.subr.mxu0 0.0
    %3060 = vmatpush1.msra.mxu0 0.0
    %3061 = vmatprep.subr.mxu0 0.0
    %3062 = vmatpush1.msra.mxu0 0.0
    %3063 = vmatprep.subr.mxu0 0.0
    %3064 = vmatpush1.msra.mxu0 0.0
    %3065 = vmatprep.subr.mxu0 0.0
    %3066 = vmatpush1.msra.mxu0 0.0
    %3067 = vmatprep.subr.mxu0 0.0
    %3068 = vmatpush1.msra.mxu0 0.0
    %3069 = vmatprep.subr.mxu0 0.0
    %3070 = vmatpush1.msra.mxu0 0.0
    %3071 = vmatprep.subr.mxu0 0.0
    %3072 = vmatpush1.msra.mxu0 0.0
    %3073 = vmatprep.subr.mxu0 0.0
    %3074 = vmatpush1.msra.mxu0 0.0
    %3075 = vmatprep.subr.mxu0 0.0
    %3076 = vmatpush1.msra.mxu0 0.0
    %3077 = vmatprep.subr.mxu0 0.0
    %3078 = vmatpush1.msra.mxu0 0.0
    %3079 = vmatprep.subr.mxu0 0.0
    %3080 = vmatpush1.msra.mxu0 0.0
    %3081 = vmatprep.subr.mxu0 0.0
    %3082 = vmatpush1.msra.mxu0 0.0
    %3083 = vmatprep.subr.mxu0 0.0
    %3084 = vmatpush1.msra.mxu0 0.0
    %3085 = vmatprep.subr.mxu0 0.0
    %3086 = vmatpush1.msra.mxu0 0.0
    %3087 = vmatprep.subr.mxu0 0.0
    %3088 = vmatpush1.msra.mxu0 0.0
    %3089 = vmatprep.subr.mxu0 0.0
    %3090 = vmatpush1.msra.mxu0 0.0
    %3091 = vmatprep.subr.mxu0 0.0
    %3092 = vmatpush1.msra.mxu0 0.0
    %3093 = vmatprep.subr.mxu0 0.0
    %3094 = vmatpush1.msra.mxu0 0.0
    %3095 = vmatprep.mubr.f32.mxu0 0.0
    %3096 = vmatmul.mubr.f32.gmra.mrb[0].mxu0 %v2935
    %v3097 = vpop.f32.mrb[0].mxu0
    %v3098 = vadd.f32 0.0, %v3097
    %v3099 = vpop.f32.mrb[0].mxu0
    %3100 = vmatprep.mubr.f32.mxu0 0.0
    %3101 = vmatmul.mubr.f32.gmra.mrb[0].mxu0 %v2937
    %v3102 = vpop.f32.mrb[0].mxu0
    %v3103 = vadd.f32 0.0, %v3102
    %v3104 = vpop.f32.mrb[0].mxu0
    %3105 = vdwg.mxu0
    %v3106 = vadd.f32 %v3014, %v3098
    %v3107 = vadd.f32 %v3015, %v3103
    %s3108 = scalar_lea.vmem [#allocation10], 896
    %v3109 = vld [vmem:[%s3108] sm:$0xff]
    %v3110 = vld [vmem:[%s3108 + $0x8] sm:$0xff]
    %v3111 = vld [vmem:[%s3108 + $0x10] sm:$0xff]
    %v3112 = vld [vmem:[%s3108 + $0x18] sm:$0xff]
    %v3113 = vld [vmem:[%s3108 + $0x20] sm:$0xff]
    %v3114 = vld [vmem:[%s3108 + $0x28] sm:$0xff]
    %v3115 = vld [vmem:[%s3108 + $0x30] sm:$0xff]
    %v3116 = vld [vmem:[%s3108 + $0x38] sm:$0xff]
    %v3117 = vld [vmem:[%s3108 + $0x40] sm:$0xff]
    %v3118 = vld [vmem:[%s3108 + $0x48] sm:$0xff]
    %v3119 = vld [vmem:[%s3108 + $0x50] sm:$0xff]
    %v3120 = vld [vmem:[%s3108 + $0x58] sm:$0xff]
    %v3121 = vld [vmem:[%s3108 + $0x60] sm:$0xff]
    %v3122 = vld [vmem:[%s3108 + $0x68] sm:$0xff]
    %3123 = vmatprep.subr.mxu0 0.0
    %3124 = vmatpush1.msra.mxu0 %v3109
    %3125 = vmatprep.subr.mxu0 0.0
    %3126 = vmatpush1.msra.mxu0 %v3110
    %3127 = vmatprep.subr.mxu0 0.0
    %3128 = vmatpush1.msra.mxu0 %v3111
    %3129 = vmatprep.subr.mxu0 0.0
    %3130 = vmatpush1.msra.mxu0 %v3112
    %3131 = vmatprep.subr.mxu0 0.0
    %3132 = vmatpush1.msra.mxu0 %v3113
    %3133 = vmatprep.subr.mxu0 0.0
    %3134 = vmatpush1.msra.mxu0 %v3114
    %3135 = vmatprep.subr.mxu0 0.0
    %3136 = vmatpush1.msra.mxu0 %v3115
    %3137 = vmatprep.subr.mxu0 0.0
    %3138 = vmatpush1.msra.mxu0 %v3116
    %3139 = vmatprep.subr.mxu0 0.0
    %3140 = vmatpush1.msra.mxu0 %v3117
    %3141 = vmatprep.subr.mxu0 0.0
    %3142 = vmatpush1.msra.mxu0 %v3118
    %3143 = vmatprep.subr.mxu0 0.0
    %3144 = vmatpush1.msra.mxu0 %v3119
    %3145 = vmatprep.subr.mxu0 0.0
    %3146 = vmatpush1.msra.mxu0 %v3120
    %3147 = vmatprep.subr.mxu0 0.0
    %3148 = vmatpush1.msra.mxu0 %v3121
    %3149 = vmatprep.subr.mxu0 0.0
    %3150 = vmatpush1.msra.mxu0 %v3122
    %3151 = vmatprep.subr.mxu0 0.0
    %3152 = vmatpush1.msra.mxu0 0.0
    %3153 = vmatprep.subr.mxu0 0.0
    %3154 = vmatpush1.msra.mxu0 0.0
    %3155 = vmatprep.subr.mxu0 0.0
    %3156 = vmatpush1.msra.mxu0 0.0
    %3157 = vmatprep.subr.mxu0 0.0
    %3158 = vmatpush1.msra.mxu0 0.0
    %3159 = vmatprep.subr.mxu0 0.0
    %3160 = vmatpush1.msra.mxu0 0.0
    %3161 = vmatprep.subr.mxu0 0.0
    %3162 = vmatpush1.msra.mxu0 0.0
    %3163 = vmatprep.subr.mxu0 0.0
    %3164 = vmatpush1.msra.mxu0 0.0
    %3165 = vmatprep.subr.mxu0 0.0
    %3166 = vmatpush1.msra.mxu0 0.0
    %3167 = vmatprep.subr.mxu0 0.0
    %3168 = vmatpush1.msra.mxu0 0.0
    %3169 = vmatprep.subr.mxu0 0.0
    %3170 = vmatpush1.msra.mxu0 0.0
    %3171 = vmatprep.subr.mxu0 0.0
    %3172 = vmatpush1.msra.mxu0 0.0
    %3173 = vmatprep.subr.mxu0 0.0
    %3174 = vmatpush1.msra.mxu0 0.0
    %3175 = vmatprep.subr.mxu0 0.0
    %3176 = vmatpush1.msra.mxu0 0.0
    %3177 = vmatprep.subr.mxu0 0.0
    %3178 = vmatpush1.msra.mxu0 0.0
    %3179 = vmatprep.subr.mxu0 0.0
    %3180 = vmatpush1.msra.mxu0 0.0
    %3181 = vmatprep.subr.mxu0 0.0
    %3182 = vmatpush1.msra.mxu0 0.0
    %3183 = vmatprep.subr.mxu0 0.0
    %3184 = vmatpush1.msra.mxu0 0.0
    %3185 = vmatprep.subr.mxu0 0.0
    %3186 = vmatpush1.msra.mxu0 0.0
    %3187 = vmatprep.mubr.f32.mxu0 0.0
    %3188 = vmatmul.mubr.f32.gmra.mrb[0].mxu0 %v2935
    %v3189 = vpop.f32.mrb[0].mxu0
    %v3190 = vadd.f32 0.0, %v3189
    %v3191 = vpop.f32.mrb[0].mxu0
    %3192 = vmatprep.mubr.f32.mxu0 0.0
    %3193 = vmatmul.mubr.f32.gmra.mrb[0].mxu0 %v2937
    %v3194 = vpop.f32.mrb[0].mxu0
    %v3195 = vadd.f32 0.0, %v3194
    %v3196 = vpop.f32.mrb[0].mxu0
    %3197 = vdwg.mxu0
    %v3198 = vadd.f32 %v3106, %v3190
    %v3199 = vadd.f32 %v3107, %v3195
    %v3200 = vld [vmem:[#allocation11] sm:$0x1]
    %v3202 = vlaneseq
    %v3203 = vshrl.u32 %v3202, 7
    %v3204 = vsub.s32 0, %v3203
    %v3205 = vrot.slane %v3200, %v3204
    %v3207 = vadd.f32 %v3198, %v3205
    %v3208 = vadd.f32 %v3199, %v3205
    %v3209 = vmax.f32 %v3207, 0.0
    %v3210 = vmax.f32 %v3208, 0.0
    %3211 = vst [vmem:[%s9] sm:$0xf] %v3209
    %3212 = vst [vmem:[%s9 - $0x2] sm:$0xc0] %v3209
    %3213 = vst [vmem:[%s9 + $0x6] sm:$0x3] %v3210
    // Predicated region
    $region62: #{vqa_forward.2} parent=1 // pred_check
      _
    $region63: #{vqa_forward.2} parent=1 // pred_check_branch
      %3215 = sbr.rel (0) target = $region65
    $region64: #{vqa_forward.2} parent=1 // pred_region
      _
    $region65: #{vqa_forward.2} parent=1 // pred_fallthru
      _
    // Predicated region
    $region66: #{vqa_forward.2} parent=1 // pred_check
      _
    $region67: #{vqa_forward.2} parent=1 // pred_check_branch
      %3217 = sbr.rel (0) target = $region69
    $region68: #{vqa_forward.2} parent=1 // pred_region
      _
    $region69: #{vqa_forward.2} parent=1 // pred_fallthru
      _
    %3218 = vsyncpa [#allocation4], 1
    %3219 = vsyncpa [#allocation6], 1
    %3220 = vsyncpa [#allocation9], 1
    %3221 = vsyncpa [#allocation12], 1

// kernel: vqa_forward.3
$region0: #{vqa_forward.3}
  #allocation0 [shape = 'u32[]', space=smem, size = 0x4, offset = 0x4, fixed_abs, tag = 'smem constant byte address 0x4 - core index']
  #allocation1 [shape = 'u32[144,128]{1,0:T(1,128)}', space=vmem, size = 0x12000, scoped, tag = 'internal scratch']
  #allocation2 [shape = 'f32[16,16]{1,0:T(8,128)}', space=vmem, size = 0x2000, scoped, tag = 'scratch operand']
  #allocation3 [shape = 'f32[16,16]{1,0:T(8,128)}', space=vmem, size = 0x2000, scoped, tag = 'scratch operand']
  #allocation4 [shape = 'f32[2,32]{1,0:T(2,128)}', space=vmem, size = 0x400, scoped, tag = 'scratch operand']
  #allocation5 [shape = 'f32[2,32]{1,0:T(2,128)}', space=vmem, size = 0x400, scoped, tag = 'scratch operand']
  #allocation6 [shape = 'f32[1,1]{1,0:T(1,128)S(1)}', space=vmem, size = 0x200, scoped, tag = 'scoped memory for vqa_forward.3']
  #allocation7 [shape = 'f32[1,1]{1,0:T(1,128)S(1)}', space=vmem, size = 0x200, scoped, tag = 'scoped memory for vqa_forward.3']
  %s0 = inlined_call_operand.vmem [shape: s32[2,8], index: 0, kind: input, shape index: {}]
  %s1 = inlined_call_operand.vmem [shape: f32[32,32], index: 1, kind: input, shape index: {}]
  %s2 = inlined_call_operand.vmem [shape: f32[50,1,16], index: 2, kind: input, shape index: {}]
  %s3 = inlined_call_operand.vmem [shape: f32[16,64], index: 3, kind: input, shape index: {}]
  %s4 = inlined_call_operand.vmem [shape: f32[16,64], index: 4, kind: input, shape index: {}]
  %s5 = inlined_call_operand.vmem [shape: f32[1,64], index: 5, kind: input, shape index: {}]
  %s6 = inlined_call_operand.vmem [shape: f32[16,64], index: 6, kind: input, shape index: {}]
  %s7 = inlined_call_operand.vmem [shape: f32[16,64], index: 7, kind: input, shape index: {}]
  %s8 = inlined_call_operand.vmem [shape: f32[1,64], index: 8, kind: input, shape index: {}]
  %s9 = inlined_call_operand.vmem [shape: f32[64,32], index: 9, kind: input, shape index: {}]
  %s10 = inlined_call_operand.vmem [shape: f32[1,32], index: 10, kind: input, shape index: {}]
  %s11 = inlined_call_operand.vmem [shape: f32[32,32], index: 11, kind: input, shape index: {}]
  %s12 = inlined_call_operand.vmem [shape: f32[1,32], index: 12, kind: input, shape index: {}]
  %s13 = inlined_call_operand.vmem [shape: f32[32,32], index: 13, kind: input, shape index: {}]
  %s14 = inlined_call_operand.vmem [shape: f32[1,32], index: 14, kind: input, shape index: {}]
  %s15 = inlined_call_operand.vmem [shape: f32[32,32], index: 15, kind: input, shape index: {}]
  %s16 = inlined_call_operand.vmem [shape: f32[32,32], index: 16, kind: input, shape index: {}]
  %s17 = inlined_call_operand.vmem [shape: f32[1,32], index: 17, kind: input, shape index: {}]
  %s18 = inlined_call_operand.<no memory space> [shape: f32[1,1], index: 18, kind: input, shape index: {}]
  %s19 = inlined_call_operand.vmem [shape: f32[1,32], index: 19, kind: input, shape index: {}]
  %s20 = inlined_call_operand.<no memory space> [shape: f32[1,1], index: 20, kind: input, shape index: {}]
  %s21 = inlined_call_operand.vmem [shape: f32[32,10], index: 21, kind: input, shape index: {}]
  %s22 = inlined_call_operand.vmem [shape: f32[1,10], index: 22, kind: input, shape index: {}]
  %s23 = inlined_call_operand.hbm [shape: f32[2,10], index: 23, kind: output, shape index: {}]
  %s24 = sld [smem:[#allocation0]]
  $region106: #{vqa_forward.3} parent=0
    _
  %s26 = ssub.s32 1, %s24
  %s27 = scalar_select 0, %s26, %s24
  %v28 = vstv %s18
  %29 = vst [vmem:[#allocation6] sm:$0x1] %v28
  %v30 = vstv %s20
  %31 = vst [vmem:[#allocation7] sm:$0x1] %v30
  $region1: #{vqa_forward.3} parent=0
    #allocation8 [shape = 'u8[1024]{0}', space=smem, size = 0x400, scoped, tag = 'input window, operand 0, single buffered']
    #allocation9 [shape = 's32[1]{0}', space=sflag, size = 0x4, scoped, tag = 'scoped memory for vqa_forward.3']
    #allocation10 [shape = 's32[1]{0}', space=sflag, size = 0x4, scoped, tag = 'scoped memory for vqa_forward.3']
    #allocation11 [shape = 'u8[1024]{0}', space=vmem, size = 0x400, scoped, tag = 'output window, operand 0, single buffered']
    %32 = vsyncpa [#allocation10], 0
    %33 = vsyncpa [#allocation9], 0
    // Predicated region
    $region2: #{vqa_forward.3} parent=1 // pred_check
      _
    $region3: #{vqa_forward.3} parent=1 // pred_check_branch
      %35 = sbr.rel (0) target = $region5
    $region4: #{vqa_forward.3} parent=1 // pred_region
      %s37 = ssub.s32 32, 32
      %38 = vsyncadd [#allocation10], %s37
      %s40 = sshll.u32 %s0, 4
      %s41 = int_to_ptr.vmem [resolvable:$true] %s40
      %43 = dma.vmem_to_smem %s41, 32, [#allocation8], [#allocation10]
    $region5: #{vqa_forward.3} parent=1 // pred_fallthru
      _
    // Predicated region
    $region6: #{vqa_forward.3} parent=1 // pred_check
      _
    $region7: #{vqa_forward.3} parent=1 // pred_check_branch
      %45 = sbr.rel (0) target = $region9
    $region8: #{vqa_forward.3} parent=1 // pred_region
      _
    $region9: #{vqa_forward.3} parent=1 // pred_fallthru
      _
    // Predicated region
    $region10: #{vqa_forward.3} parent=1 // pred_check
      _
    $region11: #{vqa_forward.3} parent=1 // pred_check_branch
      %47 = sbr.rel (0) target = $region13
    $region12: #{vqa_forward.3} parent=1 // pred_region
      _
    $region13: #{vqa_forward.3} parent=1 // pred_fallthru
      _
    // Predicated region
    $region14: #{vqa_forward.3} parent=1 // pred_check
      _
    $region15: #{vqa_forward.3} parent=1 // pred_check_branch
      %49 = sbr.rel (0) target = $region17
    $region16: #{vqa_forward.3} parent=1 // pred_region
      _
    $region17: #{vqa_forward.3} parent=1 // pred_fallthru
      _
    // Predicated region
    $region18: #{vqa_forward.3} parent=1 // pred_check
      _
    $region19: #{vqa_forward.3} parent=1 // pred_check_branch
      %51 = sbr.rel (0) target = $region21
    $region20: #{vqa_forward.3} parent=1 // pred_region
      _
    $region21: #{vqa_forward.3} parent=1 // pred_fallthru
      _
    // Predicated region
    $region22: #{vqa_forward.3} parent=1 // pred_check
      _
    $region23: #{vqa_forward.3} parent=1 // pred_check_branch
      %53 = sbr.rel (0) target = $region25
    $region24: #{vqa_forward.3} parent=1 // pred_region
      _
    $region25: #{vqa_forward.3} parent=1 // pred_fallthru
      _
    // Predicated region
    $region26: #{vqa_forward.3} parent=1 // pred_check
      _
    $region27: #{vqa_forward.3} parent=1 // pred_check_branch
      %55 = sbr.rel (0) target = $region29
    $region28: #{vqa_forward.3} parent=1 // pred_region
      _
    $region29: #{vqa_forward.3} parent=1 // pred_fallthru
      _
    // Predicated region
    $region30: #{vqa_forward.3} parent=1 // pred_check
      _
    $region31: #{vqa_forward.3} parent=1 // pred_check_branch
      %57 = sbr.rel (0) target = $region33
    $region32: #{vqa_forward.3} parent=1 // pred_region
      _
    $region33: #{vqa_forward.3} parent=1 // pred_fallthru
      _
    // Predicated region
    $region34: #{vqa_forward.3} parent=1 // pred_check
      _
    $region35: #{vqa_forward.3} parent=1 // pred_check_branch
      %59 = sbr.rel (0) target = $region37
    $region36: #{vqa_forward.3} parent=1 // pred_region
      _
    $region37: #{vqa_forward.3} parent=1 // pred_fallthru
      _
    // Predicated region
    $region38: #{vqa_forward.3} parent=1 // pred_check
      _
    $region39: #{vqa_forward.3} parent=1 // pred_check_branch
      %61 = sbr.rel (0) target = $region41
    $region40: #{vqa_forward.3} parent=1 // pred_region
      _
    $region41: #{vqa_forward.3} parent=1 // pred_fallthru
      _
    // Predicated region
    $region42: #{vqa_forward.3} parent=1 // pred_check
      _
    $region43: #{vqa_forward.3} parent=1 // pred_check_branch
      %63 = sbr.rel (0) target = $region45
    $region44: #{vqa_forward.3} parent=1 // pred_region
      _
    $region45: #{vqa_forward.3} parent=1 // pred_fallthru
      _
    // Predicated region
    $region46: #{vqa_forward.3} parent=1 // pred_check
      _
    $region47: #{vqa_forward.3} parent=1 // pred_check_branch
      %65 = sbr.rel (0) target = $region49
    $region48: #{vqa_forward.3} parent=1 // pred_region
      _
    $region49: #{vqa_forward.3} parent=1 // pred_fallthru
      _
    // Predicated region
    $region50: #{vqa_forward.3} parent=1 // pred_check
      _
    $region51: #{vqa_forward.3} parent=1 // pred_check_branch
      %67 = sbr.rel (0) target = $region53
    $region52: #{vqa_forward.3} parent=1 // pred_region
      _
    $region53: #{vqa_forward.3} parent=1 // pred_fallthru
      _
    // Predicated region
    $region54: #{vqa_forward.3} parent=1 // pred_check
      _
    $region55: #{vqa_forward.3} parent=1 // pred_check_branch
      %69 = sbr.rel (0) target = $region57
    $region56: #{vqa_forward.3} parent=1 // pred_region
      _
    $region57: #{vqa_forward.3} parent=1 // pred_fallthru
      _
    // Predicated region
    $region58: #{vqa_forward.3} parent=1 // pred_check
      _
    $region59: #{vqa_forward.3} parent=1 // pred_check_branch
      %71 = sbr.rel (0) target = $region61
    $region60: #{vqa_forward.3} parent=1 // pred_region
      _
    $region61: #{vqa_forward.3} parent=1 // pred_fallthru
      _
    // Predicated region
    $region62: #{vqa_forward.3} parent=1 // pred_check
      _
    $region63: #{vqa_forward.3} parent=1 // pred_check_branch
      %73 = sbr.rel (0) target = $region65
    $region64: #{vqa_forward.3} parent=1 // pred_region
      _
    $region65: #{vqa_forward.3} parent=1 // pred_fallthru
      _
    // Predicated region
    $region66: #{vqa_forward.3} parent=1 // pred_check
      _
    $region67: #{vqa_forward.3} parent=1 // pred_check_branch
      %75 = sbr.rel (0) target = $region69
    $region68: #{vqa_forward.3} parent=1 // pred_region
      _
    $region69: #{vqa_forward.3} parent=1 // pred_fallthru
      _
    // Predicated region
    $region70: #{vqa_forward.3} parent=1 // pred_check
      _
    $region71: #{vqa_forward.3} parent=1 // pred_check_branch
      %77 = sbr.rel (0) target = $region73
    $region72: #{vqa_forward.3} parent=1 // pred_region
      _
    $region73: #{vqa_forward.3} parent=1 // pred_fallthru
      _
    // Predicated region
    $region74: #{vqa_forward.3} parent=1 // pred_check
      _
    $region75: #{vqa_forward.3} parent=1 // pred_check_branch
      %79 = sbr.rel (0) target = $region77
    $region76: #{vqa_forward.3} parent=1 // pred_region
      _
    $region77: #{vqa_forward.3} parent=1 // pred_fallthru
      _
    // Predicated region
    $region78: #{vqa_forward.3} parent=1 // pred_check
      _
    $region79: #{vqa_forward.3} parent=1 // pred_check_branch
      %81 = sbr.rel (0) target = $region81
    $region80: #{vqa_forward.3} parent=1 // pred_region
      _
    $region81: #{vqa_forward.3} parent=1 // pred_fallthru
      _
    // Predicated region
    $region82: #{vqa_forward.3} parent=1 // pred_check
      _
    $region83: #{vqa_forward.3} parent=1 // pred_check_branch
      %83 = sbr.rel (0) target = $region85
    $region84: #{vqa_forward.3} parent=1 // pred_region
      _
    $region85: #{vqa_forward.3} parent=1 // pred_fallthru
      _
    // Predicated region
    $region86: #{vqa_forward.3} parent=1 // pred_check
      _
    $region87: #{vqa_forward.3} parent=1 // pred_check_branch
      %85 = sbr.rel (0) target = $region89
    $region88: #{vqa_forward.3} parent=1 // pred_region
      _
    $region89: #{vqa_forward.3} parent=1 // pred_fallthru
      _
    // Predicated region
    $region90: #{vqa_forward.3} parent=1 // pred_check
      _
    $region91: #{vqa_forward.3} parent=1 // pred_check_branch
      %87 = sbr.rel (0) target = $region93
    $region92: #{vqa_forward.3} parent=1 // pred_region
      _
    $region93: #{vqa_forward.3} parent=1 // pred_fallthru
      _
    // Predicated region
    $region94: #{vqa_forward.3} parent=1 // pred_check
      _
    $region95: #{vqa_forward.3} parent=1 // pred_check_branch
      %89 = sbr.rel (0) target = $region97
    $region96: #{vqa_forward.3} parent=1 // pred_region
      %90 = dma.done [#allocation10], 32
    $region97: #{vqa_forward.3} parent=1 // pred_fallthru
      _
    %91 = sfence
    %s92 = sld [smem:[#allocation8]]
    %s93 = scalar_lea.vmem %s2, %s92
    %v94 = vld [vmem:[%s93] sm:$0x1]
    %vm95 = vcmask 122880
    %96 = vst.msk [vmem:[#allocation2] sm:$0x1] %vm95, %v94
    %s97 = sld [smem:[#allocation8 + $0x80]]
    %s98 = scalar_lea.vmem %s2, %s97
    %v99 = vld [vmem:[%s98] sm:$0x1]
    %100 = vst.msk [vmem:[#allocation2 + $0x1] sm:$0x1] %vm95, %v99
    %s101 = sld [smem:[#allocation8 + $0x1]]
    %s102 = scalar_lea.vmem %s2, %s101
    %v103 = vld [vmem:[%s102] sm:$0x1]
    %104 = vst.msk [vmem:[#allocation2 + $0x2] sm:$0x1] %vm95, %v103
    %s105 = sld [smem:[#allocation8 + $0x81]]
    %s106 = scalar_lea.vmem %s2, %s105
    %v107 = vld [vmem:[%s106] sm:$0x1]
    %108 = vst.msk [vmem:[#allocation2 + $0x3] sm:$0x1] %vm95, %v107
    %s109 = sld [smem:[#allocation8 + $0x2]]
    %s110 = scalar_lea.vmem %s2, %s109
    %v111 = vld [vmem:[%s110] sm:$0x1]
    %112 = vst.msk [vmem:[#allocation2 + $0x4] sm:$0x1] %vm95, %v111
    %s113 = sld [smem:[#allocation8 + $0x82]]
    %s114 = scalar_lea.vmem %s2, %s113
    %v115 = vld [vmem:[%s114] sm:$0x1]
    %116 = vst.msk [vmem:[#allocation2 + $0x5] sm:$0x1] %vm95, %v115
    %s117 = sld [smem:[#allocation8 + $0x3]]
    %s118 = scalar_lea.vmem %s2, %s117
    %v119 = vld [vmem:[%s118] sm:$0x1]
    %120 = vst.msk [vmem:[#allocation2 + $0x6] sm:$0x1] %vm95, %v119
    %s121 = sld [smem:[#allocation8 + $0x83]]
    %s122 = scalar_lea.vmem %s2, %s121
    %v123 = vld [vmem:[%s122] sm:$0x1]
    %124 = vst.msk [vmem:[#allocation2 + $0x7] sm:$0x1] %vm95, %v123
    %s125 = sld [smem:[#allocation8 + $0x4]]
    %s126 = scalar_lea.vmem %s2, %s125
    %v127 = vld [vmem:[%s126] sm:$0x1]
    %128 = vst.msk [vmem:[#allocation2 + $0x8] sm:$0x1] %vm95, %v127
    %s129 = sld [smem:[#allocation8 + $0x84]]
    %s130 = scalar_lea.vmem %s2, %s129
    %v131 = vld [vmem:[%s130] sm:$0x1]
    %132 = vst.msk [vmem:[#allocation2 + $0x9] sm:$0x1] %vm95, %v131
    %s133 = sld [smem:[#allocation8 + $0x5]]
    %s134 = scalar_lea.vmem %s2, %s133
    %v135 = vld [vmem:[%s134] sm:$0x1]
    %136 = vst.msk [vmem:[#allocation2 + $0xa] sm:$0x1] %vm95, %v135
    %s137 = sld [smem:[#allocation8 + $0x85]]
    %s138 = scalar_lea.vmem %s2, %s137
    %v139 = vld [vmem:[%s138] sm:$0x1]
    %140 = vst.msk [vmem:[#allocation2 + $0xb] sm:$0x1] %vm95, %v139
    %s141 = sld [smem:[#allocation8 + $0x6]]
    %s142 = scalar_lea.vmem %s2, %s141
    %v143 = vld [vmem:[%s142] sm:$0x1]
    %144 = vst.msk [vmem:[#allocation2 + $0xc] sm:$0x1] %vm95, %v143
    %s145 = sld [smem:[#allocation8 + $0x86]]
    %s146 = scalar_lea.vmem %s2, %s145
    %v147 = vld [vmem:[%s146] sm:$0x1]
    %148 = vst.msk [vmem:[#allocation2 + $0xd] sm:$0x1] %vm95, %v147
    %s149 = sld [smem:[#allocation8 + $0x7]]
    %s150 = scalar_lea.vmem %s2, %s149
    %v151 = vld [vmem:[%s150] sm:$0x1]
    %152 = vst.msk [vmem:[#allocation2 + $0xe] sm:$0x1] %vm95, %v151
    %s153 = sld [smem:[#allocation8 + $0x87]]
    %s154 = scalar_lea.vmem %s2, %s153
    %v155 = vld [vmem:[%s154] sm:$0x1]
    %156 = vst.msk [vmem:[#allocation2 + $0xf] sm:$0x1] %vm95, %v155
    %v157 = vld [vmem:[#allocation2] sm:$0xff]
    %v158 = vld [vmem:[#allocation2 + $0x8] sm:$0xff]
    %v159 = vtanh.pop %v157
    %v160 = vtanh.pop %v158
    %v161 = vld [vmem:[%s3] sm:$0xff]
    %v162 = vld [vmem:[%s3 + $0x8] sm:$0xff]
    %v163 = vld [vmem:[%s5] sm:$0x1]
    %v165 = vlaneseq
    %v166 = vshrl.u32 %v165, 7
    %v167 = vsub.s32 0, %v166
    %v168 = vrot.slane %v163, %v167
    %vm170 = vcmask 130048
    %v172 = vsel %vm170, %v159, 0
    %v175 = vsel %vm170, %v160, 0
    %177 = vmatprep.subr.mxu0 0.0
    %178 = vmatpush1.msra.mxu0 %v161
    %179 = vmatprep.subr.mxu0 0.0
    %180 = vmatpush1.msra.mxu0 %v162
    %181 = vmatprep.subr.mxu0 0.0
    %182 = vmatpush1.msra.mxu0 0.0
    %183 = vmatprep.subr.mxu0 0.0
    %184 = vmatpush1.msra.mxu0 0.0
    %185 = vmatprep.subr.mxu0 0.0
    %186 = vmatpush1.msra.mxu0 0.0
    %187 = vmatprep.subr.mxu0 0.0
    %188 = vmatpush1.msra.mxu0 0.0
    %189 = vmatprep.subr.mxu0 0.0
    %190 = vmatpush1.msra.mxu0 0.0
    %191 = vmatprep.subr.mxu0 0.0
    %192 = vmatpush1.msra.mxu0 0.0
    %193 = vmatprep.subr.mxu0 0.0
    %194 = vmatpush1.msra.mxu0 0.0
    %195 = vmatprep.subr.mxu0 0.0
    %196 = vmatpush1.msra.mxu0 0.0
    %197 = vmatprep.subr.mxu0 0.0
    %198 = vmatpush1.msra.mxu0 0.0
    %199 = vmatprep.subr.mxu0 0.0
    %200 = vmatpush1.msra.mxu0 0.0
    %201 = vmatprep.subr.mxu0 0.0
    %202 = vmatpush1.msra.mxu0 0.0
    %203 = vmatprep.subr.mxu0 0.0
    %204 = vmatpush1.msra.mxu0 0.0
    %205 = vmatprep.subr.mxu0 0.0
    %206 = vmatpush1.msra.mxu0 0.0
    %207 = vmatprep.subr.mxu0 0.0
    %208 = vmatpush1.msra.mxu0 0.0
    %209 = vmatprep.subr.mxu0 0.0
    %210 = vmatpush1.msra.mxu0 0.0
    %211 = vmatprep.subr.mxu0 0.0
    %212 = vmatpush1.msra.mxu0 0.0
    %213 = vmatprep.subr.mxu0 0.0
    %214 = vmatpush1.msra.mxu0 0.0
    %215 = vmatprep.subr.mxu0 0.0
    %216 = vmatpush1.msra.mxu0 0.0
    %217 = vmatprep.subr.mxu0 0.0
    %218 = vmatpush1.msra.mxu0 0.0
    %219 = vmatprep.subr.mxu0 0.0
    %220 = vmatpush1.msra.mxu0 0.0
    %221 = vmatprep.subr.mxu0 0.0
    %222 = vmatpush1.msra.mxu0 0.0
    %223 = vmatprep.subr.mxu0 0.0
    %224 = vmatpush1.msra.mxu0 0.0
    %225 = vmatprep.subr.mxu0 0.0
    %226 = vmatpush1.msra.mxu0 0.0
    %227 = vmatprep.subr.mxu0 0.0
    %228 = vmatpush1.msra.mxu0 0.0
    %229 = vmatprep.subr.mxu0 0.0
    %230 = vmatpush1.msra.mxu0 0.0
    %231 = vmatprep.subr.mxu0 0.0
    %232 = vmatpush1.msra.mxu0 0.0
    %233 = vmatprep.subr.mxu0 0.0
    %234 = vmatpush1.msra.mxu0 0.0
    %235 = vmatprep.subr.mxu0 0.0
    %236 = vmatpush1.msra.mxu0 0.0
    %237 = vmatprep.subr.mxu0 0.0
    %238 = vmatpush1.msra.mxu0 0.0
    %239 = vmatprep.subr.mxu0 0.0
    %240 = vmatpush1.msra.mxu0 0.0
    %241 = vmatprep.mubr.f32.mxu0 0.0
    %242 = vmatmul.mubr.f32.gmra.mrb[0].mxu0 %v172
    %v243 = vpop.f32.mrb[0].mxu0
    %v244 = vadd.f32 %v168, %v243
    %v245 = vpop.f32.mrb[0].mxu0
    %246 = vmatprep.mubr.f32.mxu0 0.0
    %247 = vmatmul.mubr.f32.gmra.mrb[0].mxu0 %v175
    %v248 = vpop.f32.mrb[0].mxu0
    %v249 = vadd.f32 %v168, %v248
    %v250 = vpop.f32.mrb[0].mxu0
    %251 = vdwg.mxu0
    %v252 = vld [vmem:[%s4] sm:$0xff]
    %v253 = vld [vmem:[%s4 + $0x8] sm:$0xff]
    %v255 = vsel %vm170, 0.0, 0
    %257 = vmatprep.subr.mxu0 0.0
    %258 = vmatpush1.msra.mxu0 %v252
    %259 = vmatprep.subr.mxu0 0.0
    %260 = vmatpush1.msra.mxu0 %v253
    %261 = vmatprep.subr.mxu0 0.0
    %262 = vmatpush1.msra.mxu0 0.0
    %263 = vmatprep.subr.mxu0 0.0
    %264 = vmatpush1.msra.mxu0 0.0
    %265 = vmatprep.subr.mxu0 0.0
    %266 = vmatpush1.msra.mxu0 0.0
    %267 = vmatprep.subr.mxu0 0.0
    %268 = vmatpush1.msra.mxu0 0.0
    %269 = vmatprep.subr.mxu0 0.0
    %270 = vmatpush1.msra.mxu0 0.0
    %271 = vmatprep.subr.mxu0 0.0
    %272 = vmatpush1.msra.mxu0 0.0
    %273 = vmatprep.subr.mxu0 0.0
    %274 = vmatpush1.msra.mxu0 0.0
    %275 = vmatprep.subr.mxu0 0.0
    %276 = vmatpush1.msra.mxu0 0.0
    %277 = vmatprep.subr.mxu0 0.0
    %278 = vmatpush1.msra.mxu0 0.0
    %279 = vmatprep.subr.mxu0 0.0
    %280 = vmatpush1.msra.mxu0 0.0
    %281 = vmatprep.subr.mxu0 0.0
    %282 = vmatpush1.msra.mxu0 0.0
    %283 = vmatprep.subr.mxu0 0.0
    %284 = vmatpush1.msra.mxu0 0.0
    %285 = vmatprep.subr.mxu0 0.0
    %286 = vmatpush1.msra.mxu0 0.0
    %287 = vmatprep.subr.mxu0 0.0
    %288 = vmatpush1.msra.mxu0 0.0
    %289 = vmatprep.subr.mxu0 0.0
    %290 = vmatpush1.msra.mxu0 0.0
    %291 = vmatprep.subr.mxu0 0.0
    %292 = vmatpush1.msra.mxu0 0.0
    %293 = vmatprep.subr.mxu0 0.0
    %294 = vmatpush1.msra.mxu0 0.0
    %295 = vmatprep.subr.mxu0 0.0
    %296 = vmatpush1.msra.mxu0 0.0
    %297 = vmatprep.subr.mxu0 0.0
    %298 = vmatpush1.msra.mxu0 0.0
    %299 = vmatprep.subr.mxu0 0.0
    %300 = vmatpush1.msra.mxu0 0.0
    %301 = vmatprep.subr.mxu0 0.0
    %302 = vmatpush1.msra.mxu0 0.0
    %303 = vmatprep.subr.mxu0 0.0
    %304 = vmatpush1.msra.mxu0 0.0
    %305 = vmatprep.subr.mxu0 0.0
    %306 = vmatpush1.msra.mxu0 0.0
    %307 = vmatprep.subr.mxu0 0.0
    %308 = vmatpush1.msra.mxu0 0.0
    %309 = vmatprep.subr.mxu0 0.0
    %310 = vmatpush1.msra.mxu0 0.0
    %311 = vmatprep.subr.mxu0 0.0
    %312 = vmatpush1.msra.mxu0 0.0
    %313 = vmatprep.subr.mxu0 0.0
    %314 = vmatpush1.msra.mxu0 0.0
    %315 = vmatprep.subr.mxu0 0.0
    %316 = vmatpush1.msra.mxu0 0.0
    %317 = vmatprep.subr.mxu0 0.0
    %318 = vmatpush1.msra.mxu0 0.0
    %319 = vmatprep.subr.mxu0 0.0
    %320 = vmatpush1.msra.mxu0 0.0
    %321 = vmatprep.mubr.f32.mxu0 0.0
    %322 = vmatmul.mubr.f32.gmra.mrb[0].mxu0 %v255
    %v323 = vpop.f32.mrb[0].mxu0
    %v324 = vadd.f32 0.0, %v323
    %v325 = vpop.f32.mrb[0].mxu0
    %326 = vdwg.mxu0
    %v327 = vadd.f32 %v244, %v324
    %v328 = vmul.f32 %v327, 0.5
    %v329 = vtanh.pop %v328
    %v330 = vadd.f32 %v329, 1.0
    %v331 = vmul.f32 %v330, 0.5
    %v332 = vtanh.pop %v327
    %v333 = vmul.f32 %v331, 0.0
    %335 = vrot.lane.b32.xlu0 %v332, 96
    %v336 = vpop.permute.xlu0 %335
    %v338 = vmul.f32 %v331, %v336
    %340 = vrot.lane.b32.xlu0 %v338, 16
    %v341 = vpop.permute.xlu0 %340
    %v343 = vadd.f32 %v333, %v341
    %v344 = vtanh.pop %v343
    %346 = vrot.lane.b32.xlu0 %v344, 32
    %v347 = vpop.permute.xlu0 %346
    %v349 = vmul.f32 %v331, %v347
    %351 = vrot.lane.b32.xlu0 %v349, 80
    %v352 = vpop.permute.xlu0 %351
    %vm354 = vcmask 123904
    %355 = vst.msk [vmem:[#allocation3] sm:$0x3] %vm354, %v352
    %v356 = vsel %vm170, %v352, 0
    %358 = vmatprep.subr.mxu0 0.0
    %359 = vmatpush1.msra.mxu0 %v252
    %360 = vmatprep.subr.mxu0 0.0
    %361 = vmatpush1.msra.mxu0 %v253
    %362 = vmatprep.subr.mxu0 0.0
    %363 = vmatpush1.msra.mxu0 0.0
    %364 = vmatprep.subr.mxu0 0.0
    %365 = vmatpush1.msra.mxu0 0.0
    %366 = vmatprep.subr.mxu0 0.0
    %367 = vmatpush1.msra.mxu0 0.0
    %368 = vmatprep.subr.mxu0 0.0
    %369 = vmatpush1.msra.mxu0 0.0
    %370 = vmatprep.subr.mxu0 0.0
    %371 = vmatpush1.msra.mxu0 0.0
    %372 = vmatprep.subr.mxu0 0.0
    %373 = vmatpush1.msra.mxu0 0.0
    %374 = vmatprep.subr.mxu0 0.0
    %375 = vmatpush1.msra.mxu0 0.0
    %376 = vmatprep.subr.mxu0 0.0
    %377 = vmatpush1.msra.mxu0 0.0
    %378 = vmatprep.subr.mxu0 0.0
    %379 = vmatpush1.msra.mxu0 0.0
    %380 = vmatprep.subr.mxu0 0.0
    %381 = vmatpush1.msra.mxu0 0.0
    %382 = vmatprep.subr.mxu0 0.0
    %383 = vmatpush1.msra.mxu0 0.0
    %384 = vmatprep.subr.mxu0 0.0
    %385 = vmatpush1.msra.mxu0 0.0
    %386 = vmatprep.subr.mxu0 0.0
    %387 = vmatpush1.msra.mxu0 0.0
    %388 = vmatprep.subr.mxu0 0.0
    %389 = vmatpush1.msra.mxu0 0.0
    %390 = vmatprep.subr.mxu0 0.0
    %391 = vmatpush1.msra.mxu0 0.0
    %392 = vmatprep.subr.mxu0 0.0
    %393 = vmatpush1.msra.mxu0 0.0
    %394 = vmatprep.subr.mxu0 0.0
    %395 = vmatpush1.msra.mxu0 0.0
    %396 = vmatprep.subr.mxu0 0.0
    %397 = vmatpush1.msra.mxu0 0.0
    %398 = vmatprep.subr.mxu0 0.0
    %399 = vmatpush1.msra.mxu0 0.0
    %400 = vmatprep.subr.mxu0 0.0
    %401 = vmatpush1.msra.mxu0 0.0
    %402 = vmatprep.subr.mxu0 0.0
    %403 = vmatpush1.msra.mxu0 0.0
    %404 = vmatprep.subr.mxu0 0.0
    %405 = vmatpush1.msra.mxu0 0.0
    %406 = vmatprep.subr.mxu0 0.0
    %407 = vmatpush1.msra.mxu0 0.0
    %408 = vmatprep.subr.mxu0 0.0
    %409 = vmatpush1.msra.mxu0 0.0
    %410 = vmatprep.subr.mxu0 0.0
    %411 = vmatpush1.msra.mxu0 0.0
    %412 = vmatprep.subr.mxu0 0.0
    %413 = vmatpush1.msra.mxu0 0.0
    %414 = vmatprep.subr.mxu0 0.0
    %415 = vmatpush1.msra.mxu0 0.0
    %416 = vmatprep.subr.mxu0 0.0
    %417 = vmatpush1.msra.mxu0 0.0
    %418 = vmatprep.subr.mxu0 0.0
    %419 = vmatpush1.msra.mxu0 0.0
    %420 = vmatprep.subr.mxu0 0.0
    %421 = vmatpush1.msra.mxu0 0.0
    %422 = vmatprep.mubr.f32.mxu0 0.0
    %423 = vmatmul.mubr.f32.gmra.mrb[0].mxu0 %v356
    %v424 = vpop.f32.mrb[0].mxu0
    %v425 = vadd.f32 0.0, %v424
    %v426 = vpop.f32.mrb[0].mxu0
    %427 = vdwg.mxu0
    %v429 = vrot.slane %v425, 6
    %v431 = vadd.f32 %v244, %v429
    %v432 = vmul.f32 %v431, 0.5
    %v433 = vtanh.pop %v432
    %v434 = vadd.f32 %v433, 1.0
    %v435 = vmul.f32 %v434, 0.5
    %v436 = vtanh.pop %v431
    %v438 = vrot.slane %v343, 6
    %v440 = vmul.f32 %v435, %v438
    %442 = vrot.lane.b32.xlu0 %v436, 96
    %v443 = vpop.permute.xlu0 %442
    %v445 = vmul.f32 %v435, %v443
    %447 = vrot.lane.b32.xlu0 %v445, 16
    %v448 = vpop.permute.xlu0 %447
    %v450 = vadd.f32 %v440, %v448
    %v451 = vtanh.pop %v450
    %453 = vrot.lane.b32.xlu0 %v451, 32
    %v454 = vpop.permute.xlu0 %453
    %v456 = vmul.f32 %v435, %v454
    %458 = vrot.lane.b32.xlu0 %v456, 80
    %v459 = vpop.permute.xlu0 %458
    %vm461 = vcmask 125954
    %462 = vst.msk [vmem:[#allocation3] sm:$0xc] %vm461, %v459
    %v463 = vrot.slane %v456, 2
    %464 = vrot.lane.b32.xlu0 %v463, 80
    %v465 = vpop.permute.xlu0 %464
    %v466 = vsel %vm170, %v465, 0
    %468 = vmatprep.subr.mxu0 0.0
    %469 = vmatpush1.msra.mxu0 %v252
    %470 = vmatprep.subr.mxu0 0.0
    %471 = vmatpush1.msra.mxu0 %v253
    %472 = vmatprep.subr.mxu0 0.0
    %473 = vmatpush1.msra.mxu0 0.0
    %474 = vmatprep.subr.mxu0 0.0
    %475 = vmatpush1.msra.mxu0 0.0
    %476 = vmatprep.subr.mxu0 0.0
    %477 = vmatpush1.msra.mxu0 0.0
    %478 = vmatprep.subr.mxu0 0.0
    %479 = vmatpush1.msra.mxu0 0.0
    %480 = vmatprep.subr.mxu0 0.0
    %481 = vmatpush1.msra.mxu0 0.0
    %482 = vmatprep.subr.mxu0 0.0
    %483 = vmatpush1.msra.mxu0 0.0
    %484 = vmatprep.subr.mxu0 0.0
    %485 = vmatpush1.msra.mxu0 0.0
    %486 = vmatprep.subr.mxu0 0.0
    %487 = vmatpush1.msra.mxu0 0.0
    %488 = vmatprep.subr.mxu0 0.0
    %489 = vmatpush1.msra.mxu0 0.0
    %490 = vmatprep.subr.mxu0 0.0
    %491 = vmatpush1.msra.mxu0 0.0
    %492 = vmatprep.subr.mxu0 0.0
    %493 = vmatpush1.msra.mxu0 0.0
    %494 = vmatprep.subr.mxu0 0.0
    %495 = vmatpush1.msra.mxu0 0.0
    %496 = vmatprep.subr.mxu0 0.0
    %497 = vmatpush1.msra.mxu0 0.0
    %498 = vmatprep.subr.mxu0 0.0
    %499 = vmatpush1.msra.mxu0 0.0
    %500 = vmatprep.subr.mxu0 0.0
    %501 = vmatpush1.msra.mxu0 0.0
    %502 = vmatprep.subr.mxu0 0.0
    %503 = vmatpush1.msra.mxu0 0.0
    %504 = vmatprep.subr.mxu0 0.0
    %505 = vmatpush1.msra.mxu0 0.0
    %506 = vmatprep.subr.mxu0 0.0
    %507 = vmatpush1.msra.mxu0 0.0
    %508 = vmatprep.subr.mxu0 0.0
    %509 = vmatpush1.msra.mxu0 0.0
    %510 = vmatprep.subr.mxu0 0.0
    %511 = vmatpush1.msra.mxu0 0.0
    %512 = vmatprep.subr.mxu0 0.0
    %513 = vmatpush1.msra.mxu0 0.0
    %514 = vmatprep.subr.mxu0 0.0
    %515 = vmatpush1.msra.mxu0 0.0
    %516 = vmatprep.subr.mxu0 0.0
    %517 = vmatpush1.msra.mxu0 0.0
    %518 = vmatprep.subr.mxu0 0.0
    %519 = vmatpush1.msra.mxu0 0.0
    %520 = vmatprep.subr.mxu0 0.0
    %521 = vmatpush1.msra.mxu0 0.0
    %522 = vmatprep.subr.mxu0 0.0
    %523 = vmatpush1.msra.mxu0 0.0
    %524 = vmatprep.subr.mxu0 0.0
    %525 = vmatpush1.msra.mxu0 0.0
    %526 = vmatprep.subr.mxu0 0.0
    %527 = vmatpush1.msra.mxu0 0.0
    %528 = vmatprep.subr.mxu0 0.0
    %529 = vmatpush1.msra.mxu0 0.0
    %530 = vmatprep.subr.mxu0 0.0
    %531 = vmatpush1.msra.mxu0 0.0
    %532 = vmatprep.mubr.f32.mxu0 0.0
    %533 = vmatmul.mubr.f32.gmra.mrb[0].mxu0 %v466
    %v534 = vpop.f32.mrb[0].mxu0
    %v535 = vadd.f32 0.0, %v534
    %v536 = vpop.f32.mrb[0].mxu0
    %537 = vdwg.mxu0
    %v539 = vrot.slane %v535, 4
    %v541 = vadd.f32 %v244, %v539
    %v542 = vmul.f32 %v541, 0.5
    %v543 = vtanh.pop %v542
    %v544 = vadd.f32 %v543, 1.0
    %v545 = vmul.f32 %v544, 0.5
    %v546 = vtanh.pop %v541
    %v548 = vrot.slane %v450, 6
    %v550 = vmul.f32 %v545, %v548
    %552 = vrot.lane.b32.xlu0 %v546, 96
    %v553 = vpop.permute.xlu0 %552
    %v555 = vmul.f32 %v545, %v553
    %557 = vrot.lane.b32.xlu0 %v555, 16
    %v558 = vpop.permute.xlu0 %557
    %v560 = vadd.f32 %v550, %v558
    %v561 = vtanh.pop %v560
    %563 = vrot.lane.b32.xlu0 %v561, 32
    %v564 = vpop.permute.xlu0 %563
    %v566 = vmul.f32 %v545, %v564
    %568 = vrot.lane.b32.xlu0 %v566, 80
    %v569 = vpop.permute.xlu0 %568
    %vm571 = vcmask 128004
    %572 = vst.msk [vmem:[#allocation3] sm:$0x30] %vm571, %v569
    %v573 = vrot.slane %v566, 4
    %574 = vrot.lane.b32.xlu0 %v573, 80
    %v575 = vpop.permute.xlu0 %574
    %v576 = vsel %vm170, %v575, 0
    %578 = vmatprep.subr.mxu0 0.0
    %579 = vmatpush1.msra.mxu0 %v252
    %580 = vmatprep.subr.mxu0 0.0
    %581 = vmatpush1.msra.mxu0 %v253
    %582 = vmatprep.subr.mxu0 0.0
    %583 = vmatpush1.msra.mxu0 0.0
    %584 = vmatprep.subr.mxu0 0.0
    %585 = vmatpush1.msra.mxu0 0.0
    %586 = vmatprep.subr.mxu0 0.0
    %587 = vmatpush1.msra.mxu0 0.0
    %588 = vmatprep.subr.mxu0 0.0
    %589 = vmatpush1.msra.mxu0 0.0
    %590 = vmatprep.subr.mxu0 0.0
    %591 = vmatpush1.msra.mxu0 0.0
    %592 = vmatprep.subr.mxu0 0.0
    %593 = vmatpush1.msra.mxu0 0.0
    %594 = vmatprep.subr.mxu0 0.0
    %595 = vmatpush1.msra.mxu0 0.0
    %596 = vmatprep.subr.mxu0 0.0
    %597 = vmatpush1.msra.mxu0 0.0
    %598 = vmatprep.subr.mxu0 0.0
    %599 = vmatpush1.msra.mxu0 0.0
    %600 = vmatprep.subr.mxu0 0.0
    %601 = vmatpush1.msra.mxu0 0.0
    %602 = vmatprep.subr.mxu0 0.0
    %603 = vmatpush1.msra.mxu0 0.0
    %604 = vmatprep.subr.mxu0 0.0
    %605 = vmatpush1.msra.mxu0 0.0
    %606 = vmatprep.subr.mxu0 0.0
    %607 = vmatpush1.msra.mxu0 0.0
    %608 = vmatprep.subr.mxu0 0.0
    %609 = vmatpush1.msra.mxu0 0.0
    %610 = vmatprep.subr.mxu0 0.0
    %611 = vmatpush1.msra.mxu0 0.0
    %612 = vmatprep.subr.mxu0 0.0
    %613 = vmatpush1.msra.mxu0 0.0
    %614 = vmatprep.subr.mxu0 0.0
    %615 = vmatpush1.msra.mxu0 0.0
    %616 = vmatprep.subr.mxu0 0.0
    %617 = vmatpush1.msra.mxu0 0.0
    %618 = vmatprep.subr.mxu0 0.0
    %619 = vmatpush1.msra.mxu0 0.0
    %620 = vmatprep.subr.mxu0 0.0
    %621 = vmatpush1.msra.mxu0 0.0
    %622 = vmatprep.subr.mxu0 0.0
    %623 = vmatpush1.msra.mxu0 0.0
    %624 = vmatprep.subr.mxu0 0.0
    %625 = vmatpush1.msra.mxu0 0.0
    %626 = vmatprep.subr.mxu0 0.0
    %627 = vmatpush1.msra.mxu0 0.0
    %628 = vmatprep.subr.mxu0 0.0
    %629 = vmatpush1.msra.mxu0 0.0
    %630 = vmatprep.subr.mxu0 0.0
    %631 = vmatpush1.msra.mxu0 0.0
    %632 = vmatprep.subr.mxu0 0.0
    %633 = vmatpush1.msra.mxu0 0.0
    %634 = vmatprep.subr.mxu0 0.0
    %635 = vmatpush1.msra.mxu0 0.0
    %636 = vmatprep.subr.mxu0 0.0
    %637 = vmatpush1.msra.mxu0 0.0
    %638 = vmatprep.subr.mxu0 0.0
    %639 = vmatpush1.msra.mxu0 0.0
    %640 = vmatprep.subr.mxu0 0.0
    %641 = vmatpush1.msra.mxu0 0.0
    %642 = vmatprep.mubr.f32.mxu0 0.0
    %643 = vmatmul.mubr.f32.gmra.mrb[0].mxu0 %v576
    %v644 = vpop.f32.mrb[0].mxu0
    %v645 = vadd.f32 0.0, %v644
    %v646 = vpop.f32.mrb[0].mxu0
    %647 = vdwg.mxu0
    %v649 = vrot.slane %v645, 2
    %v651 = vadd.f32 %v244, %v649
    %v652 = vmul.f32 %v651, 0.5
    %v653 = vtanh.pop %v652
    %v654 = vadd.f32 %v653, 1.0
    %v655 = vmul.f32 %v654, 0.5
    %v656 = vtanh.pop %v651
    %v658 = vrot.slane %v560, 6
    %v660 = vmul.f32 %v655, %v658
    %662 = vrot.lane.b32.xlu0 %v656, 96
    %v663 = vpop.permute.xlu0 %662
    %v665 = vmul.f32 %v655, %v663
    %667 = vrot.lane.b32.xlu0 %v665, 16
    %v668 = vpop.permute.xlu0 %667
    %v670 = vadd.f32 %v660, %v668
    %v671 = vtanh.pop %v670
    %673 = vrot.lane.b32.xlu0 %v671, 32
    %v674 = vpop.permute.xlu0 %673
    %v676 = vmul.f32 %v655, %v674
    %678 = vrot.lane.b32.xlu0 %v676, 80
    %v679 = vpop.permute.xlu0 %678
    %vm681 = vcmask 130054
    %682 = vst.msk [vmem:[#allocation3] sm:$0xc0] %vm681, %v679
    %v683 = vrot.slane %v676, 6
    %684 = vrot.lane.b32.xlu0 %v683, 80
    %v685 = vpop.permute.xlu0 %684
    %v686 = vsel %vm170, %v685, 0
    %688 = vmatprep.subr.mxu0 0.0
    %689 = vmatpush1.msra.mxu0 %v252
    %690 = vmatprep.subr.mxu0 0.0
    %691 = vmatpush1.msra.mxu0 %v253
    %692 = vmatprep.subr.mxu0 0.0
    %693 = vmatpush1.msra.mxu0 0.0
    %694 = vmatprep.subr.mxu0 0.0
    %695 = vmatpush1.msra.mxu0 0.0
    %696 = vmatprep.subr.mxu0 0.0
    %697 = vmatpush1.msra.mxu0 0.0
    %698 = vmatprep.subr.mxu0 0.0
    %699 = vmatpush1.msra.mxu0 0.0
    %700 = vmatprep.subr.mxu0 0.0
    %701 = vmatpush1.msra.mxu0 0.0
    %702 = vmatprep.subr.mxu0 0.0
    %703 = vmatpush1.msra.mxu0 0.0
    %704 = vmatprep.subr.mxu0 0.0
    %705 = vmatpush1.msra.mxu0 0.0
    %706 = vmatprep.subr.mxu0 0.0
    %707 = vmatpush1.msra.mxu0 0.0
    %708 = vmatprep.subr.mxu0 0.0
    %709 = vmatpush1.msra.mxu0 0.0
    %710 = vmatprep.subr.mxu0 0.0
    %711 = vmatpush1.msra.mxu0 0.0
    %712 = vmatprep.subr.mxu0 0.0
    %713 = vmatpush1.msra.mxu0 0.0
    %714 = vmatprep.subr.mxu0 0.0
    %715 = vmatpush1.msra.mxu0 0.0
    %716 = vmatprep.subr.mxu0 0.0
    %717 = vmatpush1.msra.mxu0 0.0
    %718 = vmatprep.subr.mxu0 0.0
    %719 = vmatpush1.msra.mxu0 0.0
    %720 = vmatprep.subr.mxu0 0.0
    %721 = vmatpush1.msra.mxu0 0.0
    %722 = vmatprep.subr.mxu0 0.0
    %723 = vmatpush1.msra.mxu0 0.0
    %724 = vmatprep.subr.mxu0 0.0
    %725 = vmatpush1.msra.mxu0 0.0
    %726 = vmatprep.subr.mxu0 0.0
    %727 = vmatpush1.msra.mxu0 0.0
    %728 = vmatprep.subr.mxu0 0.0
    %729 = vmatpush1.msra.mxu0 0.0
    %730 = vmatprep.subr.mxu0 0.0
    %731 = vmatpush1.msra.mxu0 0.0
    %732 = vmatprep.subr.mxu0 0.0
    %733 = vmatpush1.msra.mxu0 0.0
    %734 = vmatprep.subr.mxu0 0.0
    %735 = vmatpush1.msra.mxu0 0.0
    %736 = vmatprep.subr.mxu0 0.0
    %737 = vmatpush1.msra.mxu0 0.0
    %738 = vmatprep.subr.mxu0 0.0
    %739 = vmatpush1.msra.mxu0 0.0
    %740 = vmatprep.subr.mxu0 0.0
    %741 = vmatpush1.msra.mxu0 0.0
    %742 = vmatprep.subr.mxu0 0.0
    %743 = vmatpush1.msra.mxu0 0.0
    %744 = vmatprep.subr.mxu0 0.0
    %745 = vmatpush1.msra.mxu0 0.0
    %746 = vmatprep.subr.mxu0 0.0
    %747 = vmatpush1.msra.mxu0 0.0
    %748 = vmatprep.subr.mxu0 0.0
    %749 = vmatpush1.msra.mxu0 0.0
    %750 = vmatprep.subr.mxu0 0.0
    %751 = vmatpush1.msra.mxu0 0.0
    %752 = vmatprep.mubr.f32.mxu0 0.0
    %753 = vmatmul.mubr.f32.gmra.mrb[0].mxu0 %v686
    %v754 = vpop.f32.mrb[0].mxu0
    %v755 = vadd.f32 0.0, %v754
    %v756 = vpop.f32.mrb[0].mxu0
    %757 = vdwg.mxu0
    %v758 = vadd.f32 %v249, %v755
    %v759 = vmul.f32 %v758, 0.5
    %v760 = vtanh.pop %v759
    %v761 = vadd.f32 %v760, 1.0
    %v762 = vmul.f32 %v761, 0.5
    %v763 = vtanh.pop %v758
    %v765 = vrot.slane %v670, 6
    %v767 = vmul.f32 %v762, %v765
    %769 = vrot.lane.b32.xlu0 %v763, 96
    %v770 = vpop.permute.xlu0 %769
    %v772 = vmul.f32 %v762, %v770
    %774 = vrot.lane.b32.xlu0 %v772, 16
    %v775 = vpop.permute.xlu0 %774
    %v777 = vadd.f32 %v767, %v775
    %v778 = vtanh.pop %v777
    %780 = vrot.lane.b32.xlu0 %v778, 32
    %v781 = vpop.permute.xlu0 %780
    %v783 = vmul.f32 %v762, %v781
    %785 = vrot.lane.b32.xlu0 %v783, 80
    %v786 = vpop.permute.xlu0 %785
    %788 = vst.msk [vmem:[#allocation3 + $0x8] sm:$0x3] %vm354, %v786
    %v789 = vsel %vm170, %v786, 0
    %791 = vmatprep.subr.mxu0 0.0
    %792 = vmatpush1.msra.mxu0 %v252
    %793 = vmatprep.subr.mxu0 0.0
    %794 = vmatpush1.msra.mxu0 %v253
    %795 = vmatprep.subr.mxu0 0.0
    %796 = vmatpush1.msra.mxu0 0.0
    %797 = vmatprep.subr.mxu0 0.0
    %798 = vmatpush1.msra.mxu0 0.0
    %799 = vmatprep.subr.mxu0 0.0
    %800 = vmatpush1.msra.mxu0 0.0
    %801 = vmatprep.subr.mxu0 0.0
    %802 = vmatpush1.msra.mxu0 0.0
    %803 = vmatprep.subr.mxu0 0.0
    %804 = vmatpush1.msra.mxu0 0.0
    %805 = vmatprep.subr.mxu0 0.0
    %806 = vmatpush1.msra.mxu0 0.0
    %807 = vmatprep.subr.mxu0 0.0
    %808 = vmatpush1.msra.mxu0 0.0
    %809 = vmatprep.subr.mxu0 0.0
    %810 = vmatpush1.msra.mxu0 0.0
    %811 = vmatprep.subr.mxu0 0.0
    %812 = vmatpush1.msra.mxu0 0.0
    %813 = vmatprep.subr.mxu0 0.0
    %814 = vmatpush1.msra.mxu0 0.0
    %815 = vmatprep.subr.mxu0 0.0
    %816 = vmatpush1.msra.mxu0 0.0
    %817 = vmatprep.subr.mxu0 0.0
    %818 = vmatpush1.msra.mxu0 0.0
    %819 = vmatprep.subr.mxu0 0.0
    %820 = vmatpush1.msra.mxu0 0.0
    %821 = vmatprep.subr.mxu0 0.0
    %822 = vmatpush1.msra.mxu0 0.0
    %823 = vmatprep.subr.mxu0 0.0
    %824 = vmatpush1.msra.mxu0 0.0
    %825 = vmatprep.subr.mxu0 0.0
    %826 = vmatpush1.msra.mxu0 0.0
    %827 = vmatprep.subr.mxu0 0.0
    %828 = vmatpush1.msra.mxu0 0.0
    %829 = vmatprep.subr.mxu0 0.0
    %830 = vmatpush1.msra.mxu0 0.0
    %831 = vmatprep.subr.mxu0 0.0
    %832 = vmatpush1.msra.mxu0 0.0
    %833 = vmatprep.subr.mxu0 0.0
    %834 = vmatpush1.msra.mxu0 0.0
    %835 = vmatprep.subr.mxu0 0.0
    %836 = vmatpush1.msra.mxu0 0.0
    %837 = vmatprep.subr.mxu0 0.0
    %838 = vmatpush1.msra.mxu0 0.0
    %839 = vmatprep.subr.mxu0 0.0
    %840 = vmatpush1.msra.mxu0 0.0
    %841 = vmatprep.subr.mxu0 0.0
    %842 = vmatpush1.msra.mxu0 0.0
    %843 = vmatprep.subr.mxu0 0.0
    %844 = vmatpush1.msra.mxu0 0.0
    %845 = vmatprep.subr.mxu0 0.0
    %846 = vmatpush1.msra.mxu0 0.0
    %847 = vmatprep.subr.mxu0 0.0
    %848 = vmatpush1.msra.mxu0 0.0
    %849 = vmatprep.subr.mxu0 0.0
    %850 = vmatpush1.msra.mxu0 0.0
    %851 = vmatprep.subr.mxu0 0.0
    %852 = vmatpush1.msra.mxu0 0.0
    %853 = vmatprep.subr.mxu0 0.0
    %854 = vmatpush1.msra.mxu0 0.0
    %855 = vmatprep.mubr.f32.mxu0 0.0
    %856 = vmatmul.mubr.f32.gmra.mrb[0].mxu0 %v789
    %v857 = vpop.f32.mrb[0].mxu0
    %v858 = vadd.f32 0.0, %v857
    %v859 = vpop.f32.mrb[0].mxu0
    %860 = vdwg.mxu0
    %v862 = vrot.slane %v858, 6
    %v864 = vadd.f32 %v249, %v862
    %v865 = vmul.f32 %v864, 0.5
    %v866 = vtanh.pop %v865
    %v867 = vadd.f32 %v866, 1.0
    %v868 = vmul.f32 %v867, 0.5
    %v869 = vtanh.pop %v864
    %v871 = vrot.slane %v777, 6
    %v873 = vmul.f32 %v868, %v871
    %875 = vrot.lane.b32.xlu0 %v869, 96
    %v876 = vpop.permute.xlu0 %875
    %v878 = vmul.f32 %v868, %v876
    %880 = vrot.lane.b32.xlu0 %v878, 16
    %v881 = vpop.permute.xlu0 %880
    %v883 = vadd.f32 %v873, %v881
    %v884 = vtanh.pop %v883
    %886 = vrot.lane.b32.xlu0 %v884, 32
    %v887 = vpop.permute.xlu0 %886
    %v889 = vmul.f32 %v868, %v887
    %891 = vrot.lane.b32.xlu0 %v889, 80
    %v892 = vpop.permute.xlu0 %891
    %894 = vst.msk [vmem:[#allocation3 + $0x8] sm:$0xc] %vm461, %v892
    %v895 = vrot.slane %v889, 2
    %896 = vrot.lane.b32.xlu0 %v895, 80
    %v897 = vpop.permute.xlu0 %896
    %v898 = vsel %vm170, %v897, 0
    %900 = vmatprep.subr.mxu0 0.0
    %901 = vmatpush1.msra.mxu0 %v252
    %902 = vmatprep.subr.mxu0 0.0
    %903 = vmatpush1.msra.mxu0 %v253
    %904 = vmatprep.subr.mxu0 0.0
    %905 = vmatpush1.msra.mxu0 0.0
    %906 = vmatprep.subr.mxu0 0.0
    %907 = vmatpush1.msra.mxu0 0.0
    %908 = vmatprep.subr.mxu0 0.0
    %909 = vmatpush1.msra.mxu0 0.0
    %910 = vmatprep.subr.mxu0 0.0
    %911 = vmatpush1.msra.mxu0 0.0
    %912 = vmatprep.subr.mxu0 0.0
    %913 = vmatpush1.msra.mxu0 0.0
    %914 = vmatprep.subr.mxu0 0.0
    %915 = vmatpush1.msra.mxu0 0.0
    %916 = vmatprep.subr.mxu0 0.0
    %917 = vmatpush1.msra.mxu0 0.0
    %918 = vmatprep.subr.mxu0 0.0
    %919 = vmatpush1.msra.mxu0 0.0
    %920 = vmatprep.subr.mxu0 0.0
    %921 = vmatpush1.msra.mxu0 0.0
    %922 = vmatprep.subr.mxu0 0.0
    %923 = vmatpush1.msra.mxu0 0.0
    %924 = vmatprep.subr.mxu0 0.0
    %925 = vmatpush1.msra.mxu0 0.0
    %926 = vmatprep.subr.mxu0 0.0
    %927 = vmatpush1.msra.mxu0 0.0
    %928 = vmatprep.subr.mxu0 0.0
    %929 = vmatpush1.msra.mxu0 0.0
    %930 = vmatprep.subr.mxu0 0.0
    %931 = vmatpush1.msra.mxu0 0.0
    %932 = vmatprep.subr.mxu0 0.0
    %933 = vmatpush1.msra.mxu0 0.0
    %934 = vmatprep.subr.mxu0 0.0
    %935 = vmatpush1.msra.mxu0 0.0
    %936 = vmatprep.subr.mxu0 0.0
    %937 = vmatpush1.msra.mxu0 0.0
    %938 = vmatprep.subr.mxu0 0.0
    %939 = vmatpush1.msra.mxu0 0.0
    %940 = vmatprep.subr.mxu0 0.0
    %941 = vmatpush1.msra.mxu0 0.0
    %942 = vmatprep.subr.mxu0 0.0
    %943 = vmatpush1.msra.mxu0 0.0
    %944 = vmatprep.subr.mxu0 0.0
    %945 = vmatpush1.msra.mxu0 0.0
    %946 = vmatprep.subr.mxu0 0.0
    %947 = vmatpush1.msra.mxu0 0.0
    %948 = vmatprep.subr.mxu0 0.0
    %949 = vmatpush1.msra.mxu0 0.0
    %950 = vmatprep.subr.mxu0 0.0
    %951 = vmatpush1.msra.mxu0 0.0
    %952 = vmatprep.subr.mxu0 0.0
    %953 = vmatpush1.msra.mxu0 0.0
    %954 = vmatprep.subr.mxu0 0.0
    %955 = vmatpush1.msra.mxu0 0.0
    %956 = vmatprep.subr.mxu0 0.0
    %957 = vmatpush1.msra.mxu0 0.0
    %958 = vmatprep.subr.mxu0 0.0
    %959 = vmatpush1.msra.mxu0 0.0
    %960 = vmatprep.subr.mxu0 0.0
    %961 = vmatpush1.msra.mxu0 0.0
    %962 = vmatprep.subr.mxu0 0.0
    %963 = vmatpush1.msra.mxu0 0.0
    %964 = vmatprep.mubr.f32.mxu0 0.0
    %965 = vmatmul.mubr.f32.gmra.mrb[0].mxu0 %v898
    %v966 = vpop.f32.mrb[0].mxu0
    %v967 = vadd.f32 0.0, %v966
    %v968 = vpop.f32.mrb[0].mxu0
    %969 = vdwg.mxu0
    %v971 = vrot.slane %v967, 4
    %v973 = vadd.f32 %v249, %v971
    %v974 = vmul.f32 %v973, 0.5
    %v975 = vtanh.pop %v974
    %v976 = vadd.f32 %v975, 1.0
    %v977 = vmul.f32 %v976, 0.5
    %v978 = vtanh.pop %v973
    %v980 = vrot.slane %v883, 6
    %v982 = vmul.f32 %v977, %v980
    %984 = vrot.lane.b32.xlu0 %v978, 96
    %v985 = vpop.permute.xlu0 %984
    %v987 = vmul.f32 %v977, %v985
    %989 = vrot.lane.b32.xlu0 %v987, 16
    %v990 = vpop.permute.xlu0 %989
    %v992 = vadd.f32 %v982, %v990
    %v993 = vtanh.pop %v992
    %995 = vrot.lane.b32.xlu0 %v993, 32
    %v996 = vpop.permute.xlu0 %995
    %v998 = vmul.f32 %v977, %v996
    %1000 = vrot.lane.b32.xlu0 %v998, 80
    %v1001 = vpop.permute.xlu0 %1000
    %1003 = vst.msk [vmem:[#allocation3 + $0x8] sm:$0x30] %vm571, %v1001
    %v1004 = vrot.slane %v998, 4
    %1005 = vrot.lane.b32.xlu0 %v1004, 80
    %v1006 = vpop.permute.xlu0 %1005
    %v1007 = vsel %vm170, %v1006, 0
    %1009 = vmatprep.subr.mxu0 0.0
    %1010 = vmatpush1.msra.mxu0 %v252
    %1011 = vmatprep.subr.mxu0 0.0
    %1012 = vmatpush1.msra.mxu0 %v253
    %1013 = vmatprep.subr.mxu0 0.0
    %1014 = vmatpush1.msra.mxu0 0.0
    %1015 = vmatprep.subr.mxu0 0.0
    %1016 = vmatpush1.msra.mxu0 0.0
    %1017 = vmatprep.subr.mxu0 0.0
    %1018 = vmatpush1.msra.mxu0 0.0
    %1019 = vmatprep.subr.mxu0 0.0
    %1020 = vmatpush1.msra.mxu0 0.0
    %1021 = vmatprep.subr.mxu0 0.0
    %1022 = vmatpush1.msra.mxu0 0.0
    %1023 = vmatprep.subr.mxu0 0.0
    %1024 = vmatpush1.msra.mxu0 0.0
    %1025 = vmatprep.subr.mxu0 0.0
    %1026 = vmatpush1.msra.mxu0 0.0
    %1027 = vmatprep.subr.mxu0 0.0
    %1028 = vmatpush1.msra.mxu0 0.0
    %1029 = vmatprep.subr.mxu0 0.0
    %1030 = vmatpush1.msra.mxu0 0.0
    %1031 = vmatprep.subr.mxu0 0.0
    %1032 = vmatpush1.msra.mxu0 0.0
    %1033 = vmatprep.subr.mxu0 0.0
    %1034 = vmatpush1.msra.mxu0 0.0
    %1035 = vmatprep.subr.mxu0 0.0
    %1036 = vmatpush1.msra.mxu0 0.0
    %1037 = vmatprep.subr.mxu0 0.0
    %1038 = vmatpush1.msra.mxu0 0.0
    %1039 = vmatprep.subr.mxu0 0.0
    %1040 = vmatpush1.msra.mxu0 0.0
    %1041 = vmatprep.subr.mxu0 0.0
    %1042 = vmatpush1.msra.mxu0 0.0
    %1043 = vmatprep.subr.mxu0 0.0
    %1044 = vmatpush1.msra.mxu0 0.0
    %1045 = vmatprep.subr.mxu0 0.0
    %1046 = vmatpush1.msra.mxu0 0.0
    %1047 = vmatprep.subr.mxu0 0.0
    %1048 = vmatpush1.msra.mxu0 0.0
    %1049 = vmatprep.subr.mxu0 0.0
    %1050 = vmatpush1.msra.mxu0 0.0
    %1051 = vmatprep.subr.mxu0 0.0
    %1052 = vmatpush1.msra.mxu0 0.0
    %1053 = vmatprep.subr.mxu0 0.0
    %1054 = vmatpush1.msra.mxu0 0.0
    %1055 = vmatprep.subr.mxu0 0.0
    %1056 = vmatpush1.msra.mxu0 0.0
    %1057 = vmatprep.subr.mxu0 0.0
    %1058 = vmatpush1.msra.mxu0 0.0
    %1059 = vmatprep.subr.mxu0 0.0
    %1060 = vmatpush1.msra.mxu0 0.0
    %1061 = vmatprep.subr.mxu0 0.0
    %1062 = vmatpush1.msra.mxu0 0.0
    %1063 = vmatprep.subr.mxu0 0.0
    %1064 = vmatpush1.msra.mxu0 0.0
    %1065 = vmatprep.subr.mxu0 0.0
    %1066 = vmatpush1.msra.mxu0 0.0
    %1067 = vmatprep.subr.mxu0 0.0
    %1068 = vmatpush1.msra.mxu0 0.0
    %1069 = vmatprep.subr.mxu0 0.0
    %1070 = vmatpush1.msra.mxu0 0.0
    %1071 = vmatprep.subr.mxu0 0.0
    %1072 = vmatpush1.msra.mxu0 0.0
    %1073 = vmatprep.mubr.f32.mxu0 0.0
    %1074 = vmatmul.mubr.f32.gmra.mrb[0].mxu0 %v1007
    %v1075 = vpop.f32.mrb[0].mxu0
    %v1076 = vadd.f32 0.0, %v1075
    %v1077 = vpop.f32.mrb[0].mxu0
    %1078 = vdwg.mxu0
    %v1080 = vrot.slane %v1076, 2
    %v1082 = vadd.f32 %v249, %v1080
    %v1083 = vmul.f32 %v1082, 0.5
    %v1084 = vtanh.pop %v1083
    %v1085 = vadd.f32 %v1084, 1.0
    %v1086 = vmul.f32 %v1085, 0.5
    %v1087 = vtanh.pop %v1082
    %v1089 = vrot.slane %v992, 6
    %v1091 = vmul.f32 %v1086, %v1089
    %1093 = vrot.lane.b32.xlu0 %v1087, 96
    %v1094 = vpop.permute.xlu0 %1093
    %v1096 = vmul.f32 %v1086, %v1094
    %1098 = vrot.lane.b32.xlu0 %v1096, 16
    %v1099 = vpop.permute.xlu0 %1098
    %v1101 = vadd.f32 %v1091, %v1099
    %v1102 = vtanh.pop %v1101
    %1104 = vrot.lane.b32.xlu0 %v1102, 32
    %v1105 = vpop.permute.xlu0 %1104
    %v1107 = vmul.f32 %v1086, %v1105
    %1109 = vrot.lane.b32.xlu0 %v1107, 80
    %v1110 = vpop.permute.xlu0 %1109
    %1112 = vst.msk [vmem:[#allocation3 + $0x8] sm:$0xc0] %vm681, %v1110
    %v1113 = vld [vmem:[#allocation3] sm:$0xff]
    %v1114 = vld [vmem:[#allocation3 + $0x8] sm:$0xff]
    %v1115 = vld [vmem:[%s6] sm:$0xff]
    %v1116 = vld [vmem:[%s6 + $0x8] sm:$0xff]
    %v1117 = vld [vmem:[%s8] sm:$0x1]
    %v1119 = vlaneseq
    %v1120 = vshrl.u32 %v1119, 7
    %v1121 = vsub.s32 0, %v1120
    %v1122 = vrot.slane %v1117, %v1121
    %v1125 = vsel %vm170, %v1113, 0
    %v1128 = vsel %vm170, %v1114, 0
    %1130 = vmatprep.subr.mxu0 0.0
    %1131 = vmatpush1.msra.mxu0 %v1115
    %1132 = vmatprep.subr.mxu0 0.0
    %1133 = vmatpush1.msra.mxu0 %v1116
    %1134 = vmatprep.subr.mxu0 0.0
    %1135 = vmatpush1.msra.mxu0 0.0
    %1136 = vmatprep.subr.mxu0 0.0
    %1137 = vmatpush1.msra.mxu0 0.0
    %1138 = vmatprep.subr.mxu0 0.0
    %1139 = vmatpush1.msra.mxu0 0.0
    %1140 = vmatprep.subr.mxu0 0.0
    %1141 = vmatpush1.msra.mxu0 0.0
    %1142 = vmatprep.subr.mxu0 0.0
    %1143 = vmatpush1.msra.mxu0 0.0
    %1144 = vmatprep.subr.mxu0 0.0
    %1145 = vmatpush1.msra.mxu0 0.0
    %1146 = vmatprep.subr.mxu0 0.0
    %1147 = vmatpush1.msra.mxu0 0.0
    %1148 = vmatprep.subr.mxu0 0.0
    %1149 = vmatpush1.msra.mxu0 0.0
    %1150 = vmatprep.subr.mxu0 0.0
    %1151 = vmatpush1.msra.mxu0 0.0
    %1152 = vmatprep.subr.mxu0 0.0
    %1153 = vmatpush1.msra.mxu0 0.0
    %1154 = vmatprep.subr.mxu0 0.0
    %1155 = vmatpush1.msra.mxu0 0.0
    %1156 = vmatprep.subr.mxu0 0.0
    %1157 = vmatpush1.msra.mxu0 0.0
    %1158 = vmatprep.subr.mxu0 0.0
    %1159 = vmatpush1.msra.mxu0 0.0
    %1160 = vmatprep.subr.mxu0 0.0
    %1161 = vmatpush1.msra.mxu0 0.0
    %1162 = vmatprep.subr.mxu0 0.0
    %1163 = vmatpush1.msra.mxu0 0.0
    %1164 = vmatprep.subr.mxu0 0.0
    %1165 = vmatpush1.msra.mxu0 0.0
    %1166 = vmatprep.subr.mxu0 0.0
    %1167 = vmatpush1.msra.mxu0 0.0
    %1168 = vmatprep.subr.mxu0 0.0
    %1169 = vmatpush1.msra.mxu0 0.0
    %1170 = vmatprep.subr.mxu0 0.0
    %1171 = vmatpush1.msra.mxu0 0.0
    %1172 = vmatprep.subr.mxu0 0.0
    %1173 = vmatpush1.msra.mxu0 0.0
    %1174 = vmatprep.subr.mxu0 0.0
    %1175 = vmatpush1.msra.mxu0 0.0
    %1176 = vmatprep.subr.mxu0 0.0
    %1177 = vmatpush1.msra.mxu0 0.0
    %1178 = vmatprep.subr.mxu0 0.0
    %1179 = vmatpush1.msra.mxu0 0.0
    %1180 = vmatprep.subr.mxu0 0.0
    %1181 = vmatpush1.msra.mxu0 0.0
    %1182 = vmatprep.subr.mxu0 0.0
    %1183 = vmatpush1.msra.mxu0 0.0
    %1184 = vmatprep.subr.mxu0 0.0
    %1185 = vmatpush1.msra.mxu0 0.0
    %1186 = vmatprep.subr.mxu0 0.0
    %1187 = vmatpush1.msra.mxu0 0.0
    %1188 = vmatprep.subr.mxu0 0.0
    %1189 = vmatpush1.msra.mxu0 0.0
    %1190 = vmatprep.subr.mxu0 0.0
    %1191 = vmatpush1.msra.mxu0 0.0
    %1192 = vmatprep.subr.mxu0 0.0
    %1193 = vmatpush1.msra.mxu0 0.0
    %1194 = vmatprep.mubr.f32.mxu0 0.0
    %1195 = vmatmul.mubr.f32.gmra.mrb[0].mxu0 %v1125
    %v1196 = vpop.f32.mrb[0].mxu0
    %v1197 = vadd.f32 %v1122, %v1196
    %v1198 = vpop.f32.mrb[0].mxu0
    %1199 = vmatprep.mubr.f32.mxu0 0.0
    %1200 = vmatmul.mubr.f32.gmra.mrb[0].mxu0 %v1128
    %v1201 = vpop.f32.mrb[0].mxu0
    %v1202 = vadd.f32 %v1122, %v1201
    %v1203 = vpop.f32.mrb[0].mxu0
    %1204 = vdwg.mxu0
    %v1205 = vld [vmem:[%s7] sm:$0xff]
    %v1206 = vld [vmem:[%s7 + $0x8] sm:$0xff]
    %1207 = vmatprep.subr.mxu0 0.0
    %1208 = vmatpush1.msra.mxu0 %v1205
    %1209 = vmatprep.subr.mxu0 0.0
    %1210 = vmatpush1.msra.mxu0 %v1206
    %1211 = vmatprep.subr.mxu0 0.0
    %1212 = vmatpush1.msra.mxu0 0.0
    %1213 = vmatprep.subr.mxu0 0.0
    %1214 = vmatpush1.msra.mxu0 0.0
    %1215 = vmatprep.subr.mxu0 0.0
    %1216 = vmatpush1.msra.mxu0 0.0
    %1217 = vmatprep.subr.mxu0 0.0
    %1218 = vmatpush1.msra.mxu0 0.0
    %1219 = vmatprep.subr.mxu0 0.0
    %1220 = vmatpush1.msra.mxu0 0.0
    %1221 = vmatprep.subr.mxu0 0.0
    %1222 = vmatpush1.msra.mxu0 0.0
    %1223 = vmatprep.subr.mxu0 0.0
    %1224 = vmatpush1.msra.mxu0 0.0
    %1225 = vmatprep.subr.mxu0 0.0
    %1226 = vmatpush1.msra.mxu0 0.0
    %1227 = vmatprep.subr.mxu0 0.0
    %1228 = vmatpush1.msra.mxu0 0.0
    %1229 = vmatprep.subr.mxu0 0.0
    %1230 = vmatpush1.msra.mxu0 0.0
    %1231 = vmatprep.subr.mxu0 0.0
    %1232 = vmatpush1.msra.mxu0 0.0
    %1233 = vmatprep.subr.mxu0 0.0
    %1234 = vmatpush1.msra.mxu0 0.0
    %1235 = vmatprep.subr.mxu0 0.0
    %1236 = vmatpush1.msra.mxu0 0.0
    %1237 = vmatprep.subr.mxu0 0.0
    %1238 = vmatpush1.msra.mxu0 0.0
    %1239 = vmatprep.subr.mxu0 0.0
    %1240 = vmatpush1.msra.mxu0 0.0
    %1241 = vmatprep.subr.mxu0 0.0
    %1242 = vmatpush1.msra.mxu0 0.0
    %1243 = vmatprep.subr.mxu0 0.0
    %1244 = vmatpush1.msra.mxu0 0.0
    %1245 = vmatprep.subr.mxu0 0.0
    %1246 = vmatpush1.msra.mxu0 0.0
    %1247 = vmatprep.subr.mxu0 0.0
    %1248 = vmatpush1.msra.mxu0 0.0
    %1249 = vmatprep.subr.mxu0 0.0
    %1250 = vmatpush1.msra.mxu0 0.0
    %1251 = vmatprep.subr.mxu0 0.0
    %1252 = vmatpush1.msra.mxu0 0.0
    %1253 = vmatprep.subr.mxu0 0.0
    %1254 = vmatpush1.msra.mxu0 0.0
    %1255 = vmatprep.subr.mxu0 0.0
    %1256 = vmatpush1.msra.mxu0 0.0
    %1257 = vmatprep.subr.mxu0 0.0
    %1258 = vmatpush1.msra.mxu0 0.0
    %1259 = vmatprep.subr.mxu0 0.0
    %1260 = vmatpush1.msra.mxu0 0.0
    %1261 = vmatprep.subr.mxu0 0.0
    %1262 = vmatpush1.msra.mxu0 0.0
    %1263 = vmatprep.subr.mxu0 0.0
    %1264 = vmatpush1.msra.mxu0 0.0
    %1265 = vmatprep.subr.mxu0 0.0
    %1266 = vmatpush1.msra.mxu0 0.0
    %1267 = vmatprep.subr.mxu0 0.0
    %1268 = vmatpush1.msra.mxu0 0.0
    %1269 = vmatprep.subr.mxu0 0.0
    %1270 = vmatpush1.msra.mxu0 0.0
    %1271 = vmatprep.mubr.f32.mxu0 0.0
    %1272 = vmatmul.mubr.f32.gmra.mrb[0].mxu0 %v255
    %v1273 = vpop.f32.mrb[0].mxu0
    %v1274 = vadd.f32 0.0, %v1273
    %v1275 = vpop.f32.mrb[0].mxu0
    %1276 = vdwg.mxu0
    %v1277 = vadd.f32 %v1197, %v1274
    %v1278 = vmul.f32 %v1277, 0.5
    %v1279 = vtanh.pop %v1278
    %v1280 = vadd.f32 %v1279, 1.0
    %v1281 = vmul.f32 %v1280, 0.5
    %v1282 = vtanh.pop %v1277
    %v1283 = vmul.f32 %v1281, 0.0
    %1285 = vrot.lane.b32.xlu0 %v1282, 96
    %v1286 = vpop.permute.xlu0 %1285
    %v1288 = vmul.f32 %v1281, %v1286
    %1290 = vrot.lane.b32.xlu0 %v1288, 16
    %v1291 = vpop.permute.xlu0 %1290
    %v1293 = vadd.f32 %v1283, %v1291
    %v1294 = vtanh.pop %v1293
    %1296 = vrot.lane.b32.xlu0 %v1294, 32
    %v1297 = vpop.permute.xlu0 %1296
    %v1299 = vmul.f32 %v1281, %v1297
    %1301 = vrot.lane.b32.xlu0 %v1299, 80
    %v1302 = vpop.permute.xlu0 %1301
    %v1303 = vsel %vm170, %v1302, 0
    %1305 = vmatprep.subr.mxu0 0.0
    %1306 = vmatpush1.msra.mxu0 %v1205
    %1307 = vmatprep.subr.mxu0 0.0
    %1308 = vmatpush1.msra.mxu0 %v1206
    %1309 = vmatprep.subr.mxu0 0.0
    %1310 = vmatpush1.msra.mxu0 0.0
    %1311 = vmatprep.subr.mxu0 0.0
    %1312 = vmatpush1.msra.mxu0 0.0
    %1313 = vmatprep.subr.mxu0 0.0
    %1314 = vmatpush1.msra.mxu0 0.0
    %1315 = vmatprep.subr.mxu0 0.0
    %1316 = vmatpush1.msra.mxu0 0.0
    %1317 = vmatprep.subr.mxu0 0.0
    %1318 = vmatpush1.msra.mxu0 0.0
    %1319 = vmatprep.subr.mxu0 0.0
    %1320 = vmatpush1.msra.mxu0 0.0
    %1321 = vmatprep.subr.mxu0 0.0
    %1322 = vmatpush1.msra.mxu0 0.0
    %1323 = vmatprep.subr.mxu0 0.0
    %1324 = vmatpush1.msra.mxu0 0.0
    %1325 = vmatprep.subr.mxu0 0.0
    %1326 = vmatpush1.msra.mxu0 0.0
    %1327 = vmatprep.subr.mxu0 0.0
    %1328 = vmatpush1.msra.mxu0 0.0
    %1329 = vmatprep.subr.mxu0 0.0
    %1330 = vmatpush1.msra.mxu0 0.0
    %1331 = vmatprep.subr.mxu0 0.0
    %1332 = vmatpush1.msra.mxu0 0.0
    %1333 = vmatprep.subr.mxu0 0.0
    %1334 = vmatpush1.msra.mxu0 0.0
    %1335 = vmatprep.subr.mxu0 0.0
    %1336 = vmatpush1.msra.mxu0 0.0
    %1337 = vmatprep.subr.mxu0 0.0
    %1338 = vmatpush1.msra.mxu0 0.0
    %1339 = vmatprep.subr.mxu0 0.0
    %1340 = vmatpush1.msra.mxu0 0.0
    %1341 = vmatprep.subr.mxu0 0.0
    %1342 = vmatpush1.msra.mxu0 0.0
    %1343 = vmatprep.subr.mxu0 0.0
    %1344 = vmatpush1.msra.mxu0 0.0
    %1345 = vmatprep.subr.mxu0 0.0
    %1346 = vmatpush1.msra.mxu0 0.0
    %1347 = vmatprep.subr.mxu0 0.0
    %1348 = vmatpush1.msra.mxu0 0.0
    %1349 = vmatprep.subr.mxu0 0.0
    %1350 = vmatpush1.msra.mxu0 0.0
    %1351 = vmatprep.subr.mxu0 0.0
    %1352 = vmatpush1.msra.mxu0 0.0
    %1353 = vmatprep.subr.mxu0 0.0
    %1354 = vmatpush1.msra.mxu0 0.0
    %1355 = vmatprep.subr.mxu0 0.0
    %1356 = vmatpush1.msra.mxu0 0.0
    %1357 = vmatprep.subr.mxu0 0.0
    %1358 = vmatpush1.msra.mxu0 0.0
    %1359 = vmatprep.subr.mxu0 0.0
    %1360 = vmatpush1.msra.mxu0 0.0
    %1361 = vmatprep.subr.mxu0 0.0
    %1362 = vmatpush1.msra.mxu0 0.0
    %1363 = vmatprep.subr.mxu0 0.0
    %1364 = vmatpush1.msra.mxu0 0.0
    %1365 = vmatprep.subr.mxu0 0.0
    %1366 = vmatpush1.msra.mxu0 0.0
    %1367 = vmatprep.subr.mxu0 0.0
    %1368 = vmatpush1.msra.mxu0 0.0
    %1369 = vmatprep.mubr.f32.mxu0 0.0
    %1370 = vmatmul.mubr.f32.gmra.mrb[0].mxu0 %v1303
    %v1371 = vpop.f32.mrb[0].mxu0
    %v1372 = vadd.f32 0.0, %v1371
    %v1373 = vpop.f32.mrb[0].mxu0
    %1374 = vdwg.mxu0
    %v1376 = vrot.slane %v1372, 6
    %v1378 = vadd.f32 %v1197, %v1376
    %v1379 = vmul.f32 %v1378, 0.5
    %v1380 = vtanh.pop %v1379
    %v1381 = vadd.f32 %v1380, 1.0
    %v1382 = vmul.f32 %v1381, 0.5
    %v1383 = vtanh.pop %v1378
    %v1385 = vrot.slane %v1293, 6
    %v1387 = vmul.f32 %v1382, %v1385
    %1389 = vrot.lane.b32.xlu0 %v1383, 96
    %v1390 = vpop.permute.xlu0 %1389
    %v1392 = vmul.f32 %v1382, %v1390
    %1394 = vrot.lane.b32.xlu0 %v1392, 16
    %v1395 = vpop.permute.xlu0 %1394
    %v1397 = vadd.f32 %v1387, %v1395
    %v1398 = vtanh.pop %v1397
    %1400 = vrot.lane.b32.xlu0 %v1398, 32
    %v1401 = vpop.permute.xlu0 %1400
    %v1403 = vmul.f32 %v1382, %v1401
    %v1405 = vrot.slane %v1403, 2
    %1406 = vrot.lane.b32.xlu0 %v1405, 80
    %v1407 = vpop.permute.xlu0 %1406
    %v1408 = vsel %vm170, %v1407, 0
    %1410 = vmatprep.subr.mxu0 0.0
    %1411 = vmatpush1.msra.mxu0 %v1205
    %1412 = vmatprep.subr.mxu0 0.0
    %1413 = vmatpush1.msra.mxu0 %v1206
    %1414 = vmatprep.subr.mxu0 0.0
    %1415 = vmatpush1.msra.mxu0 0.0
    %1416 = vmatprep.subr.mxu0 0.0
    %1417 = vmatpush1.msra.mxu0 0.0
    %1418 = vmatprep.subr.mxu0 0.0
    %1419 = vmatpush1.msra.mxu0 0.0
    %1420 = vmatprep.subr.mxu0 0.0
    %1421 = vmatpush1.msra.mxu0 0.0
    %1422 = vmatprep.subr.mxu0 0.0
    %1423 = vmatpush1.msra.mxu0 0.0
    %1424 = vmatprep.subr.mxu0 0.0
    %1425 = vmatpush1.msra.mxu0 0.0
    %1426 = vmatprep.subr.mxu0 0.0
    %1427 = vmatpush1.msra.mxu0 0.0
    %1428 = vmatprep.subr.mxu0 0.0
    %1429 = vmatpush1.msra.mxu0 0.0
    %1430 = vmatprep.subr.mxu0 0.0
    %1431 = vmatpush1.msra.mxu0 0.0
    %1432 = vmatprep.subr.mxu0 0.0
    %1433 = vmatpush1.msra.mxu0 0.0
    %1434 = vmatprep.subr.mxu0 0.0
    %1435 = vmatpush1.msra.mxu0 0.0
    %1436 = vmatprep.subr.mxu0 0.0
    %1437 = vmatpush1.msra.mxu0 0.0
    %1438 = vmatprep.subr.mxu0 0.0
    %1439 = vmatpush1.msra.mxu0 0.0
    %1440 = vmatprep.subr.mxu0 0.0
    %1441 = vmatpush1.msra.mxu0 0.0
    %1442 = vmatprep.subr.mxu0 0.0
    %1443 = vmatpush1.msra.mxu0 0.0
    %1444 = vmatprep.subr.mxu0 0.0
    %1445 = vmatpush1.msra.mxu0 0.0
    %1446 = vmatprep.subr.mxu0 0.0
    %1447 = vmatpush1.msra.mxu0 0.0
    %1448 = vmatprep.subr.mxu0 0.0
    %1449 = vmatpush1.msra.mxu0 0.0
    %1450 = vmatprep.subr.mxu0 0.0
    %1451 = vmatpush1.msra.mxu0 0.0
    %1452 = vmatprep.subr.mxu0 0.0
    %1453 = vmatpush1.msra.mxu0 0.0
    %1454 = vmatprep.subr.mxu0 0.0
    %1455 = vmatpush1.msra.mxu0 0.0
    %1456 = vmatprep.subr.mxu0 0.0
    %1457 = vmatpush1.msra.mxu0 0.0
    %1458 = vmatprep.subr.mxu0 0.0
    %1459 = vmatpush1.msra.mxu0 0.0
    %1460 = vmatprep.subr.mxu0 0.0
    %1461 = vmatpush1.msra.mxu0 0.0
    %1462 = vmatprep.subr.mxu0 0.0
    %1463 = vmatpush1.msra.mxu0 0.0
    %1464 = vmatprep.subr.mxu0 0.0
    %1465 = vmatpush1.msra.mxu0 0.0
    %1466 = vmatprep.subr.mxu0 0.0
    %1467 = vmatpush1.msra.mxu0 0.0
    %1468 = vmatprep.subr.mxu0 0.0
    %1469 = vmatpush1.msra.mxu0 0.0
    %1470 = vmatprep.subr.mxu0 0.0
    %1471 = vmatpush1.msra.mxu0 0.0
    %1472 = vmatprep.subr.mxu0 0.0
    %1473 = vmatpush1.msra.mxu0 0.0
    %1474 = vmatprep.mubr.f32.mxu0 0.0
    %1475 = vmatmul.mubr.f32.gmra.mrb[0].mxu0 %v1408
    %v1476 = vpop.f32.mrb[0].mxu0
    %v1477 = vadd.f32 0.0, %v1476
    %v1478 = vpop.f32.mrb[0].mxu0
    %1479 = vdwg.mxu0
    %v1481 = vrot.slane %v1477, 4
    %v1483 = vadd.f32 %v1197, %v1481
    %v1484 = vmul.f32 %v1483, 0.5
    %v1485 = vtanh.pop %v1484
    %v1486 = vadd.f32 %v1485, 1.0
    %v1487 = vmul.f32 %v1486, 0.5
    %v1488 = vtanh.pop %v1483
    %v1490 = vrot.slane %v1397, 6
    %v1492 = vmul.f32 %v1487, %v1490
    %1494 = vrot.lane.b32.xlu0 %v1488, 96
    %v1495 = vpop.permute.xlu0 %1494
    %v1497 = vmul.f32 %v1487, %v1495
    %1499 = vrot.lane.b32.xlu0 %v1497, 16
    %v1500 = vpop.permute.xlu0 %1499
    %v1502 = vadd.f32 %v1492, %v1500
    %v1503 = vtanh.pop %v1502
    %1505 = vrot.lane.b32.xlu0 %v1503, 32
    %v1506 = vpop.permute.xlu0 %1505
    %v1508 = vmul.f32 %v1487, %v1506
    %v1510 = vrot.slane %v1508, 4
    %1511 = vrot.lane.b32.xlu0 %v1510, 80
    %v1512 = vpop.permute.xlu0 %1511
    %v1513 = vsel %vm170, %v1512, 0
    %1515 = vmatprep.subr.mxu0 0.0
    %1516 = vmatpush1.msra.mxu0 %v1205
    %1517 = vmatprep.subr.mxu0 0.0
    %1518 = vmatpush1.msra.mxu0 %v1206
    %1519 = vmatprep.subr.mxu0 0.0
    %1520 = vmatpush1.msra.mxu0 0.0
    %1521 = vmatprep.subr.mxu0 0.0
    %1522 = vmatpush1.msra.mxu0 0.0
    %1523 = vmatprep.subr.mxu0 0.0
    %1524 = vmatpush1.msra.mxu0 0.0
    %1525 = vmatprep.subr.mxu0 0.0
    %1526 = vmatpush1.msra.mxu0 0.0
    %1527 = vmatprep.subr.mxu0 0.0
    %1528 = vmatpush1.msra.mxu0 0.0
    %1529 = vmatprep.subr.mxu0 0.0
    %1530 = vmatpush1.msra.mxu0 0.0
    %1531 = vmatprep.subr.mxu0 0.0
    %1532 = vmatpush1.msra.mxu0 0.0
    %1533 = vmatprep.subr.mxu0 0.0
    %1534 = vmatpush1.msra.mxu0 0.0
    %1535 = vmatprep.subr.mxu0 0.0
    %1536 = vmatpush1.msra.mxu0 0.0
    %1537 = vmatprep.subr.mxu0 0.0
    %1538 = vmatpush1.msra.mxu0 0.0
    %1539 = vmatprep.subr.mxu0 0.0
    %1540 = vmatpush1.msra.mxu0 0.0
    %1541 = vmatprep.subr.mxu0 0.0
    %1542 = vmatpush1.msra.mxu0 0.0
    %1543 = vmatprep.subr.mxu0 0.0
    %1544 = vmatpush1.msra.mxu0 0.0
    %1545 = vmatprep.subr.mxu0 0.0
    %1546 = vmatpush1.msra.mxu0 0.0
    %1547 = vmatprep.subr.mxu0 0.0
    %1548 = vmatpush1.msra.mxu0 0.0
    %1549 = vmatprep.subr.mxu0 0.0
    %1550 = vmatpush1.msra.mxu0 0.0
    %1551 = vmatprep.subr.mxu0 0.0
    %1552 = vmatpush1.msra.mxu0 0.0
    %1553 = vmatprep.subr.mxu0 0.0
    %1554 = vmatpush1.msra.mxu0 0.0
    %1555 = vmatprep.subr.mxu0 0.0
    %1556 = vmatpush1.msra.mxu0 0.0
    %1557 = vmatprep.subr.mxu0 0.0
    %1558 = vmatpush1.msra.mxu0 0.0
    %1559 = vmatprep.subr.mxu0 0.0
    %1560 = vmatpush1.msra.mxu0 0.0
    %1561 = vmatprep.subr.mxu0 0.0
    %1562 = vmatpush1.msra.mxu0 0.0
    %1563 = vmatprep.subr.mxu0 0.0
    %1564 = vmatpush1.msra.mxu0 0.0
    %1565 = vmatprep.subr.mxu0 0.0
    %1566 = vmatpush1.msra.mxu0 0.0
    %1567 = vmatprep.subr.mxu0 0.0
    %1568 = vmatpush1.msra.mxu0 0.0
    %1569 = vmatprep.subr.mxu0 0.0
    %1570 = vmatpush1.msra.mxu0 0.0
    %1571 = vmatprep.subr.mxu0 0.0
    %1572 = vmatpush1.msra.mxu0 0.0
    %1573 = vmatprep.subr.mxu0 0.0
    %1574 = vmatpush1.msra.mxu0 0.0
    %1575 = vmatprep.subr.mxu0 0.0
    %1576 = vmatpush1.msra.mxu0 0.0
    %1577 = vmatprep.subr.mxu0 0.0
    %1578 = vmatpush1.msra.mxu0 0.0
    %1579 = vmatprep.mubr.f32.mxu0 0.0
    %1580 = vmatmul.mubr.f32.gmra.mrb[0].mxu0 %v1513
    %v1581 = vpop.f32.mrb[0].mxu0
    %v1582 = vadd.f32 0.0, %v1581
    %v1583 = vpop.f32.mrb[0].mxu0
    %1584 = vdwg.mxu0
    %v1586 = vrot.slane %v1582, 2
    %v1588 = vadd.f32 %v1197, %v1586
    %v1589 = vmul.f32 %v1588, 0.5
    %v1590 = vtanh.pop %v1589
    %v1591 = vadd.f32 %v1590, 1.0
    %v1592 = vmul.f32 %v1591, 0.5
    %v1593 = vtanh.pop %v1588
    %v1595 = vrot.slane %v1502, 6
    %v1597 = vmul.f32 %v1592, %v1595
    %1599 = vrot.lane.b32.xlu0 %v1593, 96
    %v1600 = vpop.permute.xlu0 %1599
    %v1602 = vmul.f32 %v1592, %v1600
    %1604 = vrot.lane.b32.xlu0 %v1602, 16
    %v1605 = vpop.permute.xlu0 %1604
    %v1607 = vadd.f32 %v1597, %v1605
    %v1608 = vtanh.pop %v1607
    %1610 = vrot.lane.b32.xlu0 %v1608, 32
    %v1611 = vpop.permute.xlu0 %1610
    %v1613 = vmul.f32 %v1592, %v1611
    %v1615 = vrot.slane %v1613, 6
    %1616 = vrot.lane.b32.xlu0 %v1615, 80
    %v1617 = vpop.permute.xlu0 %1616
    %v1618 = vsel %vm170, %v1617, 0
    %1620 = vmatprep.subr.mxu0 0.0
    %1621 = vmatpush1.msra.mxu0 %v1205
    %1622 = vmatprep.subr.mxu0 0.0
    %1623 = vmatpush1.msra.mxu0 %v1206
    %1624 = vmatprep.subr.mxu0 0.0
    %1625 = vmatpush1.msra.mxu0 0.0
    %1626 = vmatprep.subr.mxu0 0.0
    %1627 = vmatpush1.msra.mxu0 0.0
    %1628 = vmatprep.subr.mxu0 0.0
    %1629 = vmatpush1.msra.mxu0 0.0
    %1630 = vmatprep.subr.mxu0 0.0
    %1631 = vmatpush1.msra.mxu0 0.0
    %1632 = vmatprep.subr.mxu0 0.0
    %1633 = vmatpush1.msra.mxu0 0.0
    %1634 = vmatprep.subr.mxu0 0.0
    %1635 = vmatpush1.msra.mxu0 0.0
    %1636 = vmatprep.subr.mxu0 0.0
    %1637 = vmatpush1.msra.mxu0 0.0
    %1638 = vmatprep.subr.mxu0 0.0
    %1639 = vmatpush1.msra.mxu0 0.0
    %1640 = vmatprep.subr.mxu0 0.0
    %1641 = vmatpush1.msra.mxu0 0.0
    %1642 = vmatprep.subr.mxu0 0.0
    %1643 = vmatpush1.msra.mxu0 0.0
    %1644 = vmatprep.subr.mxu0 0.0
    %1645 = vmatpush1.msra.mxu0 0.0
    %1646 = vmatprep.subr.mxu0 0.0
    %1647 = vmatpush1.msra.mxu0 0.0
    %1648 = vmatprep.subr.mxu0 0.0
    %1649 = vmatpush1.msra.mxu0 0.0
    %1650 = vmatprep.subr.mxu0 0.0
    %1651 = vmatpush1.msra.mxu0 0.0
    %1652 = vmatprep.subr.mxu0 0.0
    %1653 = vmatpush1.msra.mxu0 0.0
    %1654 = vmatprep.subr.mxu0 0.0
    %1655 = vmatpush1.msra.mxu0 0.0
    %1656 = vmatprep.subr.mxu0 0.0
    %1657 = vmatpush1.msra.mxu0 0.0
    %1658 = vmatprep.subr.mxu0 0.0
    %1659 = vmatpush1.msra.mxu0 0.0
    %1660 = vmatprep.subr.mxu0 0.0
    %1661 = vmatpush1.msra.mxu0 0.0
    %1662 = vmatprep.subr.mxu0 0.0
    %1663 = vmatpush1.msra.mxu0 0.0
    %1664 = vmatprep.subr.mxu0 0.0
    %1665 = vmatpush1.msra.mxu0 0.0
    %1666 = vmatprep.subr.mxu0 0.0
    %1667 = vmatpush1.msra.mxu0 0.0
    %1668 = vmatprep.subr.mxu0 0.0
    %1669 = vmatpush1.msra.mxu0 0.0
    %1670 = vmatprep.subr.mxu0 0.0
    %1671 = vmatpush1.msra.mxu0 0.0
    %1672 = vmatprep.subr.mxu0 0.0
    %1673 = vmatpush1.msra.mxu0 0.0
    %1674 = vmatprep.subr.mxu0 0.0
    %1675 = vmatpush1.msra.mxu0 0.0
    %1676 = vmatprep.subr.mxu0 0.0
    %1677 = vmatpush1.msra.mxu0 0.0
    %1678 = vmatprep.subr.mxu0 0.0
    %1679 = vmatpush1.msra.mxu0 0.0
    %1680 = vmatprep.subr.mxu0 0.0
    %1681 = vmatpush1.msra.mxu0 0.0
    %1682 = vmatprep.subr.mxu0 0.0
    %1683 = vmatpush1.msra.mxu0 0.0
    %1684 = vmatprep.mubr.f32.mxu0 0.0
    %1685 = vmatmul.mubr.f32.gmra.mrb[0].mxu0 %v1618
    %v1686 = vpop.f32.mrb[0].mxu0
    %v1687 = vadd.f32 0.0, %v1686
    %v1688 = vpop.f32.mrb[0].mxu0
    %1689 = vdwg.mxu0
    %v1690 = vadd.f32 %v1202, %v1687
    %v1691 = vmul.f32 %v1690, 0.5
    %v1692 = vtanh.pop %v1691
    %v1693 = vadd.f32 %v1692, 1.0
    %v1694 = vmul.f32 %v1693, 0.5
    %v1695 = vtanh.pop %v1690
    %v1697 = vrot.slane %v1607, 6
    %v1699 = vmul.f32 %v1694, %v1697
    %1701 = vrot.lane.b32.xlu0 %v1695, 96
    %v1702 = vpop.permute.xlu0 %1701
    %v1704 = vmul.f32 %v1694, %v1702
    %1706 = vrot.lane.b32.xlu0 %v1704, 16
    %v1707 = vpop.permute.xlu0 %1706
    %v1709 = vadd.f32 %v1699, %v1707
    %v1710 = vtanh.pop %v1709
    %1712 = vrot.lane.b32.xlu0 %v1710, 32
    %v1713 = vpop.permute.xlu0 %1712
    %v1715 = vmul.f32 %v1694, %v1713
    %1717 = vrot.lane.b32.xlu0 %v1715, 80
    %v1718 = vpop.permute.xlu0 %1717
    %v1719 = vsel %vm170, %v1718, 0
    %1721 = vmatprep.subr.mxu0 0.0
    %1722 = vmatpush1.msra.mxu0 %v1205
    %1723 = vmatprep.subr.mxu0 0.0
    %1724 = vmatpush1.msra.mxu0 %v1206
    %1725 = vmatprep.subr.mxu0 0.0
    %1726 = vmatpush1.msra.mxu0 0.0
    %1727 = vmatprep.subr.mxu0 0.0
    %1728 = vmatpush1.msra.mxu0 0.0
    %1729 = vmatprep.subr.mxu0 0.0
    %1730 = vmatpush1.msra.mxu0 0.0
    %1731 = vmatprep.subr.mxu0 0.0
    %1732 = vmatpush1.msra.mxu0 0.0
    %1733 = vmatprep.subr.mxu0 0.0
    %1734 = vmatpush1.msra.mxu0 0.0
    %1735 = vmatprep.subr.mxu0 0.0
    %1736 = vmatpush1.msra.mxu0 0.0
    %1737 = vmatprep.subr.mxu0 0.0
    %1738 = vmatpush1.msra.mxu0 0.0
    %1739 = vmatprep.subr.mxu0 0.0
    %1740 = vmatpush1.msra.mxu0 0.0
    %1741 = vmatprep.subr.mxu0 0.0
    %1742 = vmatpush1.msra.mxu0 0.0
    %1743 = vmatprep.subr.mxu0 0.0
    %1744 = vmatpush1.msra.mxu0 0.0
    %1745 = vmatprep.subr.mxu0 0.0
    %1746 = vmatpush1.msra.mxu0 0.0
    %1747 = vmatprep.subr.mxu0 0.0
    %1748 = vmatpush1.msra.mxu0 0.0
    %1749 = vmatprep.subr.mxu0 0.0
    %1750 = vmatpush1.msra.mxu0 0.0
    %1751 = vmatprep.subr.mxu0 0.0
    %1752 = vmatpush1.msra.mxu0 0.0
    %1753 = vmatprep.subr.mxu0 0.0
    %1754 = vmatpush1.msra.mxu0 0.0
    %1755 = vmatprep.subr.mxu0 0.0
    %1756 = vmatpush1.msra.mxu0 0.0
    %1757 = vmatprep.subr.mxu0 0.0
    %1758 = vmatpush1.msra.mxu0 0.0
    %1759 = vmatprep.subr.mxu0 0.0
    %1760 = vmatpush1.msra.mxu0 0.0
    %1761 = vmatprep.subr.mxu0 0.0
    %1762 = vmatpush1.msra.mxu0 0.0
    %1763 = vmatprep.subr.mxu0 0.0
    %1764 = vmatpush1.msra.mxu0 0.0
    %1765 = vmatprep.subr.mxu0 0.0
    %1766 = vmatpush1.msra.mxu0 0.0
    %1767 = vmatprep.subr.mxu0 0.0
    %1768 = vmatpush1.msra.mxu0 0.0
    %1769 = vmatprep.subr.mxu0 0.0
    %1770 = vmatpush1.msra.mxu0 0.0
    %1771 = vmatprep.subr.mxu0 0.0
    %1772 = vmatpush1.msra.mxu0 0.0
    %1773 = vmatprep.subr.mxu0 0.0
    %1774 = vmatpush1.msra.mxu0 0.0
    %1775 = vmatprep.subr.mxu0 0.0
    %1776 = vmatpush1.msra.mxu0 0.0
    %1777 = vmatprep.subr.mxu0 0.0
    %1778 = vmatpush1.msra.mxu0 0.0
    %1779 = vmatprep.subr.mxu0 0.0
    %1780 = vmatpush1.msra.mxu0 0.0
    %1781 = vmatprep.subr.mxu0 0.0
    %1782 = vmatpush1.msra.mxu0 0.0
    %1783 = vmatprep.subr.mxu0 0.0
    %1784 = vmatpush1.msra.mxu0 0.0
    %1785 = vmatprep.mubr.f32.mxu0 0.0
    %1786 = vmatmul.mubr.f32.gmra.mrb[0].mxu0 %v1719
    %v1787 = vpop.f32.mrb[0].mxu0
    %v1788 = vadd.f32 0.0, %v1787
    %v1789 = vpop.f32.mrb[0].mxu0
    %1790 = vdwg.mxu0
    %v1792 = vrot.slane %v1788, 6
    %v1794 = vadd.f32 %v1202, %v1792
    %v1795 = vmul.f32 %v1794, 0.5
    %v1796 = vtanh.pop %v1795
    %v1797 = vadd.f32 %v1796, 1.0
    %v1798 = vmul.f32 %v1797, 0.5
    %v1799 = vtanh.pop %v1794
    %v1801 = vrot.slane %v1709, 6
    %v1803 = vmul.f32 %v1798, %v1801
    %1805 = vrot.lane.b32.xlu0 %v1799, 96
    %v1806 = vpop.permute.xlu0 %1805
    %v1808 = vmul.f32 %v1798, %v1806
    %1810 = vrot.lane.b32.xlu0 %v1808, 16
    %v1811 = vpop.permute.xlu0 %1810
    %v1813 = vadd.f32 %v1803, %v1811
    %v1814 = vtanh.pop %v1813
    %1816 = vrot.lane.b32.xlu0 %v1814, 32
    %v1817 = vpop.permute.xlu0 %1816
    %v1819 = vmul.f32 %v1798, %v1817
    %v1821 = vrot.slane %v1819, 2
    %1822 = vrot.lane.b32.xlu0 %v1821, 80
    %v1823 = vpop.permute.xlu0 %1822
    %v1824 = vsel %vm170, %v1823, 0
    %1826 = vmatprep.subr.mxu0 0.0
    %1827 = vmatpush1.msra.mxu0 %v1205
    %1828 = vmatprep.subr.mxu0 0.0
    %1829 = vmatpush1.msra.mxu0 %v1206
    %1830 = vmatprep.subr.mxu0 0.0
    %1831 = vmatpush1.msra.mxu0 0.0
    %1832 = vmatprep.subr.mxu0 0.0
    %1833 = vmatpush1.msra.mxu0 0.0
    %1834 = vmatprep.subr.mxu0 0.0
    %1835 = vmatpush1.msra.mxu0 0.0
    %1836 = vmatprep.subr.mxu0 0.0
    %1837 = vmatpush1.msra.mxu0 0.0
    %1838 = vmatprep.subr.mxu0 0.0
    %1839 = vmatpush1.msra.mxu0 0.0
    %1840 = vmatprep.subr.mxu0 0.0
    %1841 = vmatpush1.msra.mxu0 0.0
    %1842 = vmatprep.subr.mxu0 0.0
    %1843 = vmatpush1.msra.mxu0 0.0
    %1844 = vmatprep.subr.mxu0 0.0
    %1845 = vmatpush1.msra.mxu0 0.0
    %1846 = vmatprep.subr.mxu0 0.0
    %1847 = vmatpush1.msra.mxu0 0.0
    %1848 = vmatprep.subr.mxu0 0.0
    %1849 = vmatpush1.msra.mxu0 0.0
    %1850 = vmatprep.subr.mxu0 0.0
    %1851 = vmatpush1.msra.mxu0 0.0
    %1852 = vmatprep.subr.mxu0 0.0
    %1853 = vmatpush1.msra.mxu0 0.0
    %1854 = vmatprep.subr.mxu0 0.0
    %1855 = vmatpush1.msra.mxu0 0.0
    %1856 = vmatprep.subr.mxu0 0.0
    %1857 = vmatpush1.msra.mxu0 0.0
    %1858 = vmatprep.subr.mxu0 0.0
    %1859 = vmatpush1.msra.mxu0 0.0
    %1860 = vmatprep.subr.mxu0 0.0
    %1861 = vmatpush1.msra.mxu0 0.0
    %1862 = vmatprep.subr.mxu0 0.0
    %1863 = vmatpush1.msra.mxu0 0.0
    %1864 = vmatprep.subr.mxu0 0.0
    %1865 = vmatpush1.msra.mxu0 0.0
    %1866 = vmatprep.subr.mxu0 0.0
    %1867 = vmatpush1.msra.mxu0 0.0
    %1868 = vmatprep.subr.mxu0 0.0
    %1869 = vmatpush1.msra.mxu0 0.0
    %1870 = vmatprep.subr.mxu0 0.0
    %1871 = vmatpush1.msra.mxu0 0.0
    %1872 = vmatprep.subr.mxu0 0.0
    %1873 = vmatpush1.msra.mxu0 0.0
    %1874 = vmatprep.subr.mxu0 0.0
    %1875 = vmatpush1.msra.mxu0 0.0
    %1876 = vmatprep.subr.mxu0 0.0
    %1877 = vmatpush1.msra.mxu0 0.0
    %1878 = vmatprep.subr.mxu0 0.0
    %1879 = vmatpush1.msra.mxu0 0.0
    %1880 = vmatprep.subr.mxu0 0.0
    %1881 = vmatpush1.msra.mxu0 0.0
    %1882 = vmatprep.subr.mxu0 0.0
    %1883 = vmatpush1.msra.mxu0 0.0
    %1884 = vmatprep.subr.mxu0 0.0
    %1885 = vmatpush1.msra.mxu0 0.0
    %1886 = vmatprep.subr.mxu0 0.0
    %1887 = vmatpush1.msra.mxu0 0.0
    %1888 = vmatprep.subr.mxu0 0.0
    %1889 = vmatpush1.msra.mxu0 0.0
    %1890 = vmatprep.mubr.f32.mxu0 0.0
    %1891 = vmatmul.mubr.f32.gmra.mrb[0].mxu0 %v1824
    %v1892 = vpop.f32.mrb[0].mxu0
    %v1893 = vadd.f32 0.0, %v1892
    %v1894 = vpop.f32.mrb[0].mxu0
    %1895 = vdwg.mxu0
    %v1897 = vrot.slane %v1893, 4
    %v1899 = vadd.f32 %v1202, %v1897
    %v1900 = vmul.f32 %v1899, 0.5
    %v1901 = vtanh.pop %v1900
    %v1902 = vadd.f32 %v1901, 1.0
    %v1903 = vmul.f32 %v1902, 0.5
    %v1904 = vtanh.pop %v1899
    %v1906 = vrot.slane %v1813, 6
    %v1908 = vmul.f32 %v1903, %v1906
    %1910 = vrot.lane.b32.xlu0 %v1904, 96
    %v1911 = vpop.permute.xlu0 %1910
    %v1913 = vmul.f32 %v1903, %v1911
    %1915 = vrot.lane.b32.xlu0 %v1913, 16
    %v1916 = vpop.permute.xlu0 %1915
    %v1918 = vadd.f32 %v1908, %v1916
    %v1919 = vtanh.pop %v1918
    %1921 = vrot.lane.b32.xlu0 %v1919, 32
    %v1922 = vpop.permute.xlu0 %1921
    %v1924 = vmul.f32 %v1903, %v1922
    %v1926 = vrot.slane %v1924, 4
    %1927 = vrot.lane.b32.xlu0 %v1926, 80
    %v1928 = vpop.permute.xlu0 %1927
    %v1929 = vsel %vm170, %v1928, 0
    %1931 = vmatprep.subr.mxu0 0.0
    %1932 = vmatpush1.msra.mxu0 %v1205
    %1933 = vmatprep.subr.mxu0 0.0
    %1934 = vmatpush1.msra.mxu0 %v1206
    %1935 = vmatprep.subr.mxu0 0.0
    %1936 = vmatpush1.msra.mxu0 0.0
    %1937 = vmatprep.subr.mxu0 0.0
    %1938 = vmatpush1.msra.mxu0 0.0
    %1939 = vmatprep.subr.mxu0 0.0
    %1940 = vmatpush1.msra.mxu0 0.0
    %1941 = vmatprep.subr.mxu0 0.0
    %1942 = vmatpush1.msra.mxu0 0.0
    %1943 = vmatprep.subr.mxu0 0.0
    %1944 = vmatpush1.msra.mxu0 0.0
    %1945 = vmatprep.subr.mxu0 0.0
    %1946 = vmatpush1.msra.mxu0 0.0
    %1947 = vmatprep.subr.mxu0 0.0
    %1948 = vmatpush1.msra.mxu0 0.0
    %1949 = vmatprep.subr.mxu0 0.0
    %1950 = vmatpush1.msra.mxu0 0.0
    %1951 = vmatprep.subr.mxu0 0.0
    %1952 = vmatpush1.msra.mxu0 0.0
    %1953 = vmatprep.subr.mxu0 0.0
    %1954 = vmatpush1.msra.mxu0 0.0
    %1955 = vmatprep.subr.mxu0 0.0
    %1956 = vmatpush1.msra.mxu0 0.0
    %1957 = vmatprep.subr.mxu0 0.0
    %1958 = vmatpush1.msra.mxu0 0.0
    %1959 = vmatprep.subr.mxu0 0.0
    %1960 = vmatpush1.msra.mxu0 0.0
    %1961 = vmatprep.subr.mxu0 0.0
    %1962 = vmatpush1.msra.mxu0 0.0
    %1963 = vmatprep.subr.mxu0 0.0
    %1964 = vmatpush1.msra.mxu0 0.0
    %1965 = vmatprep.subr.mxu0 0.0
    %1966 = vmatpush1.msra.mxu0 0.0
    %1967 = vmatprep.subr.mxu0 0.0
    %1968 = vmatpush1.msra.mxu0 0.0
    %1969 = vmatprep.subr.mxu0 0.0
    %1970 = vmatpush1.msra.mxu0 0.0
    %1971 = vmatprep.subr.mxu0 0.0
    %1972 = vmatpush1.msra.mxu0 0.0
    %1973 = vmatprep.subr.mxu0 0.0
    %1974 = vmatpush1.msra.mxu0 0.0
    %1975 = vmatprep.subr.mxu0 0.0
    %1976 = vmatpush1.msra.mxu0 0.0
    %1977 = vmatprep.subr.mxu0 0.0
    %1978 = vmatpush1.msra.mxu0 0.0
    %1979 = vmatprep.subr.mxu0 0.0
    %1980 = vmatpush1.msra.mxu0 0.0
    %1981 = vmatprep.subr.mxu0 0.0
    %1982 = vmatpush1.msra.mxu0 0.0
    %1983 = vmatprep.subr.mxu0 0.0
    %1984 = vmatpush1.msra.mxu0 0.0
    %1985 = vmatprep.subr.mxu0 0.0
    %1986 = vmatpush1.msra.mxu0 0.0
    %1987 = vmatprep.subr.mxu0 0.0
    %1988 = vmatpush1.msra.mxu0 0.0
    %1989 = vmatprep.subr.mxu0 0.0
    %1990 = vmatpush1.msra.mxu0 0.0
    %1991 = vmatprep.subr.mxu0 0.0
    %1992 = vmatpush1.msra.mxu0 0.0
    %1993 = vmatprep.subr.mxu0 0.0
    %1994 = vmatpush1.msra.mxu0 0.0
    %1995 = vmatprep.mubr.f32.mxu0 0.0
    %1996 = vmatmul.mubr.f32.gmra.mrb[0].mxu0 %v1929
    %v1997 = vpop.f32.mrb[0].mxu0
    %v1998 = vadd.f32 0.0, %v1997
    %v1999 = vpop.f32.mrb[0].mxu0
    %2000 = vdwg.mxu0
    %v2002 = vrot.slane %v1998, 2
    %v2004 = vadd.f32 %v1202, %v2002
    %v2005 = vmul.f32 %v2004, 0.5
    %v2006 = vtanh.pop %v2005
    %v2007 = vadd.f32 %v2006, 1.0
    %v2008 = vmul.f32 %v2007, 0.5
    %v2009 = vtanh.pop %v2004
    %v2011 = vrot.slane %v1918, 6
    %v2013 = vmul.f32 %v2008, %v2011
    %2015 = vrot.lane.b32.xlu0 %v2009, 96
    %v2016 = vpop.permute.xlu0 %2015
    %v2018 = vmul.f32 %v2008, %v2016
    %2020 = vrot.lane.b32.xlu0 %v2018, 16
    %v2021 = vpop.permute.xlu0 %2020
    %v2023 = vadd.f32 %v2013, %v2021
    %v2024 = vtanh.pop %v2023
    %2026 = vrot.lane.b32.xlu0 %v2024, 32
    %v2027 = vpop.permute.xlu0 %2026
    %v2029 = vmul.f32 %v2008, %v2027
    %v2030 = vld [vmem:[%s9] sm:$0xff]
    %v2031 = vld [vmem:[%s9 + $0x8] sm:$0xff]
    %v2032 = vld [vmem:[%s9 + $0x10] sm:$0xff]
    %v2033 = vld [vmem:[%s9 + $0x18] sm:$0xff]
    %v2034 = vld [vmem:[%s9 + $0x20] sm:$0xff]
    %v2035 = vld [vmem:[%s9 + $0x28] sm:$0xff]
    %v2036 = vld [vmem:[%s9 + $0x30] sm:$0xff]
    %v2037 = vld [vmem:[%s9 + $0x38] sm:$0xff]
    %v2038 = vtanh.pop %v1107
    %v2039 = vrot.slane %v1102, 6
    %2040 = vrot.lane.b32.xlu0 %v2039, 112
    %v2041 = vpop.permute.xlu0 %2040
    %v2042 = vsel %vm170, %v2041, 0
    %2044 = vmatprep.subr.mxu0 0.0
    %2045 = vmatpush1.msra.mxu0 %v2032
    %2046 = vmatprep.subr.mxu0 0.0
    %2047 = vmatpush1.msra.mxu0 %v2033
    %2048 = vmatprep.subr.mxu0 0.0
    %2049 = vmatpush1.msra.mxu0 0.0
    %2050 = vmatprep.subr.mxu0 0.0
    %2051 = vmatpush1.msra.mxu0 0.0
    %2052 = vmatprep.subr.mxu0 0.0
    %2053 = vmatpush1.msra.mxu0 0.0
    %2054 = vmatprep.subr.mxu0 0.0
    %2055 = vmatpush1.msra.mxu0 0.0
    %2056 = vmatprep.subr.mxu0 0.0
    %2057 = vmatpush1.msra.mxu0 0.0
    %2058 = vmatprep.subr.mxu0 0.0
    %2059 = vmatpush1.msra.mxu0 0.0
    %2060 = vmatprep.subr.mxu0 0.0
    %2061 = vmatpush1.msra.mxu0 0.0
    %2062 = vmatprep.subr.mxu0 0.0
    %2063 = vmatpush1.msra.mxu0 0.0
    %2064 = vmatprep.subr.mxu0 0.0
    %2065 = vmatpush1.msra.mxu0 0.0
    %2066 = vmatprep.subr.mxu0 0.0
    %2067 = vmatpush1.msra.mxu0 0.0
    %2068 = vmatprep.subr.mxu0 0.0
    %2069 = vmatpush1.msra.mxu0 0.0
    %2070 = vmatprep.subr.mxu0 0.0
    %2071 = vmatpush1.msra.mxu0 0.0
    %2072 = vmatprep.subr.mxu0 0.0
    %2073 = vmatpush1.msra.mxu0 0.0
    %2074 = vmatprep.subr.mxu0 0.0
    %2075 = vmatpush1.msra.mxu0 0.0
    %2076 = vmatprep.subr.mxu0 0.0
    %2077 = vmatpush1.msra.mxu0 0.0
    %2078 = vmatprep.subr.mxu0 0.0
    %2079 = vmatpush1.msra.mxu0 0.0
    %2080 = vmatprep.subr.mxu0 0.0
    %2081 = vmatpush1.msra.mxu0 0.0
    %2082 = vmatprep.subr.mxu0 0.0
    %2083 = vmatpush1.msra.mxu0 0.0
    %2084 = vmatprep.subr.mxu0 0.0
    %2085 = vmatpush1.msra.mxu0 0.0
    %2086 = vmatprep.subr.mxu0 0.0
    %2087 = vmatpush1.msra.mxu0 0.0
    %2088 = vmatprep.subr.mxu0 0.0
    %2089 = vmatpush1.msra.mxu0 0.0
    %2090 = vmatprep.subr.mxu0 0.0
    %2091 = vmatpush1.msra.mxu0 0.0
    %2092 = vmatprep.subr.mxu0 0.0
    %2093 = vmatpush1.msra.mxu0 0.0
    %2094 = vmatprep.subr.mxu0 0.0
    %2095 = vmatpush1.msra.mxu0 0.0
    %2096 = vmatprep.subr.mxu0 0.0
    %2097 = vmatpush1.msra.mxu0 0.0
    %2098 = vmatprep.subr.mxu0 0.0
    %2099 = vmatpush1.msra.mxu0 0.0
    %2100 = vmatprep.subr.mxu0 0.0
    %2101 = vmatpush1.msra.mxu0 0.0
    %2102 = vmatprep.subr.mxu0 0.0
    %2103 = vmatpush1.msra.mxu0 0.0
    %2104 = vmatprep.subr.mxu0 0.0
    %2105 = vmatpush1.msra.mxu0 0.0
    %2106 = vmatprep.subr.mxu0 0.0
    %2107 = vmatpush1.msra.mxu0 0.0
    %2108 = vmatprep.mubr.f32.mxu0 0.0
    %2109 = vmatmul.mubr.f32.gmra.mrb[0].mxu0 %v2042
    %v2110 = vpop.f32.mrb[0].mxu0
    %v2111 = vadd.f32 0.0, %v2110
    %v2112 = vpop.f32.mrb[0].mxu0
    %2113 = vdwg.mxu0
    %v2115 = vrot.slane %v2038, 6
    %2116 = vrot.lane.b32.xlu0 %v2115, 80
    %v2117 = vpop.permute.xlu0 %2116
    %v2118 = vsel %vm170, %v2117, 0
    %2120 = vmatprep.subr.mxu0 0.0
    %2121 = vmatpush1.msra.mxu0 %v2030
    %2122 = vmatprep.subr.mxu0 0.0
    %2123 = vmatpush1.msra.mxu0 %v2031
    %2124 = vmatprep.subr.mxu0 0.0
    %2125 = vmatpush1.msra.mxu0 0.0
    %2126 = vmatprep.subr.mxu0 0.0
    %2127 = vmatpush1.msra.mxu0 0.0
    %2128 = vmatprep.subr.mxu0 0.0
    %2129 = vmatpush1.msra.mxu0 0.0
    %2130 = vmatprep.subr.mxu0 0.0
    %2131 = vmatpush1.msra.mxu0 0.0
    %2132 = vmatprep.subr.mxu0 0.0
    %2133 = vmatpush1.msra.mxu0 0.0
    %2134 = vmatprep.subr.mxu0 0.0
    %2135 = vmatpush1.msra.mxu0 0.0
    %2136 = vmatprep.subr.mxu0 0.0
    %2137 = vmatpush1.msra.mxu0 0.0
    %2138 = vmatprep.subr.mxu0 0.0
    %2139 = vmatpush1.msra.mxu0 0.0
    %2140 = vmatprep.subr.mxu0 0.0
    %2141 = vmatpush1.msra.mxu0 0.0
    %2142 = vmatprep.subr.mxu0 0.0
    %2143 = vmatpush1.msra.mxu0 0.0
    %2144 = vmatprep.subr.mxu0 0.0
    %2145 = vmatpush1.msra.mxu0 0.0
    %2146 = vmatprep.subr.mxu0 0.0
    %2147 = vmatpush1.msra.mxu0 0.0
    %2148 = vmatprep.subr.mxu0 0.0
    %2149 = vmatpush1.msra.mxu0 0.0
    %2150 = vmatprep.subr.mxu0 0.0
    %2151 = vmatpush1.msra.mxu0 0.0
    %2152 = vmatprep.subr.mxu0 0.0
    %2153 = vmatpush1.msra.mxu0 0.0
    %2154 = vmatprep.subr.mxu0 0.0
    %2155 = vmatpush1.msra.mxu0 0.0
    %2156 = vmatprep.subr.mxu0 0.0
    %2157 = vmatpush1.msra.mxu0 0.0
    %2158 = vmatprep.subr.mxu0 0.0
    %2159 = vmatpush1.msra.mxu0 0.0
    %2160 = vmatprep.subr.mxu0 0.0
    %2161 = vmatpush1.msra.mxu0 0.0
    %2162 = vmatprep.subr.mxu0 0.0
    %2163 = vmatpush1.msra.mxu0 0.0
    %2164 = vmatprep.subr.mxu0 0.0
    %2165 = vmatpush1.msra.mxu0 0.0
    %2166 = vmatprep.subr.mxu0 0.0
    %2167 = vmatpush1.msra.mxu0 0.0
    %2168 = vmatprep.subr.mxu0 0.0
    %2169 = vmatpush1.msra.mxu0 0.0
    %2170 = vmatprep.subr.mxu0 0.0
    %2171 = vmatpush1.msra.mxu0 0.0
    %2172 = vmatprep.subr.mxu0 0.0
    %2173 = vmatpush1.msra.mxu0 0.0
    %2174 = vmatprep.subr.mxu0 0.0
    %2175 = vmatpush1.msra.mxu0 0.0
    %2176 = vmatprep.subr.mxu0 0.0
    %2177 = vmatpush1.msra.mxu0 0.0
    %2178 = vmatprep.subr.mxu0 0.0
    %2179 = vmatpush1.msra.mxu0 0.0
    %2180 = vmatprep.subr.mxu0 0.0
    %2181 = vmatpush1.msra.mxu0 0.0
    %2182 = vmatprep.subr.mxu0 0.0
    %2183 = vmatpush1.msra.mxu0 0.0
    %2184 = vmatprep.mubr.f32.mxu0 0.0
    %2185 = vmatmul.mubr.f32.gmra.mrb[0].mxu0 %v2118
    %v2186 = vpop.f32.mrb[0].mxu0
    %v2187 = vadd.f32 %v2111, %v2186
    %v2188 = vpop.f32.mrb[0].mxu0
    %2189 = vdwg.mxu0
    %v2190 = vtanh.pop %v2029
    %v2192 = vrot.slane %v2190, 6
    %2193 = vrot.lane.b32.xlu0 %v2192, 80
    %v2194 = vpop.permute.xlu0 %2193
    %v2195 = vsel %vm170, %v2194, 0
    %2197 = vmatprep.subr.mxu0 0.0
    %2198 = vmatpush1.msra.mxu0 %v2034
    %2199 = vmatprep.subr.mxu0 0.0
    %2200 = vmatpush1.msra.mxu0 %v2035
    %2201 = vmatprep.subr.mxu0 0.0
    %2202 = vmatpush1.msra.mxu0 0.0
    %2203 = vmatprep.subr.mxu0 0.0
    %2204 = vmatpush1.msra.mxu0 0.0
    %2205 = vmatprep.subr.mxu0 0.0
    %2206 = vmatpush1.msra.mxu0 0.0
    %2207 = vmatprep.subr.mxu0 0.0
    %2208 = vmatpush1.msra.mxu0 0.0
    %2209 = vmatprep.subr.mxu0 0.0
    %2210 = vmatpush1.msra.mxu0 0.0
    %2211 = vmatprep.subr.mxu0 0.0
    %2212 = vmatpush1.msra.mxu0 0.0
    %2213 = vmatprep.subr.mxu0 0.0
    %2214 = vmatpush1.msra.mxu0 0.0
    %2215 = vmatprep.subr.mxu0 0.0
    %2216 = vmatpush1.msra.mxu0 0.0
    %2217 = vmatprep.subr.mxu0 0.0
    %2218 = vmatpush1.msra.mxu0 0.0
    %2219 = vmatprep.subr.mxu0 0.0
    %2220 = vmatpush1.msra.mxu0 0.0
    %2221 = vmatprep.subr.mxu0 0.0
    %2222 = vmatpush1.msra.mxu0 0.0
    %2223 = vmatprep.subr.mxu0 0.0
    %2224 = vmatpush1.msra.mxu0 0.0
    %2225 = vmatprep.subr.mxu0 0.0
    %2226 = vmatpush1.msra.mxu0 0.0
    %2227 = vmatprep.subr.mxu0 0.0
    %2228 = vmatpush1.msra.mxu0 0.0
    %2229 = vmatprep.subr.mxu0 0.0
    %2230 = vmatpush1.msra.mxu0 0.0
    %2231 = vmatprep.subr.mxu0 0.0
    %2232 = vmatpush1.msra.mxu0 0.0
    %2233 = vmatprep.subr.mxu0 0.0
    %2234 = vmatpush1.msra.mxu0 0.0
    %2235 = vmatprep.subr.mxu0 0.0
    %2236 = vmatpush1.msra.mxu0 0.0
    %2237 = vmatprep.subr.mxu0 0.0
    %2238 = vmatpush1.msra.mxu0 0.0
    %2239 = vmatprep.subr.mxu0 0.0
    %2240 = vmatpush1.msra.mxu0 0.0
    %2241 = vmatprep.subr.mxu0 0.0
    %2242 = vmatpush1.msra.mxu0 0.0
    %2243 = vmatprep.subr.mxu0 0.0
    %2244 = vmatpush1.msra.mxu0 0.0
    %2245 = vmatprep.subr.mxu0 0.0
    %2246 = vmatpush1.msra.mxu0 0.0
    %2247 = vmatprep.subr.mxu0 0.0
    %2248 = vmatpush1.msra.mxu0 0.0
    %2249 = vmatprep.subr.mxu0 0.0
    %2250 = vmatpush1.msra.mxu0 0.0
    %2251 = vmatprep.subr.mxu0 0.0
    %2252 = vmatpush1.msra.mxu0 0.0
    %2253 = vmatprep.subr.mxu0 0.0
    %2254 = vmatpush1.msra.mxu0 0.0
    %2255 = vmatprep.subr.mxu0 0.0
    %2256 = vmatpush1.msra.mxu0 0.0
    %2257 = vmatprep.subr.mxu0 0.0
    %2258 = vmatpush1.msra.mxu0 0.0
    %2259 = vmatprep.subr.mxu0 0.0
    %2260 = vmatpush1.msra.mxu0 0.0
    %2261 = vmatprep.mubr.f32.mxu0 0.0
    %2262 = vmatmul.mubr.f32.gmra.mrb[0].mxu0 %v2195
    %v2263 = vpop.f32.mrb[0].mxu0
    %v2264 = vadd.f32 0.0, %v2263
    %v2265 = vpop.f32.mrb[0].mxu0
    %2266 = vdwg.mxu0
    %v2267 = vadd.f32 %v2187, %v2264
    %v2268 = vrot.slane %v2024, 6
    %2269 = vrot.lane.b32.xlu0 %v2268, 112
    %v2270 = vpop.permute.xlu0 %2269
    %v2271 = vsel %vm170, %v2270, 0
    %2273 = vmatprep.subr.mxu0 0.0
    %2274 = vmatpush1.msra.mxu0 %v2036
    %2275 = vmatprep.subr.mxu0 0.0
    %2276 = vmatpush1.msra.mxu0 %v2037
    %2277 = vmatprep.subr.mxu0 0.0
    %2278 = vmatpush1.msra.mxu0 0.0
    %2279 = vmatprep.subr.mxu0 0.0
    %2280 = vmatpush1.msra.mxu0 0.0
    %2281 = vmatprep.subr.mxu0 0.0
    %2282 = vmatpush1.msra.mxu0 0.0
    %2283 = vmatprep.subr.mxu0 0.0
    %2284 = vmatpush1.msra.mxu0 0.0
    %2285 = vmatprep.subr.mxu0 0.0
    %2286 = vmatpush1.msra.mxu0 0.0
    %2287 = vmatprep.subr.mxu0 0.0
    %2288 = vmatpush1.msra.mxu0 0.0
    %2289 = vmatprep.subr.mxu0 0.0
    %2290 = vmatpush1.msra.mxu0 0.0
    %2291 = vmatprep.subr.mxu0 0.0
    %2292 = vmatpush1.msra.mxu0 0.0
    %2293 = vmatprep.subr.mxu0 0.0
    %2294 = vmatpush1.msra.mxu0 0.0
    %2295 = vmatprep.subr.mxu0 0.0
    %2296 = vmatpush1.msra.mxu0 0.0
    %2297 = vmatprep.subr.mxu0 0.0
    %2298 = vmatpush1.msra.mxu0 0.0
    %2299 = vmatprep.subr.mxu0 0.0
    %2300 = vmatpush1.msra.mxu0 0.0
    %2301 = vmatprep.subr.mxu0 0.0
    %2302 = vmatpush1.msra.mxu0 0.0
    %2303 = vmatprep.subr.mxu0 0.0
    %2304 = vmatpush1.msra.mxu0 0.0
    %2305 = vmatprep.subr.mxu0 0.0
    %2306 = vmatpush1.msra.mxu0 0.0
    %2307 = vmatprep.subr.mxu0 0.0
    %2308 = vmatpush1.msra.mxu0 0.0
    %2309 = vmatprep.subr.mxu0 0.0
    %2310 = vmatpush1.msra.mxu0 0.0
    %2311 = vmatprep.subr.mxu0 0.0
    %2312 = vmatpush1.msra.mxu0 0.0
    %2313 = vmatprep.subr.mxu0 0.0
    %2314 = vmatpush1.msra.mxu0 0.0
    %2315 = vmatprep.subr.mxu0 0.0
    %2316 = vmatpush1.msra.mxu0 0.0
    %2317 = vmatprep.subr.mxu0 0.0
    %2318 = vmatpush1.msra.mxu0 0.0
    %2319 = vmatprep.subr.mxu0 0.0
    %2320 = vmatpush1.msra.mxu0 0.0
    %2321 = vmatprep.subr.mxu0 0.0
    %2322 = vmatpush1.msra.mxu0 0.0
    %2323 = vmatprep.subr.mxu0 0.0
    %2324 = vmatpush1.msra.mxu0 0.0
    %2325 = vmatprep.subr.mxu0 0.0
    %2326 = vmatpush1.msra.mxu0 0.0
    %2327 = vmatprep.subr.mxu0 0.0
    %2328 = vmatpush1.msra.mxu0 0.0
    %2329 = vmatprep.subr.mxu0 0.0
    %2330 = vmatpush1.msra.mxu0 0.0
    %2331 = vmatprep.subr.mxu0 0.0
    %2332 = vmatpush1.msra.mxu0 0.0
    %2333 = vmatprep.subr.mxu0 0.0
    %2334 = vmatpush1.msra.mxu0 0.0
    %2335 = vmatprep.subr.mxu0 0.0
    %2336 = vmatpush1.msra.mxu0 0.0
    %2337 = vmatprep.mubr.f32.mxu0 0.0
    %2338 = vmatmul.mubr.f32.gmra.mrb[0].mxu0 %v2271
    %v2339 = vpop.f32.mrb[0].mxu0
    %v2340 = vadd.f32 0.0, %v2339
    %v2341 = vpop.f32.mrb[0].mxu0
    %2342 = vdwg.mxu0
    %v2343 = vadd.f32 %v2267, %v2340
    %v2344 = vld [vmem:[%s10] sm:$0x1]
    %v2346 = vlaneseq
    %v2347 = vshrl.u32 %v2346, 7
    %v2348 = vsub.s32 0, %v2347
    %v2349 = vrot.slane %v2344, %v2348
    %v2351 = vadd.f32 %v2343, %v2349
    %v2352 = vld [vmem:[%s1] sm:$0xff]
    %v2353 = vld [vmem:[%s1 + $0x8] sm:$0xff]
    %v2354 = vld [vmem:[%s1 + $0x10] sm:$0xff]
    %v2355 = vld [vmem:[%s1 + $0x18] sm:$0xff]
    %v2356 = vld [vmem:[%s11] sm:$0xff]
    %v2357 = vld [vmem:[%s11 + $0x8] sm:$0xff]
    %v2358 = vld [vmem:[%s11 + $0x10] sm:$0xff]
    %v2359 = vld [vmem:[%s11 + $0x18] sm:$0xff]
    %v2360 = vld [vmem:[%s12] sm:$0x1]
    %v2362 = vlaneseq
    %v2363 = vshrl.u32 %v2362, 7
    %v2364 = vsub.s32 0, %v2363
    %v2365 = vrot.slane %v2360, %v2364
    %vm2367 = vcmask 261120
    %v2369 = vsel %vm2367, %v2352, 0
    %v2372 = vsel %vm2367, %v2353, 0
    %v2375 = vsel %vm2367, %v2354, 0
    %v2378 = vsel %vm2367, %v2355, 0
    %2380 = vmatprep.subr.mxu0 0.0
    %2381 = vmatpush1.msra.mxu0 %v2356
    %2382 = vmatprep.subr.mxu0 0.0
    %2383 = vmatpush1.msra.mxu0 %v2357
    %2384 = vmatprep.subr.mxu0 0.0
    %2385 = vmatpush1.msra.mxu0 %v2358
    %2386 = vmatprep.subr.mxu0 0.0
    %2387 = vmatpush1.msra.mxu0 %v2359
    %2388 = vmatprep.subr.mxu0 0.0
    %2389 = vmatpush1.msra.mxu0 0.0
    %2390 = vmatprep.subr.mxu0 0.0
    %2391 = vmatpush1.msra.mxu0 0.0
    %2392 = vmatprep.subr.mxu0 0.0
    %2393 = vmatpush1.msra.mxu0 0.0
    %2394 = vmatprep.subr.mxu0 0.0
    %2395 = vmatpush1.msra.mxu0 0.0
    %2396 = vmatprep.subr.mxu0 0.0
    %2397 = vmatpush1.msra.mxu0 0.0
    %2398 = vmatprep.subr.mxu0 0.0
    %2399 = vmatpush1.msra.mxu0 0.0
    %2400 = vmatprep.subr.mxu0 0.0
    %2401 = vmatpush1.msra.mxu0 0.0
    %2402 = vmatprep.subr.mxu0 0.0
    %2403 = vmatpush1.msra.mxu0 0.0
    %2404 = vmatprep.subr.mxu0 0.0
    %2405 = vmatpush1.msra.mxu0 0.0
    %2406 = vmatprep.subr.mxu0 0.0
    %2407 = vmatpush1.msra.mxu0 0.0
    %2408 = vmatprep.subr.mxu0 0.0
    %2409 = vmatpush1.msra.mxu0 0.0
    %2410 = vmatprep.subr.mxu0 0.0
    %2411 = vmatpush1.msra.mxu0 0.0
    %2412 = vmatprep.subr.mxu0 0.0
    %2413 = vmatpush1.msra.mxu0 0.0
    %2414 = vmatprep.subr.mxu0 0.0
    %2415 = vmatpush1.msra.mxu0 0.0
    %2416 = vmatprep.subr.mxu0 0.0
    %2417 = vmatpush1.msra.mxu0 0.0
    %2418 = vmatprep.subr.mxu0 0.0
    %2419 = vmatpush1.msra.mxu0 0.0
    %2420 = vmatprep.subr.mxu0 0.0
    %2421 = vmatpush1.msra.mxu0 0.0
    %2422 = vmatprep.subr.mxu0 0.0
    %2423 = vmatpush1.msra.mxu0 0.0
    %2424 = vmatprep.subr.mxu0 0.0
    %2425 = vmatpush1.msra.mxu0 0.0
    %2426 = vmatprep.subr.mxu0 0.0
    %2427 = vmatpush1.msra.mxu0 0.0
    %2428 = vmatprep.subr.mxu0 0.0
    %2429 = vmatpush1.msra.mxu0 0.0
    %2430 = vmatprep.subr.mxu0 0.0
    %2431 = vmatpush1.msra.mxu0 0.0
    %2432 = vmatprep.subr.mxu0 0.0
    %2433 = vmatpush1.msra.mxu0 0.0
    %2434 = vmatprep.subr.mxu0 0.0
    %2435 = vmatpush1.msra.mxu0 0.0
    %2436 = vmatprep.subr.mxu0 0.0
    %2437 = vmatpush1.msra.mxu0 0.0
    %2438 = vmatprep.subr.mxu0 0.0
    %2439 = vmatpush1.msra.mxu0 0.0
    %2440 = vmatprep.subr.mxu0 0.0
    %2441 = vmatpush1.msra.mxu0 0.0
    %2442 = vmatprep.subr.mxu0 0.0
    %2443 = vmatpush1.msra.mxu0 0.0
    %2444 = vmatprep.mubr.f32.mxu0 0.0
    %2445 = vmatmul.mubr.f32.gmra.mrb[0].mxu0 %v2369
    %v2446 = vpop.f32.mrb[0].mxu0
    %v2447 = vadd.f32 %v2365, %v2446
    %v2448 = vpop.f32.mrb[0].mxu0
    %2449 = vmatprep.mubr.f32.mxu0 0.0
    %2450 = vmatmul.mubr.f32.gmra.mrb[0].mxu0 %v2372
    %v2451 = vpop.f32.mrb[0].mxu0
    %v2452 = vadd.f32 %v2365, %v2451
    %v2453 = vpop.f32.mrb[0].mxu0
    %2454 = vmatprep.mubr.f32.mxu0 0.0
    %2455 = vmatmul.mubr.f32.gmra.mrb[0].mxu0 %v2375
    %v2456 = vpop.f32.mrb[0].mxu0
    %v2457 = vadd.f32 %v2365, %v2456
    %v2458 = vpop.f32.mrb[0].mxu0
    %2459 = vmatprep.mubr.f32.mxu0 0.0
    %2460 = vmatmul.mubr.f32.gmra.mrb[0].mxu0 %v2378
    %v2461 = vpop.f32.mrb[0].mxu0
    %v2462 = vadd.f32 %v2365, %v2461
    %v2463 = vpop.f32.mrb[0].mxu0
    %2464 = vdwg.mxu0
    %v2465 = vtanh.pop %v2447
    %v2466 = vtanh.pop %v2452
    %v2467 = vtanh.pop %v2457
    %v2468 = vtanh.pop %v2462
    %v2469 = vld [vmem:[%s17] sm:$0x1]
    %v2470 = vld [vmem:[#allocation6] sm:$0x1]
    %v2471 = vld [vmem:[%s19] sm:$0x1]
    %v2472 = vld [vmem:[#allocation7] sm:$0x1]
    %v2473 = vld [vmem:[%s13] sm:$0xff]
    %v2474 = vld [vmem:[%s13 + $0x8] sm:$0xff]
    %v2475 = vld [vmem:[%s13 + $0x10] sm:$0xff]
    %v2476 = vld [vmem:[%s13 + $0x18] sm:$0xff]
    %v2477 = vld [vmem:[%s14] sm:$0x1]
    %v2479 = vlaneseq
    %v2480 = vshrl.u32 %v2479, 7
    %v2481 = vsub.s32 0, %v2480
    %v2482 = vrot.slane %v2477, %v2481
    %v2485 = vsel %vm2367, %v2351, 0
    %2487 = vmatprep.subr.mxu0 0.0
    %2488 = vmatpush1.msra.mxu0 %v2473
    %2489 = vmatprep.subr.mxu0 0.0
    %2490 = vmatpush1.msra.mxu0 %v2474
    %2491 = vmatprep.subr.mxu0 0.0
    %2492 = vmatpush1.msra.mxu0 %v2475
    %2493 = vmatprep.subr.mxu0 0.0
    %2494 = vmatpush1.msra.mxu0 %v2476
    %2495 = vmatprep.subr.mxu0 0.0
    %2496 = vmatpush1.msra.mxu0 0.0
    %2497 = vmatprep.subr.mxu0 0.0
    %2498 = vmatpush1.msra.mxu0 0.0
    %2499 = vmatprep.subr.mxu0 0.0
    %2500 = vmatpush1.msra.mxu0 0.0
    %2501 = vmatprep.subr.mxu0 0.0
    %2502 = vmatpush1.msra.mxu0 0.0
    %2503 = vmatprep.subr.mxu0 0.0
    %2504 = vmatpush1.msra.mxu0 0.0
    %2505 = vmatprep.subr.mxu0 0.0
    %2506 = vmatpush1.msra.mxu0 0.0
    %2507 = vmatprep.subr.mxu0 0.0
    %2508 = vmatpush1.msra.mxu0 0.0
    %2509 = vmatprep.subr.mxu0 0.0
    %2510 = vmatpush1.msra.mxu0 0.0
    %2511 = vmatprep.subr.mxu0 0.0
    %2512 = vmatpush1.msra.mxu0 0.0
    %2513 = vmatprep.subr.mxu0 0.0
    %2514 = vmatpush1.msra.mxu0 0.0
    %2515 = vmatprep.subr.mxu0 0.0
    %2516 = vmatpush1.msra.mxu0 0.0
    %2517 = vmatprep.subr.mxu0 0.0
    %2518 = vmatpush1.msra.mxu0 0.0
    %2519 = vmatprep.subr.mxu0 0.0
    %2520 = vmatpush1.msra.mxu0 0.0
    %2521 = vmatprep.subr.mxu0 0.0
    %2522 = vmatpush1.msra.mxu0 0.0
    %2523 = vmatprep.subr.mxu0 0.0
    %2524 = vmatpush1.msra.mxu0 0.0
    %2525 = vmatprep.subr.mxu0 0.0
    %2526 = vmatpush1.msra.mxu0 0.0
    %2527 = vmatprep.subr.mxu0 0.0
    %2528 = vmatpush1.msra.mxu0 0.0
    %2529 = vmatprep.subr.mxu0 0.0
    %2530 = vmatpush1.msra.mxu0 0.0
    %2531 = vmatprep.subr.mxu0 0.0
    %2532 = vmatpush1.msra.mxu0 0.0
    %2533 = vmatprep.subr.mxu0 0.0
    %2534 = vmatpush1.msra.mxu0 0.0
    %2535 = vmatprep.subr.mxu0 0.0
    %2536 = vmatpush1.msra.mxu0 0.0
    %2537 = vmatprep.subr.mxu0 0.0
    %2538 = vmatpush1.msra.mxu0 0.0
    %2539 = vmatprep.subr.mxu0 0.0
    %2540 = vmatpush1.msra.mxu0 0.0
    %2541 = vmatprep.subr.mxu0 0.0
    %2542 = vmatpush1.msra.mxu0 0.0
    %2543 = vmatprep.subr.mxu0 0.0
    %2544 = vmatpush1.msra.mxu0 0.0
    %2545 = vmatprep.subr.mxu0 0.0
    %2546 = vmatpush1.msra.mxu0 0.0
    %2547 = vmatprep.subr.mxu0 0.0
    %2548 = vmatpush1.msra.mxu0 0.0
    %2549 = vmatprep.subr.mxu0 0.0
    %2550 = vmatpush1.msra.mxu0 0.0
    %2551 = vmatprep.mubr.f32.mxu0 0.0
    %2552 = vmatmul.mubr.f32.gmra.mrb[0].mxu0 %v2485
    %v2553 = vpop.f32.mrb[0].mxu0
    %v2554 = vadd.f32 %v2482, %v2553
    %v2555 = vpop.f32.mrb[0].mxu0
    %2556 = vdwg.mxu0
    %v2557 = vld [vmem:[%s15] sm:$0xff]
    %v2558 = vld [vmem:[%s15 + $0x8] sm:$0xff]
    %v2559 = vld [vmem:[%s15 + $0x10] sm:$0xff]
    %v2560 = vld [vmem:[%s15 + $0x18] sm:$0xff]
    %v2562 = vsel %vm2367, %v2465, 0
    %v2565 = vsel %vm2367, %v2466, 0
    %v2568 = vsel %vm2367, %v2467, 0
    %v2571 = vsel %vm2367, %v2468, 0
    %2573 = vmatprep.subr.mxu0 0.0
    %2574 = vmatpush1.msra.mxu0 %v2557
    %2575 = vmatprep.subr.mxu0 0.0
    %2576 = vmatpush1.msra.mxu0 %v2558
    %2577 = vmatprep.subr.mxu0 0.0
    %2578 = vmatpush1.msra.mxu0 %v2559
    %2579 = vmatprep.subr.mxu0 0.0
    %2580 = vmatpush1.msra.mxu0 %v2560
    %2581 = vmatprep.subr.mxu0 0.0
    %2582 = vmatpush1.msra.mxu0 0.0
    %2583 = vmatprep.subr.mxu0 0.0
    %2584 = vmatpush1.msra.mxu0 0.0
    %2585 = vmatprep.subr.mxu0 0.0
    %2586 = vmatpush1.msra.mxu0 0.0
    %2587 = vmatprep.subr.mxu0 0.0
    %2588 = vmatpush1.msra.mxu0 0.0
    %2589 = vmatprep.subr.mxu0 0.0
    %2590 = vmatpush1.msra.mxu0 0.0
    %2591 = vmatprep.subr.mxu0 0.0
    %2592 = vmatpush1.msra.mxu0 0.0
    %2593 = vmatprep.subr.mxu0 0.0
    %2594 = vmatpush1.msra.mxu0 0.0
    %2595 = vmatprep.subr.mxu0 0.0
    %2596 = vmatpush1.msra.mxu0 0.0
    %2597 = vmatprep.subr.mxu0 0.0
    %2598 = vmatpush1.msra.mxu0 0.0
    %2599 = vmatprep.subr.mxu0 0.0
    %2600 = vmatpush1.msra.mxu0 0.0
    %2601 = vmatprep.subr.mxu0 0.0
    %2602 = vmatpush1.msra.mxu0 0.0
    %2603 = vmatprep.subr.mxu0 0.0
    %2604 = vmatpush1.msra.mxu0 0.0
    %2605 = vmatprep.subr.mxu0 0.0
    %2606 = vmatpush1.msra.mxu0 0.0
    %2607 = vmatprep.subr.mxu0 0.0
    %2608 = vmatpush1.msra.mxu0 0.0
    %2609 = vmatprep.subr.mxu0 0.0
    %2610 = vmatpush1.msra.mxu0 0.0
    %2611 = vmatprep.subr.mxu0 0.0
    %2612 = vmatpush1.msra.mxu0 0.0
    %2613 = vmatprep.subr.mxu0 0.0
    %2614 = vmatpush1.msra.mxu0 0.0
    %2615 = vmatprep.subr.mxu0 0.0
    %2616 = vmatpush1.msra.mxu0 0.0
    %2617 = vmatprep.subr.mxu0 0.0
    %2618 = vmatpush1.msra.mxu0 0.0
    %2619 = vmatprep.subr.mxu0 0.0
    %2620 = vmatpush1.msra.mxu0 0.0
    %2621 = vmatprep.subr.mxu0 0.0
    %2622 = vmatpush1.msra.mxu0 0.0
    %2623 = vmatprep.subr.mxu0 0.0
    %2624 = vmatpush1.msra.mxu0 0.0
    %2625 = vmatprep.subr.mxu0 0.0
    %2626 = vmatpush1.msra.mxu0 0.0
    %2627 = vmatprep.subr.mxu0 0.0
    %2628 = vmatpush1.msra.mxu0 0.0
    %2629 = vmatprep.subr.mxu0 0.0
    %2630 = vmatpush1.msra.mxu0 0.0
    %2631 = vmatprep.subr.mxu0 0.0
    %2632 = vmatpush1.msra.mxu0 0.0
    %2633 = vmatprep.subr.mxu0 0.0
    %2634 = vmatpush1.msra.mxu0 0.0
    %2635 = vmatprep.subr.mxu0 0.0
    %2636 = vmatpush1.msra.mxu0 0.0
    %2637 = vmatprep.mubr.f32.mxu0 0.0
    %2638 = vmatmul.mubr.f32.gmra.mrb[0].mxu0 %v2562
    %v2639 = vpop.f32.mrb[0].mxu0
    %v2640 = vadd.f32 0.0, %v2639
    %v2641 = vpop.f32.mrb[0].mxu0
    %2642 = vmatprep.mubr.f32.mxu0 0.0
    %2643 = vmatmul.mubr.f32.gmra.mrb[0].mxu0 %v2565
    %v2644 = vpop.f32.mrb[0].mxu0
    %v2645 = vadd.f32 0.0, %v2644
    %v2646 = vpop.f32.mrb[0].mxu0
    %2647 = vmatprep.mubr.f32.mxu0 0.0
    %2648 = vmatmul.mubr.f32.gmra.mrb[0].mxu0 %v2568
    %v2649 = vpop.f32.mrb[0].mxu0
    %v2650 = vadd.f32 0.0, %v2649
    %v2651 = vpop.f32.mrb[0].mxu0
    %2652 = vmatprep.mubr.f32.mxu0 0.0
    %2653 = vmatmul.mubr.f32.gmra.mrb[0].mxu0 %v2571
    %v2654 = vpop.f32.mrb[0].mxu0
    %v2655 = vadd.f32 0.0, %v2654
    %v2656 = vpop.f32.mrb[0].mxu0
    %2657 = vdwg.mxu0
    %v2658 = vld [vmem:[%s16] sm:$0xff]
    %v2659 = vld [vmem:[%s16 + $0x8] sm:$0xff]
    %v2660 = vld [vmem:[%s16 + $0x10] sm:$0xff]
    %v2661 = vld [vmem:[%s16 + $0x18] sm:$0xff]
    %2662 = vmatprep.subr.mxu0 0.0
    %2663 = vmatpush1.msra.mxu0 %v2658
    %2664 = vmatprep.subr.mxu0 0.0
    %2665 = vmatpush1.msra.mxu0 %v2659
    %2666 = vmatprep.subr.mxu0 0.0
    %2667 = vmatpush1.msra.mxu0 %v2660
    %2668 = vmatprep.subr.mxu0 0.0
    %2669 = vmatpush1.msra.mxu0 %v2661
    %2670 = vmatprep.subr.mxu0 0.0
    %2671 = vmatpush1.msra.mxu0 0.0
    %2672 = vmatprep.subr.mxu0 0.0
    %2673 = vmatpush1.msra.mxu0 0.0
    %2674 = vmatprep.subr.mxu0 0.0
    %2675 = vmatpush1.msra.mxu0 0.0
    %2676 = vmatprep.subr.mxu0 0.0
    %2677 = vmatpush1.msra.mxu0 0.0
    %2678 = vmatprep.subr.mxu0 0.0
    %2679 = vmatpush1.msra.mxu0 0.0
    %2680 = vmatprep.subr.mxu0 0.0
    %2681 = vmatpush1.msra.mxu0 0.0
    %2682 = vmatprep.subr.mxu0 0.0
    %2683 = vmatpush1.msra.mxu0 0.0
    %2684 = vmatprep.subr.mxu0 0.0
    %2685 = vmatpush1.msra.mxu0 0.0
    %2686 = vmatprep.subr.mxu0 0.0
    %2687 = vmatpush1.msra.mxu0 0.0
    %2688 = vmatprep.subr.mxu0 0.0
    %2689 = vmatpush1.msra.mxu0 0.0
    %2690 = vmatprep.subr.mxu0 0.0
    %2691 = vmatpush1.msra.mxu0 0.0
    %2692 = vmatprep.subr.mxu0 0.0
    %2693 = vmatpush1.msra.mxu0 0.0
    %2694 = vmatprep.subr.mxu0 0.0
    %2695 = vmatpush1.msra.mxu0 0.0
    %2696 = vmatprep.subr.mxu0 0.0
    %2697 = vmatpush1.msra.mxu0 0.0
    %2698 = vmatprep.subr.mxu0 0.0
    %2699 = vmatpush1.msra.mxu0 0.0
    %2700 = vmatprep.subr.mxu0 0.0
    %2701 = vmatpush1.msra.mxu0 0.0
    %2702 = vmatprep.subr.mxu0 0.0
    %2703 = vmatpush1.msra.mxu0 0.0
    %2704 = vmatprep.subr.mxu0 0.0
    %2705 = vmatpush1.msra.mxu0 0.0
    %2706 = vmatprep.subr.mxu0 0.0
    %2707 = vmatpush1.msra.mxu0 0.0
    %2708 = vmatprep.subr.mxu0 0.0
    %2709 = vmatpush1.msra.mxu0 0.0
    %2710 = vmatprep.subr.mxu0 0.0
    %2711 = vmatpush1.msra.mxu0 0.0
    %2712 = vmatprep.subr.mxu0 0.0
    %2713 = vmatpush1.msra.mxu0 0.0
    %2714 = vmatprep.subr.mxu0 0.0
    %2715 = vmatpush1.msra.mxu0 0.0
    %2716 = vmatprep.subr.mxu0 0.0
    %2717 = vmatpush1.msra.mxu0 0.0
    %2718 = vmatprep.subr.mxu0 0.0
    %2719 = vmatpush1.msra.mxu0 0.0
    %2720 = vmatprep.subr.mxu0 0.0
    %2721 = vmatpush1.msra.mxu0 0.0
    %2722 = vmatprep.subr.mxu0 0.0
    %2723 = vmatpush1.msra.mxu0 0.0
    %2724 = vmatprep.subr.mxu0 0.0
    %2725 = vmatpush1.msra.mxu0 0.0
    %2726 = vmatprep.mubr.f32.mxu0 0.0
    %2727 = vmatmul.mubr.f32.gmra.mrb[0].mxu0 %v2562
    %v2728 = vpop.f32.mrb[0].mxu0
    %v2729 = vadd.f32 0.0, %v2728
    %v2730 = vpop.f32.mrb[0].mxu0
    %2731 = vmatprep.mubr.f32.mxu0 0.0
    %2732 = vmatmul.mubr.f32.gmra.mrb[0].mxu0 %v2565
    %v2733 = vpop.f32.mrb[0].mxu0
    %v2734 = vadd.f32 0.0, %v2733
    %v2735 = vpop.f32.mrb[0].mxu0
    %2736 = vmatprep.mubr.f32.mxu0 0.0
    %2737 = vmatmul.mubr.f32.gmra.mrb[0].mxu0 %v2568
    %v2738 = vpop.f32.mrb[0].mxu0
    %v2739 = vadd.f32 0.0, %v2738
    %v2740 = vpop.f32.mrb[0].mxu0
    %2741 = vmatprep.mubr.f32.mxu0 0.0
    %2742 = vmatmul.mubr.f32.gmra.mrb[0].mxu0 %v2571
    %v2743 = vpop.f32.mrb[0].mxu0
    %v2744 = vadd.f32 0.0, %v2743
    %v2745 = vpop.f32.mrb[0].mxu0
    %2746 = vdwg.mxu0
    %v2747 = vlaneseq
    %v2748 = vshrl.u32 %v2747, 7
    %v2749 = vsub.s32 0, %v2748
    %v2750 = vrot.slane %v2554, %v2749
    %v2751 = vadd.f32 %v2750, %v2640
    %v2752 = vadd.f32 %v2750, %v2645
    %v2753 = vtanh.pop %v2751
    %v2754 = vtanh.pop %v2752
    %v2756 = vlaneseq
    %v2757 = vshrl.u32 %v2756, 7
    %v2758 = vsub.s32 0, %v2757
    %v2759 = vrot.slane %v2469, %v2758
    %v2761 = vmul.f32 %v2753, %v2759
    %v2762 = vmul.f32 %v2754, %v2759
    %v2763 = vsel %vm2367, %v2761, 0.0
    %2764 = vadd.xlane.f32.xlu0 %v2763
    %v2765 = vpop.xlane.xlu0 %2764
    %v2766 = vsel %vm2367, %v2762, 0.0
    %2767 = vadd.xlane.f32.xlu0 %v2766
    %v2768 = vpop.xlane.xlu0 %2767
    %v2770 = vlaneseq
    %v2771 = vshrl.u32 %v2770, 7
    %v2772 = vsub.s32 0, %v2771
    %v2773 = vrot.slane %v2470, %v2772
    %v2775 = vadd.f32 %v2765, %v2773
    %v2776 = vadd.f32 %v2768, %v2773
    %vm2777 = vcmask 7168
    %v2778 = vsel %vm2777, %v2775, -inf
    %v2779 = vsel %vm2777, %v2776, -inf
    %v2780 = vmax.f32 %v2778, %v2779
    %v2781 = vrot.slane %v2780, 4
    %v2782 = vmax.f32 %v2780, %v2781
    %v2783 = vrot.slane %v2782, 2
    %v2784 = vmax.f32 %v2782, %v2783
    %v2785 = vrot.slane %v2784, 1
    %v2786 = vmax.f32 %v2784, %v2785
    %v2787 = vsub.f32 %v2775, %v2786
    %v2788 = vsub.f32 %v2776, %v2786
    %v2789 = vmul.f32 %v2787, 1.442695
    %v2790 = vpow.pop %v2789
    %v2791 = vmul.f32 %v2788, 1.442695
    %v2792 = vpow.pop %v2791
    %v2793 = vsel %vm2777, %v2790, 0.0
    %v2794 = vsel %vm2777, %v2792, 0.0
    %v2795 = vadd.f32 %v2793, %v2794
    %v2796 = vrot.slane %v2795, 4
    %v2797 = vadd.f32 %v2795, %v2796
    %v2798 = vrot.slane %v2797, 2
    %v2799 = vadd.f32 %v2797, %v2798
    %v2800 = vrot.slane %v2799, 1
    %v2801 = vadd.f32 %v2799, %v2800
    %v2802 = vrcp.pop %v2801
    %v2803 = vmul.f32 %v2790, %v2802
    %v2804 = vmul.f32 %v2792, %v2802
    %2806 = vset.pattern.permute.xlu0 0
    %2807 = vperm.xlu0 %2806, %v2803
    %v2808 = vpop.permute.xlu0 %2807
    %2811 = vset.pattern.permute.xlu0 0
    %2812 = vperm.xlu0 %2811, %v2804
    %v2813 = vpop.permute.xlu0 %2812
    %v2815 = vmul.f32 %v2808, %v2465
    %v2816 = vmul.f32 %v2813, %v2466
    %v2817 = vsel %vm2367, %v2815, 0.0
    %v2818 = vsel %vm2367, %v2816, 0.0
    %v2819 = vadd.f32 %v2817, %v2818
    %v2820 = vrot.slane %v2819, 4
    %v2821 = vadd.f32 %v2819, %v2820
    %v2822 = vrot.slane %v2821, 2
    %v2823 = vadd.f32 %v2821, %v2822
    %v2824 = vrot.slane %v2823, 1
    %v2825 = vadd.f32 %v2823, %v2824
    %v2826 = vadd.f32 %v2351, %v2825
    %vm2827 = vcmask 253952
    %2828 = vst.msk [vmem:[#allocation4] sm:$0x1] %vm2827, %v2826
    %v2829 = vlaneseq
    %v2830 = vshrl.u32 %v2829, 7
    %v2831 = vsub.s32 1, %v2830
    %v2832 = vrot.slane %v2554, %v2831
    %v2833 = vadd.f32 %v2832, %v2650
    %v2834 = vadd.f32 %v2832, %v2655
    %v2835 = vtanh.pop %v2833
    %v2836 = vtanh.pop %v2834
    %v2837 = vmul.f32 %v2835, %v2759
    %v2838 = vmul.f32 %v2836, %v2759
    %v2839 = vsel %vm2367, %v2837, 0.0
    %2840 = vadd.xlane.f32.xlu0 %v2839
    %v2841 = vpop.xlane.xlu0 %2840
    %v2842 = vsel %vm2367, %v2838, 0.0
    %2843 = vadd.xlane.f32.xlu0 %v2842
    %v2844 = vpop.xlane.xlu0 %2843
    %v2845 = vadd.f32 %v2841, %v2773
    %v2846 = vadd.f32 %v2844, %v2773
    %v2847 = vsel %vm2777, %v2845, -inf
    %v2848 = vsel %vm2777, %v2846, -inf
    %v2849 = vmax.f32 %v2847, %v2848
    %v2850 = vrot.slane %v2849, 4
    %v2851 = vmax.f32 %v2849, %v2850
    %v2852 = vrot.slane %v2851, 2
    %v2853 = vmax.f32 %v2851, %v2852
    %v2854 = vrot.slane %v2853, 1
    %v2855 = vmax.f32 %v2853, %v2854
    %v2856 = vsub.f32 %v2845, %v2855
    %v2857 = vsub.f32 %v2846, %v2855
    %v2858 = vmul.f32 %v2856, 1.442695
    %v2859 = vpow.pop %v2858
    %v2860 = vmul.f32 %v2857, 1.442695
    %v2861 = vpow.pop %v2860
    %v2862 = vsel %vm2777, %v2859, 0.0
    %v2863 = vsel %vm2777, %v2861, 0.0
    %v2864 = vadd.f32 %v2862, %v2863
    %v2865 = vrot.slane %v2864, 4
    %v2866 = vadd.f32 %v2864, %v2865
    %v2867 = vrot.slane %v2866, 2
    %v2868 = vadd.f32 %v2866, %v2867
    %v2869 = vrot.slane %v2868, 1
    %v2870 = vadd.f32 %v2868, %v2869
    %v2871 = vrcp.pop %v2870
    %v2872 = vmul.f32 %v2859, %v2871
    %v2873 = vmul.f32 %v2861, %v2871
    %2875 = vset.pattern.permute.xlu0 0
    %2876 = vperm.xlu0 %2875, %v2872
    %v2877 = vpop.permute.xlu0 %2876
    %2880 = vset.pattern.permute.xlu0 0
    %2881 = vperm.xlu0 %2880, %v2873
    %v2882 = vpop.permute.xlu0 %2881
    %v2884 = vmul.f32 %v2877, %v2467
    %v2885 = vmul.f32 %v2882, %v2468
    %v2886 = vsel %vm2367, %v2884, 0.0
    %v2887 = vsel %vm2367, %v2885, 0.0
    %v2888 = vadd.f32 %v2886, %v2887
    %v2889 = vrot.slane %v2888, 4
    %v2890 = vadd.f32 %v2888, %v2889
    %v2891 = vrot.slane %v2890, 2
    %v2892 = vadd.f32 %v2890, %v2891
    %v2893 = vrot.slane %v2892, 1
    %v2894 = vadd.f32 %v2892, %v2893
    %v2895 = vadd.f32 %v2351, %v2894
    %vm2896 = vcmask 254977
    %2897 = vst.msk [vmem:[#allocation4] sm:$0x2] %vm2896, %v2895
    %v2898 = vld [vmem:[#allocation4] sm:$0x3]
    %v2899 = vld [vmem:[%s15] sm:$0xff]
    %v2900 = vld [vmem:[%s15 + $0x8] sm:$0xff]
    %v2901 = vld [vmem:[%s15 + $0x10] sm:$0xff]
    %v2902 = vld [vmem:[%s15 + $0x18] sm:$0xff]
    %v2904 = vsel %vm2367, %v2898, 0
    %2906 = vmatprep.subr.mxu0 0.0
    %2907 = vmatpush1.msra.mxu0 %v2899
    %2908 = vmatprep.subr.mxu0 0.0
    %2909 = vmatpush1.msra.mxu0 %v2900
    %2910 = vmatprep.subr.mxu0 0.0
    %2911 = vmatpush1.msra.mxu0 %v2901
    %2912 = vmatprep.subr.mxu0 0.0
    %2913 = vmatpush1.msra.mxu0 %v2902
    %2914 = vmatprep.subr.mxu0 0.0
    %2915 = vmatpush1.msra.mxu0 0.0
    %2916 = vmatprep.subr.mxu0 0.0
    %2917 = vmatpush1.msra.mxu0 0.0
    %2918 = vmatprep.subr.mxu0 0.0
    %2919 = vmatpush1.msra.mxu0 0.0
    %2920 = vmatprep.subr.mxu0 0.0
    %2921 = vmatpush1.msra.mxu0 0.0
    %2922 = vmatprep.subr.mxu0 0.0
    %2923 = vmatpush1.msra.mxu0 0.0
    %2924 = vmatprep.subr.mxu0 0.0
    %2925 = vmatpush1.msra.mxu0 0.0
    %2926 = vmatprep.subr.mxu0 0.0
    %2927 = vmatpush1.msra.mxu0 0.0
    %2928 = vmatprep.subr.mxu0 0.0
    %2929 = vmatpush1.msra.mxu0 0.0
    %2930 = vmatprep.subr.mxu0 0.0
    %2931 = vmatpush1.msra.mxu0 0.0
    %2932 = vmatprep.subr.mxu0 0.0
    %2933 = vmatpush1.msra.mxu0 0.0
    %2934 = vmatprep.subr.mxu0 0.0
    %2935 = vmatpush1.msra.mxu0 0.0
    %2936 = vmatprep.subr.mxu0 0.0
    %2937 = vmatpush1.msra.mxu0 0.0
    %2938 = vmatprep.subr.mxu0 0.0
    %2939 = vmatpush1.msra.mxu0 0.0
    %2940 = vmatprep.subr.mxu0 0.0
    %2941 = vmatpush1.msra.mxu0 0.0
    %2942 = vmatprep.subr.mxu0 0.0
    %2943 = vmatpush1.msra.mxu0 0.0
    %2944 = vmatprep.subr.mxu0 0.0
    %2945 = vmatpush1.msra.mxu0 0.0
    %2946 = vmatprep.subr.mxu0 0.0
    %2947 = vmatpush1.msra.mxu0 0.0
    %2948 = vmatprep.subr.mxu0 0.0
    %2949 = vmatpush1.msra.mxu0 0.0
    %2950 = vmatprep.subr.mxu0 0.0
    %2951 = vmatpush1.msra.mxu0 0.0
    %2952 = vmatprep.subr.mxu0 0.0
    %2953 = vmatpush1.msra.mxu0 0.0
    %2954 = vmatprep.subr.mxu0 0.0
    %2955 = vmatpush1.msra.mxu0 0.0
    %2956 = vmatprep.subr.mxu0 0.0
    %2957 = vmatpush1.msra.mxu0 0.0
    %2958 = vmatprep.subr.mxu0 0.0
    %2959 = vmatpush1.msra.mxu0 0.0
    %2960 = vmatprep.subr.mxu0 0.0
    %2961 = vmatpush1.msra.mxu0 0.0
    %2962 = vmatprep.subr.mxu0 0.0
    %2963 = vmatpush1.msra.mxu0 0.0
    %2964 = vmatprep.subr.mxu0 0.0
    %2965 = vmatpush1.msra.mxu0 0.0
    %2966 = vmatprep.subr.mxu0 0.0
    %2967 = vmatpush1.msra.mxu0 0.0
    %2968 = vmatprep.subr.mxu0 0.0
    %2969 = vmatpush1.msra.mxu0 0.0
    %2970 = vmatprep.mubr.f32.mxu0 0.0
    %2971 = vmatmul.mubr.f32.gmra.mrb[0].mxu0 %v2904
    %v2972 = vpop.f32.mrb[0].mxu0
    %v2973 = vadd.f32 0.0, %v2972
    %v2974 = vpop.f32.mrb[0].mxu0
    %2975 = vdwg.mxu0
    %v2976 = vlaneseq
    %v2977 = vshrl.u32 %v2976, 7
    %v2978 = vsub.s32 0, %v2977
    %v2979 = vrot.slane %v2973, %v2978
    %v2980 = vadd.f32 %v2979, %v2729
    %v2981 = vadd.f32 %v2979, %v2734
    %v2982 = vtanh.pop %v2980
    %v2983 = vtanh.pop %v2981
    %v2985 = vlaneseq
    %v2986 = vshrl.u32 %v2985, 7
    %v2987 = vsub.s32 0, %v2986
    %v2988 = vrot.slane %v2471, %v2987
    %v2990 = vmul.f32 %v2982, %v2988
    %v2991 = vmul.f32 %v2983, %v2988
    %v2992 = vsel %vm2367, %v2990, 0.0
    %2993 = vadd.xlane.f32.xlu0 %v2992
    %v2994 = vpop.xlane.xlu0 %2993
    %v2995 = vsel %vm2367, %v2991, 0.0
    %2996 = vadd.xlane.f32.xlu0 %v2995
    %v2997 = vpop.xlane.xlu0 %2996
    %v2999 = vlaneseq
    %v3000 = vshrl.u32 %v2999, 7
    %v3001 = vsub.s32 0, %v3000
    %v3002 = vrot.slane %v2472, %v3001
    %v3004 = vadd.f32 %v2994, %v3002
    %v3005 = vadd.f32 %v2997, %v3002
    %v3006 = vsel %vm2777, %v3004, -inf
    %v3007 = vsel %vm2777, %v3005, -inf
    %v3008 = vmax.f32 %v3006, %v3007
    %v3009 = vrot.slane %v3008, 4
    %v3010 = vmax.f32 %v3008, %v3009
    %v3011 = vrot.slane %v3010, 2
    %v3012 = vmax.f32 %v3010, %v3011
    %v3013 = vrot.slane %v3012, 1
    %v3014 = vmax.f32 %v3012, %v3013
    %v3015 = vsub.f32 %v3004, %v3014
    %v3016 = vsub.f32 %v3005, %v3014
    %v3017 = vmul.f32 %v3015, 1.442695
    %v3018 = vpow.pop %v3017
    %v3019 = vmul.f32 %v3016, 1.442695
    %v3020 = vpow.pop %v3019
    %v3021 = vsel %vm2777, %v3018, 0.0
    %v3022 = vsel %vm2777, %v3020, 0.0
    %v3023 = vadd.f32 %v3021, %v3022
    %v3024 = vrot.slane %v3023, 4
    %v3025 = vadd.f32 %v3023, %v3024
    %v3026 = vrot.slane %v3025, 2
    %v3027 = vadd.f32 %v3025, %v3026
    %v3028 = vrot.slane %v3027, 1
    %v3029 = vadd.f32 %v3027, %v3028
    %v3030 = vrcp.pop %v3029
    %v3031 = vmul.f32 %v3018, %v3030
    %v3032 = vmul.f32 %v3020, %v3030
    %3034 = vset.pattern.permute.xlu0 0
    %3035 = vperm.xlu0 %3034, %v3031
    %v3036 = vpop.permute.xlu0 %3035
    %3039 = vset.pattern.permute.xlu0 0
    %3040 = vperm.xlu0 %3039, %v3032
    %v3041 = vpop.permute.xlu0 %3040
    %v3043 = vmul.f32 %v3036, %v2465
    %v3044 = vmul.f32 %v3041, %v2466
    %v3045 = vsel %vm2367, %v3043, 0.0
    %v3046 = vsel %vm2367, %v3044, 0.0
    %v3047 = vadd.f32 %v3045, %v3046
    %v3048 = vrot.slane %v3047, 4
    %v3049 = vadd.f32 %v3047, %v3048
    %v3050 = vrot.slane %v3049, 2
    %v3051 = vadd.f32 %v3049, %v3050
    %v3052 = vrot.slane %v3051, 1
    %v3053 = vadd.f32 %v3051, %v3052
    %v3054 = vadd.f32 %v2898, %v3053
    %3055 = vst.msk [vmem:[#allocation5] sm:$0x1] %vm2827, %v3054
    %v3056 = vlaneseq
    %v3057 = vshrl.u32 %v3056, 7
    %v3058 = vsub.s32 1, %v3057
    %v3059 = vrot.slane %v2973, %v3058
    %v3060 = vadd.f32 %v3059, %v2739
    %v3061 = vadd.f32 %v3059, %v2744
    %v3062 = vtanh.pop %v3060
    %v3063 = vtanh.pop %v3061
    %v3064 = vmul.f32 %v3062, %v2988
    %v3065 = vmul.f32 %v3063, %v2988
    %v3066 = vsel %vm2367, %v3064, 0.0
    %3067 = vadd.xlane.f32.xlu0 %v3066
    %v3068 = vpop.xlane.xlu0 %3067
    %v3069 = vsel %vm2367, %v3065, 0.0
    %3070 = vadd.xlane.f32.xlu0 %v3069
    %v3071 = vpop.xlane.xlu0 %3070
    %v3072 = vadd.f32 %v3068, %v3002
    %v3073 = vadd.f32 %v3071, %v3002
    %v3074 = vsel %vm2777, %v3072, -inf
    %v3075 = vsel %vm2777, %v3073, -inf
    %v3076 = vmax.f32 %v3074, %v3075
    %v3077 = vrot.slane %v3076, 4
    %v3078 = vmax.f32 %v3076, %v3077
    %v3079 = vrot.slane %v3078, 2
    %v3080 = vmax.f32 %v3078, %v3079
    %v3081 = vrot.slane %v3080, 1
    %v3082 = vmax.f32 %v3080, %v3081
    %v3083 = vsub.f32 %v3072, %v3082
    %v3084 = vsub.f32 %v3073, %v3082
    %v3085 = vmul.f32 %v3083, 1.442695
    %v3086 = vpow.pop %v3085
    %v3087 = vmul.f32 %v3084, 1.442695
    %v3088 = vpow.pop %v3087
    %v3089 = vsel %vm2777, %v3086, 0.0
    %v3090 = vsel %vm2777, %v3088, 0.0
    %v3091 = vadd.f32 %v3089, %v3090
    %v3092 = vrot.slane %v3091, 4
    %v3093 = vadd.f32 %v3091, %v3092
    %v3094 = vrot.slane %v3093, 2
    %v3095 = vadd.f32 %v3093, %v3094
    %v3096 = vrot.slane %v3095, 1
    %v3097 = vadd.f32 %v3095, %v3096
    %v3098 = vrcp.pop %v3097
    %v3099 = vmul.f32 %v3086, %v3098
    %v3100 = vmul.f32 %v3088, %v3098
    %3102 = vset.pattern.permute.xlu0 0
    %3103 = vperm.xlu0 %3102, %v3099
    %v3104 = vpop.permute.xlu0 %3103
    %3107 = vset.pattern.permute.xlu0 0
    %3108 = vperm.xlu0 %3107, %v3100
    %v3109 = vpop.permute.xlu0 %3108
    %v3111 = vmul.f32 %v3104, %v2467
    %v3112 = vmul.f32 %v3109, %v2468
    %v3113 = vsel %vm2367, %v3111, 0.0
    %v3114 = vsel %vm2367, %v3112, 0.0
    %v3115 = vadd.f32 %v3113, %v3114
    %v3116 = vrot.slane %v3115, 4
    %v3117 = vadd.f32 %v3115, %v3116
    %v3118 = vrot.slane %v3117, 2
    %v3119 = vadd.f32 %v3117, %v3118
    %v3120 = vrot.slane %v3119, 1
    %v3121 = vadd.f32 %v3119, %v3120
    %v3122 = vadd.f32 %v2898, %v3121
    %3123 = vst.msk [vmem:[#allocation5] sm:$0x2] %vm2896, %v3122
    %v3124 = vld [vmem:[#allocation5] sm:$0x3]
    %v3125 = vld [vmem:[%s21] sm:$0xff]
    %v3126 = vld [vmem:[%s21 + $0x8] sm:$0xff]
    %v3127 = vld [vmem:[%s21 + $0x10] sm:$0xff]
    %v3128 = vld [vmem:[%s21 + $0x18] sm:$0xff]
    %v3129 = vld [vmem:[%s22] sm:$0x1]
    %v3131 = vlaneseq
    %v3132 = vshrl.u32 %v3131, 7
    %v3133 = vsub.s32 0, %v3132
    %v3134 = vrot.slane %v3129, %v3133
    %v3137 = vsel %vm2367, %v3124, 0
    %3139 = vmatprep.subr.mxu0 0.0
    %3140 = vmatpush1.msra.mxu0 %v3125
    %3141 = vmatprep.subr.mxu0 0.0
    %3142 = vmatpush1.msra.mxu0 %v3126
    %3143 = vmatprep.subr.mxu0 0.0
    %3144 = vmatpush1.msra.mxu0 %v3127
    %3145 = vmatprep.subr.mxu0 0.0
    %3146 = vmatpush1.msra.mxu0 %v3128
    %3147 = vmatprep.subr.mxu0 0.0
    %3148 = vmatpush1.msra.mxu0 0.0
    %3149 = vmatprep.subr.mxu0 0.0
    %3150 = vmatpush1.msra.mxu0 0.0
    %3151 = vmatprep.subr.mxu0 0.0
    %3152 = vmatpush1.msra.mxu0 0.0
    %3153 = vmatprep.subr.mxu0 0.0
    %3154 = vmatpush1.msra.mxu0 0.0
    %3155 = vmatprep.subr.mxu0 0.0
    %3156 = vmatpush1.msra.mxu0 0.0
    %3157 = vmatprep.subr.mxu0 0.0
    %3158 = vmatpush1.msra.mxu0 0.0
    %3159 = vmatprep.subr.mxu0 0.0
    %3160 = vmatpush1.msra.mxu0 0.0
    %3161 = vmatprep.subr.mxu0 0.0
    %3162 = vmatpush1.msra.mxu0 0.0
    %3163 = vmatprep.subr.mxu0 0.0
    %3164 = vmatpush1.msra.mxu0 0.0
    %3165 = vmatprep.subr.mxu0 0.0
    %3166 = vmatpush1.msra.mxu0 0.0
    %3167 = vmatprep.subr.mxu0 0.0
    %3168 = vmatpush1.msra.mxu0 0.0
    %3169 = vmatprep.subr.mxu0 0.0
    %3170 = vmatpush1.msra.mxu0 0.0
    %3171 = vmatprep.subr.mxu0 0.0
    %3172 = vmatpush1.msra.mxu0 0.0
    %3173 = vmatprep.subr.mxu0 0.0
    %3174 = vmatpush1.msra.mxu0 0.0
    %3175 = vmatprep.subr.mxu0 0.0
    %3176 = vmatpush1.msra.mxu0 0.0
    %3177 = vmatprep.subr.mxu0 0.0
    %3178 = vmatpush1.msra.mxu0 0.0
    %3179 = vmatprep.subr.mxu0 0.0
    %3180 = vmatpush1.msra.mxu0 0.0
    %3181 = vmatprep.subr.mxu0 0.0
    %3182 = vmatpush1.msra.mxu0 0.0
    %3183 = vmatprep.subr.mxu0 0.0
    %3184 = vmatpush1.msra.mxu0 0.0
    %3185 = vmatprep.subr.mxu0 0.0
    %3186 = vmatpush1.msra.mxu0 0.0
    %3187 = vmatprep.subr.mxu0 0.0
    %3188 = vmatpush1.msra.mxu0 0.0
    %3189 = vmatprep.subr.mxu0 0.0
    %3190 = vmatpush1.msra.mxu0 0.0
    %3191 = vmatprep.subr.mxu0 0.0
    %3192 = vmatpush1.msra.mxu0 0.0
    %3193 = vmatprep.subr.mxu0 0.0
    %3194 = vmatpush1.msra.mxu0 0.0
    %3195 = vmatprep.subr.mxu0 0.0
    %3196 = vmatpush1.msra.mxu0 0.0
    %3197 = vmatprep.subr.mxu0 0.0
    %3198 = vmatpush1.msra.mxu0 0.0
    %3199 = vmatprep.subr.mxu0 0.0
    %3200 = vmatpush1.msra.mxu0 0.0
    %3201 = vmatprep.subr.mxu0 0.0
    %3202 = vmatpush1.msra.mxu0 0.0
    %3203 = vmatprep.mubr.f32.mxu0 0.0
    %3204 = vmatmul.mubr.f32.gmra.mrb[0].mxu0 %v3137
    %v3205 = vpop.f32.mrb[0].mxu0
    %v3206 = vadd.f32 %v3134, %v3205
    %v3207 = vpop.f32.mrb[0].mxu0
    %3208 = vdwg.mxu0
    %vm3209 = vcmask 74752
    %3210 = vst.msk [vmem:[#allocation11] sm:$0x3] %vm3209, %v3206
    // Predicated region
    $region98: #{vqa_forward.3} parent=1 // pred_check
      _
    $region99: #{vqa_forward.3} parent=1 // pred_check_branch
      %3212 = sbr.rel (0) target = $region101
    $region100: #{vqa_forward.3} parent=1 // pred_region
      %s3214 = ssub.s32 32, 32
      %3215 = vsyncadd [#allocation9], %s3214
      %s3217 = sshll.u32 [#allocation11], 4
      %s3218 = int_to_ptr.vmem [resolvable:$true] %s3217
      %3220 = dma.vmem_to_hbm [thread:$0]  %s3218, 32, %s23, [#allocation9]
    $region101: #{vqa_forward.3} parent=1 // pred_fallthru
      _
    // Predicated region
    $region102: #{vqa_forward.3} parent=1 // pred_check
      _
    $region103: #{vqa_forward.3} parent=1 // pred_check_branch
      %3222 = sbr.rel (0) target = $region105
    $region104: #{vqa_forward.3} parent=1 // pred_region
      %3223 = dma.done [#allocation9], 32
    $region105: #{vqa_forward.3} parent=1 // pred_fallthru
      _
    %3224 = vsyncpa [#allocation9], 1
    %3225 = vsyncpa [#allocation10], 1

</llo_original>
